<compile_context>
chip_gen: v5e
topology: v5e:2x2
jax: 0.10.0
libtpu: 0.0.40
codegen_flags: <defaults>
</compile_context>

<pallas_src>
import jax
import jax.numpy as jnp
from jax.experimental import pallas as pl
from jax.experimental.pallas import tpu as pltpu

C_IN, C_MID, C_OUT = 1024, 512, 256
K, PAD = 5, 2
EPS = 1e-5


def _pick_vmem_limit():
    """Scoped-VMEM request that stays under physical VMEM on every generation
    (v7x: 64 MiB per TensorCore; v5e/v6e: 128 MiB)."""
    try:
        cap = int(pltpu.get_tpu_info().vmem_capacity_bytes)
    except Exception:
        cap = 64 << 20  # conservative fallback (v7x-sized)
    return max(32 << 20, min((cap * 3) // 4, 96 << 20))


_COMPILER_PARAMS = pltpu.CompilerParams(
    dimension_semantics=("parallel",),
    vmem_limit_bytes=_pick_vmem_limit(),
)


def _conv_same(x_bf16, w_ref):
    """'Same'-padded 1D conv as K shifted MXU matmuls, f32 accumulation.

    x_bf16: (1, L, Cin) bf16 value.  w_ref: (K, Cin, Cout) bf16 ref.
    Returns (1, L, Cout) f32.

    y[l] = sum_k x[l + k - PAD] @ w[k]  (zero padding at the boundaries).
    The center tap initializes the accumulator; boundary taps are a full-tile
    matmul, an XLU sublane roll (t_rolled[l] = t[l + s]), and a row mask that
    zeroes the rows whose shifted source would be out of range.  Everything
    stays full-tile and in registers; a single store happens in the caller.
    """
    L = x_bf16.shape[1]
    cout = w_ref.shape[2]
    x2 = x_bf16.reshape(L, -1)  # drop leading unit dim (layout no-op)

    def tap(k):
        return jnp.dot(x2, w_ref[k], preferred_element_type=jnp.float32)

    acc = tap(PAD)                                              # (L, Cout)
    row = jax.lax.broadcasted_iota(jnp.int32, (L, 1), 0)
    for k in range(K):
        if k == PAD:
            continue
        s = k - PAD                               # shift in {-2, -1, 1, 2}
        lo, hi = max(0, -s), L - max(0, s)        # valid output rows
        if hi <= lo:
            continue
        t = pltpu.roll(tap(k), shift=(-s) % L, axis=0)   # t[l] = x[l+s] @ w[k]
        acc = acc + jnp.where((row >= lo) & (row < hi), t, 0.0)
    return acc.reshape(1, L, cout)


# ---------------- stage 1: conv1 + per-sample BN1 partial stats -------------
def conv1_stats_kernel(x_ref, w1_ref, acc1_ref, s_ref, ss_ref):
    a = _conv_same(x_ref[...], w1_ref)
    acc1_ref[...] = a
    s_ref[...] = jnp.sum(a, axis=1, keepdims=True)
    ss_ref[...] = jnp.sum(a * a, axis=1, keepdims=True)


# ------- stage 2: BN1 (precomputed scale/shift) + ReLU + conv2 + stats ------
def bn1_conv2_stats_kernel(a1_ref, sc1_ref, sh1_ref, w2_ref,
                           acc2_ref, s_ref, ss_ref):
    h1 = jnp.maximum(a1_ref[...] * sc1_ref[...] + sh1_ref[...], 0.0)
    a = _conv_same(h1.astype(jnp.bfloat16), w2_ref)
    acc2_ref[...] = a
    s_ref[...] = jnp.sum(a, axis=1, keepdims=True)
    ss_ref[...] = jnp.sum(a * a, axis=1, keepdims=True)


# ---------------- stage 3: BN2 + ReLU + Linear(256 -> 1) --------------------
def bn2_fc_kernel(a2_ref, sc2_ref, sh2_ref, wf_ref, out_ref):
    h2 = jnp.maximum(a2_ref[...] * sc2_ref[...] + sh2_ref[...], 0.0)
    L = h2.shape[1]
    # Contract the channel dim on the MXU instead of a cross-lane reduction.
    y = jnp.dot(h2.reshape(L, C_OUT), wf_ref[...],
                preferred_element_type=jnp.float32)
    out_ref[...] = y.reshape(1, L, 1)


def _bn_scale_shift(s, ss, gamma, beta, n):
    """Combine per-sample partial sums into per-channel BN scale/shift
    (training-mode batch statistics, biased variance)."""
    mean = jnp.sum(s, axis=(0, 1)) / n
    var = jnp.maximum(jnp.sum(ss, axis=(0, 1)) / n - mean * mean, 0.0)
    inv = jax.lax.rsqrt(var + EPS)
    scale = gamma.reshape(-1) * inv
    shift = beta.reshape(-1) - mean * scale
    c = scale.shape[0]
    return scale.reshape(1, 1, c), shift.reshape(1, 1, c)


@jax.jit
def cnn_batchnorm_forward(x, params):
    """x: (B, L, 1024) float32 -> (B, L) float32."""
    (w1, b1, g1, bt1, w2, b2, g2, bt2, wf, bf) = params
    del b1, b2  # conv biases cancel exactly under training-mode BatchNorm
    B, L, _ = x.shape
    n = B * L

    xb = x.astype(jnp.bfloat16)
    w1b = w1.astype(jnp.bfloat16)
    w2b = w2.astype(jnp.bfloat16)

    # -- stage 1 --------------------------------------------------------------
    acc1, s1, ss1 = pl.pallas_call(
        conv1_stats_kernel,
        grid=(B,),
        in_specs=[
            pl.BlockSpec((1, L, C_IN), lambda b: (b, 0, 0)),
            pl.BlockSpec((K, C_IN, C_MID), lambda b: (0, 0, 0)),
        ],
        out_specs=[
            pl.BlockSpec((1, L, C_MID), lambda b: (b, 0, 0)),
            pl.BlockSpec((1, 1, C_MID), lambda b: (b, 0, 0)),
            pl.BlockSpec((1, 1, C_MID), lambda b: (b, 0, 0)),
        ],
        out_shape=(
            jax.ShapeDtypeStruct((B, L, C_MID), jnp.float32),
            jax.ShapeDtypeStruct((B, 1, C_MID), jnp.float32),
            jax.ShapeDtypeStruct((B, 1, C_MID), jnp.float32),
        ),
        compiler_params=_COMPILER_PARAMS,
    )(xb, w1b)
    scale1, shift1 = _bn_scale_shift(s1, ss1, g1, bt1, n)

    # -- stage 2 --------------------------------------------------------------
    acc2, s2, ss2 = pl.pallas_call(
        bn1_conv2_stats_kernel,
        grid=(B,),
        in_specs=[
            pl.BlockSpec((1, L, C_MID), lambda b: (b, 0, 0)),
            pl.BlockSpec((1, 1, C_MID), lambda b: (0, 0, 0)),
            pl.BlockSpec((1, 1, C_MID), lambda b: (0, 0, 0)),
            pl.BlockSpec((K, C_MID, C_OUT), lambda b: (0, 0, 0)),
        ],
        out_specs=[
            pl.BlockSpec((1, L, C_OUT), lambda b: (b, 0, 0)),
            pl.BlockSpec((1, 1, C_OUT), lambda b: (b, 0, 0)),
            pl.BlockSpec((1, 1, C_OUT), lambda b: (b, 0, 0)),
        ],
        out_shape=(
            jax.ShapeDtypeStruct((B, L, C_OUT), jnp.float32),
            jax.ShapeDtypeStruct((B, 1, C_OUT), jnp.float32),
            jax.ShapeDtypeStruct((B, 1, C_OUT), jnp.float32),
        ),
        compiler_params=_COMPILER_PARAMS,
    )(acc1, scale1, shift1, w2b)
    scale2, shift2 = _bn_scale_shift(s2, ss2, g2, bt2, n)

    # -- stage 3 --------------------------------------------------------------
    out = pl.pallas_call(
        bn2_fc_kernel,
        grid=(B,),
        in_specs=[
            pl.BlockSpec((1, L, C_OUT), lambda b: (b, 0, 0)),
            pl.BlockSpec((1, 1, C_OUT), lambda b: (0, 0, 0)),
            pl.BlockSpec((1, 1, C_OUT), lambda b: (0, 0, 0)),
            pl.BlockSpec((C_OUT, 1), lambda b: (0, 0)),
        ],
        out_specs=pl.BlockSpec((1, L, 1), lambda b: (b, 0, 0)),
        out_shape=jax.ShapeDtypeStruct((B, L, 1), jnp.float32),
        compiler_params=_COMPILER_PARAMS,
    )(acc2, scale2, shift2, wf)

    # Final Linear bias added outside the kernel (scalar broadcast, fused by XLA).
    return out[:, :, 0] + bf[0, 0]


def ref_forward(x, params):
    """Pure-JAX reference implementing the PyTorch spec math (conv bias +
    centered two-pass variance), with the same bf16-on-the-MXU precision
    choices as the kernel so the comparison isolates kernel plumbing
    (and validates the bias-cancellation / one-pass-variance rewrites)."""
    (w1, b1, g1, bt1, w2, b2, g2, bt2, wf, bf) = params
    B, L, _ = x.shape

    def conv(h, w, b):
        hb = h.astype(jnp.bfloat16)
        wb = w.astype(jnp.bfloat16)
        hp = jnp.pad(hb, ((0, 0), (PAD, PAD), (0, 0)))
        acc = sum(jax.lax.dot_general(hp[:, k:k + L, :], wb[k],
                                      dimension_numbers=(((2,), (0,)), ((), ())),
                                      preferred_element_type=jnp.float32)
                  for k in range(K))
        return acc + b[0][None, None, :]

    def bn_relu(a, g, bt):
        m = jnp.mean(a, axis=(0, 1), keepdims=True)
        v = jnp.mean((a - m) ** 2, axis=(0, 1), keepdims=True)
        y = (a - m) * jax.lax.rsqrt(v + EPS) * g[0][None, None, :] \
            + bt[0][None, None, :]
        return jnp.maximum(y, 0.0)

    h1 = bn_relu(conv(x, w1, b1), g1, bt1)
    h2 = bn_relu(conv(h1, w2, b2), g2, bt2)
    return jnp.einsum('blc,co->blo', h2, wf)[:, :, 0] + bf[0, 0]


def init_params(key):
    ks = jax.random.split(key, 9)
    # conv weights stored as (K, Cin, Cout); PyTorch stores (Cout, Cin, K).
    w1 = 0.02 * jax.random.normal(ks[0], (K, C_IN, C_MID), jnp.float32)
    b1 = 0.10 * jax.random.normal(ks[1], (1, C_MID), jnp.float32)
    g1 = 1.0 + 0.10 * jax.random.normal(ks[2], (1, C_MID), jnp.float32)
    bt1 = 0.10 * jax.random.normal(ks[3], (1, C_MID), jnp.float32)
    w2 = 0.02 * jax.random.normal(ks[4], (K, C_MID, C_OUT), jnp.float32)
    b2 = 0.10 * jax.random.normal(ks[5], (1, C_OUT), jnp.float32)
    g2 = 1.0 + 0.10 * jax.random.normal(ks[6], (1, C_OUT), jnp.float32)
    bt2 = 0.10 * jax.random.normal(ks[7], (1, C_OUT), jnp.float32)
    wf = 0.05 * jax.random.normal(ks[8], (C_OUT, 1), jnp.float32)  # Linear(256,1)
    bf = jnp.full((1, 1), 0.1, jnp.float32)
    return (w1, b1, g1, bt1, w2, b2, g2, bt2, wf, bf)


if __name__ == "__main__":
    key = jax.random.PRNGKey(0)
    kx, kp = jax.random.split(key)
    B, L = 2, 8
    x = jax.random.normal(kx, (B, L, C_IN), jnp.float32)
    params = init_params(kp)

    out = jax.block_until_ready(cnn_batchnorm_forward(x, params))
    ref = jax.block_until_ready(ref_forward(x, params))

    assert out.shape == (B, L), out.shape
    err = float(jnp.max(jnp.abs(out - ref)))
    assert err < 5e-3, f"max abs err {err}"
    print("KERNEL_OK")
</pallas_src>

<mosaic_0001>
module attributes {stable_mosaic.version = 11 : i64} {
  func.func @conv1_stats_kernel(%arg0: i32, %arg1: memref<1x8x1024xbf16, #tpu.memory_space<vmem>>, %arg2: memref<5x1024x512xbf16, #tpu.memory_space<vmem>>, %arg3: memref<1x8x512xf32, #tpu.memory_space<vmem>>, %arg4: memref<1x1x512xf32, #tpu.memory_space<vmem>>, %arg5: memref<1x1x512xf32, #tpu.memory_space<vmem>>) attributes {dimension_semantics = [#tpu.dimension_semantics<parallel>], iteration_bounds = array<i64: 2>, scalar_prefetch = 0 : i64, scratch_operands = 0 : i64, tpu.core_type = #tpu.core_type<tc>, window_params = [{transform_indices = @transform_0, window_bounds = array<i64: 1, 8, 1024>}, {pipeline_mode = #tpu.pipeline_mode<synchronous>, transform_indices = @transform_1, window_bounds = array<i64: 5, 1024, 512>}, {transform_indices = @transform_2, window_bounds = array<i64: 1, 8, 512>}, {transform_indices = @transform_3, window_bounds = array<i64: 1, 1, 512>}, {transform_indices = @transform_4, window_bounds = array<i64: 1, 1, 512>}]} {
    %c0 = arith.constant 0 : index
    %c0_0 = arith.constant 0 : index
    %c0_1 = arith.constant 0 : index
    %0 = vector.load %arg1[%c0, %c0_0, %c0_1] : memref<1x8x1024xbf16, #tpu.memory_space<vmem>>, vector<1x8x1024xbf16>
    %1 = vector.shape_cast %0 : vector<1x8x1024xbf16> to vector<8x1024xbf16>
    %c2 = arith.constant 2 : index
    %c0_2 = arith.constant 0 : index
    %c0_3 = arith.constant 0 : index
    %2 = vector.load %arg2[%c2, %c0_2, %c0_3] : memref<5x1024x512xbf16, #tpu.memory_space<vmem>>, vector<1x1024x512xbf16>
    %3 = vector.shape_cast %2 : vector<1x1024x512xbf16> to vector<1024x512xbf16>
    %cst = arith.constant dense<0.000000e+00> : vector<8x512xf32>
    %4 = tpu.matmul %1, %3, %cst {dimension_numbers = #tpu.dot_dimension_numbers<[1], [0], [0], [1], [0, 0, 1, 1], [], []>} : vector<8x1024xbf16>, vector<1024x512xbf16>, vector<8x512xf32> -> vector<8x512xf32>
    %5 = tpu.iota {dimensions = array<i32: 0>} : vector<8x1xi32>
    %c0_4 = arith.constant 0 : index
    %c0_5 = arith.constant 0 : index
    %c0_6 = arith.constant 0 : index
    %6 = vector.load %arg2[%c0_4, %c0_5, %c0_6] : memref<5x1024x512xbf16, #tpu.memory_space<vmem>>, vector<1x1024x512xbf16>
    %7 = vector.shape_cast %6 : vector<1x1024x512xbf16> to vector<1024x512xbf16>
    %cst_7 = arith.constant dense<0.000000e+00> : vector<8x512xf32>
    %8 = tpu.matmul %1, %7, %cst_7 {dimension_numbers = #tpu.dot_dimension_numbers<[1], [0], [0], [1], [0, 0, 1, 1], [], []>} : vector<8x1024xbf16>, vector<1024x512xbf16>, vector<8x512xf32> -> vector<8x512xf32>
    %c2_i32 = arith.constant 2 : i32
    %9 = tpu.dynamic_rotate %8 by %c2_i32 dim 0 : vector<8x512xf32>, i32 -> vector<8x512xf32>
    %c2_i32_8 = arith.constant 2 : i32
    %10 = vector.broadcast %c2_i32_8 : i32 to vector<8x1xi32>
    %11 = arith.cmpi sge, %5, %10 : vector<8x1xi32>
    %c8_i32 = arith.constant 8 : i32
    %12 = vector.broadcast %c8_i32 : i32 to vector<8x1xi32>
    %13 = arith.cmpi slt, %5, %12 : vector<8x1xi32>
    %14 = arith.andi %11, %13 : vector<8x1xi1>
    %cst_9 = arith.constant 0.000000e+00 : f32
    %15 = vector.shape_cast %14 : vector<8x1xi1> to vector<8x1xi1>
    %16 = vector.broadcast %15 : vector<8x1xi1> to vector<8x512xi1>
    %17 = vector.broadcast %cst_9 : f32 to vector<8x512xf32>
    %18 = arith.select %16, %9, %17 : vector<8x512xi1>, vector<8x512xf32>
    %19 = arith.addf %4, %18 : vector<8x512xf32>
    %c1 = arith.constant 1 : index
    %c0_10 = arith.constant 0 : index
    %c0_11 = arith.constant 0 : index
    %20 = vector.load %arg2[%c1, %c0_10, %c0_11] : memref<5x1024x512xbf16, #tpu.memory_space<vmem>>, vector<1x1024x512xbf16>
    %21 = vector.shape_cast %20 : vector<1x1024x512xbf16> to vector<1024x512xbf16>
    %cst_12 = arith.constant dense<0.000000e+00> : vector<8x512xf32>
    %22 = tpu.matmul %1, %21, %cst_12 {dimension_numbers = #tpu.dot_dimension_numbers<[1], [0], [0], [1], [0, 0, 1, 1], [], []>} : vector<8x1024xbf16>, vector<1024x512xbf16>, vector<8x512xf32> -> vector<8x512xf32>
    %c1_i32 = arith.constant 1 : i32
    %23 = tpu.dynamic_rotate %22 by %c1_i32 dim 0 : vector<8x512xf32>, i32 -> vector<8x512xf32>
    %c1_i32_13 = arith.constant 1 : i32
    %24 = vector.broadcast %c1_i32_13 : i32 to vector<8x1xi32>
    %25 = arith.cmpi sge, %5, %24 : vector<8x1xi32>
    %c8_i32_14 = arith.constant 8 : i32
    %26 = vector.broadcast %c8_i32_14 : i32 to vector<8x1xi32>
    %27 = arith.cmpi slt, %5, %26 : vector<8x1xi32>
    %28 = arith.andi %25, %27 : vector<8x1xi1>
    %cst_15 = arith.constant 0.000000e+00 : f32
    %29 = vector.shape_cast %28 : vector<8x1xi1> to vector<8x1xi1>
    %30 = vector.broadcast %29 : vector<8x1xi1> to vector<8x512xi1>
    %31 = vector.broadcast %cst_15 : f32 to vector<8x512xf32>
    %32 = arith.select %30, %23, %31 : vector<8x512xi1>, vector<8x512xf32>
    %33 = arith.addf %19, %32 : vector<8x512xf32>
    %c3 = arith.constant 3 : index
    %c0_16 = arith.constant 0 : index
    %c0_17 = arith.constant 0 : index
    %34 = vector.load %arg2[%c3, %c0_16, %c0_17] : memref<5x1024x512xbf16, #tpu.memory_space<vmem>>, vector<1x1024x512xbf16>
    %35 = vector.shape_cast %34 : vector<1x1024x512xbf16> to vector<1024x512xbf16>
    %cst_18 = arith.constant dense<0.000000e+00> : vector<8x512xf32>
    %36 = tpu.matmul %1, %35, %cst_18 {dimension_numbers = #tpu.dot_dimension_numbers<[1], [0], [0], [1], [0, 0, 1, 1], [], []>} : vector<8x1024xbf16>, vector<1024x512xbf16>, vector<8x512xf32> -> vector<8x512xf32>
    %c7_i32 = arith.constant 7 : i32
    %37 = tpu.dynamic_rotate %36 by %c7_i32 dim 0 : vector<8x512xf32>, i32 -> vector<8x512xf32>
    %c0_i32 = arith.constant 0 : i32
    %38 = vector.broadcast %c0_i32 : i32 to vector<8x1xi32>
    %39 = arith.cmpi sge, %5, %38 : vector<8x1xi32>
    %c7_i32_19 = arith.constant 7 : i32
    %40 = vector.broadcast %c7_i32_19 : i32 to vector<8x1xi32>
    %41 = arith.cmpi slt, %5, %40 : vector<8x1xi32>
    %42 = arith.andi %39, %41 : vector<8x1xi1>
    %cst_20 = arith.constant 0.000000e+00 : f32
    %43 = vector.shape_cast %42 : vector<8x1xi1> to vector<8x1xi1>
    %44 = vector.broadcast %43 : vector<8x1xi1> to vector<8x512xi1>
    %45 = vector.broadcast %cst_20 : f32 to vector<8x512xf32>
    %46 = arith.select %44, %37, %45 : vector<8x512xi1>, vector<8x512xf32>
    %47 = arith.addf %33, %46 : vector<8x512xf32>
    %c4 = arith.constant 4 : index
    %c0_21 = arith.constant 0 : index
    %c0_22 = arith.constant 0 : index
    %48 = vector.load %arg2[%c4, %c0_21, %c0_22] : memref<5x1024x512xbf16, #tpu.memory_space<vmem>>, vector<1x1024x512xbf16>
    %49 = vector.shape_cast %48 : vector<1x1024x512xbf16> to vector<1024x512xbf16>
    %cst_23 = arith.constant dense<0.000000e+00> : vector<8x512xf32>
    %50 = tpu.matmul %1, %49, %cst_23 {dimension_numbers = #tpu.dot_dimension_numbers<[1], [0], [0], [1], [0, 0, 1, 1], [], []>} : vector<8x1024xbf16>, vector<1024x512xbf16>, vector<8x512xf32> -> vector<8x512xf32>
    %c6_i32 = arith.constant 6 : i32
    %51 = tpu.dynamic_rotate %50 by %c6_i32 dim 0 : vector<8x512xf32>, i32 -> vector<8x512xf32>
    %c0_i32_24 = arith.constant 0 : i32
    %52 = vector.broadcast %c0_i32_24 : i32 to vector<8x1xi32>
    %53 = arith.cmpi sge, %5, %52 : vector<8x1xi32>
    %c6_i32_25 = arith.constant 6 : i32
    %54 = vector.broadcast %c6_i32_25 : i32 to vector<8x1xi32>
    %55 = arith.cmpi slt, %5, %54 : vector<8x1xi32>
    %56 = arith.andi %53, %55 : vector<8x1xi1>
    %cst_26 = arith.constant 0.000000e+00 : f32
    %57 = vector.shape_cast %56 : vector<8x1xi1> to vector<8x1xi1>
    %58 = vector.broadcast %57 : vector<8x1xi1> to vector<8x512xi1>
    %59 = vector.broadcast %cst_26 : f32 to vector<8x512xf32>
    %60 = arith.select %58, %51, %59 : vector<8x512xi1>, vector<8x512xf32>
    %61 = arith.addf %47, %60 : vector<8x512xf32>
    %62 = vector.shape_cast %61 : vector<8x512xf32> to vector<1x8x512xf32>
    %c0_27 = arith.constant 0 : index
    %c0_28 = arith.constant 0 : index
    %c0_29 = arith.constant 0 : index
    %63 = vector.load %arg3[%c0_27, %c0_28, %c0_29] : memref<1x8x512xf32, #tpu.memory_space<vmem>>, vector<1x8x512xf32>
    tpu.vector_store %arg3[%c0_27, %c0_28, %c0_29], %62 {strides = array<i32>} : memref<1x8x512xf32, #tpu.memory_space<vmem>>, vector<1x8x512xf32>,
    %cst_30 = arith.constant dense<0.000000e+00> : vector<1x512xf32>
    %64 = vector.multi_reduction <add>, %62, %cst_30 [1] : vector<1x8x512xf32> to vector<1x512xf32>
    %65 = vector.shape_cast %64 : vector<1x512xf32> to vector<1x1x512xf32>
    %c0_31 = arith.constant 0 : index
    %c0_32 = arith.constant 0 : index
    %c0_33 = arith.constant 0 : index
    %66 = vector.load %arg4[%c0_31, %c0_32, %c0_33] : memref<1x1x512xf32, #tpu.memory_space<vmem>>, vector<1x1x512xf32>
    tpu.vector_store %arg4[%c0_31, %c0_32, %c0_33], %65 {strides = array<i32>} : memref<1x1x512xf32, #tpu.memory_space<vmem>>, vector<1x1x512xf32>,
    %67 = arith.mulf %62, %62 : vector<1x8x512xf32>
    %cst_34 = arith.constant dense<0.000000e+00> : vector<1x512xf32>
    %68 = vector.multi_reduction <add>, %67, %cst_34 [1] : vector<1x8x512xf32> to vector<1x512xf32>
    %69 = vector.shape_cast %68 : vector<1x512xf32> to vector<1x1x512xf32>
    %c0_35 = arith.constant 0 : index
    %c0_36 = arith.constant 0 : index
    %c0_37 = arith.constant 0 : index
    %70 = vector.load %arg5[%c0_35, %c0_36, %c0_37] : memref<1x1x512xf32, #tpu.memory_space<vmem>>, vector<1x1x512xf32>
    tpu.vector_store %arg5[%c0_35, %c0_36, %c0_37], %69 {strides = array<i32>} : memref<1x1x512xf32, #tpu.memory_space<vmem>>, vector<1x1x512xf32>,
    return
  }
  func.func @transform_0(%arg0: i32) -> (i32, i32, i32) {
    %c0_i32 = arith.constant 0 : i32
    %c0_i32_0 = arith.constant 0 : i32
    %c0_i32_1 = arith.constant 0 : i32
    return %arg0, %c0_i32, %c0_i32_0 : i32, i32, i32
  }
  func.func @transform_1(%arg0: i32) -> (i32, i32, i32) {
    %c0_i32 = arith.constant 0 : i32
    %c0_i32_0 = arith.constant 0 : i32
    %c0_i32_1 = arith.constant 0 : i32
    %c0_i32_2 = arith.constant 0 : i32
    return %c0_i32, %c0_i32_0, %c0_i32_1 : i32, i32, i32
  }
  func.func @transform_2(%arg0: i32) -> (i32, i32, i32) {
    %c0_i32 = arith.constant 0 : i32
    %c0_i32_0 = arith.constant 0 : i32
    %c0_i32_1 = arith.constant 0 : i32
    return %arg0, %c0_i32, %c0_i32_0 : i32, i32, i32
  }
  func.func @transform_3(%arg0: i32) -> (i32, i32, i32) {
    %c0_i32 = arith.constant 0 : i32
    %c0_i32_0 = arith.constant 0 : i32
    %c0_i32_1 = arith.constant 0 : i32
    return %arg0, %c0_i32, %c0_i32_0 : i32, i32, i32
  }
  func.func @transform_4(%arg0: i32) -> (i32, i32, i32) {
    %c0_i32 = arith.constant 0 : i32
    %c0_i32_0 = arith.constant 0 : i32
    %c0_i32_1 = arith.constant 0 : i32
    return %arg0, %c0_i32, %c0_i32_0 : i32, i32, i32
  }
}

module attributes {stable_mosaic.version = 11 : i64} {
  func.func @bn1_conv2_stats_kernel(%arg0: i32, %arg1: memref<1x8x512xf32, #tpu.memory_space<vmem>>, %arg2: memref<1x1x512xf32, #tpu.memory_space<vmem>>, %arg3: memref<1x1x512xf32, #tpu.memory_space<vmem>>, %arg4: memref<5x512x256xbf16, #tpu.memory_space<vmem>>, %arg5: memref<1x8x256xf32, #tpu.memory_space<vmem>>, %arg6: memref<1x1x256xf32, #tpu.memory_space<vmem>>, %arg7: memref<1x1x256xf32, #tpu.memory_space<vmem>>) attributes {dimension_semantics = [#tpu.dimension_semantics<parallel>], iteration_bounds = array<i64: 2>, scalar_prefetch = 0 : i64, scratch_operands = 0 : i64, tpu.core_type = #tpu.core_type<tc>, window_params = [{transform_indices = @transform_0, window_bounds = array<i64: 1, 8, 512>}, {pipeline_mode = #tpu.pipeline_mode<synchronous>, transform_indices = @transform_1, window_bounds = array<i64: 1, 1, 512>}, {pipeline_mode = #tpu.pipeline_mode<synchronous>, transform_indices = @transform_2, window_bounds = array<i64: 1, 1, 512>}, {pipeline_mode = #tpu.pipeline_mode<synchronous>, transform_indices = @transform_3, window_bounds = array<i64: 5, 512, 256>}, {transform_indices = @transform_4, window_bounds = array<i64: 1, 8, 256>}, {transform_indices = @transform_5, window_bounds = array<i64: 1, 1, 256>}, {transform_indices = @transform_6, window_bounds = array<i64: 1, 1, 256>}]} {
    %c0 = arith.constant 0 : index
    %c0_0 = arith.constant 0 : index
    %c0_1 = arith.constant 0 : index
    %0 = vector.load %arg1[%c0, %c0_0, %c0_1] : memref<1x8x512xf32, #tpu.memory_space<vmem>>, vector<1x8x512xf32>
    %c0_2 = arith.constant 0 : index
    %c0_3 = arith.constant 0 : index
    %c0_4 = arith.constant 0 : index
    %1 = vector.load %arg2[%c0_2, %c0_3, %c0_4] : memref<1x1x512xf32, #tpu.memory_space<vmem>>, vector<1x1x512xf32>
    %2 = vector.broadcast %1 : vector<1x1x512xf32> to vector<1x8x512xf32>
    %3 = arith.mulf %0, %2 : vector<1x8x512xf32>
    %c0_5 = arith.constant 0 : index
    %c0_6 = arith.constant 0 : index
    %c0_7 = arith.constant 0 : index
    %4 = vector.load %arg3[%c0_5, %c0_6, %c0_7] : memref<1x1x512xf32, #tpu.memory_space<vmem>>, vector<1x1x512xf32>
    %5 = vector.broadcast %4 : vector<1x1x512xf32> to vector<1x8x512xf32>
    %6 = arith.addf %3, %5 : vector<1x8x512xf32>
    %cst = arith.constant 0.000000e+00 : f32
    %7 = vector.broadcast %cst : f32 to vector<1x8x512xf32>
    %8 = arith.maximumf %6, %7 : vector<1x8x512xf32>
    %9 = arith.truncf %8 : vector<1x8x512xf32> to vector<1x8x512xbf16>
    %10 = vector.shape_cast %9 : vector<1x8x512xbf16> to vector<8x512xbf16>
    %c2 = arith.constant 2 : index
    %c0_8 = arith.constant 0 : index
    %c0_9 = arith.constant 0 : index
    %11 = vector.load %arg4[%c2, %c0_8, %c0_9] : memref<5x512x256xbf16, #tpu.memory_space<vmem>>, vector<1x512x256xbf16>
    %12 = vector.shape_cast %11 : vector<1x512x256xbf16> to vector<512x256xbf16>
    %cst_10 = arith.constant dense<0.000000e+00> : vector<8x256xf32>
    %13 = tpu.matmul %10, %12, %cst_10 {dimension_numbers = #tpu.dot_dimension_numbers<[1], [0], [0], [1], [0, 0, 1, 1], [], []>} : vector<8x512xbf16>, vector<512x256xbf16>, vector<8x256xf32> -> vector<8x256xf32>
    %14 = tpu.iota {dimensions = array<i32: 0>} : vector<8x1xi32>
    %c0_11 = arith.constant 0 : index
    %c0_12 = arith.constant 0 : index
    %c0_13 = arith.constant 0 : index
    %15 = vector.load %arg4[%c0_11, %c0_12, %c0_13] : memref<5x512x256xbf16, #tpu.memory_space<vmem>>, vector<1x512x256xbf16>
    %16 = vector.shape_cast %15 : vector<1x512x256xbf16> to vector<512x256xbf16>
    %cst_14 = arith.constant dense<0.000000e+00> : vector<8x256xf32>
    %17 = tpu.matmul %10, %16, %cst_14 {dimension_numbers = #tpu.dot_dimension_numbers<[1], [0], [0], [1], [0, 0, 1, 1], [], []>} : vector<8x512xbf16>, vector<512x256xbf16>, vector<8x256xf32> -> vector<8x256xf32>
    %c2_i32 = arith.constant 2 : i32
    %18 = tpu.dynamic_rotate %17 by %c2_i32 dim 0 : vector<8x256xf32>, i32 -> vector<8x256xf32>
    %c2_i32_15 = arith.constant 2 : i32
    %19 = vector.broadcast %c2_i32_15 : i32 to vector<8x1xi32>
    %20 = arith.cmpi sge, %14, %19 : vector<8x1xi32>
    %c8_i32 = arith.constant 8 : i32
    %21 = vector.broadcast %c8_i32 : i32 to vector<8x1xi32>
    %22 = arith.cmpi slt, %14, %21 : vector<8x1xi32>
    %23 = arith.andi %20, %22 : vector<8x1xi1>
    %cst_16 = arith.constant 0.000000e+00 : f32
    %24 = vector.shape_cast %23 : vector<8x1xi1> to vector<8x1xi1>
    %25 = vector.broadcast %24 : vector<8x1xi1> to vector<8x256xi1>
    %26 = vector.broadcast %cst_16 : f32 to vector<8x256xf32>
    %27 = arith.select %25, %18, %26 : vector<8x256xi1>, vector<8x256xf32>
    %28 = arith.addf %13, %27 : vector<8x256xf32>
    %c1 = arith.constant 1 : index
    %c0_17 = arith.constant 0 : index
    %c0_18 = arith.constant 0 : index
    %29 = vector.load %arg4[%c1, %c0_17, %c0_18] : memref<5x512x256xbf16, #tpu.memory_space<vmem>>, vector<1x512x256xbf16>
    %30 = vector.shape_cast %29 : vector<1x512x256xbf16> to vector<512x256xbf16>
    %cst_19 = arith.constant dense<0.000000e+00> : vector<8x256xf32>
    %31 = tpu.matmul %10, %30, %cst_19 {dimension_numbers = #tpu.dot_dimension_numbers<[1], [0], [0], [1], [0, 0, 1, 1], [], []>} : vector<8x512xbf16>, vector<512x256xbf16>, vector<8x256xf32> -> vector<8x256xf32>
    %c1_i32 = arith.constant 1 : i32
    %32 = tpu.dynamic_rotate %31 by %c1_i32 dim 0 : vector<8x256xf32>, i32 -> vector<8x256xf32>
    %c1_i32_20 = arith.constant 1 : i32
    %33 = vector.broadcast %c1_i32_20 : i32 to vector<8x1xi32>
    %34 = arith.cmpi sge, %14, %33 : vector<8x1xi32>
    %c8_i32_21 = arith.constant 8 : i32
    %35 = vector.broadcast %c8_i32_21 : i32 to vector<8x1xi32>
    %36 = arith.cmpi slt, %14, %35 : vector<8x1xi32>
    %37 = arith.andi %34, %36 : vector<8x1xi1>
    %cst_22 = arith.constant 0.000000e+00 : f32
    %38 = vector.shape_cast %37 : vector<8x1xi1> to vector<8x1xi1>
    %39 = vector.broadcast %38 : vector<8x1xi1> to vector<8x256xi1>
    %40 = vector.broadcast %cst_22 : f32 to vector<8x256xf32>
    %41 = arith.select %39, %32, %40 : vector<8x256xi1>, vector<8x256xf32>
    %42 = arith.addf %28, %41 : vector<8x256xf32>
    %c3 = arith.constant 3 : index
    %c0_23 = arith.constant 0 : index
    %c0_24 = arith.constant 0 : index
    %43 = vector.load %arg4[%c3, %c0_23, %c0_24] : memref<5x512x256xbf16, #tpu.memory_space<vmem>>, vector<1x512x256xbf16>
    %44 = vector.shape_cast %43 : vector<1x512x256xbf16> to vector<512x256xbf16>
    %cst_25 = arith.constant dense<0.000000e+00> : vector<8x256xf32>
    %45 = tpu.matmul %10, %44, %cst_25 {dimension_numbers = #tpu.dot_dimension_numbers<[1], [0], [0], [1], [0, 0, 1, 1], [], []>} : vector<8x512xbf16>, vector<512x256xbf16>, vector<8x256xf32> -> vector<8x256xf32>
    %c7_i32 = arith.constant 7 : i32
    %46 = tpu.dynamic_rotate %45 by %c7_i32 dim 0 : vector<8x256xf32>, i32 -> vector<8x256xf32>
    %c0_i32 = arith.constant 0 : i32
    %47 = vector.broadcast %c0_i32 : i32 to vector<8x1xi32>
    %48 = arith.cmpi sge, %14, %47 : vector<8x1xi32>
    %c7_i32_26 = arith.constant 7 : i32
    %49 = vector.broadcast %c7_i32_26 : i32 to vector<8x1xi32>
    %50 = arith.cmpi slt, %14, %49 : vector<8x1xi32>
    %51 = arith.andi %48, %50 : vector<8x1xi1>
    %cst_27 = arith.constant 0.000000e+00 : f32
    %52 = vector.shape_cast %51 : vector<8x1xi1> to vector<8x1xi1>
    %53 = vector.broadcast %52 : vector<8x1xi1> to vector<8x256xi1>
    %54 = vector.broadcast %cst_27 : f32 to vector<8x256xf32>
    %55 = arith.select %53, %46, %54 : vector<8x256xi1>, vector<8x256xf32>
    %56 = arith.addf %42, %55 : vector<8x256xf32>
    %c4 = arith.constant 4 : index
    %c0_28 = arith.constant 0 : index
    %c0_29 = arith.constant 0 : index
    %57 = vector.load %arg4[%c4, %c0_28, %c0_29] : memref<5x512x256xbf16, #tpu.memory_space<vmem>>, vector<1x512x256xbf16>
    %58 = vector.shape_cast %57 : vector<1x512x256xbf16> to vector<512x256xbf16>
    %cst_30 = arith.constant dense<0.000000e+00> : vector<8x256xf32>
    %59 = tpu.matmul %10, %58, %cst_30 {dimension_numbers = #tpu.dot_dimension_numbers<[1], [0], [0], [1], [0, 0, 1, 1], [], []>} : vector<8x512xbf16>, vector<512x256xbf16>, vector<8x256xf32> -> vector<8x256xf32>
    %c6_i32 = arith.constant 6 : i32
    %60 = tpu.dynamic_rotate %59 by %c6_i32 dim 0 : vector<8x256xf32>, i32 -> vector<8x256xf32>
    %c0_i32_31 = arith.constant 0 : i32
    %61 = vector.broadcast %c0_i32_31 : i32 to vector<8x1xi32>
    %62 = arith.cmpi sge, %14, %61 : vector<8x1xi32>
    %c6_i32_32 = arith.constant 6 : i32
    %63 = vector.broadcast %c6_i32_32 : i32 to vector<8x1xi32>
    %64 = arith.cmpi slt, %14, %63 : vector<8x1xi32>
    %65 = arith.andi %62, %64 : vector<8x1xi1>
    %cst_33 = arith.constant 0.000000e+00 : f32
    %66 = vector.shape_cast %65 : vector<8x1xi1> to vector<8x1xi1>
    %67 = vector.broadcast %66 : vector<8x1xi1> to vector<8x256xi1>
    %68 = vector.broadcast %cst_33 : f32 to vector<8x256xf32>
    %69 = arith.select %67, %60, %68 : vector<8x256xi1>, vector<8x256xf32>
    %70 = arith.addf %56, %69 : vector<8x256xf32>
    %71 = vector.shape_cast %70 : vector<8x256xf32> to vector<1x8x256xf32>
    %c0_34 = arith.constant 0 : index
    %c0_35 = arith.constant 0 : index
    %c0_36 = arith.constant 0 : index
    %72 = vector.load %arg5[%c0_34, %c0_35, %c0_36] : memref<1x8x256xf32, #tpu.memory_space<vmem>>, vector<1x8x256xf32>
    tpu.vector_store %arg5[%c0_34, %c0_35, %c0_36], %71 {strides = array<i32>} : memref<1x8x256xf32, #tpu.memory_space<vmem>>, vector<1x8x256xf32>,
    %cst_37 = arith.constant dense<0.000000e+00> : vector<1x256xf32>
    %73 = vector.multi_reduction <add>, %71, %cst_37 [1] : vector<1x8x256xf32> to vector<1x256xf32>
    %74 = vector.shape_cast %73 : vector<1x256xf32> to vector<1x1x256xf32>
    %c0_38 = arith.constant 0 : index
    %c0_39 = arith.constant 0 : index
    %c0_40 = arith.constant 0 : index
    %75 = vector.load %arg6[%c0_38, %c0_39, %c0_40] : memref<1x1x256xf32, #tpu.memory_space<vmem>>, vector<1x1x256xf32>
    tpu.vector_store %arg6[%c0_38, %c0_39, %c0_40], %74 {strides = array<i32>} : memref<1x1x256xf32, #tpu.memory_space<vmem>>, vector<1x1x256xf32>,
    %76 = arith.mulf %71, %71 : vector<1x8x256xf32>
    %cst_41 = arith.constant dense<0.000000e+00> : vector<1x256xf32>
    %77 = vector.multi_reduction <add>, %76, %cst_41 [1] : vector<1x8x256xf32> to vector<1x256xf32>
    %78 = vector.shape_cast %77 : vector<1x256xf32> to vector<1x1x256xf32>
    %c0_42 = arith.constant 0 : index
    %c0_43 = arith.constant 0 : index
    %c0_44 = arith.constant 0 : index
    %79 = vector.load %arg7[%c0_42, %c0_43, %c0_44] : memref<1x1x256xf32, #tpu.memory_space<vmem>>, vector<1x1x256xf32>
    tpu.vector_store %arg7[%c0_42, %c0_43, %c0_44], %78 {strides = array<i32>} : memref<1x1x256xf32, #tpu.memory_space<vmem>>, vector<1x1x256xf32>,
    return
  }
  func.func @transform_0(%arg0: i32) -> (i32, i32, i32) {
    %c0_i32 = arith.constant 0 : i32
    %c0_i32_0 = arith.constant 0 : i32
    %c0_i32_1 = arith.constant 0 : i32
    return %arg0, %c0_i32, %c0_i32_0 : i32, i32, i32
  }
  func.func @transform_1(%arg0: i32) -> (i32, i32, i32) {
    %c0_i32 = arith.constant 0 : i32
    %c0_i32_0 = arith.constant 0 : i32
    %c0_i32_1 = arith.constant 0 : i32
    %c0_i32_2 = arith.constant 0 : i32
    return %c0_i32, %c0_i32_0, %c0_i32_1 : i32, i32, i32
  }
  func.func @transform_2(%arg0: i32) -> (i32, i32, i32) {
    %c0_i32 = arith.constant 0 : i32
    %c0_i32_0 = arith.constant 0 : i32
    %c0_i32_1 = arith.constant 0 : i32
    %c0_i32_2 = arith.constant 0 : i32
    return %c0_i32, %c0_i32_0, %c0_i32_1 : i32, i32, i32
  }
  func.func @transform_3(%arg0: i32) -> (i32, i32, i32) {
    %c0_i32 = arith.constant 0 : i32
    %c0_i32_0 = arith.constant 0 : i32
    %c0_i32_1 = arith.constant 0 : i32
    %c0_i32_2 = arith.constant 0 : i32
    return %c0_i32, %c0_i32_0, %c0_i32_1 : i32, i32, i32
  }
  func.func @transform_4(%arg0: i32) -> (i32, i32, i32) {
    %c0_i32 = arith.constant 0 : i32
    %c0_i32_0 = arith.constant 0 : i32
    %c0_i32_1 = arith.constant 0 : i32
    return %arg0, %c0_i32, %c0_i32_0 : i32, i32, i32
  }
  func.func @transform_5(%arg0: i32) -> (i32, i32, i32) {
    %c0_i32 = arith.constant 0 : i32
    %c0_i32_0 = arith.constant 0 : i32
    %c0_i32_1 = arith.constant 0 : i32
    return %arg0, %c0_i32, %c0_i32_0 : i32, i32, i32
  }
  func.func @transform_6(%arg0: i32) -> (i32, i32, i32) {
    %c0_i32 = arith.constant 0 : i32
    %c0_i32_0 = arith.constant 0 : i32
    %c0_i32_1 = arith.constant 0 : i32
    return %arg0, %c0_i32, %c0_i32_0 : i32, i32, i32
  }
}

module attributes {stable_mosaic.version = 11 : i64} {
  func.func @bn2_fc_kernel(%arg0: i32, %arg1: memref<1x8x256xf32, #tpu.memory_space<vmem>>, %arg2: memref<1x1x256xf32, #tpu.memory_space<vmem>>, %arg3: memref<1x1x256xf32, #tpu.memory_space<vmem>>, %arg4: memref<256x1xf32, #tpu.memory_space<vmem>>, %arg5: memref<1x8x1xf32, #tpu.memory_space<vmem>>) attributes {dimension_semantics = [#tpu.dimension_semantics<parallel>], iteration_bounds = array<i64: 2>, scalar_prefetch = 0 : i64, scratch_operands = 0 : i64, tpu.core_type = #tpu.core_type<tc>, window_params = [{transform_indices = @transform_0, window_bounds = array<i64: 1, 8, 256>}, {pipeline_mode = #tpu.pipeline_mode<synchronous>, transform_indices = @transform_1, window_bounds = array<i64: 1, 1, 256>}, {pipeline_mode = #tpu.pipeline_mode<synchronous>, transform_indices = @transform_2, window_bounds = array<i64: 1, 1, 256>}, {pipeline_mode = #tpu.pipeline_mode<synchronous>, transform_indices = @transform_3, window_bounds = array<i64: 256, 1>}, {transform_indices = @transform_4, window_bounds = array<i64: 1, 8, 1>}]} {
    %c0 = arith.constant 0 : index
    %c0_0 = arith.constant 0 : index
    %c0_1 = arith.constant 0 : index
    %0 = vector.load %arg1[%c0, %c0_0, %c0_1] : memref<1x8x256xf32, #tpu.memory_space<vmem>>, vector<1x8x256xf32>
    %c0_2 = arith.constant 0 : index
    %c0_3 = arith.constant 0 : index
    %c0_4 = arith.constant 0 : index
    %1 = vector.load %arg2[%c0_2, %c0_3, %c0_4] : memref<1x1x256xf32, #tpu.memory_space<vmem>>, vector<1x1x256xf32>
    %2 = vector.broadcast %1 : vector<1x1x256xf32> to vector<1x8x256xf32>
    %3 = arith.mulf %0, %2 : vector<1x8x256xf32>
    %c0_5 = arith.constant 0 : index
    %c0_6 = arith.constant 0 : index
    %c0_7 = arith.constant 0 : index
    %4 = vector.load %arg3[%c0_5, %c0_6, %c0_7] : memref<1x1x256xf32, #tpu.memory_space<vmem>>, vector<1x1x256xf32>
    %5 = vector.broadcast %4 : vector<1x1x256xf32> to vector<1x8x256xf32>
    %6 = arith.addf %3, %5 : vector<1x8x256xf32>
    %cst = arith.constant 0.000000e+00 : f32
    %7 = vector.broadcast %cst : f32 to vector<1x8x256xf32>
    %8 = arith.maximumf %6, %7 : vector<1x8x256xf32>
    %9 = vector.shape_cast %8 : vector<1x8x256xf32> to vector<8x256xf32>
    %c0_8 = arith.constant 0 : index
    %c0_9 = arith.constant 0 : index
    %10 = vector.load %arg4[%c0_8, %c0_9] : memref<256x1xf32, #tpu.memory_space<vmem>>, vector<256x1xf32>
    %cst_10 = arith.constant dense<0.000000e+00> : vector<8x1xf32>
    %11 = tpu.matmul %9, %10, %cst_10 {dimension_numbers = #tpu.dot_dimension_numbers<[1], [0], [0], [1], [0, 0, 1, 1], [], []>} : vector<8x256xf32>, vector<256x1xf32>, vector<8x1xf32> -> vector<8x1xf32>
    %12 = vector.shape_cast %11 : vector<8x1xf32> to vector<1x8x1xf32>
    %c0_11 = arith.constant 0 : index
    %c0_12 = arith.constant 0 : index
    %c0_13 = arith.constant 0 : index
    %13 = vector.load %arg5[%c0_11, %c0_12, %c0_13] : memref<1x8x1xf32, #tpu.memory_space<vmem>>, vector<1x8x1xf32>
    tpu.vector_store %arg5[%c0_11, %c0_12, %c0_13], %12 {strides = array<i32>} : memref<1x8x1xf32, #tpu.memory_space<vmem>>, vector<1x8x1xf32>,
    return
  }
  func.func @transform_0(%arg0: i32) -> (i32, i32, i32) {
    %c0_i32 = arith.constant 0 : i32
    %c0_i32_0 = arith.constant 0 : i32
    %c0_i32_1 = arith.constant 0 : i32
    return %arg0, %c0_i32, %c0_i32_0 : i32, i32, i32
  }
  func.func @transform_1(%arg0: i32) -> (i32, i32, i32) {
    %c0_i32 = arith.constant 0 : i32
    %c0_i32_0 = arith.constant 0 : i32
    %c0_i32_1 = arith.constant 0 : i32
    %c0_i32_2 = arith.constant 0 : i32
    return %c0_i32, %c0_i32_0, %c0_i32_1 : i32, i32, i32
  }
  func.func @transform_2(%arg0: i32) -> (i32, i32, i32) {
    %c0_i32 = arith.constant 0 : i32
    %c0_i32_0 = arith.constant 0 : i32
    %c0_i32_1 = arith.constant 0 : i32
    %c0_i32_2 = arith.constant 0 : i32
    return %c0_i32, %c0_i32_0, %c0_i32_1 : i32, i32, i32
  }
  func.func @transform_3(%arg0: i32) -> (i32, i32) {
    %c0_i32 = arith.constant 0 : i32
    %c0_i32_0 = arith.constant 0 : i32
    %c0_i32_1 = arith.constant 0 : i32
    return %c0_i32, %c0_i32_0 : i32, i32
  }
  func.func @transform_4(%arg0: i32) -> (i32, i32, i32) {
    %c0_i32 = arith.constant 0 : i32
    %c0_i32_0 = arith.constant 0 : i32
    %c0_i32_1 = arith.constant 0 : i32
    return %arg0, %c0_i32, %c0_i32_0 : i32, i32, i32
  }
}

</mosaic_0001>

<llo_original>
// kernel: cnn_batchnorm_forward.5
$region0: #{cnn_batchnorm_forward.5}
  #allocation0 [shape = 'u32[]', space=smem, size = 0x4, offset = 0x4, fixed_abs, tag = 'smem constant byte address 0x4 - core index']
  #allocation1 [shape = 'u32[72,128]{1,0:T(1,128)}', space=vmem, size = 0x9000, scoped, tag = 'internal scratch']
  %s0 = inlined_call_operand.vmem [shape: f32[2,8,256], index: 0, kind: input, shape index: {}]
  %s1 = inlined_call_operand.vmem [shape: f32[1,1,256], index: 1, kind: input, shape index: {}]
  %s2 = inlined_call_operand.vmem [shape: f32[1,1,256], index: 2, kind: input, shape index: {}]
  %s3 = inlined_call_operand.vmem [shape: f32[256,1], index: 3, kind: input, shape index: {}]
  %s4 = inlined_call_operand.vmem [shape: f32[2,8,1], index: 4, kind: output, shape index: {}]
  %s5 = sld [smem:[#allocation0]]
  $region49: #{cnn_batchnorm_forward.5} parent=0
    _
  %s7 = ssub.s32 1, %s5
  %s8 = scalar_select 0, %s7, %s5
  loop: start=0, step=1, limit=4
  $region2: #{cnn_batchnorm_forward.5} parent=0 // loop_pre_header
    _
  $region3: #{cnn_batchnorm_forward.5} parent=0 // loop_header
    %s10 = sphi 0, %s14
    %p11 = scmp.ge.s32.totalorder %s10, 4
    %s20 = sphi 0, %s22
    %s23 = sphi 0, %s20
    %s24 = sphi 0, %s23
    %s40 = sphi 0, %s24
    %s44 = sphi 0, %s44
    %s46 = sphi 0, %s44
    %s47 = sphi 0, %s46
    %s61 = sphi 0, %s47
    %s65 = sphi 0, %s65
    %s67 = sphi 0, %s65
    %s68 = sphi 0, %s67
    %s82 = sphi 0, %s68
    %s86 = sphi 0, %s86
    %s88 = sphi 0, %s86
    %s89 = sphi 0, %s88
    %s103 = sphi 0, %s89
    %s109 = sphi 0, %s111
    %s112 = sphi 0, %s109
    %s113 = sphi 0, %s112
    %s129 = sphi 0, %s113
  $region4: #{cnn_batchnorm_forward.5} parent=0 // loop_header_branch
    %13 = sbr.rel (%p11) target = $region8
  $region5: #{cnn_batchnorm_forward.5} parent=0 // loop_body
    %s15 = ssub.s32 %s10, 1
    %s16 = ssub.s32 %s10, 2
    %s17 = sadd.s32 %s10, 1
    %s18 = ssub.s32 %s10, %s17
    %p19 = scmp.eq.s32.totalorder %s18, 0
    %s21 = sadd.s32 %s20, 1
    %s22 = scalar_select %p19, %s20, %s21
    %p25 = pneg %p19
    %p26 = scmp.eq.s32.totalorder %s10, 1
    %p27 = por %p25, %p26
    %p28 = scmp.ne.s32.totalorder %s20, %s23
    %p29 = scmp.eq.s32.totalorder %s10, 0
    %p30 = por %p28, %p29
    %p31 = scmp.ne.s32.totalorder %s20, %s23
    %p32 = scmp.eq.s32.totalorder %s15, 1
    %p33 = por %p31, %p32
    %p34 = scmp.ne.s32.totalorder %s23, %s24
    %p35 = scmp.eq.s32.totalorder %s15, 0
    %p36 = por %p34, %p35
    %p37 = scmp.ne.s32.totalorder %s23, %s24
    %p38 = scmp.eq.s32.totalorder %s16, 1
    %p39 = por %p37, %p38
    %p41 = scmp.ne.s32.totalorder %s24, %s40
    %p42 = scmp.eq.s32.totalorder %s16, 0
    %p43 = por %p41, %p42
    %s45 = sadd.s32 %s44, 1
    %p48 = scmp.eq.s32.totalorder %s10, 1
    %p49 = scmp.ne.s32.totalorder %s44, %s46
    %p50 = scmp.eq.s32.totalorder %s10, 0
    %p51 = por %p49, %p50
    %p52 = scmp.ne.s32.totalorder %s44, %s46
    %p53 = scmp.eq.s32.totalorder %s15, 1
    %p54 = por %p52, %p53
    %p55 = scmp.ne.s32.totalorder %s46, %s47
    %p56 = scmp.eq.s32.totalorder %s15, 0
    %p57 = por %p55, %p56
    %p58 = scmp.ne.s32.totalorder %s46, %s47
    %p59 = scmp.eq.s32.totalorder %s16, 1
    %p60 = por %p58, %p59
    %p62 = scmp.ne.s32.totalorder %s47, %s61
    %p63 = scmp.eq.s32.totalorder %s16, 0
    %p64 = por %p62, %p63
    %s66 = sadd.s32 %s65, 1
    %p69 = scmp.eq.s32.totalorder %s10, 1
    %p70 = scmp.ne.s32.totalorder %s65, %s67
    %p71 = scmp.eq.s32.totalorder %s10, 0
    %p72 = por %p70, %p71
    %p73 = scmp.ne.s32.totalorder %s65, %s67
    %p74 = scmp.eq.s32.totalorder %s15, 1
    %p75 = por %p73, %p74
    %p76 = scmp.ne.s32.totalorder %s67, %s68
    %p77 = scmp.eq.s32.totalorder %s15, 0
    %p78 = por %p76, %p77
    %p79 = scmp.ne.s32.totalorder %s67, %s68
    %p80 = scmp.eq.s32.totalorder %s16, 1
    %p81 = por %p79, %p80
    %p83 = scmp.ne.s32.totalorder %s68, %s82
    %p84 = scmp.eq.s32.totalorder %s16, 0
    %p85 = por %p83, %p84
    %s87 = sadd.s32 %s86, 1
    %p90 = scmp.eq.s32.totalorder %s10, 1
    %p91 = scmp.ne.s32.totalorder %s86, %s88
    %p92 = scmp.eq.s32.totalorder %s10, 0
    %p93 = por %p91, %p92
    %p94 = scmp.ne.s32.totalorder %s86, %s88
    %p95 = scmp.eq.s32.totalorder %s15, 1
    %p96 = por %p94, %p95
    %p97 = scmp.ne.s32.totalorder %s88, %s89
    %p98 = scmp.eq.s32.totalorder %s15, 0
    %p99 = por %p97, %p98
    %p100 = scmp.ne.s32.totalorder %s88, %s89
    %p101 = scmp.eq.s32.totalorder %s16, 1
    %p102 = por %p100, %p101
    %p104 = scmp.ne.s32.totalorder %s89, %s103
    %p105 = scmp.eq.s32.totalorder %s16, 0
    %p106 = por %p104, %p105
    %s107 = ssub.s32 %s10, %s17
    %p108 = scmp.eq.s32.totalorder %s107, 0
    %s110 = sadd.s32 %s109, 1
    %s111 = scalar_select %p108, %s109, %s110
    %p114 = pneg %p108
    %p115 = scmp.eq.s32.totalorder %s10, 1
    %p116 = por %p114, %p115
    %p117 = scmp.ne.s32.totalorder %s109, %s112
    %p118 = scmp.eq.s32.totalorder %s10, 0
    %p119 = por %p117, %p118
    %p120 = scmp.ne.s32.totalorder %s109, %s112
    %p121 = scmp.eq.s32.totalorder %s15, 1
    %p122 = por %p120, %p121
    %p123 = scmp.ne.s32.totalorder %s112, %s113
    %p124 = scmp.eq.s32.totalorder %s15, 0
    %p125 = por %p123, %p124
    %p126 = scmp.ne.s32.totalorder %s112, %s113
    %p127 = scmp.eq.s32.totalorder %s16, 1
    %p128 = por %p126, %p127
    %p130 = scmp.ne.s32.totalorder %s113, %s129
    %p131 = scmp.eq.s32.totalorder %s16, 0
    %p132 = por %p130, %p131
    %p133 = scmp.le.s32.totalorder 1, %s10
    %p134 = scmp.lt.s32.totalorder %s10, 3
    %p135 = pnand %p133, %p134
    %p136 = pneg %p135
    // Predicated region
    $region9: #{cnn_batchnorm_forward.5} parent=5 // pred_check
      _
    $region10: #{cnn_batchnorm_forward.5} parent=5 // pred_check_branch
      %138 = sbr.rel (%p135) target = $region12
    $region11: #{cnn_batchnorm_forward.5} parent=5 // pred_region
      %s139 = ssub.s32 %s10, 1
      // Predicated region
      $region13: #{cnn_batchnorm_forward.5} parent=11 // pred_check
        %p140 = pneg %p57
      $region14: #{cnn_batchnorm_forward.5} parent=11 // pred_check_branch
        %142 = sbr.rel (%p140) target = $region16
      $region15: #{cnn_batchnorm_forward.5} parent=11 // pred_region
        _
      $region16: #{cnn_batchnorm_forward.5} parent=11 // pred_fallthru
        _
      // Predicated region
      $region17: #{cnn_batchnorm_forward.5} parent=11 // pred_check
        %p143 = pneg %p78
      $region18: #{cnn_batchnorm_forward.5} parent=11 // pred_check_branch
        %145 = sbr.rel (%p143) target = $region20
      $region19: #{cnn_batchnorm_forward.5} parent=11 // pred_region
        _
      $region20: #{cnn_batchnorm_forward.5} parent=11 // pred_fallthru
        _
      // Predicated region
      $region21: #{cnn_batchnorm_forward.5} parent=11 // pred_check
        %p146 = pneg %p99
      $region22: #{cnn_batchnorm_forward.5} parent=11 // pred_check_branch
        %148 = sbr.rel (%p146) target = $region24
      $region23: #{cnn_batchnorm_forward.5} parent=11 // pred_region
        _
      $region24: #{cnn_batchnorm_forward.5} parent=11 // pred_fallthru
        _
    $region12: #{cnn_batchnorm_forward.5} parent=5 // pred_fallthru
      _
    %p149 = scmp.lt.s32.totalorder %s10, 2
    // Predicated region
    $region25: #{cnn_batchnorm_forward.5} parent=5 // pred_check
      %p150 = pneg %p149
    $region26: #{cnn_batchnorm_forward.5} parent=5 // pred_check_branch
      %152 = sbr.rel (%p150) target = $region28
    $region27: #{cnn_batchnorm_forward.5} parent=5 // pred_region
      // Predicated region
      $region29: #{cnn_batchnorm_forward.5} parent=27 // pred_check
        %p153 = pneg %p30
      $region30: #{cnn_batchnorm_forward.5} parent=27 // pred_check_branch
        %155 = sbr.rel (%p153) target = $region32
      $region31: #{cnn_batchnorm_forward.5} parent=27 // pred_region
        %p156 = scmp.lt.s32.totalorder %s10, 1
        %s157 = scalar_select %p156, %s10, 1
        %s158 = smul.addr %s157, 2
        %s159 = smul.addr %s158, 8
        %s160 = scalar_lea.vmem %s0, %s159
      $region32: #{cnn_batchnorm_forward.5} parent=27 // pred_fallthru
        _
    $region28: #{cnn_batchnorm_forward.5} parent=5 // pred_fallthru
      _
    %p161 = scmp.le.s32.totalorder 1, %s10
    %p162 = scmp.lt.s32.totalorder %s10, 3
    %p163 = pnand %p161, %p162
    %p164 = pneg %p163
    // Predicated region
    $region33: #{cnn_batchnorm_forward.5} parent=5 // pred_check
      _
    $region34: #{cnn_batchnorm_forward.5} parent=5 // pred_check_branch
      %166 = sbr.rel (%p163) target = $region36
    $region35: #{cnn_batchnorm_forward.5} parent=5 // pred_region
      %s167 = ssub.s32 %s10, 1
      %p168 = scmp.lt.s32.totalorder %s15, 1
      %s169 = scalar_select %p168, %s15, 1
      %s170 = smul.addr %s169, 2
      %s171 = smul.addr %s170, 8
      %s172 = scalar_lea.vmem %s0, %s171
      %p173 = pneg %p36
      %p174 = pneg %p33
      %p175 = pneg %p57
      %p176 = pneg %p54
      %p177 = pneg %p78
      %p178 = pneg %p75
      %p179 = pneg %p99
      %p180 = pneg %p96
      %p181 = pneg %p125
      %p182 = pneg %p122
      %p183 = scmp.lt.s32.totalorder %s15, 1
      %s184 = scalar_select %p183, %s15, 1
      %s185 = smul.addr %s184, 8
      %s186 = scalar_lea.vmem %s4, %s185
      %p187 = scmp.lt.s32.totalorder %s15, 1
      %s188 = scalar_select %p187, %s15, 1
      %s189 = smul.addr %s188, 2
      %s190 = smul.addr %s189, 8
      %s191 = scalar_lea.vmem %s0, %s190
      %p192 = scmp.lt.s32.totalorder %s15, 1
      %s193 = scalar_select %p192, %s15, 1
      %s194 = smul.addr %s193, 8
      %s195 = scalar_lea.vmem %s4, %s194
      %v196 = vld [vmem:[%s191] sm:$0xff]
      %v197 = vld [vmem:[%s191 + $0x8] sm:$0xff]
      %v198 = vld [vmem:[%s1] sm:$0x3]
      %v200 = vperm.slane %v198, 0
      %v201 = vperm.slane %v198, 1
      %v204 = vmul.f32 %v196, %v200
      %v205 = vmul.f32 %v197, %v201
      %v206 = vld [vmem:[%s2] sm:$0x3]
      %v208 = vperm.slane %v206, 0
      %v209 = vperm.slane %v206, 1
      %v212 = vadd.f32 %v204, %v208
      %v213 = vadd.f32 %v205, %v209
      %v214 = vmax.f32 %v212, 0.0
      %v215 = vmax.f32 %v213, 0.0
      %v216 = vld [vmem:[%s3] sm:$0xff]
      %v217 = vld [vmem:[%s3 + $0x8] sm:$0xff]
      %v218 = vld [vmem:[%s3 + $0x10] sm:$0xff]
      %v219 = vld [vmem:[%s3 + $0x18] sm:$0xff]
      %v220 = vld [vmem:[%s3 + $0x20] sm:$0xff]
      %v221 = vld [vmem:[%s3 + $0x28] sm:$0xff]
      %v222 = vld [vmem:[%s3 + $0x30] sm:$0xff]
      %v223 = vld [vmem:[%s3 + $0x38] sm:$0xff]
      %v224 = vld [vmem:[%s3 + $0x40] sm:$0xff]
      %v225 = vld [vmem:[%s3 + $0x48] sm:$0xff]
      %v226 = vld [vmem:[%s3 + $0x50] sm:$0xff]
      %v227 = vld [vmem:[%s3 + $0x58] sm:$0xff]
      %v228 = vld [vmem:[%s3 + $0x60] sm:$0xff]
      %v229 = vld [vmem:[%s3 + $0x68] sm:$0xff]
      %v230 = vld [vmem:[%s3 + $0x70] sm:$0xff]
      %v231 = vld [vmem:[%s3 + $0x78] sm:$0xff]
      %v232 = vld [vmem:[%s3 + $0x80] sm:$0xff]
      %v233 = vld [vmem:[%s3 + $0x88] sm:$0xff]
      %v234 = vld [vmem:[%s3 + $0x90] sm:$0xff]
      %v235 = vld [vmem:[%s3 + $0x98] sm:$0xff]
      %v236 = vld [vmem:[%s3 + $0xa0] sm:$0xff]
      %v237 = vld [vmem:[%s3 + $0xa8] sm:$0xff]
      %v238 = vld [vmem:[%s3 + $0xb0] sm:$0xff]
      %v239 = vld [vmem:[%s3 + $0xb8] sm:$0xff]
      %v240 = vld [vmem:[%s3 + $0xc0] sm:$0xff]
      %v241 = vld [vmem:[%s3 + $0xc8] sm:$0xff]
      %v242 = vld [vmem:[%s3 + $0xd0] sm:$0xff]
      %v243 = vld [vmem:[%s3 + $0xd8] sm:$0xff]
      %v244 = vld [vmem:[%s3 + $0xe0] sm:$0xff]
      %v245 = vld [vmem:[%s3 + $0xe8] sm:$0xff]
      %v246 = vld [vmem:[%s3 + $0xf0] sm:$0xff]
      %v247 = vld [vmem:[%s3 + $0xf8] sm:$0xff]
      %248 = vmatpush.msra.mxu0 %v231
      %249 = vmatpush.msra.mxu0 %v230
      %250 = vmatpush.msra.mxu0 %v229
      %251 = vmatpush.msra.mxu0 %v228
      %252 = vmatpush.msra.mxu0 %v227
      %253 = vmatpush.msra.mxu0 %v226
      %254 = vmatpush.msra.mxu0 %v225
      %255 = vmatpush.msra.mxu0 %v224
      %256 = vmatpush.msra.mxu0 %v223
      %257 = vmatpush.msra.mxu0 %v222
      %258 = vmatpush.msra.mxu0 %v221
      %259 = vmatpush.msra.mxu0 %v220
      %260 = vmatpush.msra.mxu0 %v219
      %261 = vmatpush.msra.mxu0 %v218
      %262 = vmatpush.msra.mxu0 %v217
      %263 = vmatpush.msra.mxu0 %v216
      %264 = vmatmul.f32.gmra.mxu0 %v214
      %v265 = vpop.f32.mrf.mxu0
      %v266 = vadd.f32 0.0, %v265
      %267 = vdwg.mxu0
      %268 = vmatpush.msra.mxu0 %v247
      %269 = vmatpush.msra.mxu0 %v246
      %270 = vmatpush.msra.mxu0 %v245
      %271 = vmatpush.msra.mxu0 %v244
      %272 = vmatpush.msra.mxu0 %v243
      %273 = vmatpush.msra.mxu0 %v242
      %274 = vmatpush.msra.mxu0 %v241
      %275 = vmatpush.msra.mxu0 %v240
      %276 = vmatpush.msra.mxu0 %v239
      %277 = vmatpush.msra.mxu0 %v238
      %278 = vmatpush.msra.mxu0 %v237
      %279 = vmatpush.msra.mxu0 %v236
      %280 = vmatpush.msra.mxu0 %v235
      %281 = vmatpush.msra.mxu0 %v234
      %282 = vmatpush.msra.mxu0 %v233
      %283 = vmatpush.msra.mxu0 %v232
      %284 = vmatmul.f32.gmra.mxu0 %v215
      %v285 = vpop.f32.mrf.mxu0
      %v286 = vadd.f32 %v266, %v285
      %287 = vdwg.mxu0
      %vm288 = vcmask 7168
      %289 = vst.msk [vmem:[%s195] sm:$0xff] %vm288, %v286
      %p290 = scmp.lt.s32.totalorder %s15, 1
      %s291 = scalar_select %p290, %s15, 1
      %s292 = smul.addr %s291, 8
      %s293 = scalar_lea.vmem %s4, %s292
      // Predicated region
      $region37: #{cnn_batchnorm_forward.5} parent=35 // pred_check
        %p294 = pneg %p122
      $region38: #{cnn_batchnorm_forward.5} parent=35 // pred_check_branch
        %296 = sbr.rel (%p294) target = $region40
      $region39: #{cnn_batchnorm_forward.5} parent=35 // pred_region
        _
      $region40: #{cnn_batchnorm_forward.5} parent=35 // pred_fallthru
        _
    $region36: #{cnn_batchnorm_forward.5} parent=5 // pred_fallthru
      _
    %p297 = scmp.le.s32.totalorder 2, %s10
    // Predicated region
    $region41: #{cnn_batchnorm_forward.5} parent=5 // pred_check
      %p298 = pneg %p297
    $region42: #{cnn_batchnorm_forward.5} parent=5 // pred_check_branch
      %300 = sbr.rel (%p298) target = $region44
    $region43: #{cnn_batchnorm_forward.5} parent=5 // pred_region
      %s301 = ssub.s32 %s10, 2
      // Predicated region
      $region45: #{cnn_batchnorm_forward.5} parent=43 // pred_check
        %p302 = pneg %p128
      $region46: #{cnn_batchnorm_forward.5} parent=43 // pred_check_branch
        %304 = sbr.rel (%p302) target = $region48
      $region47: #{cnn_batchnorm_forward.5} parent=43 // pred_region
        %p305 = scmp.lt.s32.totalorder %s16, 1
        %s306 = scalar_select %p305, %s16, 1
        %s307 = smul.addr %s306, 8
        %s308 = scalar_lea.vmem %s4, %s307
      $region48: #{cnn_batchnorm_forward.5} parent=43 // pred_fallthru
        _
    $region44: #{cnn_batchnorm_forward.5} parent=5 // pred_fallthru
      _
  $region6: #{cnn_batchnorm_forward.5} parent=0 // loop_footer
    %s14 = sadd.s32 1, %s10
  $region7: #{cnn_batchnorm_forward.5} parent=0 // loop_footer_branch
    %9 = sbr.rel target = $region3
  $region8: #{cnn_batchnorm_forward.5} parent=0 // loop_exit
    _

// kernel: cnn_batchnorm_forward.4
$region0: #{cnn_batchnorm_forward.4}
  #allocation0 [shape = 'u32[]', space=smem, size = 0x4, offset = 0x4, fixed_abs, tag = 'smem constant byte address 0x4 - core index']
  #allocation1 [shape = 'u32[72,128]{1,0:T(1,128)}', space=vmem, size = 0x9000, scoped, tag = 'internal scratch']
  %s0 = inlined_call_operand.vmem [shape: f32[2,8,512], index: 0, kind: input, shape index: {}]
  %s1 = inlined_call_operand.vmem [shape: f32[1,1,512], index: 1, kind: input, shape index: {}]
  %s2 = inlined_call_operand.vmem [shape: f32[1,1,512], index: 2, kind: input, shape index: {}]
  %s3 = inlined_call_operand.vmem [shape: bf16[5,512,256], index: 3, kind: input, shape index: {}]
  %s4 = inlined_call_operand.vmem [shape: f32[2,8,256], index: 4, kind: output, shape index: {0}]
  %s5 = inlined_call_operand.vmem [shape: f32[2,1,256], index: 5, kind: output, shape index: {1}]
  %s6 = inlined_call_operand.vmem [shape: f32[2,1,256], index: 6, kind: output, shape index: {2}]
  %7 = xla_tuple %s4, %s5, %s6
  %s8 = sld [smem:[#allocation0]]
  $region65: #{cnn_batchnorm_forward.4} parent=0
    _
  %s10 = ssub.s32 1, %s8
  %s11 = scalar_select 0, %s10, %s8
  loop: start=0, step=1, limit=4
  $region2: #{cnn_batchnorm_forward.4} parent=0 // loop_pre_header
    _
  $region3: #{cnn_batchnorm_forward.4} parent=0 // loop_header
    %s13 = sphi 0, %s17
    %p14 = scmp.ge.s32.totalorder %s13, 4
    %s23 = sphi 0, %s25
    %s26 = sphi 0, %s23
    %s27 = sphi 0, %s26
    %s43 = sphi 0, %s27
    %s47 = sphi 0, %s47
    %s49 = sphi 0, %s47
    %s50 = sphi 0, %s49
    %s64 = sphi 0, %s50
    %s68 = sphi 0, %s68
    %s70 = sphi 0, %s68
    %s71 = sphi 0, %s70
    %s85 = sphi 0, %s71
    %s89 = sphi 0, %s89
    %s91 = sphi 0, %s89
    %s92 = sphi 0, %s91
    %s106 = sphi 0, %s92
    %s112 = sphi 0, %s114
    %s115 = sphi 0, %s112
    %s116 = sphi 0, %s115
    %s132 = sphi 0, %s116
    %s138 = sphi 0, %s140
    %s141 = sphi 0, %s138
    %s142 = sphi 0, %s141
    %s158 = sphi 0, %s142
    %s164 = sphi 0, %s166
    %s167 = sphi 0, %s164
    %s168 = sphi 0, %s167
    %s184 = sphi 0, %s168
  $region4: #{cnn_batchnorm_forward.4} parent=0 // loop_header_branch
    %16 = sbr.rel (%p14) target = $region8
  $region5: #{cnn_batchnorm_forward.4} parent=0 // loop_body
    %s18 = ssub.s32 %s13, 1
    %s19 = ssub.s32 %s13, 2
    %s20 = sadd.s32 %s13, 1
    %s21 = ssub.s32 %s13, %s20
    %p22 = scmp.eq.s32.totalorder %s21, 0
    %s24 = sadd.s32 %s23, 1
    %s25 = scalar_select %p22, %s23, %s24
    %p28 = pneg %p22
    %p29 = scmp.eq.s32.totalorder %s13, 1
    %p30 = por %p28, %p29
    %p31 = scmp.ne.s32.totalorder %s23, %s26
    %p32 = scmp.eq.s32.totalorder %s13, 0
    %p33 = por %p31, %p32
    %p34 = scmp.ne.s32.totalorder %s23, %s26
    %p35 = scmp.eq.s32.totalorder %s18, 1
    %p36 = por %p34, %p35
    %p37 = scmp.ne.s32.totalorder %s26, %s27
    %p38 = scmp.eq.s32.totalorder %s18, 0
    %p39 = por %p37, %p38
    %p40 = scmp.ne.s32.totalorder %s26, %s27
    %p41 = scmp.eq.s32.totalorder %s19, 1
    %p42 = por %p40, %p41
    %p44 = scmp.ne.s32.totalorder %s27, %s43
    %p45 = scmp.eq.s32.totalorder %s19, 0
    %p46 = por %p44, %p45
    %s48 = sadd.s32 %s47, 1
    %p51 = scmp.eq.s32.totalorder %s13, 1
    %p52 = scmp.ne.s32.totalorder %s47, %s49
    %p53 = scmp.eq.s32.totalorder %s13, 0
    %p54 = por %p52, %p53
    %p55 = scmp.ne.s32.totalorder %s47, %s49
    %p56 = scmp.eq.s32.totalorder %s18, 1
    %p57 = por %p55, %p56
    %p58 = scmp.ne.s32.totalorder %s49, %s50
    %p59 = scmp.eq.s32.totalorder %s18, 0
    %p60 = por %p58, %p59
    %p61 = scmp.ne.s32.totalorder %s49, %s50
    %p62 = scmp.eq.s32.totalorder %s19, 1
    %p63 = por %p61, %p62
    %p65 = scmp.ne.s32.totalorder %s50, %s64
    %p66 = scmp.eq.s32.totalorder %s19, 0
    %p67 = por %p65, %p66
    %s69 = sadd.s32 %s68, 1
    %p72 = scmp.eq.s32.totalorder %s13, 1
    %p73 = scmp.ne.s32.totalorder %s68, %s70
    %p74 = scmp.eq.s32.totalorder %s13, 0
    %p75 = por %p73, %p74
    %p76 = scmp.ne.s32.totalorder %s68, %s70
    %p77 = scmp.eq.s32.totalorder %s18, 1
    %p78 = por %p76, %p77
    %p79 = scmp.ne.s32.totalorder %s70, %s71
    %p80 = scmp.eq.s32.totalorder %s18, 0
    %p81 = por %p79, %p80
    %p82 = scmp.ne.s32.totalorder %s70, %s71
    %p83 = scmp.eq.s32.totalorder %s19, 1
    %p84 = por %p82, %p83
    %p86 = scmp.ne.s32.totalorder %s71, %s85
    %p87 = scmp.eq.s32.totalorder %s19, 0
    %p88 = por %p86, %p87
    %s90 = sadd.s32 %s89, 1
    %p93 = scmp.eq.s32.totalorder %s13, 1
    %p94 = scmp.ne.s32.totalorder %s89, %s91
    %p95 = scmp.eq.s32.totalorder %s13, 0
    %p96 = por %p94, %p95
    %p97 = scmp.ne.s32.totalorder %s89, %s91
    %p98 = scmp.eq.s32.totalorder %s18, 1
    %p99 = por %p97, %p98
    %p100 = scmp.ne.s32.totalorder %s91, %s92
    %p101 = scmp.eq.s32.totalorder %s18, 0
    %p102 = por %p100, %p101
    %p103 = scmp.ne.s32.totalorder %s91, %s92
    %p104 = scmp.eq.s32.totalorder %s19, 1
    %p105 = por %p103, %p104
    %p107 = scmp.ne.s32.totalorder %s92, %s106
    %p108 = scmp.eq.s32.totalorder %s19, 0
    %p109 = por %p107, %p108
    %s110 = ssub.s32 %s13, %s20
    %p111 = scmp.eq.s32.totalorder %s110, 0
    %s113 = sadd.s32 %s112, 1
    %s114 = scalar_select %p111, %s112, %s113
    %p117 = pneg %p111
    %p118 = scmp.eq.s32.totalorder %s13, 1
    %p119 = por %p117, %p118
    %p120 = scmp.ne.s32.totalorder %s112, %s115
    %p121 = scmp.eq.s32.totalorder %s13, 0
    %p122 = por %p120, %p121
    %p123 = scmp.ne.s32.totalorder %s112, %s115
    %p124 = scmp.eq.s32.totalorder %s18, 1
    %p125 = por %p123, %p124
    %p126 = scmp.ne.s32.totalorder %s115, %s116
    %p127 = scmp.eq.s32.totalorder %s18, 0
    %p128 = por %p126, %p127
    %p129 = scmp.ne.s32.totalorder %s115, %s116
    %p130 = scmp.eq.s32.totalorder %s19, 1
    %p131 = por %p129, %p130
    %p133 = scmp.ne.s32.totalorder %s116, %s132
    %p134 = scmp.eq.s32.totalorder %s19, 0
    %p135 = por %p133, %p134
    %s136 = ssub.s32 %s13, %s20
    %p137 = scmp.eq.s32.totalorder %s136, 0
    %s139 = sadd.s32 %s138, 1
    %s140 = scalar_select %p137, %s138, %s139
    %p143 = pneg %p137
    %p144 = scmp.eq.s32.totalorder %s13, 1
    %p145 = por %p143, %p144
    %p146 = scmp.ne.s32.totalorder %s138, %s141
    %p147 = scmp.eq.s32.totalorder %s13, 0
    %p148 = por %p146, %p147
    %p149 = scmp.ne.s32.totalorder %s138, %s141
    %p150 = scmp.eq.s32.totalorder %s18, 1
    %p151 = por %p149, %p150
    %p152 = scmp.ne.s32.totalorder %s141, %s142
    %p153 = scmp.eq.s32.totalorder %s18, 0
    %p154 = por %p152, %p153
    %p155 = scmp.ne.s32.totalorder %s141, %s142
    %p156 = scmp.eq.s32.totalorder %s19, 1
    %p157 = por %p155, %p156
    %p159 = scmp.ne.s32.totalorder %s142, %s158
    %p160 = scmp.eq.s32.totalorder %s19, 0
    %p161 = por %p159, %p160
    %s162 = ssub.s32 %s13, %s20
    %p163 = scmp.eq.s32.totalorder %s162, 0
    %s165 = sadd.s32 %s164, 1
    %s166 = scalar_select %p163, %s164, %s165
    %p169 = pneg %p163
    %p170 = scmp.eq.s32.totalorder %s13, 1
    %p171 = por %p169, %p170
    %p172 = scmp.ne.s32.totalorder %s164, %s167
    %p173 = scmp.eq.s32.totalorder %s13, 0
    %p174 = por %p172, %p173
    %p175 = scmp.ne.s32.totalorder %s164, %s167
    %p176 = scmp.eq.s32.totalorder %s18, 1
    %p177 = por %p175, %p176
    %p178 = scmp.ne.s32.totalorder %s167, %s168
    %p179 = scmp.eq.s32.totalorder %s18, 0
    %p180 = por %p178, %p179
    %p181 = scmp.ne.s32.totalorder %s167, %s168
    %p182 = scmp.eq.s32.totalorder %s19, 1
    %p183 = por %p181, %p182
    %p185 = scmp.ne.s32.totalorder %s168, %s184
    %p186 = scmp.eq.s32.totalorder %s19, 0
    %p187 = por %p185, %p186
    %p188 = scmp.le.s32.totalorder 1, %s13
    %p189 = scmp.lt.s32.totalorder %s13, 3
    %p190 = pnand %p188, %p189
    %p191 = pneg %p190
    // Predicated region
    $region9: #{cnn_batchnorm_forward.4} parent=5 // pred_check
      _
    $region10: #{cnn_batchnorm_forward.4} parent=5 // pred_check_branch
      %193 = sbr.rel (%p190) target = $region12
    $region11: #{cnn_batchnorm_forward.4} parent=5 // pred_region
      %s194 = ssub.s32 %s13, 1
      // Predicated region
      $region13: #{cnn_batchnorm_forward.4} parent=11 // pred_check
        %p195 = pneg %p60
      $region14: #{cnn_batchnorm_forward.4} parent=11 // pred_check_branch
        %197 = sbr.rel (%p195) target = $region16
      $region15: #{cnn_batchnorm_forward.4} parent=11 // pred_region
        _
      $region16: #{cnn_batchnorm_forward.4} parent=11 // pred_fallthru
        _
      // Predicated region
      $region17: #{cnn_batchnorm_forward.4} parent=11 // pred_check
        %p198 = pneg %p81
      $region18: #{cnn_batchnorm_forward.4} parent=11 // pred_check_branch
        %200 = sbr.rel (%p198) target = $region20
      $region19: #{cnn_batchnorm_forward.4} parent=11 // pred_region
        _
      $region20: #{cnn_batchnorm_forward.4} parent=11 // pred_fallthru
        _
      // Predicated region
      $region21: #{cnn_batchnorm_forward.4} parent=11 // pred_check
        %p201 = pneg %p102
      $region22: #{cnn_batchnorm_forward.4} parent=11 // pred_check_branch
        %203 = sbr.rel (%p201) target = $region24
      $region23: #{cnn_batchnorm_forward.4} parent=11 // pred_region
        _
      $region24: #{cnn_batchnorm_forward.4} parent=11 // pred_fallthru
        _
    $region12: #{cnn_batchnorm_forward.4} parent=5 // pred_fallthru
      _
    %p204 = scmp.lt.s32.totalorder %s13, 2
    // Predicated region
    $region25: #{cnn_batchnorm_forward.4} parent=5 // pred_check
      %p205 = pneg %p204
    $region26: #{cnn_batchnorm_forward.4} parent=5 // pred_check_branch
      %207 = sbr.rel (%p205) target = $region28
    $region27: #{cnn_batchnorm_forward.4} parent=5 // pred_region
      // Predicated region
      $region29: #{cnn_batchnorm_forward.4} parent=27 // pred_check
        %p208 = pneg %p33
      $region30: #{cnn_batchnorm_forward.4} parent=27 // pred_check_branch
        %210 = sbr.rel (%p208) target = $region32
      $region31: #{cnn_batchnorm_forward.4} parent=27 // pred_region
        %p211 = scmp.lt.s32.totalorder %s13, 1
        %s212 = scalar_select %p211, %s13, 1
        %s213 = smul.addr %s212, 4
        %s214 = smul.addr %s213, 8
        %s215 = scalar_lea.vmem %s0, %s214
      $region32: #{cnn_batchnorm_forward.4} parent=27 // pred_fallthru
        _
    $region28: #{cnn_batchnorm_forward.4} parent=5 // pred_fallthru
      _
    %p216 = scmp.le.s32.totalorder 1, %s13
    %p217 = scmp.lt.s32.totalorder %s13, 3
    %p218 = pnand %p216, %p217
    %p219 = pneg %p218
    // Predicated region
    $region33: #{cnn_batchnorm_forward.4} parent=5 // pred_check
      _
    $region34: #{cnn_batchnorm_forward.4} parent=5 // pred_check_branch
      %221 = sbr.rel (%p218) target = $region36
    $region35: #{cnn_batchnorm_forward.4} parent=5 // pred_region
      %s222 = ssub.s32 %s13, 1
      %p223 = scmp.lt.s32.totalorder %s18, 1
      %s224 = scalar_select %p223, %s18, 1
      %s225 = smul.addr %s224, 4
      %s226 = smul.addr %s225, 8
      %s227 = scalar_lea.vmem %s0, %s226
      %p228 = pneg %p39
      %p229 = pneg %p36
      %p230 = pneg %p60
      %p231 = pneg %p57
      %p232 = pneg %p81
      %p233 = pneg %p78
      %p234 = pneg %p102
      %p235 = pneg %p99
      %p236 = pneg %p128
      %p237 = pneg %p125
      %p238 = scmp.lt.s32.totalorder %s18, 1
      %s239 = scalar_select %p238, %s18, 1
      %s240 = smul.addr %s239, 2
      %s241 = smul.addr %s240, 8
      %s242 = scalar_lea.vmem %s4, %s241
      %p243 = pneg %p154
      %p244 = pneg %p151
      %p245 = scmp.lt.s32.totalorder %s18, 1
      %s246 = scalar_select %p245, %s18, 1
      %s247 = smul.addr %s246, 2
      %s248 = scalar_lea.vmem %s5, %s247
      %p249 = pneg %p180
      %p250 = pneg %p177
      %p251 = scmp.lt.s32.totalorder %s18, 1
      %s252 = scalar_select %p251, %s18, 1
      %s253 = smul.addr %s252, 2
      %s254 = scalar_lea.vmem %s6, %s253
      %p255 = scmp.lt.s32.totalorder %s18, 1
      %s256 = scalar_select %p255, %s18, 1
      %s257 = smul.addr %s256, 4
      %s258 = smul.addr %s257, 8
      %s259 = scalar_lea.vmem %s0, %s258
      %p260 = scmp.lt.s32.totalorder %s18, 1
      %s261 = scalar_select %p260, %s18, 1
      %s262 = smul.addr %s261, 2
      %s263 = smul.addr %s262, 8
      %s264 = scalar_lea.vmem %s4, %s263
      %p265 = scmp.lt.s32.totalorder %s18, 1
      %s266 = scalar_select %p265, %s18, 1
      %s267 = smul.addr %s266, 2
      %s268 = scalar_lea.vmem %s5, %s267
      %p269 = scmp.lt.s32.totalorder %s18, 1
      %s270 = scalar_select %p269, %s18, 1
      %s271 = smul.addr %s270, 2
      %s272 = scalar_lea.vmem %s6, %s271
      %v273 = vld [vmem:[%s259] sm:$0xff]
      %v274 = vld [vmem:[%s259 + $0x8] sm:$0xff]
      %v275 = vld [vmem:[%s259 + $0x10] sm:$0xff]
      %v276 = vld [vmem:[%s259 + $0x18] sm:$0xff]
      %v277 = vld [vmem:[%s1] sm:$0xf]
      %v279 = vperm.slane %v277, 0
      %v280 = vperm.slane %v277, 1
      %v281 = vperm.slane %v277, 2
      %v282 = vperm.slane %v277, 3
      %v287 = vmul.f32 %v273, %v279
      %v288 = vmul.f32 %v274, %v280
      %v289 = vmul.f32 %v275, %v281
      %v290 = vmul.f32 %v276, %v282
      %v291 = vld [vmem:[%s2] sm:$0xf]
      %v293 = vperm.slane %v291, 0
      %v294 = vperm.slane %v291, 1
      %v295 = vperm.slane %v291, 2
      %v296 = vperm.slane %v291, 3
      %v301 = vadd.f32 %v287, %v293
      %v302 = vadd.f32 %v288, %v294
      %v303 = vadd.f32 %v289, %v295
      %v304 = vadd.f32 %v290, %v296
      %v305 = vmax.f32 %v301, 0.0
      %v306 = vmax.f32 %v302, 0.0
      %v307 = vmax.f32 %v303, 0.0
      %v308 = vmax.f32 %v304, 0.0
      %v309 = vpack.c.bf16 %v306, %v305
      %v310 = vpack.c.bf16 %v308, %v307
      %s311 = scalar_lea.vmem %s3, 1024
      %v312 = vld [vmem:[%s311] sm:$0xff]
      %v313 = vld [vmem:[%s311 + $0x8] sm:$0xff]
      %v314 = vld [vmem:[%s311 + $0x10] sm:$0xff]
      %v315 = vld [vmem:[%s311 + $0x18] sm:$0xff]
      %v316 = vld [vmem:[%s311 + $0x20] sm:$0xff]
      %v317 = vld [vmem:[%s311 + $0x28] sm:$0xff]
      %v318 = vld [vmem:[%s311 + $0x30] sm:$0xff]
      %v319 = vld [vmem:[%s311 + $0x38] sm:$0xff]
      %v320 = vld [vmem:[%s311 + $0x40] sm:$0xff]
      %v321 = vld [vmem:[%s311 + $0x48] sm:$0xff]
      %v322 = vld [vmem:[%s311 + $0x50] sm:$0xff]
      %v323 = vld [vmem:[%s311 + $0x58] sm:$0xff]
      %v324 = vld [vmem:[%s311 + $0x60] sm:$0xff]
      %v325 = vld [vmem:[%s311 + $0x68] sm:$0xff]
      %v326 = vld [vmem:[%s311 + $0x70] sm:$0xff]
      %v327 = vld [vmem:[%s311 + $0x78] sm:$0xff]
      %v328 = vld [vmem:[%s311 + $0x80] sm:$0xff]
      %v329 = vld [vmem:[%s311 + $0x88] sm:$0xff]
      %v330 = vld [vmem:[%s311 + $0x90] sm:$0xff]
      %v331 = vld [vmem:[%s311 + $0x98] sm:$0xff]
      %v332 = vld [vmem:[%s311 + $0xa0] sm:$0xff]
      %v333 = vld [vmem:[%s311 + $0xa8] sm:$0xff]
      %v334 = vld [vmem:[%s311 + $0xb0] sm:$0xff]
      %v335 = vld [vmem:[%s311 + $0xb8] sm:$0xff]
      %v336 = vld [vmem:[%s311 + $0xc0] sm:$0xff]
      %v337 = vld [vmem:[%s311 + $0xc8] sm:$0xff]
      %v338 = vld [vmem:[%s311 + $0xd0] sm:$0xff]
      %v339 = vld [vmem:[%s311 + $0xd8] sm:$0xff]
      %v340 = vld [vmem:[%s311 + $0xe0] sm:$0xff]
      %v341 = vld [vmem:[%s311 + $0xe8] sm:$0xff]
      %v342 = vld [vmem:[%s311 + $0xf0] sm:$0xff]
      %v343 = vld [vmem:[%s311 + $0xf8] sm:$0xff]
      %v344 = vld [vmem:[%s311 + $0x100] sm:$0xff]
      %v345 = vld [vmem:[%s311 + $0x108] sm:$0xff]
      %v346 = vld [vmem:[%s311 + $0x110] sm:$0xff]
      %v347 = vld [vmem:[%s311 + $0x118] sm:$0xff]
      %v348 = vld [vmem:[%s311 + $0x120] sm:$0xff]
      %v349 = vld [vmem:[%s311 + $0x128] sm:$0xff]
      %v350 = vld [vmem:[%s311 + $0x130] sm:$0xff]
      %v351 = vld [vmem:[%s311 + $0x138] sm:$0xff]
      %v352 = vld [vmem:[%s311 + $0x140] sm:$0xff]
      %v353 = vld [vmem:[%s311 + $0x148] sm:$0xff]
      %v354 = vld [vmem:[%s311 + $0x150] sm:$0xff]
      %v355 = vld [vmem:[%s311 + $0x158] sm:$0xff]
      %v356 = vld [vmem:[%s311 + $0x160] sm:$0xff]
      %v357 = vld [vmem:[%s311 + $0x168] sm:$0xff]
      %v358 = vld [vmem:[%s311 + $0x170] sm:$0xff]
      %v359 = vld [vmem:[%s311 + $0x178] sm:$0xff]
      %v360 = vld [vmem:[%s311 + $0x180] sm:$0xff]
      %v361 = vld [vmem:[%s311 + $0x188] sm:$0xff]
      %v362 = vld [vmem:[%s311 + $0x190] sm:$0xff]
      %v363 = vld [vmem:[%s311 + $0x198] sm:$0xff]
      %v364 = vld [vmem:[%s311 + $0x1a0] sm:$0xff]
      %v365 = vld [vmem:[%s311 + $0x1a8] sm:$0xff]
      %v366 = vld [vmem:[%s311 + $0x1b0] sm:$0xff]
      %v367 = vld [vmem:[%s311 + $0x1b8] sm:$0xff]
      %v368 = vld [vmem:[%s311 + $0x1c0] sm:$0xff]
      %v369 = vld [vmem:[%s311 + $0x1c8] sm:$0xff]
      %v370 = vld [vmem:[%s311 + $0x1d0] sm:$0xff]
      %v371 = vld [vmem:[%s311 + $0x1d8] sm:$0xff]
      %v372 = vld [vmem:[%s311 + $0x1e0] sm:$0xff]
      %v373 = vld [vmem:[%s311 + $0x1e8] sm:$0xff]
      %v374 = vld [vmem:[%s311 + $0x1f0] sm:$0xff]
      %v375 = vld [vmem:[%s311 + $0x1f8] sm:$0xff]
      %v376 = vlaneseq
      %v377 = vshrl.u32 %v376, 7
      %v378 = vld [vmem:[%s3] sm:$0xff]
      %v379 = vld [vmem:[%s3 + $0x8] sm:$0xff]
      %v380 = vld [vmem:[%s3 + $0x10] sm:$0xff]
      %v381 = vld [vmem:[%s3 + $0x18] sm:$0xff]
      %v382 = vld [vmem:[%s3 + $0x20] sm:$0xff]
      %v383 = vld [vmem:[%s3 + $0x28] sm:$0xff]
      %v384 = vld [vmem:[%s3 + $0x30] sm:$0xff]
      %v385 = vld [vmem:[%s3 + $0x38] sm:$0xff]
      %v386 = vld [vmem:[%s3 + $0x40] sm:$0xff]
      %v387 = vld [vmem:[%s3 + $0x48] sm:$0xff]
      %v388 = vld [vmem:[%s3 + $0x50] sm:$0xff]
      %v389 = vld [vmem:[%s3 + $0x58] sm:$0xff]
      %v390 = vld [vmem:[%s3 + $0x60] sm:$0xff]
      %v391 = vld [vmem:[%s3 + $0x68] sm:$0xff]
      %v392 = vld [vmem:[%s3 + $0x70] sm:$0xff]
      %v393 = vld [vmem:[%s3 + $0x78] sm:$0xff]
      %v394 = vld [vmem:[%s3 + $0x80] sm:$0xff]
      %v395 = vld [vmem:[%s3 + $0x88] sm:$0xff]
      %v396 = vld [vmem:[%s3 + $0x90] sm:$0xff]
      %v397 = vld [vmem:[%s3 + $0x98] sm:$0xff]
      %v398 = vld [vmem:[%s3 + $0xa0] sm:$0xff]
      %v399 = vld [vmem:[%s3 + $0xa8] sm:$0xff]
      %v400 = vld [vmem:[%s3 + $0xb0] sm:$0xff]
      %v401 = vld [vmem:[%s3 + $0xb8] sm:$0xff]
      %v402 = vld [vmem:[%s3 + $0xc0] sm:$0xff]
      %v403 = vld [vmem:[%s3 + $0xc8] sm:$0xff]
      %v404 = vld [vmem:[%s3 + $0xd0] sm:$0xff]
      %v405 = vld [vmem:[%s3 + $0xd8] sm:$0xff]
      %v406 = vld [vmem:[%s3 + $0xe0] sm:$0xff]
      %v407 = vld [vmem:[%s3 + $0xe8] sm:$0xff]
      %v408 = vld [vmem:[%s3 + $0xf0] sm:$0xff]
      %v409 = vld [vmem:[%s3 + $0xf8] sm:$0xff]
      %v410 = vld [vmem:[%s3 + $0x100] sm:$0xff]
      %v411 = vld [vmem:[%s3 + $0x108] sm:$0xff]
      %v412 = vld [vmem:[%s3 + $0x110] sm:$0xff]
      %v413 = vld [vmem:[%s3 + $0x118] sm:$0xff]
      %v414 = vld [vmem:[%s3 + $0x120] sm:$0xff]
      %v415 = vld [vmem:[%s3 + $0x128] sm:$0xff]
      %v416 = vld [vmem:[%s3 + $0x130] sm:$0xff]
      %v417 = vld [vmem:[%s3 + $0x138] sm:$0xff]
      %v418 = vld [vmem:[%s3 + $0x140] sm:$0xff]
      %v419 = vld [vmem:[%s3 + $0x148] sm:$0xff]
      %v420 = vld [vmem:[%s3 + $0x150] sm:$0xff]
      %v421 = vld [vmem:[%s3 + $0x158] sm:$0xff]
      %v422 = vld [vmem:[%s3 + $0x160] sm:$0xff]
      %v423 = vld [vmem:[%s3 + $0x168] sm:$0xff]
      %v424 = vld [vmem:[%s3 + $0x170] sm:$0xff]
      %v425 = vld [vmem:[%s3 + $0x178] sm:$0xff]
      %v426 = vld [vmem:[%s3 + $0x180] sm:$0xff]
      %v427 = vld [vmem:[%s3 + $0x188] sm:$0xff]
      %v428 = vld [vmem:[%s3 + $0x190] sm:$0xff]
      %v429 = vld [vmem:[%s3 + $0x198] sm:$0xff]
      %v430 = vld [vmem:[%s3 + $0x1a0] sm:$0xff]
      %v431 = vld [vmem:[%s3 + $0x1a8] sm:$0xff]
      %v432 = vld [vmem:[%s3 + $0x1b0] sm:$0xff]
      %v433 = vld [vmem:[%s3 + $0x1b8] sm:$0xff]
      %v434 = vld [vmem:[%s3 + $0x1c0] sm:$0xff]
      %v435 = vld [vmem:[%s3 + $0x1c8] sm:$0xff]
      %v436 = vld [vmem:[%s3 + $0x1d0] sm:$0xff]
      %v437 = vld [vmem:[%s3 + $0x1d8] sm:$0xff]
      %v438 = vld [vmem:[%s3 + $0x1e0] sm:$0xff]
      %v439 = vld [vmem:[%s3 + $0x1e8] sm:$0xff]
      %v440 = vld [vmem:[%s3 + $0x1f0] sm:$0xff]
      %v441 = vld [vmem:[%s3 + $0x1f8] sm:$0xff]
      %v444 = vunpack.c.l.b16 %v309
      %v445 = vunpack.c.h.b16 %v309
      %v446 = vunpack.c.l.b16 %v310
      %v447 = vunpack.c.h.b16 %v310
      %v448 = vpack.c.b16 %v444, %v444
      %v449 = vpack.c.b16 %v445, %v445
      %v450 = vpack.c.b16 %v446, %v446
      %v451 = vpack.c.b16 %v447, %v447
      %v520 = vunpack.c.l.b16 %v378
      %v521 = vunpack.c.h.b16 %v378
      %v522 = vunpack.c.l.b16 %v379
      %v523 = vunpack.c.h.b16 %v379
      %v524 = vunpack.c.l.b16 %v380
      %v525 = vunpack.c.h.b16 %v380
      %v526 = vunpack.c.l.b16 %v381
      %v527 = vunpack.c.h.b16 %v381
      %v528 = vunpack.c.l.b16 %v382
      %v529 = vunpack.c.h.b16 %v382
      %v530 = vunpack.c.l.b16 %v383
      %v531 = vunpack.c.h.b16 %v383
      %v532 = vunpack.c.l.b16 %v384
      %v533 = vunpack.c.h.b16 %v384
      %v534 = vunpack.c.l.b16 %v385
      %v535 = vunpack.c.h.b16 %v385
      %v536 = vunpack.c.l.b16 %v386
      %v537 = vunpack.c.h.b16 %v386
      %v538 = vunpack.c.l.b16 %v387
      %v539 = vunpack.c.h.b16 %v387
      %v540 = vunpack.c.l.b16 %v388
      %v541 = vunpack.c.h.b16 %v388
      %v542 = vunpack.c.l.b16 %v389
      %v543 = vunpack.c.h.b16 %v389
      %v544 = vunpack.c.l.b16 %v390
      %v545 = vunpack.c.h.b16 %v390
      %v546 = vunpack.c.l.b16 %v391
      %v547 = vunpack.c.h.b16 %v391
      %v548 = vunpack.c.l.b16 %v392
      %v549 = vunpack.c.h.b16 %v392
      %v550 = vunpack.c.l.b16 %v393
      %v551 = vunpack.c.h.b16 %v393
      %v552 = vunpack.c.l.b16 %v394
      %v553 = vunpack.c.h.b16 %v394
      %v554 = vunpack.c.l.b16 %v395
      %v555 = vunpack.c.h.b16 %v395
      %v556 = vunpack.c.l.b16 %v396
      %v557 = vunpack.c.h.b16 %v396
      %v558 = vunpack.c.l.b16 %v397
      %v559 = vunpack.c.h.b16 %v397
      %v560 = vunpack.c.l.b16 %v398
      %v561 = vunpack.c.h.b16 %v398
      %v562 = vunpack.c.l.b16 %v399
      %v563 = vunpack.c.h.b16 %v399
      %v564 = vunpack.c.l.b16 %v400
      %v565 = vunpack.c.h.b16 %v400
      %v566 = vunpack.c.l.b16 %v401
      %v567 = vunpack.c.h.b16 %v401
      %v568 = vunpack.c.l.b16 %v402
      %v569 = vunpack.c.h.b16 %v402
      %v570 = vunpack.c.l.b16 %v403
      %v571 = vunpack.c.h.b16 %v403
      %v572 = vunpack.c.l.b16 %v404
      %v573 = vunpack.c.h.b16 %v404
      %v574 = vunpack.c.l.b16 %v405
      %v575 = vunpack.c.h.b16 %v405
      %v576 = vunpack.c.l.b16 %v406
      %v577 = vunpack.c.h.b16 %v406
      %v578 = vunpack.c.l.b16 %v407
      %v579 = vunpack.c.h.b16 %v407
      %v580 = vunpack.c.l.b16 %v408
      %v581 = vunpack.c.h.b16 %v408
      %v582 = vunpack.c.l.b16 %v409
      %v583 = vunpack.c.h.b16 %v409
      %v584 = vunpack.c.l.b16 %v410
      %v585 = vunpack.c.h.b16 %v410
      %v586 = vunpack.c.l.b16 %v411
      %v587 = vunpack.c.h.b16 %v411
      %v588 = vunpack.c.l.b16 %v412
      %v589 = vunpack.c.h.b16 %v412
      %v590 = vunpack.c.l.b16 %v413
      %v591 = vunpack.c.h.b16 %v413
      %v592 = vunpack.c.l.b16 %v414
      %v593 = vunpack.c.h.b16 %v414
      %v594 = vunpack.c.l.b16 %v415
      %v595 = vunpack.c.h.b16 %v415
      %v596 = vunpack.c.l.b16 %v416
      %v597 = vunpack.c.h.b16 %v416
      %v598 = vunpack.c.l.b16 %v417
      %v599 = vunpack.c.h.b16 %v417
      %v600 = vunpack.c.l.b16 %v418
      %v601 = vunpack.c.h.b16 %v418
      %v602 = vunpack.c.l.b16 %v419
      %v603 = vunpack.c.h.b16 %v419
      %v604 = vunpack.c.l.b16 %v420
      %v605 = vunpack.c.h.b16 %v420
      %v606 = vunpack.c.l.b16 %v421
      %v607 = vunpack.c.h.b16 %v421
      %v608 = vunpack.c.l.b16 %v422
      %v609 = vunpack.c.h.b16 %v422
      %v610 = vunpack.c.l.b16 %v423
      %v611 = vunpack.c.h.b16 %v423
      %v612 = vunpack.c.l.b16 %v424
      %v613 = vunpack.c.h.b16 %v424
      %v614 = vunpack.c.l.b16 %v425
      %v615 = vunpack.c.h.b16 %v425
      %v616 = vunpack.c.l.b16 %v426
      %v617 = vunpack.c.h.b16 %v426
      %v618 = vunpack.c.l.b16 %v427
      %v619 = vunpack.c.h.b16 %v427
      %v620 = vunpack.c.l.b16 %v428
      %v621 = vunpack.c.h.b16 %v428
      %v622 = vunpack.c.l.b16 %v429
      %v623 = vunpack.c.h.b16 %v429
      %v624 = vunpack.c.l.b16 %v430
      %v625 = vunpack.c.h.b16 %v430
      %v626 = vunpack.c.l.b16 %v431
      %v627 = vunpack.c.h.b16 %v431
      %v628 = vunpack.c.l.b16 %v432
      %v629 = vunpack.c.h.b16 %v432
      %v630 = vunpack.c.l.b16 %v433
      %v631 = vunpack.c.h.b16 %v433
      %v632 = vunpack.c.l.b16 %v434
      %v633 = vunpack.c.h.b16 %v434
      %v634 = vunpack.c.l.b16 %v435
      %v635 = vunpack.c.h.b16 %v435
      %v636 = vunpack.c.l.b16 %v436
      %v637 = vunpack.c.h.b16 %v436
      %v638 = vunpack.c.l.b16 %v437
      %v639 = vunpack.c.h.b16 %v437
      %v640 = vunpack.c.l.b16 %v438
      %v641 = vunpack.c.h.b16 %v438
      %v642 = vunpack.c.l.b16 %v439
      %v643 = vunpack.c.h.b16 %v439
      %v644 = vunpack.c.l.b16 %v440
      %v645 = vunpack.c.h.b16 %v440
      %v646 = vunpack.c.l.b16 %v441
      %v647 = vunpack.c.h.b16 %v441
      %v648 = vpack.c.b16 %v522, %v520
      %v649 = vpack.c.b16 %v523, %v521
      %v650 = vpack.c.b16 %v526, %v524
      %v651 = vpack.c.b16 %v527, %v525
      %v652 = vpack.c.b16 %v530, %v528
      %v653 = vpack.c.b16 %v531, %v529
      %v654 = vpack.c.b16 %v534, %v532
      %v655 = vpack.c.b16 %v535, %v533
      %v656 = vpack.c.b16 %v538, %v536
      %v657 = vpack.c.b16 %v539, %v537
      %v658 = vpack.c.b16 %v542, %v540
      %v659 = vpack.c.b16 %v543, %v541
      %v660 = vpack.c.b16 %v546, %v544
      %v661 = vpack.c.b16 %v547, %v545
      %v662 = vpack.c.b16 %v550, %v548
      %v663 = vpack.c.b16 %v551, %v549
      %v664 = vpack.c.b16 %v554, %v552
      %v665 = vpack.c.b16 %v555, %v553
      %v666 = vpack.c.b16 %v558, %v556
      %v667 = vpack.c.b16 %v559, %v557
      %v668 = vpack.c.b16 %v562, %v560
      %v669 = vpack.c.b16 %v563, %v561
      %v670 = vpack.c.b16 %v566, %v564
      %v671 = vpack.c.b16 %v567, %v565
      %v672 = vpack.c.b16 %v570, %v568
      %v673 = vpack.c.b16 %v571, %v569
      %v674 = vpack.c.b16 %v574, %v572
      %v675 = vpack.c.b16 %v575, %v573
      %v676 = vpack.c.b16 %v578, %v576
      %v677 = vpack.c.b16 %v579, %v577
      %v678 = vpack.c.b16 %v582, %v580
      %v679 = vpack.c.b16 %v583, %v581
      %v680 = vpack.c.b16 %v586, %v584
      %v681 = vpack.c.b16 %v587, %v585
      %v682 = vpack.c.b16 %v590, %v588
      %v683 = vpack.c.b16 %v591, %v589
      %v684 = vpack.c.b16 %v594, %v592
      %v685 = vpack.c.b16 %v595, %v593
      %v686 = vpack.c.b16 %v598, %v596
      %v687 = vpack.c.b16 %v599, %v597
      %v688 = vpack.c.b16 %v602, %v600
      %v689 = vpack.c.b16 %v603, %v601
      %v690 = vpack.c.b16 %v606, %v604
      %v691 = vpack.c.b16 %v607, %v605
      %v692 = vpack.c.b16 %v610, %v608
      %v693 = vpack.c.b16 %v611, %v609
      %v694 = vpack.c.b16 %v614, %v612
      %v695 = vpack.c.b16 %v615, %v613
      %v696 = vpack.c.b16 %v618, %v616
      %v697 = vpack.c.b16 %v619, %v617
      %v698 = vpack.c.b16 %v622, %v620
      %v699 = vpack.c.b16 %v623, %v621
      %v700 = vpack.c.b16 %v626, %v624
      %v701 = vpack.c.b16 %v627, %v625
      %v702 = vpack.c.b16 %v630, %v628
      %v703 = vpack.c.b16 %v631, %v629
      %v704 = vpack.c.b16 %v634, %v632
      %v705 = vpack.c.b16 %v635, %v633
      %v706 = vpack.c.b16 %v638, %v636
      %v707 = vpack.c.b16 %v639, %v637
      %v708 = vpack.c.b16 %v642, %v640
      %v709 = vpack.c.b16 %v643, %v641
      %v710 = vpack.c.b16 %v646, %v644
      %v711 = vpack.c.b16 %v647, %v645
      %776 = vmatpush.bf16.msra.mxu0 %v662
      %777 = vmatpush.bf16.msra.mxu0 %v660
      %778 = vmatpush.bf16.msra.mxu0 %v658
      %779 = vmatpush.bf16.msra.mxu0 %v656
      %780 = vmatpush.bf16.msra.mxu0 %v654
      %781 = vmatpush.bf16.msra.mxu0 %v652
      %782 = vmatpush.bf16.msra.mxu0 %v650
      %783 = vmatpush.bf16.msra.mxu0 %v648
      %784 = vmatmul.bf16.gmra.mxu0 %v448
      %v785 = vpop.f32.mrf.mxu0
      %v786 = vadd.f32 0.0, %v785
      %v787 = vpop.f32.mrf.mxu0
      %788 = vdwg.mxu0
      %789 = vmatpush.bf16.msra.mxu0 %v678
      %790 = vmatpush.bf16.msra.mxu0 %v676
      %791 = vmatpush.bf16.msra.mxu0 %v674
      %792 = vmatpush.bf16.msra.mxu0 %v672
      %793 = vmatpush.bf16.msra.mxu0 %v670
      %794 = vmatpush.bf16.msra.mxu0 %v668
      %795 = vmatpush.bf16.msra.mxu0 %v666
      %796 = vmatpush.bf16.msra.mxu0 %v664
      %797 = vmatmul.bf16.gmra.mxu0 %v449
      %v798 = vpop.f32.mrf.mxu0
      %v799 = vadd.f32 %v786, %v798
      %v800 = vpop.f32.mrf.mxu0
      %801 = vdwg.mxu0
      %802 = vmatpush.bf16.msra.mxu0 %v694
      %803 = vmatpush.bf16.msra.mxu0 %v692
      %804 = vmatpush.bf16.msra.mxu0 %v690
      %805 = vmatpush.bf16.msra.mxu0 %v688
      %806 = vmatpush.bf16.msra.mxu0 %v686
      %807 = vmatpush.bf16.msra.mxu0 %v684
      %808 = vmatpush.bf16.msra.mxu0 %v682
      %809 = vmatpush.bf16.msra.mxu0 %v680
      %810 = vmatmul.bf16.gmra.mxu0 %v450
      %v811 = vpop.f32.mrf.mxu0
      %v812 = vadd.f32 %v799, %v811
      %v813 = vpop.f32.mrf.mxu0
      %814 = vdwg.mxu0
      %815 = vmatpush.bf16.msra.mxu0 %v710
      %816 = vmatpush.bf16.msra.mxu0 %v708
      %817 = vmatpush.bf16.msra.mxu0 %v706
      %818 = vmatpush.bf16.msra.mxu0 %v704
      %819 = vmatpush.bf16.msra.mxu0 %v702
      %820 = vmatpush.bf16.msra.mxu0 %v700
      %821 = vmatpush.bf16.msra.mxu0 %v698
      %822 = vmatpush.bf16.msra.mxu0 %v696
      %823 = vmatmul.bf16.gmra.mxu0 %v451
      %v824 = vpop.f32.mrf.mxu0
      %v825 = vadd.f32 %v812, %v824
      %v826 = vpop.f32.mrf.mxu0
      %827 = vdwg.mxu0
      %828 = vmatpush.bf16.msra.mxu0 %v663
      %829 = vmatpush.bf16.msra.mxu0 %v661
      %830 = vmatpush.bf16.msra.mxu0 %v659
      %831 = vmatpush.bf16.msra.mxu0 %v657
      %832 = vmatpush.bf16.msra.mxu0 %v655
      %833 = vmatpush.bf16.msra.mxu0 %v653
      %834 = vmatpush.bf16.msra.mxu0 %v651
      %835 = vmatpush.bf16.msra.mxu0 %v649
      %836 = vmatmul.bf16.gmra.mxu0 %v448
      %v837 = vpop.f32.mrf.mxu0
      %v838 = vadd.f32 0.0, %v837
      %v839 = vpop.f32.mrf.mxu0
      %840 = vdwg.mxu0
      %841 = vmatpush.bf16.msra.mxu0 %v679
      %842 = vmatpush.bf16.msra.mxu0 %v677
      %843 = vmatpush.bf16.msra.mxu0 %v675
      %844 = vmatpush.bf16.msra.mxu0 %v673
      %845 = vmatpush.bf16.msra.mxu0 %v671
      %846 = vmatpush.bf16.msra.mxu0 %v669
      %847 = vmatpush.bf16.msra.mxu0 %v667
      %848 = vmatpush.bf16.msra.mxu0 %v665
      %849 = vmatmul.bf16.gmra.mxu0 %v449
      %v850 = vpop.f32.mrf.mxu0
      %v851 = vadd.f32 %v838, %v850
      %v852 = vpop.f32.mrf.mxu0
      %853 = vdwg.mxu0
      %854 = vmatpush.bf16.msra.mxu0 %v695
      %855 = vmatpush.bf16.msra.mxu0 %v693
      %856 = vmatpush.bf16.msra.mxu0 %v691
      %857 = vmatpush.bf16.msra.mxu0 %v689
      %858 = vmatpush.bf16.msra.mxu0 %v687
      %859 = vmatpush.bf16.msra.mxu0 %v685
      %860 = vmatpush.bf16.msra.mxu0 %v683
      %861 = vmatpush.bf16.msra.mxu0 %v681
      %862 = vmatmul.bf16.gmra.mxu0 %v450
      %v863 = vpop.f32.mrf.mxu0
      %v864 = vadd.f32 %v851, %v863
      %v865 = vpop.f32.mrf.mxu0
      %866 = vdwg.mxu0
      %867 = vmatpush.bf16.msra.mxu0 %v711
      %868 = vmatpush.bf16.msra.mxu0 %v709
      %869 = vmatpush.bf16.msra.mxu0 %v707
      %870 = vmatpush.bf16.msra.mxu0 %v705
      %871 = vmatpush.bf16.msra.mxu0 %v703
      %872 = vmatpush.bf16.msra.mxu0 %v701
      %873 = vmatpush.bf16.msra.mxu0 %v699
      %874 = vmatpush.bf16.msra.mxu0 %v697
      %875 = vmatmul.bf16.gmra.mxu0 %v451
      %v876 = vpop.f32.mrf.mxu0
      %v877 = vadd.f32 %v864, %v876
      %v878 = vpop.f32.mrf.mxu0
      %879 = vdwg.mxu0
      %v880 = vrot.slane %v825, 6
      %v881 = vrot.slane %v877, 6
      %vm882 = vcmp.ge.s32.totalorder %v377, 2
      %vm883 = vcmp.lt.s32.totalorder %v377, 8
      %vm884 = vmand %vm882, %vm883
      %v885 = vsel %vm884, 1, 0
      %vm886 = vcmp.eq.s32.totalorder %v885, 1
      %v887 = vsel %vm886, %v880, 0.0
      %v888 = vsel %vm886, %v881, 0.0
      %v953 = vunpack.c.l.b16 %v312
      %v954 = vunpack.c.h.b16 %v312
      %v955 = vunpack.c.l.b16 %v313
      %v956 = vunpack.c.h.b16 %v313
      %v957 = vunpack.c.l.b16 %v314
      %v958 = vunpack.c.h.b16 %v314
      %v959 = vunpack.c.l.b16 %v315
      %v960 = vunpack.c.h.b16 %v315
      %v961 = vunpack.c.l.b16 %v316
      %v962 = vunpack.c.h.b16 %v316
      %v963 = vunpack.c.l.b16 %v317
      %v964 = vunpack.c.h.b16 %v317
      %v965 = vunpack.c.l.b16 %v318
      %v966 = vunpack.c.h.b16 %v318
      %v967 = vunpack.c.l.b16 %v319
      %v968 = vunpack.c.h.b16 %v319
      %v969 = vunpack.c.l.b16 %v320
      %v970 = vunpack.c.h.b16 %v320
      %v971 = vunpack.c.l.b16 %v321
      %v972 = vunpack.c.h.b16 %v321
      %v973 = vunpack.c.l.b16 %v322
      %v974 = vunpack.c.h.b16 %v322
      %v975 = vunpack.c.l.b16 %v323
      %v976 = vunpack.c.h.b16 %v323
      %v977 = vunpack.c.l.b16 %v324
      %v978 = vunpack.c.h.b16 %v324
      %v979 = vunpack.c.l.b16 %v325
      %v980 = vunpack.c.h.b16 %v325
      %v981 = vunpack.c.l.b16 %v326
      %v982 = vunpack.c.h.b16 %v326
      %v983 = vunpack.c.l.b16 %v327
      %v984 = vunpack.c.h.b16 %v327
      %v985 = vunpack.c.l.b16 %v328
      %v986 = vunpack.c.h.b16 %v328
      %v987 = vunpack.c.l.b16 %v329
      %v988 = vunpack.c.h.b16 %v329
      %v989 = vunpack.c.l.b16 %v330
      %v990 = vunpack.c.h.b16 %v330
      %v991 = vunpack.c.l.b16 %v331
      %v992 = vunpack.c.h.b16 %v331
      %v993 = vunpack.c.l.b16 %v332
      %v994 = vunpack.c.h.b16 %v332
      %v995 = vunpack.c.l.b16 %v333
      %v996 = vunpack.c.h.b16 %v333
      %v997 = vunpack.c.l.b16 %v334
      %v998 = vunpack.c.h.b16 %v334
      %v999 = vunpack.c.l.b16 %v335
      %v1000 = vunpack.c.h.b16 %v335
      %v1001 = vunpack.c.l.b16 %v336
      %v1002 = vunpack.c.h.b16 %v336
      %v1003 = vunpack.c.l.b16 %v337
      %v1004 = vunpack.c.h.b16 %v337
      %v1005 = vunpack.c.l.b16 %v338
      %v1006 = vunpack.c.h.b16 %v338
      %v1007 = vunpack.c.l.b16 %v339
      %v1008 = vunpack.c.h.b16 %v339
      %v1009 = vunpack.c.l.b16 %v340
      %v1010 = vunpack.c.h.b16 %v340
      %v1011 = vunpack.c.l.b16 %v341
      %v1012 = vunpack.c.h.b16 %v341
      %v1013 = vunpack.c.l.b16 %v342
      %v1014 = vunpack.c.h.b16 %v342
      %v1015 = vunpack.c.l.b16 %v343
      %v1016 = vunpack.c.h.b16 %v343
      %v1017 = vunpack.c.l.b16 %v344
      %v1018 = vunpack.c.h.b16 %v344
      %v1019 = vunpack.c.l.b16 %v345
      %v1020 = vunpack.c.h.b16 %v345
      %v1021 = vunpack.c.l.b16 %v346
      %v1022 = vunpack.c.h.b16 %v346
      %v1023 = vunpack.c.l.b16 %v347
      %v1024 = vunpack.c.h.b16 %v347
      %v1025 = vunpack.c.l.b16 %v348
      %v1026 = vunpack.c.h.b16 %v348
      %v1027 = vunpack.c.l.b16 %v349
      %v1028 = vunpack.c.h.b16 %v349
      %v1029 = vunpack.c.l.b16 %v350
      %v1030 = vunpack.c.h.b16 %v350
      %v1031 = vunpack.c.l.b16 %v351
      %v1032 = vunpack.c.h.b16 %v351
      %v1033 = vunpack.c.l.b16 %v352
      %v1034 = vunpack.c.h.b16 %v352
      %v1035 = vunpack.c.l.b16 %v353
      %v1036 = vunpack.c.h.b16 %v353
      %v1037 = vunpack.c.l.b16 %v354
      %v1038 = vunpack.c.h.b16 %v354
      %v1039 = vunpack.c.l.b16 %v355
      %v1040 = vunpack.c.h.b16 %v355
      %v1041 = vunpack.c.l.b16 %v356
      %v1042 = vunpack.c.h.b16 %v356
      %v1043 = vunpack.c.l.b16 %v357
      %v1044 = vunpack.c.h.b16 %v357
      %v1045 = vunpack.c.l.b16 %v358
      %v1046 = vunpack.c.h.b16 %v358
      %v1047 = vunpack.c.l.b16 %v359
      %v1048 = vunpack.c.h.b16 %v359
      %v1049 = vunpack.c.l.b16 %v360
      %v1050 = vunpack.c.h.b16 %v360
      %v1051 = vunpack.c.l.b16 %v361
      %v1052 = vunpack.c.h.b16 %v361
      %v1053 = vunpack.c.l.b16 %v362
      %v1054 = vunpack.c.h.b16 %v362
      %v1055 = vunpack.c.l.b16 %v363
      %v1056 = vunpack.c.h.b16 %v363
      %v1057 = vunpack.c.l.b16 %v364
      %v1058 = vunpack.c.h.b16 %v364
      %v1059 = vunpack.c.l.b16 %v365
      %v1060 = vunpack.c.h.b16 %v365
      %v1061 = vunpack.c.l.b16 %v366
      %v1062 = vunpack.c.h.b16 %v366
      %v1063 = vunpack.c.l.b16 %v367
      %v1064 = vunpack.c.h.b16 %v367
      %v1065 = vunpack.c.l.b16 %v368
      %v1066 = vunpack.c.h.b16 %v368
      %v1067 = vunpack.c.l.b16 %v369
      %v1068 = vunpack.c.h.b16 %v369
      %v1069 = vunpack.c.l.b16 %v370
      %v1070 = vunpack.c.h.b16 %v370
      %v1071 = vunpack.c.l.b16 %v371
      %v1072 = vunpack.c.h.b16 %v371
      %v1073 = vunpack.c.l.b16 %v372
      %v1074 = vunpack.c.h.b16 %v372
      %v1075 = vunpack.c.l.b16 %v373
      %v1076 = vunpack.c.h.b16 %v373
      %v1077 = vunpack.c.l.b16 %v374
      %v1078 = vunpack.c.h.b16 %v374
      %v1079 = vunpack.c.l.b16 %v375
      %v1080 = vunpack.c.h.b16 %v375
      %v1081 = vpack.c.b16 %v955, %v953
      %v1082 = vpack.c.b16 %v956, %v954
      %v1083 = vpack.c.b16 %v959, %v957
      %v1084 = vpack.c.b16 %v960, %v958
      %v1085 = vpack.c.b16 %v963, %v961
      %v1086 = vpack.c.b16 %v964, %v962
      %v1087 = vpack.c.b16 %v967, %v965
      %v1088 = vpack.c.b16 %v968, %v966
      %v1089 = vpack.c.b16 %v971, %v969
      %v1090 = vpack.c.b16 %v972, %v970
      %v1091 = vpack.c.b16 %v975, %v973
      %v1092 = vpack.c.b16 %v976, %v974
      %v1093 = vpack.c.b16 %v979, %v977
      %v1094 = vpack.c.b16 %v980, %v978
      %v1095 = vpack.c.b16 %v983, %v981
      %v1096 = vpack.c.b16 %v984, %v982
      %v1097 = vpack.c.b16 %v987, %v985
      %v1098 = vpack.c.b16 %v988, %v986
      %v1099 = vpack.c.b16 %v991, %v989
      %v1100 = vpack.c.b16 %v992, %v990
      %v1101 = vpack.c.b16 %v995, %v993
      %v1102 = vpack.c.b16 %v996, %v994
      %v1103 = vpack.c.b16 %v999, %v997
      %v1104 = vpack.c.b16 %v1000, %v998
      %v1105 = vpack.c.b16 %v1003, %v1001
      %v1106 = vpack.c.b16 %v1004, %v1002
      %v1107 = vpack.c.b16 %v1007, %v1005
      %v1108 = vpack.c.b16 %v1008, %v1006
      %v1109 = vpack.c.b16 %v1011, %v1009
      %v1110 = vpack.c.b16 %v1012, %v1010
      %v1111 = vpack.c.b16 %v1015, %v1013
      %v1112 = vpack.c.b16 %v1016, %v1014
      %v1113 = vpack.c.b16 %v1019, %v1017
      %v1114 = vpack.c.b16 %v1020, %v1018
      %v1115 = vpack.c.b16 %v1023, %v1021
      %v1116 = vpack.c.b16 %v1024, %v1022
      %v1117 = vpack.c.b16 %v1027, %v1025
      %v1118 = vpack.c.b16 %v1028, %v1026
      %v1119 = vpack.c.b16 %v1031, %v1029
      %v1120 = vpack.c.b16 %v1032, %v1030
      %v1121 = vpack.c.b16 %v1035, %v1033
      %v1122 = vpack.c.b16 %v1036, %v1034
      %v1123 = vpack.c.b16 %v1039, %v1037
      %v1124 = vpack.c.b16 %v1040, %v1038
      %v1125 = vpack.c.b16 %v1043, %v1041
      %v1126 = vpack.c.b16 %v1044, %v1042
      %v1127 = vpack.c.b16 %v1047, %v1045
      %v1128 = vpack.c.b16 %v1048, %v1046
      %v1129 = vpack.c.b16 %v1051, %v1049
      %v1130 = vpack.c.b16 %v1052, %v1050
      %v1131 = vpack.c.b16 %v1055, %v1053
      %v1132 = vpack.c.b16 %v1056, %v1054
      %v1133 = vpack.c.b16 %v1059, %v1057
      %v1134 = vpack.c.b16 %v1060, %v1058
      %v1135 = vpack.c.b16 %v1063, %v1061
      %v1136 = vpack.c.b16 %v1064, %v1062
      %v1137 = vpack.c.b16 %v1067, %v1065
      %v1138 = vpack.c.b16 %v1068, %v1066
      %v1139 = vpack.c.b16 %v1071, %v1069
      %v1140 = vpack.c.b16 %v1072, %v1070
      %v1141 = vpack.c.b16 %v1075, %v1073
      %v1142 = vpack.c.b16 %v1076, %v1074
      %v1143 = vpack.c.b16 %v1079, %v1077
      %v1144 = vpack.c.b16 %v1080, %v1078
      %1209 = vmatpush.bf16.msra.mxu0 %v1095
      %1210 = vmatpush.bf16.msra.mxu0 %v1093
      %1211 = vmatpush.bf16.msra.mxu0 %v1091
      %1212 = vmatpush.bf16.msra.mxu0 %v1089
      %1213 = vmatpush.bf16.msra.mxu0 %v1087
      %1214 = vmatpush.bf16.msra.mxu0 %v1085
      %1215 = vmatpush.bf16.msra.mxu0 %v1083
      %1216 = vmatpush.bf16.msra.mxu0 %v1081
      %1217 = vmatmul.bf16.gmra.mxu0 %v448
      %v1218 = vpop.f32.mrf.mxu0
      %v1219 = vadd.f32 %v887, %v1218
      %v1220 = vpop.f32.mrf.mxu0
      %1221 = vdwg.mxu0
      %1222 = vmatpush.bf16.msra.mxu0 %v1111
      %1223 = vmatpush.bf16.msra.mxu0 %v1109
      %1224 = vmatpush.bf16.msra.mxu0 %v1107
      %1225 = vmatpush.bf16.msra.mxu0 %v1105
      %1226 = vmatpush.bf16.msra.mxu0 %v1103
      %1227 = vmatpush.bf16.msra.mxu0 %v1101
      %1228 = vmatpush.bf16.msra.mxu0 %v1099
      %1229 = vmatpush.bf16.msra.mxu0 %v1097
      %1230 = vmatmul.bf16.gmra.mxu0 %v449
      %v1231 = vpop.f32.mrf.mxu0
      %v1232 = vadd.f32 %v1219, %v1231
      %v1233 = vpop.f32.mrf.mxu0
      %1234 = vdwg.mxu0
      %1235 = vmatpush.bf16.msra.mxu0 %v1127
      %1236 = vmatpush.bf16.msra.mxu0 %v1125
      %1237 = vmatpush.bf16.msra.mxu0 %v1123
      %1238 = vmatpush.bf16.msra.mxu0 %v1121
      %1239 = vmatpush.bf16.msra.mxu0 %v1119
      %1240 = vmatpush.bf16.msra.mxu0 %v1117
      %1241 = vmatpush.bf16.msra.mxu0 %v1115
      %1242 = vmatpush.bf16.msra.mxu0 %v1113
      %1243 = vmatmul.bf16.gmra.mxu0 %v450
      %v1244 = vpop.f32.mrf.mxu0
      %v1245 = vadd.f32 %v1232, %v1244
      %v1246 = vpop.f32.mrf.mxu0
      %1247 = vdwg.mxu0
      %1248 = vmatpush.bf16.msra.mxu0 %v1143
      %1249 = vmatpush.bf16.msra.mxu0 %v1141
      %1250 = vmatpush.bf16.msra.mxu0 %v1139
      %1251 = vmatpush.bf16.msra.mxu0 %v1137
      %1252 = vmatpush.bf16.msra.mxu0 %v1135
      %1253 = vmatpush.bf16.msra.mxu0 %v1133
      %1254 = vmatpush.bf16.msra.mxu0 %v1131
      %1255 = vmatpush.bf16.msra.mxu0 %v1129
      %1256 = vmatmul.bf16.gmra.mxu0 %v451
      %v1257 = vpop.f32.mrf.mxu0
      %v1258 = vadd.f32 %v1245, %v1257
      %v1259 = vpop.f32.mrf.mxu0
      %1260 = vdwg.mxu0
      %1261 = vmatpush.bf16.msra.mxu0 %v1096
      %1262 = vmatpush.bf16.msra.mxu0 %v1094
      %1263 = vmatpush.bf16.msra.mxu0 %v1092
      %1264 = vmatpush.bf16.msra.mxu0 %v1090
      %1265 = vmatpush.bf16.msra.mxu0 %v1088
      %1266 = vmatpush.bf16.msra.mxu0 %v1086
      %1267 = vmatpush.bf16.msra.mxu0 %v1084
      %1268 = vmatpush.bf16.msra.mxu0 %v1082
      %1269 = vmatmul.bf16.gmra.mxu0 %v448
      %v1270 = vpop.f32.mrf.mxu0
      %v1271 = vadd.f32 %v888, %v1270
      %v1272 = vpop.f32.mrf.mxu0
      %1273 = vdwg.mxu0
      %1274 = vmatpush.bf16.msra.mxu0 %v1112
      %1275 = vmatpush.bf16.msra.mxu0 %v1110
      %1276 = vmatpush.bf16.msra.mxu0 %v1108
      %1277 = vmatpush.bf16.msra.mxu0 %v1106
      %1278 = vmatpush.bf16.msra.mxu0 %v1104
      %1279 = vmatpush.bf16.msra.mxu0 %v1102
      %1280 = vmatpush.bf16.msra.mxu0 %v1100
      %1281 = vmatpush.bf16.msra.mxu0 %v1098
      %1282 = vmatmul.bf16.gmra.mxu0 %v449
      %v1283 = vpop.f32.mrf.mxu0
      %v1284 = vadd.f32 %v1271, %v1283
      %v1285 = vpop.f32.mrf.mxu0
      %1286 = vdwg.mxu0
      %1287 = vmatpush.bf16.msra.mxu0 %v1128
      %1288 = vmatpush.bf16.msra.mxu0 %v1126
      %1289 = vmatpush.bf16.msra.mxu0 %v1124
      %1290 = vmatpush.bf16.msra.mxu0 %v1122
      %1291 = vmatpush.bf16.msra.mxu0 %v1120
      %1292 = vmatpush.bf16.msra.mxu0 %v1118
      %1293 = vmatpush.bf16.msra.mxu0 %v1116
      %1294 = vmatpush.bf16.msra.mxu0 %v1114
      %1295 = vmatmul.bf16.gmra.mxu0 %v450
      %v1296 = vpop.f32.mrf.mxu0
      %v1297 = vadd.f32 %v1284, %v1296
      %v1298 = vpop.f32.mrf.mxu0
      %1299 = vdwg.mxu0
      %1300 = vmatpush.bf16.msra.mxu0 %v1144
      %1301 = vmatpush.bf16.msra.mxu0 %v1142
      %1302 = vmatpush.bf16.msra.mxu0 %v1140
      %1303 = vmatpush.bf16.msra.mxu0 %v1138
      %1304 = vmatpush.bf16.msra.mxu0 %v1136
      %1305 = vmatpush.bf16.msra.mxu0 %v1134
      %1306 = vmatpush.bf16.msra.mxu0 %v1132
      %1307 = vmatpush.bf16.msra.mxu0 %v1130
      %1308 = vmatmul.bf16.gmra.mxu0 %v451
      %v1309 = vpop.f32.mrf.mxu0
      %v1310 = vadd.f32 %v1297, %v1309
      %v1311 = vpop.f32.mrf.mxu0
      %1312 = vdwg.mxu0
      %s1313 = scalar_lea.vmem %s3, 512
      %v1314 = vld [vmem:[%s1313] sm:$0xff]
      %v1315 = vld [vmem:[%s1313 + $0x8] sm:$0xff]
      %v1316 = vld [vmem:[%s1313 + $0x10] sm:$0xff]
      %v1317 = vld [vmem:[%s1313 + $0x18] sm:$0xff]
      %v1318 = vld [vmem:[%s1313 + $0x20] sm:$0xff]
      %v1319 = vld [vmem:[%s1313 + $0x28] sm:$0xff]
      %v1320 = vld [vmem:[%s1313 + $0x30] sm:$0xff]
      %v1321 = vld [vmem:[%s1313 + $0x38] sm:$0xff]
      %v1322 = vld [vmem:[%s1313 + $0x40] sm:$0xff]
      %v1323 = vld [vmem:[%s1313 + $0x48] sm:$0xff]
      %v1324 = vld [vmem:[%s1313 + $0x50] sm:$0xff]
      %v1325 = vld [vmem:[%s1313 + $0x58] sm:$0xff]
      %v1326 = vld [vmem:[%s1313 + $0x60] sm:$0xff]
      %v1327 = vld [vmem:[%s1313 + $0x68] sm:$0xff]
      %v1328 = vld [vmem:[%s1313 + $0x70] sm:$0xff]
      %v1329 = vld [vmem:[%s1313 + $0x78] sm:$0xff]
      %v1330 = vld [vmem:[%s1313 + $0x80] sm:$0xff]
      %v1331 = vld [vmem:[%s1313 + $0x88] sm:$0xff]
      %v1332 = vld [vmem:[%s1313 + $0x90] sm:$0xff]
      %v1333 = vld [vmem:[%s1313 + $0x98] sm:$0xff]
      %v1334 = vld [vmem:[%s1313 + $0xa0] sm:$0xff]
      %v1335 = vld [vmem:[%s1313 + $0xa8] sm:$0xff]
      %v1336 = vld [vmem:[%s1313 + $0xb0] sm:$0xff]
      %v1337 = vld [vmem:[%s1313 + $0xb8] sm:$0xff]
      %v1338 = vld [vmem:[%s1313 + $0xc0] sm:$0xff]
      %v1339 = vld [vmem:[%s1313 + $0xc8] sm:$0xff]
      %v1340 = vld [vmem:[%s1313 + $0xd0] sm:$0xff]
      %v1341 = vld [vmem:[%s1313 + $0xd8] sm:$0xff]
      %v1342 = vld [vmem:[%s1313 + $0xe0] sm:$0xff]
      %v1343 = vld [vmem:[%s1313 + $0xe8] sm:$0xff]
      %v1344 = vld [vmem:[%s1313 + $0xf0] sm:$0xff]
      %v1345 = vld [vmem:[%s1313 + $0xf8] sm:$0xff]
      %v1346 = vld [vmem:[%s1313 + $0x100] sm:$0xff]
      %v1347 = vld [vmem:[%s1313 + $0x108] sm:$0xff]
      %v1348 = vld [vmem:[%s1313 + $0x110] sm:$0xff]
      %v1349 = vld [vmem:[%s1313 + $0x118] sm:$0xff]
      %v1350 = vld [vmem:[%s1313 + $0x120] sm:$0xff]
      %v1351 = vld [vmem:[%s1313 + $0x128] sm:$0xff]
      %v1352 = vld [vmem:[%s1313 + $0x130] sm:$0xff]
      %v1353 = vld [vmem:[%s1313 + $0x138] sm:$0xff]
      %v1354 = vld [vmem:[%s1313 + $0x140] sm:$0xff]
      %v1355 = vld [vmem:[%s1313 + $0x148] sm:$0xff]
      %v1356 = vld [vmem:[%s1313 + $0x150] sm:$0xff]
      %v1357 = vld [vmem:[%s1313 + $0x158] sm:$0xff]
      %v1358 = vld [vmem:[%s1313 + $0x160] sm:$0xff]
      %v1359 = vld [vmem:[%s1313 + $0x168] sm:$0xff]
      %v1360 = vld [vmem:[%s1313 + $0x170] sm:$0xff]
      %v1361 = vld [vmem:[%s1313 + $0x178] sm:$0xff]
      %v1362 = vld [vmem:[%s1313 + $0x180] sm:$0xff]
      %v1363 = vld [vmem:[%s1313 + $0x188] sm:$0xff]
      %v1364 = vld [vmem:[%s1313 + $0x190] sm:$0xff]
      %v1365 = vld [vmem:[%s1313 + $0x198] sm:$0xff]
      %v1366 = vld [vmem:[%s1313 + $0x1a0] sm:$0xff]
      %v1367 = vld [vmem:[%s1313 + $0x1a8] sm:$0xff]
      %v1368 = vld [vmem:[%s1313 + $0x1b0] sm:$0xff]
      %v1369 = vld [vmem:[%s1313 + $0x1b8] sm:$0xff]
      %v1370 = vld [vmem:[%s1313 + $0x1c0] sm:$0xff]
      %v1371 = vld [vmem:[%s1313 + $0x1c8] sm:$0xff]
      %v1372 = vld [vmem:[%s1313 + $0x1d0] sm:$0xff]
      %v1373 = vld [vmem:[%s1313 + $0x1d8] sm:$0xff]
      %v1374 = vld [vmem:[%s1313 + $0x1e0] sm:$0xff]
      %v1375 = vld [vmem:[%s1313 + $0x1e8] sm:$0xff]
      %v1376 = vld [vmem:[%s1313 + $0x1f0] sm:$0xff]
      %v1377 = vld [vmem:[%s1313 + $0x1f8] sm:$0xff]
      %v1442 = vunpack.c.l.b16 %v1314
      %v1443 = vunpack.c.h.b16 %v1314
      %v1444 = vunpack.c.l.b16 %v1315
      %v1445 = vunpack.c.h.b16 %v1315
      %v1446 = vunpack.c.l.b16 %v1316
      %v1447 = vunpack.c.h.b16 %v1316
      %v1448 = vunpack.c.l.b16 %v1317
      %v1449 = vunpack.c.h.b16 %v1317
      %v1450 = vunpack.c.l.b16 %v1318
      %v1451 = vunpack.c.h.b16 %v1318
      %v1452 = vunpack.c.l.b16 %v1319
      %v1453 = vunpack.c.h.b16 %v1319
      %v1454 = vunpack.c.l.b16 %v1320
      %v1455 = vunpack.c.h.b16 %v1320
      %v1456 = vunpack.c.l.b16 %v1321
      %v1457 = vunpack.c.h.b16 %v1321
      %v1458 = vunpack.c.l.b16 %v1322
      %v1459 = vunpack.c.h.b16 %v1322
      %v1460 = vunpack.c.l.b16 %v1323
      %v1461 = vunpack.c.h.b16 %v1323
      %v1462 = vunpack.c.l.b16 %v1324
      %v1463 = vunpack.c.h.b16 %v1324
      %v1464 = vunpack.c.l.b16 %v1325
      %v1465 = vunpack.c.h.b16 %v1325
      %v1466 = vunpack.c.l.b16 %v1326
      %v1467 = vunpack.c.h.b16 %v1326
      %v1468 = vunpack.c.l.b16 %v1327
      %v1469 = vunpack.c.h.b16 %v1327
      %v1470 = vunpack.c.l.b16 %v1328
      %v1471 = vunpack.c.h.b16 %v1328
      %v1472 = vunpack.c.l.b16 %v1329
      %v1473 = vunpack.c.h.b16 %v1329
      %v1474 = vunpack.c.l.b16 %v1330
      %v1475 = vunpack.c.h.b16 %v1330
      %v1476 = vunpack.c.l.b16 %v1331
      %v1477 = vunpack.c.h.b16 %v1331
      %v1478 = vunpack.c.l.b16 %v1332
      %v1479 = vunpack.c.h.b16 %v1332
      %v1480 = vunpack.c.l.b16 %v1333
      %v1481 = vunpack.c.h.b16 %v1333
      %v1482 = vunpack.c.l.b16 %v1334
      %v1483 = vunpack.c.h.b16 %v1334
      %v1484 = vunpack.c.l.b16 %v1335
      %v1485 = vunpack.c.h.b16 %v1335
      %v1486 = vunpack.c.l.b16 %v1336
      %v1487 = vunpack.c.h.b16 %v1336
      %v1488 = vunpack.c.l.b16 %v1337
      %v1489 = vunpack.c.h.b16 %v1337
      %v1490 = vunpack.c.l.b16 %v1338
      %v1491 = vunpack.c.h.b16 %v1338
      %v1492 = vunpack.c.l.b16 %v1339
      %v1493 = vunpack.c.h.b16 %v1339
      %v1494 = vunpack.c.l.b16 %v1340
      %v1495 = vunpack.c.h.b16 %v1340
      %v1496 = vunpack.c.l.b16 %v1341
      %v1497 = vunpack.c.h.b16 %v1341
      %v1498 = vunpack.c.l.b16 %v1342
      %v1499 = vunpack.c.h.b16 %v1342
      %v1500 = vunpack.c.l.b16 %v1343
      %v1501 = vunpack.c.h.b16 %v1343
      %v1502 = vunpack.c.l.b16 %v1344
      %v1503 = vunpack.c.h.b16 %v1344
      %v1504 = vunpack.c.l.b16 %v1345
      %v1505 = vunpack.c.h.b16 %v1345
      %v1506 = vunpack.c.l.b16 %v1346
      %v1507 = vunpack.c.h.b16 %v1346
      %v1508 = vunpack.c.l.b16 %v1347
      %v1509 = vunpack.c.h.b16 %v1347
      %v1510 = vunpack.c.l.b16 %v1348
      %v1511 = vunpack.c.h.b16 %v1348
      %v1512 = vunpack.c.l.b16 %v1349
      %v1513 = vunpack.c.h.b16 %v1349
      %v1514 = vunpack.c.l.b16 %v1350
      %v1515 = vunpack.c.h.b16 %v1350
      %v1516 = vunpack.c.l.b16 %v1351
      %v1517 = vunpack.c.h.b16 %v1351
      %v1518 = vunpack.c.l.b16 %v1352
      %v1519 = vunpack.c.h.b16 %v1352
      %v1520 = vunpack.c.l.b16 %v1353
      %v1521 = vunpack.c.h.b16 %v1353
      %v1522 = vunpack.c.l.b16 %v1354
      %v1523 = vunpack.c.h.b16 %v1354
      %v1524 = vunpack.c.l.b16 %v1355
      %v1525 = vunpack.c.h.b16 %v1355
      %v1526 = vunpack.c.l.b16 %v1356
      %v1527 = vunpack.c.h.b16 %v1356
      %v1528 = vunpack.c.l.b16 %v1357
      %v1529 = vunpack.c.h.b16 %v1357
      %v1530 = vunpack.c.l.b16 %v1358
      %v1531 = vunpack.c.h.b16 %v1358
      %v1532 = vunpack.c.l.b16 %v1359
      %v1533 = vunpack.c.h.b16 %v1359
      %v1534 = vunpack.c.l.b16 %v1360
      %v1535 = vunpack.c.h.b16 %v1360
      %v1536 = vunpack.c.l.b16 %v1361
      %v1537 = vunpack.c.h.b16 %v1361
      %v1538 = vunpack.c.l.b16 %v1362
      %v1539 = vunpack.c.h.b16 %v1362
      %v1540 = vunpack.c.l.b16 %v1363
      %v1541 = vunpack.c.h.b16 %v1363
      %v1542 = vunpack.c.l.b16 %v1364
      %v1543 = vunpack.c.h.b16 %v1364
      %v1544 = vunpack.c.l.b16 %v1365
      %v1545 = vunpack.c.h.b16 %v1365
      %v1546 = vunpack.c.l.b16 %v1366
      %v1547 = vunpack.c.h.b16 %v1366
      %v1548 = vunpack.c.l.b16 %v1367
      %v1549 = vunpack.c.h.b16 %v1367
      %v1550 = vunpack.c.l.b16 %v1368
      %v1551 = vunpack.c.h.b16 %v1368
      %v1552 = vunpack.c.l.b16 %v1369
      %v1553 = vunpack.c.h.b16 %v1369
      %v1554 = vunpack.c.l.b16 %v1370
      %v1555 = vunpack.c.h.b16 %v1370
      %v1556 = vunpack.c.l.b16 %v1371
      %v1557 = vunpack.c.h.b16 %v1371
      %v1558 = vunpack.c.l.b16 %v1372
      %v1559 = vunpack.c.h.b16 %v1372
      %v1560 = vunpack.c.l.b16 %v1373
      %v1561 = vunpack.c.h.b16 %v1373
      %v1562 = vunpack.c.l.b16 %v1374
      %v1563 = vunpack.c.h.b16 %v1374
      %v1564 = vunpack.c.l.b16 %v1375
      %v1565 = vunpack.c.h.b16 %v1375
      %v1566 = vunpack.c.l.b16 %v1376
      %v1567 = vunpack.c.h.b16 %v1376
      %v1568 = vunpack.c.l.b16 %v1377
      %v1569 = vunpack.c.h.b16 %v1377
      %v1570 = vpack.c.b16 %v1444, %v1442
      %v1571 = vpack.c.b16 %v1445, %v1443
      %v1572 = vpack.c.b16 %v1448, %v1446
      %v1573 = vpack.c.b16 %v1449, %v1447
      %v1574 = vpack.c.b16 %v1452, %v1450
      %v1575 = vpack.c.b16 %v1453, %v1451
      %v1576 = vpack.c.b16 %v1456, %v1454
      %v1577 = vpack.c.b16 %v1457, %v1455
      %v1578 = vpack.c.b16 %v1460, %v1458
      %v1579 = vpack.c.b16 %v1461, %v1459
      %v1580 = vpack.c.b16 %v1464, %v1462
      %v1581 = vpack.c.b16 %v1465, %v1463
      %v1582 = vpack.c.b16 %v1468, %v1466
      %v1583 = vpack.c.b16 %v1469, %v1467
      %v1584 = vpack.c.b16 %v1472, %v1470
      %v1585 = vpack.c.b16 %v1473, %v1471
      %v1586 = vpack.c.b16 %v1476, %v1474
      %v1587 = vpack.c.b16 %v1477, %v1475
      %v1588 = vpack.c.b16 %v1480, %v1478
      %v1589 = vpack.c.b16 %v1481, %v1479
      %v1590 = vpack.c.b16 %v1484, %v1482
      %v1591 = vpack.c.b16 %v1485, %v1483
      %v1592 = vpack.c.b16 %v1488, %v1486
      %v1593 = vpack.c.b16 %v1489, %v1487
      %v1594 = vpack.c.b16 %v1492, %v1490
      %v1595 = vpack.c.b16 %v1493, %v1491
      %v1596 = vpack.c.b16 %v1496, %v1494
      %v1597 = vpack.c.b16 %v1497, %v1495
      %v1598 = vpack.c.b16 %v1500, %v1498
      %v1599 = vpack.c.b16 %v1501, %v1499
      %v1600 = vpack.c.b16 %v1504, %v1502
      %v1601 = vpack.c.b16 %v1505, %v1503
      %v1602 = vpack.c.b16 %v1508, %v1506
      %v1603 = vpack.c.b16 %v1509, %v1507
      %v1604 = vpack.c.b16 %v1512, %v1510
      %v1605 = vpack.c.b16 %v1513, %v1511
      %v1606 = vpack.c.b16 %v1516, %v1514
      %v1607 = vpack.c.b16 %v1517, %v1515
      %v1608 = vpack.c.b16 %v1520, %v1518
      %v1609 = vpack.c.b16 %v1521, %v1519
      %v1610 = vpack.c.b16 %v1524, %v1522
      %v1611 = vpack.c.b16 %v1525, %v1523
      %v1612 = vpack.c.b16 %v1528, %v1526
      %v1613 = vpack.c.b16 %v1529, %v1527
      %v1614 = vpack.c.b16 %v1532, %v1530
      %v1615 = vpack.c.b16 %v1533, %v1531
      %v1616 = vpack.c.b16 %v1536, %v1534
      %v1617 = vpack.c.b16 %v1537, %v1535
      %v1618 = vpack.c.b16 %v1540, %v1538
      %v1619 = vpack.c.b16 %v1541, %v1539
      %v1620 = vpack.c.b16 %v1544, %v1542
      %v1621 = vpack.c.b16 %v1545, %v1543
      %v1622 = vpack.c.b16 %v1548, %v1546
      %v1623 = vpack.c.b16 %v1549, %v1547
      %v1624 = vpack.c.b16 %v1552, %v1550
      %v1625 = vpack.c.b16 %v1553, %v1551
      %v1626 = vpack.c.b16 %v1556, %v1554
      %v1627 = vpack.c.b16 %v1557, %v1555
      %v1628 = vpack.c.b16 %v1560, %v1558
      %v1629 = vpack.c.b16 %v1561, %v1559
      %v1630 = vpack.c.b16 %v1564, %v1562
      %v1631 = vpack.c.b16 %v1565, %v1563
      %v1632 = vpack.c.b16 %v1568, %v1566
      %v1633 = vpack.c.b16 %v1569, %v1567
      %1698 = vmatpush.bf16.msra.mxu0 %v1584
      %1699 = vmatpush.bf16.msra.mxu0 %v1582
      %1700 = vmatpush.bf16.msra.mxu0 %v1580
      %1701 = vmatpush.bf16.msra.mxu0 %v1578
      %1702 = vmatpush.bf16.msra.mxu0 %v1576
      %1703 = vmatpush.bf16.msra.mxu0 %v1574
      %1704 = vmatpush.bf16.msra.mxu0 %v1572
      %1705 = vmatpush.bf16.msra.mxu0 %v1570
      %1706 = vmatmul.bf16.gmra.mxu0 %v448
      %v1707 = vpop.f32.mrf.mxu0
      %v1708 = vadd.f32 0.0, %v1707
      %v1709 = vpop.f32.mrf.mxu0
      %1710 = vdwg.mxu0
      %1711 = vmatpush.bf16.msra.mxu0 %v1600
      %1712 = vmatpush.bf16.msra.mxu0 %v1598
      %1713 = vmatpush.bf16.msra.mxu0 %v1596
      %1714 = vmatpush.bf16.msra.mxu0 %v1594
      %1715 = vmatpush.bf16.msra.mxu0 %v1592
      %1716 = vmatpush.bf16.msra.mxu0 %v1590
      %1717 = vmatpush.bf16.msra.mxu0 %v1588
      %1718 = vmatpush.bf16.msra.mxu0 %v1586
      %1719 = vmatmul.bf16.gmra.mxu0 %v449
      %v1720 = vpop.f32.mrf.mxu0
      %v1721 = vadd.f32 %v1708, %v1720
      %v1722 = vpop.f32.mrf.mxu0
      %1723 = vdwg.mxu0
      %1724 = vmatpush.bf16.msra.mxu0 %v1616
      %1725 = vmatpush.bf16.msra.mxu0 %v1614
      %1726 = vmatpush.bf16.msra.mxu0 %v1612
      %1727 = vmatpush.bf16.msra.mxu0 %v1610
      %1728 = vmatpush.bf16.msra.mxu0 %v1608
      %1729 = vmatpush.bf16.msra.mxu0 %v1606
      %1730 = vmatpush.bf16.msra.mxu0 %v1604
      %1731 = vmatpush.bf16.msra.mxu0 %v1602
      %1732 = vmatmul.bf16.gmra.mxu0 %v450
      %v1733 = vpop.f32.mrf.mxu0
      %v1734 = vadd.f32 %v1721, %v1733
      %v1735 = vpop.f32.mrf.mxu0
      %1736 = vdwg.mxu0
      %1737 = vmatpush.bf16.msra.mxu0 %v1632
      %1738 = vmatpush.bf16.msra.mxu0 %v1630
      %1739 = vmatpush.bf16.msra.mxu0 %v1628
      %1740 = vmatpush.bf16.msra.mxu0 %v1626
      %1741 = vmatpush.bf16.msra.mxu0 %v1624
      %1742 = vmatpush.bf16.msra.mxu0 %v1622
      %1743 = vmatpush.bf16.msra.mxu0 %v1620
      %1744 = vmatpush.bf16.msra.mxu0 %v1618
      %1745 = vmatmul.bf16.gmra.mxu0 %v451
      %v1746 = vpop.f32.mrf.mxu0
      %v1747 = vadd.f32 %v1734, %v1746
      %v1748 = vpop.f32.mrf.mxu0
      %1749 = vdwg.mxu0
      %1750 = vmatpush.bf16.msra.mxu0 %v1585
      %1751 = vmatpush.bf16.msra.mxu0 %v1583
      %1752 = vmatpush.bf16.msra.mxu0 %v1581
      %1753 = vmatpush.bf16.msra.mxu0 %v1579
      %1754 = vmatpush.bf16.msra.mxu0 %v1577
      %1755 = vmatpush.bf16.msra.mxu0 %v1575
      %1756 = vmatpush.bf16.msra.mxu0 %v1573
      %1757 = vmatpush.bf16.msra.mxu0 %v1571
      %1758 = vmatmul.bf16.gmra.mxu0 %v448
      %v1759 = vpop.f32.mrf.mxu0
      %v1760 = vadd.f32 0.0, %v1759
      %v1761 = vpop.f32.mrf.mxu0
      %1762 = vdwg.mxu0
      %1763 = vmatpush.bf16.msra.mxu0 %v1601
      %1764 = vmatpush.bf16.msra.mxu0 %v1599
      %1765 = vmatpush.bf16.msra.mxu0 %v1597
      %1766 = vmatpush.bf16.msra.mxu0 %v1595
      %1767 = vmatpush.bf16.msra.mxu0 %v1593
      %1768 = vmatpush.bf16.msra.mxu0 %v1591
      %1769 = vmatpush.bf16.msra.mxu0 %v1589
      %1770 = vmatpush.bf16.msra.mxu0 %v1587
      %1771 = vmatmul.bf16.gmra.mxu0 %v449
      %v1772 = vpop.f32.mrf.mxu0
      %v1773 = vadd.f32 %v1760, %v1772
      %v1774 = vpop.f32.mrf.mxu0
      %1775 = vdwg.mxu0
      %1776 = vmatpush.bf16.msra.mxu0 %v1617
      %1777 = vmatpush.bf16.msra.mxu0 %v1615
      %1778 = vmatpush.bf16.msra.mxu0 %v1613
      %1779 = vmatpush.bf16.msra.mxu0 %v1611
      %1780 = vmatpush.bf16.msra.mxu0 %v1609
      %1781 = vmatpush.bf16.msra.mxu0 %v1607
      %1782 = vmatpush.bf16.msra.mxu0 %v1605
      %1783 = vmatpush.bf16.msra.mxu0 %v1603
      %1784 = vmatmul.bf16.gmra.mxu0 %v450
      %v1785 = vpop.f32.mrf.mxu0
      %v1786 = vadd.f32 %v1773, %v1785
      %v1787 = vpop.f32.mrf.mxu0
      %1788 = vdwg.mxu0
      %1789 = vmatpush.bf16.msra.mxu0 %v1633
      %1790 = vmatpush.bf16.msra.mxu0 %v1631
      %1791 = vmatpush.bf16.msra.mxu0 %v1629
      %1792 = vmatpush.bf16.msra.mxu0 %v1627
      %1793 = vmatpush.bf16.msra.mxu0 %v1625
      %1794 = vmatpush.bf16.msra.mxu0 %v1623
      %1795 = vmatpush.bf16.msra.mxu0 %v1621
      %1796 = vmatpush.bf16.msra.mxu0 %v1619
      %1797 = vmatmul.bf16.gmra.mxu0 %v451
      %v1798 = vpop.f32.mrf.mxu0
      %v1799 = vadd.f32 %v1786, %v1798
      %v1800 = vpop.f32.mrf.mxu0
      %1801 = vdwg.mxu0
      %v1802 = vrot.slane %v1747, 7
      %v1803 = vrot.slane %v1799, 7
      %vm1804 = vcmp.ge.s32.totalorder %v377, 1
      %vm1805 = vmand %vm1804, %vm883
      %v1806 = vsel %vm1805, 1, 0
      %vm1807 = vcmp.eq.s32.totalorder %v1806, 1
      %v1808 = vsel %vm1807, %v1802, 0.0
      %v1809 = vsel %vm1807, %v1803, 0.0
      %v1810 = vadd.f32 %v1258, %v1808
      %v1811 = vadd.f32 %v1310, %v1809
      %s1812 = scalar_lea.vmem %s3, 1536
      %v1813 = vld [vmem:[%s1812] sm:$0xff]
      %v1814 = vld [vmem:[%s1812 + $0x8] sm:$0xff]
      %v1815 = vld [vmem:[%s1812 + $0x10] sm:$0xff]
      %v1816 = vld [vmem:[%s1812 + $0x18] sm:$0xff]
      %v1817 = vld [vmem:[%s1812 + $0x20] sm:$0xff]
      %v1818 = vld [vmem:[%s1812 + $0x28] sm:$0xff]
      %v1819 = vld [vmem:[%s1812 + $0x30] sm:$0xff]
      %v1820 = vld [vmem:[%s1812 + $0x38] sm:$0xff]
      %v1821 = vld [vmem:[%s1812 + $0x40] sm:$0xff]
      %v1822 = vld [vmem:[%s1812 + $0x48] sm:$0xff]
      %v1823 = vld [vmem:[%s1812 + $0x50] sm:$0xff]
      %v1824 = vld [vmem:[%s1812 + $0x58] sm:$0xff]
      %v1825 = vld [vmem:[%s1812 + $0x60] sm:$0xff]
      %v1826 = vld [vmem:[%s1812 + $0x68] sm:$0xff]
      %v1827 = vld [vmem:[%s1812 + $0x70] sm:$0xff]
      %v1828 = vld [vmem:[%s1812 + $0x78] sm:$0xff]
      %v1829 = vld [vmem:[%s1812 + $0x80] sm:$0xff]
      %v1830 = vld [vmem:[%s1812 + $0x88] sm:$0xff]
      %v1831 = vld [vmem:[%s1812 + $0x90] sm:$0xff]
      %v1832 = vld [vmem:[%s1812 + $0x98] sm:$0xff]
      %v1833 = vld [vmem:[%s1812 + $0xa0] sm:$0xff]
      %v1834 = vld [vmem:[%s1812 + $0xa8] sm:$0xff]
      %v1835 = vld [vmem:[%s1812 + $0xb0] sm:$0xff]
      %v1836 = vld [vmem:[%s1812 + $0xb8] sm:$0xff]
      %v1837 = vld [vmem:[%s1812 + $0xc0] sm:$0xff]
      %v1838 = vld [vmem:[%s1812 + $0xc8] sm:$0xff]
      %v1839 = vld [vmem:[%s1812 + $0xd0] sm:$0xff]
      %v1840 = vld [vmem:[%s1812 + $0xd8] sm:$0xff]
      %v1841 = vld [vmem:[%s1812 + $0xe0] sm:$0xff]
      %v1842 = vld [vmem:[%s1812 + $0xe8] sm:$0xff]
      %v1843 = vld [vmem:[%s1812 + $0xf0] sm:$0xff]
      %v1844 = vld [vmem:[%s1812 + $0xf8] sm:$0xff]
      %v1845 = vld [vmem:[%s1812 + $0x100] sm:$0xff]
      %v1846 = vld [vmem:[%s1812 + $0x108] sm:$0xff]
      %v1847 = vld [vmem:[%s1812 + $0x110] sm:$0xff]
      %v1848 = vld [vmem:[%s1812 + $0x118] sm:$0xff]
      %v1849 = vld [vmem:[%s1812 + $0x120] sm:$0xff]
      %v1850 = vld [vmem:[%s1812 + $0x128] sm:$0xff]
      %v1851 = vld [vmem:[%s1812 + $0x130] sm:$0xff]
      %v1852 = vld [vmem:[%s1812 + $0x138] sm:$0xff]
      %v1853 = vld [vmem:[%s1812 + $0x140] sm:$0xff]
      %v1854 = vld [vmem:[%s1812 + $0x148] sm:$0xff]
      %v1855 = vld [vmem:[%s1812 + $0x150] sm:$0xff]
      %v1856 = vld [vmem:[%s1812 + $0x158] sm:$0xff]
      %v1857 = vld [vmem:[%s1812 + $0x160] sm:$0xff]
      %v1858 = vld [vmem:[%s1812 + $0x168] sm:$0xff]
      %v1859 = vld [vmem:[%s1812 + $0x170] sm:$0xff]
      %v1860 = vld [vmem:[%s1812 + $0x178] sm:$0xff]
      %v1861 = vld [vmem:[%s1812 + $0x180] sm:$0xff]
      %v1862 = vld [vmem:[%s1812 + $0x188] sm:$0xff]
      %v1863 = vld [vmem:[%s1812 + $0x190] sm:$0xff]
      %v1864 = vld [vmem:[%s1812 + $0x198] sm:$0xff]
      %v1865 = vld [vmem:[%s1812 + $0x1a0] sm:$0xff]
      %v1866 = vld [vmem:[%s1812 + $0x1a8] sm:$0xff]
      %v1867 = vld [vmem:[%s1812 + $0x1b0] sm:$0xff]
      %v1868 = vld [vmem:[%s1812 + $0x1b8] sm:$0xff]
      %v1869 = vld [vmem:[%s1812 + $0x1c0] sm:$0xff]
      %v1870 = vld [vmem:[%s1812 + $0x1c8] sm:$0xff]
      %v1871 = vld [vmem:[%s1812 + $0x1d0] sm:$0xff]
      %v1872 = vld [vmem:[%s1812 + $0x1d8] sm:$0xff]
      %v1873 = vld [vmem:[%s1812 + $0x1e0] sm:$0xff]
      %v1874 = vld [vmem:[%s1812 + $0x1e8] sm:$0xff]
      %v1875 = vld [vmem:[%s1812 + $0x1f0] sm:$0xff]
      %v1876 = vld [vmem:[%s1812 + $0x1f8] sm:$0xff]
      %v1941 = vunpack.c.l.b16 %v1813
      %v1942 = vunpack.c.h.b16 %v1813
      %v1943 = vunpack.c.l.b16 %v1814
      %v1944 = vunpack.c.h.b16 %v1814
      %v1945 = vunpack.c.l.b16 %v1815
      %v1946 = vunpack.c.h.b16 %v1815
      %v1947 = vunpack.c.l.b16 %v1816
      %v1948 = vunpack.c.h.b16 %v1816
      %v1949 = vunpack.c.l.b16 %v1817
      %v1950 = vunpack.c.h.b16 %v1817
      %v1951 = vunpack.c.l.b16 %v1818
      %v1952 = vunpack.c.h.b16 %v1818
      %v1953 = vunpack.c.l.b16 %v1819
      %v1954 = vunpack.c.h.b16 %v1819
      %v1955 = vunpack.c.l.b16 %v1820
      %v1956 = vunpack.c.h.b16 %v1820
      %v1957 = vunpack.c.l.b16 %v1821
      %v1958 = vunpack.c.h.b16 %v1821
      %v1959 = vunpack.c.l.b16 %v1822
      %v1960 = vunpack.c.h.b16 %v1822
      %v1961 = vunpack.c.l.b16 %v1823
      %v1962 = vunpack.c.h.b16 %v1823
      %v1963 = vunpack.c.l.b16 %v1824
      %v1964 = vunpack.c.h.b16 %v1824
      %v1965 = vunpack.c.l.b16 %v1825
      %v1966 = vunpack.c.h.b16 %v1825
      %v1967 = vunpack.c.l.b16 %v1826
      %v1968 = vunpack.c.h.b16 %v1826
      %v1969 = vunpack.c.l.b16 %v1827
      %v1970 = vunpack.c.h.b16 %v1827
      %v1971 = vunpack.c.l.b16 %v1828
      %v1972 = vunpack.c.h.b16 %v1828
      %v1973 = vunpack.c.l.b16 %v1829
      %v1974 = vunpack.c.h.b16 %v1829
      %v1975 = vunpack.c.l.b16 %v1830
      %v1976 = vunpack.c.h.b16 %v1830
      %v1977 = vunpack.c.l.b16 %v1831
      %v1978 = vunpack.c.h.b16 %v1831
      %v1979 = vunpack.c.l.b16 %v1832
      %v1980 = vunpack.c.h.b16 %v1832
      %v1981 = vunpack.c.l.b16 %v1833
      %v1982 = vunpack.c.h.b16 %v1833
      %v1983 = vunpack.c.l.b16 %v1834
      %v1984 = vunpack.c.h.b16 %v1834
      %v1985 = vunpack.c.l.b16 %v1835
      %v1986 = vunpack.c.h.b16 %v1835
      %v1987 = vunpack.c.l.b16 %v1836
      %v1988 = vunpack.c.h.b16 %v1836
      %v1989 = vunpack.c.l.b16 %v1837
      %v1990 = vunpack.c.h.b16 %v1837
      %v1991 = vunpack.c.l.b16 %v1838
      %v1992 = vunpack.c.h.b16 %v1838
      %v1993 = vunpack.c.l.b16 %v1839
      %v1994 = vunpack.c.h.b16 %v1839
      %v1995 = vunpack.c.l.b16 %v1840
      %v1996 = vunpack.c.h.b16 %v1840
      %v1997 = vunpack.c.l.b16 %v1841
      %v1998 = vunpack.c.h.b16 %v1841
      %v1999 = vunpack.c.l.b16 %v1842
      %v2000 = vunpack.c.h.b16 %v1842
      %v2001 = vunpack.c.l.b16 %v1843
      %v2002 = vunpack.c.h.b16 %v1843
      %v2003 = vunpack.c.l.b16 %v1844
      %v2004 = vunpack.c.h.b16 %v1844
      %v2005 = vunpack.c.l.b16 %v1845
      %v2006 = vunpack.c.h.b16 %v1845
      %v2007 = vunpack.c.l.b16 %v1846
      %v2008 = vunpack.c.h.b16 %v1846
      %v2009 = vunpack.c.l.b16 %v1847
      %v2010 = vunpack.c.h.b16 %v1847
      %v2011 = vunpack.c.l.b16 %v1848
      %v2012 = vunpack.c.h.b16 %v1848
      %v2013 = vunpack.c.l.b16 %v1849
      %v2014 = vunpack.c.h.b16 %v1849
      %v2015 = vunpack.c.l.b16 %v1850
      %v2016 = vunpack.c.h.b16 %v1850
      %v2017 = vunpack.c.l.b16 %v1851
      %v2018 = vunpack.c.h.b16 %v1851
      %v2019 = vunpack.c.l.b16 %v1852
      %v2020 = vunpack.c.h.b16 %v1852
      %v2021 = vunpack.c.l.b16 %v1853
      %v2022 = vunpack.c.h.b16 %v1853
      %v2023 = vunpack.c.l.b16 %v1854
      %v2024 = vunpack.c.h.b16 %v1854
      %v2025 = vunpack.c.l.b16 %v1855
      %v2026 = vunpack.c.h.b16 %v1855
      %v2027 = vunpack.c.l.b16 %v1856
      %v2028 = vunpack.c.h.b16 %v1856
      %v2029 = vunpack.c.l.b16 %v1857
      %v2030 = vunpack.c.h.b16 %v1857
      %v2031 = vunpack.c.l.b16 %v1858
      %v2032 = vunpack.c.h.b16 %v1858
      %v2033 = vunpack.c.l.b16 %v1859
      %v2034 = vunpack.c.h.b16 %v1859
      %v2035 = vunpack.c.l.b16 %v1860
      %v2036 = vunpack.c.h.b16 %v1860
      %v2037 = vunpack.c.l.b16 %v1861
      %v2038 = vunpack.c.h.b16 %v1861
      %v2039 = vunpack.c.l.b16 %v1862
      %v2040 = vunpack.c.h.b16 %v1862
      %v2041 = vunpack.c.l.b16 %v1863
      %v2042 = vunpack.c.h.b16 %v1863
      %v2043 = vunpack.c.l.b16 %v1864
      %v2044 = vunpack.c.h.b16 %v1864
      %v2045 = vunpack.c.l.b16 %v1865
      %v2046 = vunpack.c.h.b16 %v1865
      %v2047 = vunpack.c.l.b16 %v1866
      %v2048 = vunpack.c.h.b16 %v1866
      %v2049 = vunpack.c.l.b16 %v1867
      %v2050 = vunpack.c.h.b16 %v1867
      %v2051 = vunpack.c.l.b16 %v1868
      %v2052 = vunpack.c.h.b16 %v1868
      %v2053 = vunpack.c.l.b16 %v1869
      %v2054 = vunpack.c.h.b16 %v1869
      %v2055 = vunpack.c.l.b16 %v1870
      %v2056 = vunpack.c.h.b16 %v1870
      %v2057 = vunpack.c.l.b16 %v1871
      %v2058 = vunpack.c.h.b16 %v1871
      %v2059 = vunpack.c.l.b16 %v1872
      %v2060 = vunpack.c.h.b16 %v1872
      %v2061 = vunpack.c.l.b16 %v1873
      %v2062 = vunpack.c.h.b16 %v1873
      %v2063 = vunpack.c.l.b16 %v1874
      %v2064 = vunpack.c.h.b16 %v1874
      %v2065 = vunpack.c.l.b16 %v1875
      %v2066 = vunpack.c.h.b16 %v1875
      %v2067 = vunpack.c.l.b16 %v1876
      %v2068 = vunpack.c.h.b16 %v1876
      %v2069 = vpack.c.b16 %v1943, %v1941
      %v2070 = vpack.c.b16 %v1944, %v1942
      %v2071 = vpack.c.b16 %v1947, %v1945
      %v2072 = vpack.c.b16 %v1948, %v1946
      %v2073 = vpack.c.b16 %v1951, %v1949
      %v2074 = vpack.c.b16 %v1952, %v1950
      %v2075 = vpack.c.b16 %v1955, %v1953
      %v2076 = vpack.c.b16 %v1956, %v1954
      %v2077 = vpack.c.b16 %v1959, %v1957
      %v2078 = vpack.c.b16 %v1960, %v1958
      %v2079 = vpack.c.b16 %v1963, %v1961
      %v2080 = vpack.c.b16 %v1964, %v1962
      %v2081 = vpack.c.b16 %v1967, %v1965
      %v2082 = vpack.c.b16 %v1968, %v1966
      %v2083 = vpack.c.b16 %v1971, %v1969
      %v2084 = vpack.c.b16 %v1972, %v1970
      %v2085 = vpack.c.b16 %v1975, %v1973
      %v2086 = vpack.c.b16 %v1976, %v1974
      %v2087 = vpack.c.b16 %v1979, %v1977
      %v2088 = vpack.c.b16 %v1980, %v1978
      %v2089 = vpack.c.b16 %v1983, %v1981
      %v2090 = vpack.c.b16 %v1984, %v1982
      %v2091 = vpack.c.b16 %v1987, %v1985
      %v2092 = vpack.c.b16 %v1988, %v1986
      %v2093 = vpack.c.b16 %v1991, %v1989
      %v2094 = vpack.c.b16 %v1992, %v1990
      %v2095 = vpack.c.b16 %v1995, %v1993
      %v2096 = vpack.c.b16 %v1996, %v1994
      %v2097 = vpack.c.b16 %v1999, %v1997
      %v2098 = vpack.c.b16 %v2000, %v1998
      %v2099 = vpack.c.b16 %v2003, %v2001
      %v2100 = vpack.c.b16 %v2004, %v2002
      %v2101 = vpack.c.b16 %v2007, %v2005
      %v2102 = vpack.c.b16 %v2008, %v2006
      %v2103 = vpack.c.b16 %v2011, %v2009
      %v2104 = vpack.c.b16 %v2012, %v2010
      %v2105 = vpack.c.b16 %v2015, %v2013
      %v2106 = vpack.c.b16 %v2016, %v2014
      %v2107 = vpack.c.b16 %v2019, %v2017
      %v2108 = vpack.c.b16 %v2020, %v2018
      %v2109 = vpack.c.b16 %v2023, %v2021
      %v2110 = vpack.c.b16 %v2024, %v2022
      %v2111 = vpack.c.b16 %v2027, %v2025
      %v2112 = vpack.c.b16 %v2028, %v2026
      %v2113 = vpack.c.b16 %v2031, %v2029
      %v2114 = vpack.c.b16 %v2032, %v2030
      %v2115 = vpack.c.b16 %v2035, %v2033
      %v2116 = vpack.c.b16 %v2036, %v2034
      %v2117 = vpack.c.b16 %v2039, %v2037
      %v2118 = vpack.c.b16 %v2040, %v2038
      %v2119 = vpack.c.b16 %v2043, %v2041
      %v2120 = vpack.c.b16 %v2044, %v2042
      %v2121 = vpack.c.b16 %v2047, %v2045
      %v2122 = vpack.c.b16 %v2048, %v2046
      %v2123 = vpack.c.b16 %v2051, %v2049
      %v2124 = vpack.c.b16 %v2052, %v2050
      %v2125 = vpack.c.b16 %v2055, %v2053
      %v2126 = vpack.c.b16 %v2056, %v2054
      %v2127 = vpack.c.b16 %v2059, %v2057
      %v2128 = vpack.c.b16 %v2060, %v2058
      %v2129 = vpack.c.b16 %v2063, %v2061
      %v2130 = vpack.c.b16 %v2064, %v2062
      %v2131 = vpack.c.b16 %v2067, %v2065
      %v2132 = vpack.c.b16 %v2068, %v2066
      %2197 = vmatpush.bf16.msra.mxu0 %v2083
      %2198 = vmatpush.bf16.msra.mxu0 %v2081
      %2199 = vmatpush.bf16.msra.mxu0 %v2079
      %2200 = vmatpush.bf16.msra.mxu0 %v2077
      %2201 = vmatpush.bf16.msra.mxu0 %v2075
      %2202 = vmatpush.bf16.msra.mxu0 %v2073
      %2203 = vmatpush.bf16.msra.mxu0 %v2071
      %2204 = vmatpush.bf16.msra.mxu0 %v2069
      %2205 = vmatmul.bf16.gmra.mxu0 %v448
      %v2206 = vpop.f32.mrf.mxu0
      %v2207 = vadd.f32 0.0, %v2206
      %v2208 = vpop.f32.mrf.mxu0
      %2209 = vdwg.mxu0
      %2210 = vmatpush.bf16.msra.mxu0 %v2099
      %2211 = vmatpush.bf16.msra.mxu0 %v2097
      %2212 = vmatpush.bf16.msra.mxu0 %v2095
      %2213 = vmatpush.bf16.msra.mxu0 %v2093
      %2214 = vmatpush.bf16.msra.mxu0 %v2091
      %2215 = vmatpush.bf16.msra.mxu0 %v2089
      %2216 = vmatpush.bf16.msra.mxu0 %v2087
      %2217 = vmatpush.bf16.msra.mxu0 %v2085
      %2218 = vmatmul.bf16.gmra.mxu0 %v449
      %v2219 = vpop.f32.mrf.mxu0
      %v2220 = vadd.f32 %v2207, %v2219
      %v2221 = vpop.f32.mrf.mxu0
      %2222 = vdwg.mxu0
      %2223 = vmatpush.bf16.msra.mxu0 %v2115
      %2224 = vmatpush.bf16.msra.mxu0 %v2113
      %2225 = vmatpush.bf16.msra.mxu0 %v2111
      %2226 = vmatpush.bf16.msra.mxu0 %v2109
      %2227 = vmatpush.bf16.msra.mxu0 %v2107
      %2228 = vmatpush.bf16.msra.mxu0 %v2105
      %2229 = vmatpush.bf16.msra.mxu0 %v2103
      %2230 = vmatpush.bf16.msra.mxu0 %v2101
      %2231 = vmatmul.bf16.gmra.mxu0 %v450
      %v2232 = vpop.f32.mrf.mxu0
      %v2233 = vadd.f32 %v2220, %v2232
      %v2234 = vpop.f32.mrf.mxu0
      %2235 = vdwg.mxu0
      %2236 = vmatpush.bf16.msra.mxu0 %v2131
      %2237 = vmatpush.bf16.msra.mxu0 %v2129
      %2238 = vmatpush.bf16.msra.mxu0 %v2127
      %2239 = vmatpush.bf16.msra.mxu0 %v2125
      %2240 = vmatpush.bf16.msra.mxu0 %v2123
      %2241 = vmatpush.bf16.msra.mxu0 %v2121
      %2242 = vmatpush.bf16.msra.mxu0 %v2119
      %2243 = vmatpush.bf16.msra.mxu0 %v2117
      %2244 = vmatmul.bf16.gmra.mxu0 %v451
      %v2245 = vpop.f32.mrf.mxu0
      %v2246 = vadd.f32 %v2233, %v2245
      %v2247 = vpop.f32.mrf.mxu0
      %2248 = vdwg.mxu0
      %2249 = vmatpush.bf16.msra.mxu0 %v2084
      %2250 = vmatpush.bf16.msra.mxu0 %v2082
      %2251 = vmatpush.bf16.msra.mxu0 %v2080
      %2252 = vmatpush.bf16.msra.mxu0 %v2078
      %2253 = vmatpush.bf16.msra.mxu0 %v2076
      %2254 = vmatpush.bf16.msra.mxu0 %v2074
      %2255 = vmatpush.bf16.msra.mxu0 %v2072
      %2256 = vmatpush.bf16.msra.mxu0 %v2070
      %2257 = vmatmul.bf16.gmra.mxu0 %v448
      %v2258 = vpop.f32.mrf.mxu0
      %v2259 = vadd.f32 0.0, %v2258
      %v2260 = vpop.f32.mrf.mxu0
      %2261 = vdwg.mxu0
      %2262 = vmatpush.bf16.msra.mxu0 %v2100
      %2263 = vmatpush.bf16.msra.mxu0 %v2098
      %2264 = vmatpush.bf16.msra.mxu0 %v2096
      %2265 = vmatpush.bf16.msra.mxu0 %v2094
      %2266 = vmatpush.bf16.msra.mxu0 %v2092
      %2267 = vmatpush.bf16.msra.mxu0 %v2090
      %2268 = vmatpush.bf16.msra.mxu0 %v2088
      %2269 = vmatpush.bf16.msra.mxu0 %v2086
      %2270 = vmatmul.bf16.gmra.mxu0 %v449
      %v2271 = vpop.f32.mrf.mxu0
      %v2272 = vadd.f32 %v2259, %v2271
      %v2273 = vpop.f32.mrf.mxu0
      %2274 = vdwg.mxu0
      %2275 = vmatpush.bf16.msra.mxu0 %v2116
      %2276 = vmatpush.bf16.msra.mxu0 %v2114
      %2277 = vmatpush.bf16.msra.mxu0 %v2112
      %2278 = vmatpush.bf16.msra.mxu0 %v2110
      %2279 = vmatpush.bf16.msra.mxu0 %v2108
      %2280 = vmatpush.bf16.msra.mxu0 %v2106
      %2281 = vmatpush.bf16.msra.mxu0 %v2104
      %2282 = vmatpush.bf16.msra.mxu0 %v2102
      %2283 = vmatmul.bf16.gmra.mxu0 %v450
      %v2284 = vpop.f32.mrf.mxu0
      %v2285 = vadd.f32 %v2272, %v2284
      %v2286 = vpop.f32.mrf.mxu0
      %2287 = vdwg.mxu0
      %2288 = vmatpush.bf16.msra.mxu0 %v2132
      %2289 = vmatpush.bf16.msra.mxu0 %v2130
      %2290 = vmatpush.bf16.msra.mxu0 %v2128
      %2291 = vmatpush.bf16.msra.mxu0 %v2126
      %2292 = vmatpush.bf16.msra.mxu0 %v2124
      %2293 = vmatpush.bf16.msra.mxu0 %v2122
      %2294 = vmatpush.bf16.msra.mxu0 %v2120
      %2295 = vmatpush.bf16.msra.mxu0 %v2118
      %2296 = vmatmul.bf16.gmra.mxu0 %v451
      %v2297 = vpop.f32.mrf.mxu0
      %v2298 = vadd.f32 %v2285, %v2297
      %v2299 = vpop.f32.mrf.mxu0
      %2300 = vdwg.mxu0
      %v2301 = vrot.slane %v2246, 1
      %v2302 = vrot.slane %v2298, 1
      %vm2303 = vcmp.ge.s32.totalorder %v377, 0
      %vm2304 = vcmp.lt.s32.totalorder %v377, 7
      %vm2305 = vmand %vm2303, %vm2304
      %v2306 = vsel %vm2305, 1, 0
      %vm2307 = vcmp.eq.s32.totalorder %v2306, 1
      %v2308 = vsel %vm2307, %v2301, 0.0
      %v2309 = vsel %vm2307, %v2302, 0.0
      %v2310 = vadd.f32 %v1810, %v2308
      %v2311 = vadd.f32 %v1811, %v2309
      %s2312 = scalar_lea.vmem %s3, 2048
      %v2313 = vld [vmem:[%s2312] sm:$0xff]
      %v2314 = vld [vmem:[%s2312 + $0x8] sm:$0xff]
      %v2315 = vld [vmem:[%s2312 + $0x10] sm:$0xff]
      %v2316 = vld [vmem:[%s2312 + $0x18] sm:$0xff]
      %v2317 = vld [vmem:[%s2312 + $0x20] sm:$0xff]
      %v2318 = vld [vmem:[%s2312 + $0x28] sm:$0xff]
      %v2319 = vld [vmem:[%s2312 + $0x30] sm:$0xff]
      %v2320 = vld [vmem:[%s2312 + $0x38] sm:$0xff]
      %v2321 = vld [vmem:[%s2312 + $0x40] sm:$0xff]
      %v2322 = vld [vmem:[%s2312 + $0x48] sm:$0xff]
      %v2323 = vld [vmem:[%s2312 + $0x50] sm:$0xff]
      %v2324 = vld [vmem:[%s2312 + $0x58] sm:$0xff]
      %v2325 = vld [vmem:[%s2312 + $0x60] sm:$0xff]
      %v2326 = vld [vmem:[%s2312 + $0x68] sm:$0xff]
      %v2327 = vld [vmem:[%s2312 + $0x70] sm:$0xff]
      %v2328 = vld [vmem:[%s2312 + $0x78] sm:$0xff]
      %v2329 = vld [vmem:[%s2312 + $0x80] sm:$0xff]
      %v2330 = vld [vmem:[%s2312 + $0x88] sm:$0xff]
      %v2331 = vld [vmem:[%s2312 + $0x90] sm:$0xff]
      %v2332 = vld [vmem:[%s2312 + $0x98] sm:$0xff]
      %v2333 = vld [vmem:[%s2312 + $0xa0] sm:$0xff]
      %v2334 = vld [vmem:[%s2312 + $0xa8] sm:$0xff]
      %v2335 = vld [vmem:[%s2312 + $0xb0] sm:$0xff]
      %v2336 = vld [vmem:[%s2312 + $0xb8] sm:$0xff]
      %v2337 = vld [vmem:[%s2312 + $0xc0] sm:$0xff]
      %v2338 = vld [vmem:[%s2312 + $0xc8] sm:$0xff]
      %v2339 = vld [vmem:[%s2312 + $0xd0] sm:$0xff]
      %v2340 = vld [vmem:[%s2312 + $0xd8] sm:$0xff]
      %v2341 = vld [vmem:[%s2312 + $0xe0] sm:$0xff]
      %v2342 = vld [vmem:[%s2312 + $0xe8] sm:$0xff]
      %v2343 = vld [vmem:[%s2312 + $0xf0] sm:$0xff]
      %v2344 = vld [vmem:[%s2312 + $0xf8] sm:$0xff]
      %v2345 = vld [vmem:[%s2312 + $0x100] sm:$0xff]
      %v2346 = vld [vmem:[%s2312 + $0x108] sm:$0xff]
      %v2347 = vld [vmem:[%s2312 + $0x110] sm:$0xff]
      %v2348 = vld [vmem:[%s2312 + $0x118] sm:$0xff]
      %v2349 = vld [vmem:[%s2312 + $0x120] sm:$0xff]
      %v2350 = vld [vmem:[%s2312 + $0x128] sm:$0xff]
      %v2351 = vld [vmem:[%s2312 + $0x130] sm:$0xff]
      %v2352 = vld [vmem:[%s2312 + $0x138] sm:$0xff]
      %v2353 = vld [vmem:[%s2312 + $0x140] sm:$0xff]
      %v2354 = vld [vmem:[%s2312 + $0x148] sm:$0xff]
      %v2355 = vld [vmem:[%s2312 + $0x150] sm:$0xff]
      %v2356 = vld [vmem:[%s2312 + $0x158] sm:$0xff]
      %v2357 = vld [vmem:[%s2312 + $0x160] sm:$0xff]
      %v2358 = vld [vmem:[%s2312 + $0x168] sm:$0xff]
      %v2359 = vld [vmem:[%s2312 + $0x170] sm:$0xff]
      %v2360 = vld [vmem:[%s2312 + $0x178] sm:$0xff]
      %v2361 = vld [vmem:[%s2312 + $0x180] sm:$0xff]
      %v2362 = vld [vmem:[%s2312 + $0x188] sm:$0xff]
      %v2363 = vld [vmem:[%s2312 + $0x190] sm:$0xff]
      %v2364 = vld [vmem:[%s2312 + $0x198] sm:$0xff]
      %v2365 = vld [vmem:[%s2312 + $0x1a0] sm:$0xff]
      %v2366 = vld [vmem:[%s2312 + $0x1a8] sm:$0xff]
      %v2367 = vld [vmem:[%s2312 + $0x1b0] sm:$0xff]
      %v2368 = vld [vmem:[%s2312 + $0x1b8] sm:$0xff]
      %v2369 = vld [vmem:[%s2312 + $0x1c0] sm:$0xff]
      %v2370 = vld [vmem:[%s2312 + $0x1c8] sm:$0xff]
      %v2371 = vld [vmem:[%s2312 + $0x1d0] sm:$0xff]
      %v2372 = vld [vmem:[%s2312 + $0x1d8] sm:$0xff]
      %v2373 = vld [vmem:[%s2312 + $0x1e0] sm:$0xff]
      %v2374 = vld [vmem:[%s2312 + $0x1e8] sm:$0xff]
      %v2375 = vld [vmem:[%s2312 + $0x1f0] sm:$0xff]
      %v2376 = vld [vmem:[%s2312 + $0x1f8] sm:$0xff]
      %v2441 = vunpack.c.l.b16 %v2313
      %v2442 = vunpack.c.h.b16 %v2313
      %v2443 = vunpack.c.l.b16 %v2314
      %v2444 = vunpack.c.h.b16 %v2314
      %v2445 = vunpack.c.l.b16 %v2315
      %v2446 = vunpack.c.h.b16 %v2315
      %v2447 = vunpack.c.l.b16 %v2316
      %v2448 = vunpack.c.h.b16 %v2316
      %v2449 = vunpack.c.l.b16 %v2317
      %v2450 = vunpack.c.h.b16 %v2317
      %v2451 = vunpack.c.l.b16 %v2318
      %v2452 = vunpack.c.h.b16 %v2318
      %v2453 = vunpack.c.l.b16 %v2319
      %v2454 = vunpack.c.h.b16 %v2319
      %v2455 = vunpack.c.l.b16 %v2320
      %v2456 = vunpack.c.h.b16 %v2320
      %v2457 = vunpack.c.l.b16 %v2321
      %v2458 = vunpack.c.h.b16 %v2321
      %v2459 = vunpack.c.l.b16 %v2322
      %v2460 = vunpack.c.h.b16 %v2322
      %v2461 = vunpack.c.l.b16 %v2323
      %v2462 = vunpack.c.h.b16 %v2323
      %v2463 = vunpack.c.l.b16 %v2324
      %v2464 = vunpack.c.h.b16 %v2324
      %v2465 = vunpack.c.l.b16 %v2325
      %v2466 = vunpack.c.h.b16 %v2325
      %v2467 = vunpack.c.l.b16 %v2326
      %v2468 = vunpack.c.h.b16 %v2326
      %v2469 = vunpack.c.l.b16 %v2327
      %v2470 = vunpack.c.h.b16 %v2327
      %v2471 = vunpack.c.l.b16 %v2328
      %v2472 = vunpack.c.h.b16 %v2328
      %v2473 = vunpack.c.l.b16 %v2329
      %v2474 = vunpack.c.h.b16 %v2329
      %v2475 = vunpack.c.l.b16 %v2330
      %v2476 = vunpack.c.h.b16 %v2330
      %v2477 = vunpack.c.l.b16 %v2331
      %v2478 = vunpack.c.h.b16 %v2331
      %v2479 = vunpack.c.l.b16 %v2332
      %v2480 = vunpack.c.h.b16 %v2332
      %v2481 = vunpack.c.l.b16 %v2333
      %v2482 = vunpack.c.h.b16 %v2333
      %v2483 = vunpack.c.l.b16 %v2334
      %v2484 = vunpack.c.h.b16 %v2334
      %v2485 = vunpack.c.l.b16 %v2335
      %v2486 = vunpack.c.h.b16 %v2335
      %v2487 = vunpack.c.l.b16 %v2336
      %v2488 = vunpack.c.h.b16 %v2336
      %v2489 = vunpack.c.l.b16 %v2337
      %v2490 = vunpack.c.h.b16 %v2337
      %v2491 = vunpack.c.l.b16 %v2338
      %v2492 = vunpack.c.h.b16 %v2338
      %v2493 = vunpack.c.l.b16 %v2339
      %v2494 = vunpack.c.h.b16 %v2339
      %v2495 = vunpack.c.l.b16 %v2340
      %v2496 = vunpack.c.h.b16 %v2340
      %v2497 = vunpack.c.l.b16 %v2341
      %v2498 = vunpack.c.h.b16 %v2341
      %v2499 = vunpack.c.l.b16 %v2342
      %v2500 = vunpack.c.h.b16 %v2342
      %v2501 = vunpack.c.l.b16 %v2343
      %v2502 = vunpack.c.h.b16 %v2343
      %v2503 = vunpack.c.l.b16 %v2344
      %v2504 = vunpack.c.h.b16 %v2344
      %v2505 = vunpack.c.l.b16 %v2345
      %v2506 = vunpack.c.h.b16 %v2345
      %v2507 = vunpack.c.l.b16 %v2346
      %v2508 = vunpack.c.h.b16 %v2346
      %v2509 = vunpack.c.l.b16 %v2347
      %v2510 = vunpack.c.h.b16 %v2347
      %v2511 = vunpack.c.l.b16 %v2348
      %v2512 = vunpack.c.h.b16 %v2348
      %v2513 = vunpack.c.l.b16 %v2349
      %v2514 = vunpack.c.h.b16 %v2349
      %v2515 = vunpack.c.l.b16 %v2350
      %v2516 = vunpack.c.h.b16 %v2350
      %v2517 = vunpack.c.l.b16 %v2351
      %v2518 = vunpack.c.h.b16 %v2351
      %v2519 = vunpack.c.l.b16 %v2352
      %v2520 = vunpack.c.h.b16 %v2352
      %v2521 = vunpack.c.l.b16 %v2353
      %v2522 = vunpack.c.h.b16 %v2353
      %v2523 = vunpack.c.l.b16 %v2354
      %v2524 = vunpack.c.h.b16 %v2354
      %v2525 = vunpack.c.l.b16 %v2355
      %v2526 = vunpack.c.h.b16 %v2355
      %v2527 = vunpack.c.l.b16 %v2356
      %v2528 = vunpack.c.h.b16 %v2356
      %v2529 = vunpack.c.l.b16 %v2357
      %v2530 = vunpack.c.h.b16 %v2357
      %v2531 = vunpack.c.l.b16 %v2358
      %v2532 = vunpack.c.h.b16 %v2358
      %v2533 = vunpack.c.l.b16 %v2359
      %v2534 = vunpack.c.h.b16 %v2359
      %v2535 = vunpack.c.l.b16 %v2360
      %v2536 = vunpack.c.h.b16 %v2360
      %v2537 = vunpack.c.l.b16 %v2361
      %v2538 = vunpack.c.h.b16 %v2361
      %v2539 = vunpack.c.l.b16 %v2362
      %v2540 = vunpack.c.h.b16 %v2362
      %v2541 = vunpack.c.l.b16 %v2363
      %v2542 = vunpack.c.h.b16 %v2363
      %v2543 = vunpack.c.l.b16 %v2364
      %v2544 = vunpack.c.h.b16 %v2364
      %v2545 = vunpack.c.l.b16 %v2365
      %v2546 = vunpack.c.h.b16 %v2365
      %v2547 = vunpack.c.l.b16 %v2366
      %v2548 = vunpack.c.h.b16 %v2366
      %v2549 = vunpack.c.l.b16 %v2367
      %v2550 = vunpack.c.h.b16 %v2367
      %v2551 = vunpack.c.l.b16 %v2368
      %v2552 = vunpack.c.h.b16 %v2368
      %v2553 = vunpack.c.l.b16 %v2369
      %v2554 = vunpack.c.h.b16 %v2369
      %v2555 = vunpack.c.l.b16 %v2370
      %v2556 = vunpack.c.h.b16 %v2370
      %v2557 = vunpack.c.l.b16 %v2371
      %v2558 = vunpack.c.h.b16 %v2371
      %v2559 = vunpack.c.l.b16 %v2372
      %v2560 = vunpack.c.h.b16 %v2372
      %v2561 = vunpack.c.l.b16 %v2373
      %v2562 = vunpack.c.h.b16 %v2373
      %v2563 = vunpack.c.l.b16 %v2374
      %v2564 = vunpack.c.h.b16 %v2374
      %v2565 = vunpack.c.l.b16 %v2375
      %v2566 = vunpack.c.h.b16 %v2375
      %v2567 = vunpack.c.l.b16 %v2376
      %v2568 = vunpack.c.h.b16 %v2376
      %v2569 = vpack.c.b16 %v2443, %v2441
      %v2570 = vpack.c.b16 %v2444, %v2442
      %v2571 = vpack.c.b16 %v2447, %v2445
      %v2572 = vpack.c.b16 %v2448, %v2446
      %v2573 = vpack.c.b16 %v2451, %v2449
      %v2574 = vpack.c.b16 %v2452, %v2450
      %v2575 = vpack.c.b16 %v2455, %v2453
      %v2576 = vpack.c.b16 %v2456, %v2454
      %v2577 = vpack.c.b16 %v2459, %v2457
      %v2578 = vpack.c.b16 %v2460, %v2458
      %v2579 = vpack.c.b16 %v2463, %v2461
      %v2580 = vpack.c.b16 %v2464, %v2462
      %v2581 = vpack.c.b16 %v2467, %v2465
      %v2582 = vpack.c.b16 %v2468, %v2466
      %v2583 = vpack.c.b16 %v2471, %v2469
      %v2584 = vpack.c.b16 %v2472, %v2470
      %v2585 = vpack.c.b16 %v2475, %v2473
      %v2586 = vpack.c.b16 %v2476, %v2474
      %v2587 = vpack.c.b16 %v2479, %v2477
      %v2588 = vpack.c.b16 %v2480, %v2478
      %v2589 = vpack.c.b16 %v2483, %v2481
      %v2590 = vpack.c.b16 %v2484, %v2482
      %v2591 = vpack.c.b16 %v2487, %v2485
      %v2592 = vpack.c.b16 %v2488, %v2486
      %v2593 = vpack.c.b16 %v2491, %v2489
      %v2594 = vpack.c.b16 %v2492, %v2490
      %v2595 = vpack.c.b16 %v2495, %v2493
      %v2596 = vpack.c.b16 %v2496, %v2494
      %v2597 = vpack.c.b16 %v2499, %v2497
      %v2598 = vpack.c.b16 %v2500, %v2498
      %v2599 = vpack.c.b16 %v2503, %v2501
      %v2600 = vpack.c.b16 %v2504, %v2502
      %v2601 = vpack.c.b16 %v2507, %v2505
      %v2602 = vpack.c.b16 %v2508, %v2506
      %v2603 = vpack.c.b16 %v2511, %v2509
      %v2604 = vpack.c.b16 %v2512, %v2510
      %v2605 = vpack.c.b16 %v2515, %v2513
      %v2606 = vpack.c.b16 %v2516, %v2514
      %v2607 = vpack.c.b16 %v2519, %v2517
      %v2608 = vpack.c.b16 %v2520, %v2518
      %v2609 = vpack.c.b16 %v2523, %v2521
      %v2610 = vpack.c.b16 %v2524, %v2522
      %v2611 = vpack.c.b16 %v2527, %v2525
      %v2612 = vpack.c.b16 %v2528, %v2526
      %v2613 = vpack.c.b16 %v2531, %v2529
      %v2614 = vpack.c.b16 %v2532, %v2530
      %v2615 = vpack.c.b16 %v2535, %v2533
      %v2616 = vpack.c.b16 %v2536, %v2534
      %v2617 = vpack.c.b16 %v2539, %v2537
      %v2618 = vpack.c.b16 %v2540, %v2538
      %v2619 = vpack.c.b16 %v2543, %v2541
      %v2620 = vpack.c.b16 %v2544, %v2542
      %v2621 = vpack.c.b16 %v2547, %v2545
      %v2622 = vpack.c.b16 %v2548, %v2546
      %v2623 = vpack.c.b16 %v2551, %v2549
      %v2624 = vpack.c.b16 %v2552, %v2550
      %v2625 = vpack.c.b16 %v2555, %v2553
      %v2626 = vpack.c.b16 %v2556, %v2554
      %v2627 = vpack.c.b16 %v2559, %v2557
      %v2628 = vpack.c.b16 %v2560, %v2558
      %v2629 = vpack.c.b16 %v2563, %v2561
      %v2630 = vpack.c.b16 %v2564, %v2562
      %v2631 = vpack.c.b16 %v2567, %v2565
      %v2632 = vpack.c.b16 %v2568, %v2566
      %2697 = vmatpush.bf16.msra.mxu0 %v2583
      %2698 = vmatpush.bf16.msra.mxu0 %v2581
      %2699 = vmatpush.bf16.msra.mxu0 %v2579
      %2700 = vmatpush.bf16.msra.mxu0 %v2577
      %2701 = vmatpush.bf16.msra.mxu0 %v2575
      %2702 = vmatpush.bf16.msra.mxu0 %v2573
      %2703 = vmatpush.bf16.msra.mxu0 %v2571
      %2704 = vmatpush.bf16.msra.mxu0 %v2569
      %2705 = vmatmul.bf16.gmra.mxu0 %v448
      %v2706 = vpop.f32.mrf.mxu0
      %v2707 = vadd.f32 0.0, %v2706
      %v2708 = vpop.f32.mrf.mxu0
      %2709 = vdwg.mxu0
      %2710 = vmatpush.bf16.msra.mxu0 %v2599
      %2711 = vmatpush.bf16.msra.mxu0 %v2597
      %2712 = vmatpush.bf16.msra.mxu0 %v2595
      %2713 = vmatpush.bf16.msra.mxu0 %v2593
      %2714 = vmatpush.bf16.msra.mxu0 %v2591
      %2715 = vmatpush.bf16.msra.mxu0 %v2589
      %2716 = vmatpush.bf16.msra.mxu0 %v2587
      %2717 = vmatpush.bf16.msra.mxu0 %v2585
      %2718 = vmatmul.bf16.gmra.mxu0 %v449
      %v2719 = vpop.f32.mrf.mxu0
      %v2720 = vadd.f32 %v2707, %v2719
      %v2721 = vpop.f32.mrf.mxu0
      %2722 = vdwg.mxu0
      %2723 = vmatpush.bf16.msra.mxu0 %v2615
      %2724 = vmatpush.bf16.msra.mxu0 %v2613
      %2725 = vmatpush.bf16.msra.mxu0 %v2611
      %2726 = vmatpush.bf16.msra.mxu0 %v2609
      %2727 = vmatpush.bf16.msra.mxu0 %v2607
      %2728 = vmatpush.bf16.msra.mxu0 %v2605
      %2729 = vmatpush.bf16.msra.mxu0 %v2603
      %2730 = vmatpush.bf16.msra.mxu0 %v2601
      %2731 = vmatmul.bf16.gmra.mxu0 %v450
      %v2732 = vpop.f32.mrf.mxu0
      %v2733 = vadd.f32 %v2720, %v2732
      %v2734 = vpop.f32.mrf.mxu0
      %2735 = vdwg.mxu0
      %2736 = vmatpush.bf16.msra.mxu0 %v2631
      %2737 = vmatpush.bf16.msra.mxu0 %v2629
      %2738 = vmatpush.bf16.msra.mxu0 %v2627
      %2739 = vmatpush.bf16.msra.mxu0 %v2625
      %2740 = vmatpush.bf16.msra.mxu0 %v2623
      %2741 = vmatpush.bf16.msra.mxu0 %v2621
      %2742 = vmatpush.bf16.msra.mxu0 %v2619
      %2743 = vmatpush.bf16.msra.mxu0 %v2617
      %2744 = vmatmul.bf16.gmra.mxu0 %v451
      %v2745 = vpop.f32.mrf.mxu0
      %v2746 = vadd.f32 %v2733, %v2745
      %v2747 = vpop.f32.mrf.mxu0
      %2748 = vdwg.mxu0
      %2749 = vmatpush.bf16.msra.mxu0 %v2584
      %2750 = vmatpush.bf16.msra.mxu0 %v2582
      %2751 = vmatpush.bf16.msra.mxu0 %v2580
      %2752 = vmatpush.bf16.msra.mxu0 %v2578
      %2753 = vmatpush.bf16.msra.mxu0 %v2576
      %2754 = vmatpush.bf16.msra.mxu0 %v2574
      %2755 = vmatpush.bf16.msra.mxu0 %v2572
      %2756 = vmatpush.bf16.msra.mxu0 %v2570
      %2757 = vmatmul.bf16.gmra.mxu0 %v448
      %v2758 = vpop.f32.mrf.mxu0
      %v2759 = vadd.f32 0.0, %v2758
      %v2760 = vpop.f32.mrf.mxu0
      %2761 = vdwg.mxu0
      %2762 = vmatpush.bf16.msra.mxu0 %v2600
      %2763 = vmatpush.bf16.msra.mxu0 %v2598
      %2764 = vmatpush.bf16.msra.mxu0 %v2596
      %2765 = vmatpush.bf16.msra.mxu0 %v2594
      %2766 = vmatpush.bf16.msra.mxu0 %v2592
      %2767 = vmatpush.bf16.msra.mxu0 %v2590
      %2768 = vmatpush.bf16.msra.mxu0 %v2588
      %2769 = vmatpush.bf16.msra.mxu0 %v2586
      %2770 = vmatmul.bf16.gmra.mxu0 %v449
      %v2771 = vpop.f32.mrf.mxu0
      %v2772 = vadd.f32 %v2759, %v2771
      %v2773 = vpop.f32.mrf.mxu0
      %2774 = vdwg.mxu0
      %2775 = vmatpush.bf16.msra.mxu0 %v2616
      %2776 = vmatpush.bf16.msra.mxu0 %v2614
      %2777 = vmatpush.bf16.msra.mxu0 %v2612
      %2778 = vmatpush.bf16.msra.mxu0 %v2610
      %2779 = vmatpush.bf16.msra.mxu0 %v2608
      %2780 = vmatpush.bf16.msra.mxu0 %v2606
      %2781 = vmatpush.bf16.msra.mxu0 %v2604
      %2782 = vmatpush.bf16.msra.mxu0 %v2602
      %2783 = vmatmul.bf16.gmra.mxu0 %v450
      %v2784 = vpop.f32.mrf.mxu0
      %v2785 = vadd.f32 %v2772, %v2784
      %v2786 = vpop.f32.mrf.mxu0
      %2787 = vdwg.mxu0
      %2788 = vmatpush.bf16.msra.mxu0 %v2632
      %2789 = vmatpush.bf16.msra.mxu0 %v2630
      %2790 = vmatpush.bf16.msra.mxu0 %v2628
      %2791 = vmatpush.bf16.msra.mxu0 %v2626
      %2792 = vmatpush.bf16.msra.mxu0 %v2624
      %2793 = vmatpush.bf16.msra.mxu0 %v2622
      %2794 = vmatpush.bf16.msra.mxu0 %v2620
      %2795 = vmatpush.bf16.msra.mxu0 %v2618
      %2796 = vmatmul.bf16.gmra.mxu0 %v451
      %v2797 = vpop.f32.mrf.mxu0
      %v2798 = vadd.f32 %v2785, %v2797
      %v2799 = vpop.f32.mrf.mxu0
      %2800 = vdwg.mxu0
      %v2801 = vrot.slane %v2746, 2
      %v2802 = vrot.slane %v2798, 2
      %vm2803 = vcmp.lt.s32.totalorder %v377, 6
      %vm2804 = vmand %vm2303, %vm2803
      %v2805 = vsel %vm2804, 1, 0
      %vm2806 = vcmp.eq.s32.totalorder %v2805, 1
      %v2807 = vsel %vm2806, %v2801, 0.0
      %v2808 = vsel %vm2806, %v2802, 0.0
      %v2809 = vadd.f32 %v2310, %v2807
      %v2810 = vadd.f32 %v2311, %v2808
      %2811 = vst [vmem:[%s264] sm:$0xff] %v2809
      %2812 = vst [vmem:[%s264 + $0x8] sm:$0xff] %v2810
      %v2813 = vrot.slane %v2809, 4
      %v2814 = vadd.f32 %v2809, %v2813
      %v2815 = vrot.slane %v2814, 2
      %v2816 = vadd.f32 %v2814, %v2815
      %v2817 = vrot.slane %v2816, 1
      %v2818 = vadd.f32 %v2816, %v2817
      %v2819 = vrot.slane %v2810, 4
      %v2820 = vadd.f32 %v2810, %v2819
      %v2821 = vrot.slane %v2820, 2
      %v2822 = vadd.f32 %v2820, %v2821
      %v2823 = vrot.slane %v2822, 1
      %v2824 = vadd.f32 %v2822, %v2823
      %v2827 = vrot.slane %v2824, 7
      %vm2828 = vcmask 1040384
      %v2829 = vsel %vm2828, %v2818, %v2827
      %v2831 = vlaneseq
      %vm2832 = vcmp.ge.s32.totalorder %v2831, 0
      %vm2833 = vcmp.lt.s32.totalorder %v2831, 256
      %vm2834 = vmand %vm2832, %vm2833
      %2835 = vst.msk [vmem:[%s268] sm:$0x3] %vm2834, %v2829
      %v2836 = vmul.f32 %v2809, %v2809
      %v2837 = vmul.f32 %v2810, %v2810
      %v2838 = vrot.slane %v2836, 4
      %v2839 = vadd.f32 %v2836, %v2838
      %v2840 = vrot.slane %v2839, 2
      %v2841 = vadd.f32 %v2839, %v2840
      %v2842 = vrot.slane %v2841, 1
      %v2843 = vadd.f32 %v2841, %v2842
      %v2844 = vrot.slane %v2837, 4
      %v2845 = vadd.f32 %v2837, %v2844
      %v2846 = vrot.slane %v2845, 2
      %v2847 = vadd.f32 %v2845, %v2846
      %v2848 = vrot.slane %v2847, 1
      %v2849 = vadd.f32 %v2847, %v2848
      %v2852 = vrot.slane %v2849, 7
      %v2853 = vsel %vm2828, %v2843, %v2852
      %2855 = vst.msk [vmem:[%s272] sm:$0x3] %vm2834, %v2853
      %p2856 = scmp.lt.s32.totalorder %s18, 1
      %s2857 = scalar_select %p2856, %s18, 1
      %s2858 = smul.addr %s2857, 2
      %s2859 = smul.addr %s2858, 8
      %s2860 = scalar_lea.vmem %s4, %s2859
      %p2861 = scmp.lt.s32.totalorder %s18, 1
      %s2862 = scalar_select %p2861, %s18, 1
      %s2863 = smul.addr %s2862, 2
      %s2864 = scalar_lea.vmem %s5, %s2863
      %p2865 = scmp.lt.s32.totalorder %s18, 1
      %s2866 = scalar_select %p2865, %s18, 1
      %s2867 = smul.addr %s2866, 2
      %s2868 = scalar_lea.vmem %s6, %s2867
      // Predicated region
      $region37: #{cnn_batchnorm_forward.4} parent=35 // pred_check
        %p2869 = pneg %p125
      $region38: #{cnn_batchnorm_forward.4} parent=35 // pred_check_branch
        %2871 = sbr.rel (%p2869) target = $region40
      $region39: #{cnn_batchnorm_forward.4} parent=35 // pred_region
        _
      $region40: #{cnn_batchnorm_forward.4} parent=35 // pred_fallthru
        _
      // Predicated region
      $region41: #{cnn_batchnorm_forward.4} parent=35 // pred_check
        %p2872 = pneg %p151
      $region42: #{cnn_batchnorm_forward.4} parent=35 // pred_check_branch
        %2874 = sbr.rel (%p2872) target = $region44
      $region43: #{cnn_batchnorm_forward.4} parent=35 // pred_region
        _
      $region44: #{cnn_batchnorm_forward.4} parent=35 // pred_fallthru
        _
      // Predicated region
      $region45: #{cnn_batchnorm_forward.4} parent=35 // pred_check
        %p2875 = pneg %p177
      $region46: #{cnn_batchnorm_forward.4} parent=35 // pred_check_branch
        %2877 = sbr.rel (%p2875) target = $region48
      $region47: #{cnn_batchnorm_forward.4} parent=35 // pred_region
        _
      $region48: #{cnn_batchnorm_forward.4} parent=35 // pred_fallthru
        _
    $region36: #{cnn_batchnorm_forward.4} parent=5 // pred_fallthru
      _
    %p2878 = scmp.le.s32.totalorder 2, %s13
    // Predicated region
    $region49: #{cnn_batchnorm_forward.4} parent=5 // pred_check
      %p2879 = pneg %p2878
    $region50: #{cnn_batchnorm_forward.4} parent=5 // pred_check_branch
      %2881 = sbr.rel (%p2879) target = $region52
    $region51: #{cnn_batchnorm_forward.4} parent=5 // pred_region
      %s2882 = ssub.s32 %s13, 2
      // Predicated region
      $region53: #{cnn_batchnorm_forward.4} parent=51 // pred_check
        %p2883 = pneg %p131
      $region54: #{cnn_batchnorm_forward.4} parent=51 // pred_check_branch
        %2885 = sbr.rel (%p2883) target = $region56
      $region55: #{cnn_batchnorm_forward.4} parent=51 // pred_region
        %p2886 = scmp.lt.s32.totalorder %s19, 1
        %s2887 = scalar_select %p2886, %s19, 1
        %s2888 = smul.addr %s2887, 2
        %s2889 = smul.addr %s2888, 8
        %s2890 = scalar_lea.vmem %s4, %s2889
      $region56: #{cnn_batchnorm_forward.4} parent=51 // pred_fallthru
        _
      // Predicated region
      $region57: #{cnn_batchnorm_forward.4} parent=51 // pred_check
        %p2891 = pneg %p157
      $region58: #{cnn_batchnorm_forward.4} parent=51 // pred_check_branch
        %2893 = sbr.rel (%p2891) target = $region60
      $region59: #{cnn_batchnorm_forward.4} parent=51 // pred_region
        %p2894 = scmp.lt.s32.totalorder %s19, 1
        %s2895 = scalar_select %p2894, %s19, 1
        %s2896 = smul.addr %s2895, 2
        %s2897 = scalar_lea.vmem %s5, %s2896
      $region60: #{cnn_batchnorm_forward.4} parent=51 // pred_fallthru
        _
      // Predicated region
      $region61: #{cnn_batchnorm_forward.4} parent=51 // pred_check
        %p2898 = pneg %p183
      $region62: #{cnn_batchnorm_forward.4} parent=51 // pred_check_branch
        %2900 = sbr.rel (%p2898) target = $region64
      $region63: #{cnn_batchnorm_forward.4} parent=51 // pred_region
        %p2901 = scmp.lt.s32.totalorder %s19, 1
        %s2902 = scalar_select %p2901, %s19, 1
        %s2903 = smul.addr %s2902, 2
        %s2904 = scalar_lea.vmem %s6, %s2903
      $region64: #{cnn_batchnorm_forward.4} parent=51 // pred_fallthru
        _
    $region52: #{cnn_batchnorm_forward.4} parent=5 // pred_fallthru
      _
  $region6: #{cnn_batchnorm_forward.4} parent=0 // loop_footer
    %s17 = sadd.s32 1, %s13
  $region7: #{cnn_batchnorm_forward.4} parent=0 // loop_footer_branch
    %12 = sbr.rel target = $region3
  $region8: #{cnn_batchnorm_forward.4} parent=0 // loop_exit
    _

// kernel: cnn_batchnorm_forward.3
$region0: #{cnn_batchnorm_forward.3}
  #allocation0 [shape = 'u32[]', space=smem, size = 0x4, offset = 0x4, fixed_abs, tag = 'smem constant byte address 0x4 - core index']
  #allocation1 [shape = 'u32[72,128]{1,0:T(1,128)}', space=vmem, size = 0x9000, scoped, tag = 'internal scratch']
  %s0 = inlined_call_operand.vmem [shape: bf16[2,8,1024], index: 0, kind: input, shape index: {}]
  %s1 = inlined_call_operand.vmem [shape: bf16[5,1024,512], index: 1, kind: input, shape index: {}]
  %s2 = inlined_call_operand.vmem [shape: f32[2,8,512], index: 2, kind: output, shape index: {0}]
  %s3 = inlined_call_operand.vmem [shape: f32[2,1,512], index: 3, kind: output, shape index: {1}]
  %s4 = inlined_call_operand.vmem [shape: f32[2,1,512], index: 4, kind: output, shape index: {2}]
  %5 = xla_tuple %s2, %s3, %s4
  %s6 = sld [smem:[#allocation0]]
  $region57: #{cnn_batchnorm_forward.3} parent=0
    _
  %s8 = ssub.s32 1, %s6
  %s9 = scalar_select 0, %s8, %s6
  loop: start=0, step=1, limit=4
  $region2: #{cnn_batchnorm_forward.3} parent=0 // loop_pre_header
    _
  $region3: #{cnn_batchnorm_forward.3} parent=0 // loop_header
    %s11 = sphi 0, %s15
    %p12 = scmp.ge.s32.totalorder %s11, 4
    %s21 = sphi 0, %s23
    %s24 = sphi 0, %s21
    %s25 = sphi 0, %s24
    %s41 = sphi 0, %s25
    %s45 = sphi 0, %s45
    %s47 = sphi 0, %s45
    %s48 = sphi 0, %s47
    %s62 = sphi 0, %s48
    %s68 = sphi 0, %s70
    %s71 = sphi 0, %s68
    %s72 = sphi 0, %s71
    %s88 = sphi 0, %s72
    %s94 = sphi 0, %s96
    %s97 = sphi 0, %s94
    %s98 = sphi 0, %s97
    %s114 = sphi 0, %s98
    %s120 = sphi 0, %s122
    %s123 = sphi 0, %s120
    %s124 = sphi 0, %s123
    %s140 = sphi 0, %s124
  $region4: #{cnn_batchnorm_forward.3} parent=0 // loop_header_branch
    %14 = sbr.rel (%p12) target = $region8
  $region5: #{cnn_batchnorm_forward.3} parent=0 // loop_body
    %s16 = ssub.s32 %s11, 1
    %s17 = ssub.s32 %s11, 2
    %s18 = sadd.s32 %s11, 1
    %s19 = ssub.s32 %s11, %s18
    %p20 = scmp.eq.s32.totalorder %s19, 0
    %s22 = sadd.s32 %s21, 1
    %s23 = scalar_select %p20, %s21, %s22
    %p26 = pneg %p20
    %p27 = scmp.eq.s32.totalorder %s11, 1
    %p28 = por %p26, %p27
    %p29 = scmp.ne.s32.totalorder %s21, %s24
    %p30 = scmp.eq.s32.totalorder %s11, 0
    %p31 = por %p29, %p30
    %p32 = scmp.ne.s32.totalorder %s21, %s24
    %p33 = scmp.eq.s32.totalorder %s16, 1
    %p34 = por %p32, %p33
    %p35 = scmp.ne.s32.totalorder %s24, %s25
    %p36 = scmp.eq.s32.totalorder %s16, 0
    %p37 = por %p35, %p36
    %p38 = scmp.ne.s32.totalorder %s24, %s25
    %p39 = scmp.eq.s32.totalorder %s17, 1
    %p40 = por %p38, %p39
    %p42 = scmp.ne.s32.totalorder %s25, %s41
    %p43 = scmp.eq.s32.totalorder %s17, 0
    %p44 = por %p42, %p43
    %s46 = sadd.s32 %s45, 1
    %p49 = scmp.eq.s32.totalorder %s11, 1
    %p50 = scmp.ne.s32.totalorder %s45, %s47
    %p51 = scmp.eq.s32.totalorder %s11, 0
    %p52 = por %p50, %p51
    %p53 = scmp.ne.s32.totalorder %s45, %s47
    %p54 = scmp.eq.s32.totalorder %s16, 1
    %p55 = por %p53, %p54
    %p56 = scmp.ne.s32.totalorder %s47, %s48
    %p57 = scmp.eq.s32.totalorder %s16, 0
    %p58 = por %p56, %p57
    %p59 = scmp.ne.s32.totalorder %s47, %s48
    %p60 = scmp.eq.s32.totalorder %s17, 1
    %p61 = por %p59, %p60
    %p63 = scmp.ne.s32.totalorder %s48, %s62
    %p64 = scmp.eq.s32.totalorder %s17, 0
    %p65 = por %p63, %p64
    %s66 = ssub.s32 %s11, %s18
    %p67 = scmp.eq.s32.totalorder %s66, 0
    %s69 = sadd.s32 %s68, 1
    %s70 = scalar_select %p67, %s68, %s69
    %p73 = pneg %p67
    %p74 = scmp.eq.s32.totalorder %s11, 1
    %p75 = por %p73, %p74
    %p76 = scmp.ne.s32.totalorder %s68, %s71
    %p77 = scmp.eq.s32.totalorder %s11, 0
    %p78 = por %p76, %p77
    %p79 = scmp.ne.s32.totalorder %s68, %s71
    %p80 = scmp.eq.s32.totalorder %s16, 1
    %p81 = por %p79, %p80
    %p82 = scmp.ne.s32.totalorder %s71, %s72
    %p83 = scmp.eq.s32.totalorder %s16, 0
    %p84 = por %p82, %p83
    %p85 = scmp.ne.s32.totalorder %s71, %s72
    %p86 = scmp.eq.s32.totalorder %s17, 1
    %p87 = por %p85, %p86
    %p89 = scmp.ne.s32.totalorder %s72, %s88
    %p90 = scmp.eq.s32.totalorder %s17, 0
    %p91 = por %p89, %p90
    %s92 = ssub.s32 %s11, %s18
    %p93 = scmp.eq.s32.totalorder %s92, 0
    %s95 = sadd.s32 %s94, 1
    %s96 = scalar_select %p93, %s94, %s95
    %p99 = pneg %p93
    %p100 = scmp.eq.s32.totalorder %s11, 1
    %p101 = por %p99, %p100
    %p102 = scmp.ne.s32.totalorder %s94, %s97
    %p103 = scmp.eq.s32.totalorder %s11, 0
    %p104 = por %p102, %p103
    %p105 = scmp.ne.s32.totalorder %s94, %s97
    %p106 = scmp.eq.s32.totalorder %s16, 1
    %p107 = por %p105, %p106
    %p108 = scmp.ne.s32.totalorder %s97, %s98
    %p109 = scmp.eq.s32.totalorder %s16, 0
    %p110 = por %p108, %p109
    %p111 = scmp.ne.s32.totalorder %s97, %s98
    %p112 = scmp.eq.s32.totalorder %s17, 1
    %p113 = por %p111, %p112
    %p115 = scmp.ne.s32.totalorder %s98, %s114
    %p116 = scmp.eq.s32.totalorder %s17, 0
    %p117 = por %p115, %p116
    %s118 = ssub.s32 %s11, %s18
    %p119 = scmp.eq.s32.totalorder %s118, 0
    %s121 = sadd.s32 %s120, 1
    %s122 = scalar_select %p119, %s120, %s121
    %p125 = pneg %p119
    %p126 = scmp.eq.s32.totalorder %s11, 1
    %p127 = por %p125, %p126
    %p128 = scmp.ne.s32.totalorder %s120, %s123
    %p129 = scmp.eq.s32.totalorder %s11, 0
    %p130 = por %p128, %p129
    %p131 = scmp.ne.s32.totalorder %s120, %s123
    %p132 = scmp.eq.s32.totalorder %s16, 1
    %p133 = por %p131, %p132
    %p134 = scmp.ne.s32.totalorder %s123, %s124
    %p135 = scmp.eq.s32.totalorder %s16, 0
    %p136 = por %p134, %p135
    %p137 = scmp.ne.s32.totalorder %s123, %s124
    %p138 = scmp.eq.s32.totalorder %s17, 1
    %p139 = por %p137, %p138
    %p141 = scmp.ne.s32.totalorder %s124, %s140
    %p142 = scmp.eq.s32.totalorder %s17, 0
    %p143 = por %p141, %p142
    %p144 = scmp.le.s32.totalorder 1, %s11
    %p145 = scmp.lt.s32.totalorder %s11, 3
    %p146 = pnand %p144, %p145
    %p147 = pneg %p146
    // Predicated region
    $region9: #{cnn_batchnorm_forward.3} parent=5 // pred_check
      _
    $region10: #{cnn_batchnorm_forward.3} parent=5 // pred_check_branch
      %149 = sbr.rel (%p146) target = $region12
    $region11: #{cnn_batchnorm_forward.3} parent=5 // pred_region
      %s150 = ssub.s32 %s11, 1
      // Predicated region
      $region13: #{cnn_batchnorm_forward.3} parent=11 // pred_check
        %p151 = pneg %p58
      $region14: #{cnn_batchnorm_forward.3} parent=11 // pred_check_branch
        %153 = sbr.rel (%p151) target = $region16
      $region15: #{cnn_batchnorm_forward.3} parent=11 // pred_region
        _
      $region16: #{cnn_batchnorm_forward.3} parent=11 // pred_fallthru
        _
    $region12: #{cnn_batchnorm_forward.3} parent=5 // pred_fallthru
      _
    %p154 = scmp.lt.s32.totalorder %s11, 2
    // Predicated region
    $region17: #{cnn_batchnorm_forward.3} parent=5 // pred_check
      %p155 = pneg %p154
    $region18: #{cnn_batchnorm_forward.3} parent=5 // pred_check_branch
      %157 = sbr.rel (%p155) target = $region20
    $region19: #{cnn_batchnorm_forward.3} parent=5 // pred_region
      // Predicated region
      $region21: #{cnn_batchnorm_forward.3} parent=19 // pred_check
        %p158 = pneg %p31
      $region22: #{cnn_batchnorm_forward.3} parent=19 // pred_check_branch
        %160 = sbr.rel (%p158) target = $region24
      $region23: #{cnn_batchnorm_forward.3} parent=19 // pred_region
        %p161 = scmp.lt.s32.totalorder %s11, 1
        %s162 = scalar_select %p161, %s11, 1
        %s163 = smul.addr %s162, 8
        %s164 = smul.addr %s163, 4
        %s165 = scalar_lea.vmem %s0, %s164
      $region24: #{cnn_batchnorm_forward.3} parent=19 // pred_fallthru
        _
    $region20: #{cnn_batchnorm_forward.3} parent=5 // pred_fallthru
      _
    %p166 = scmp.le.s32.totalorder 1, %s11
    %p167 = scmp.lt.s32.totalorder %s11, 3
    %p168 = pnand %p166, %p167
    %p169 = pneg %p168
    // Predicated region
    $region25: #{cnn_batchnorm_forward.3} parent=5 // pred_check
      _
    $region26: #{cnn_batchnorm_forward.3} parent=5 // pred_check_branch
      %171 = sbr.rel (%p168) target = $region28
    $region27: #{cnn_batchnorm_forward.3} parent=5 // pred_region
      %s172 = ssub.s32 %s11, 1
      %p173 = scmp.lt.s32.totalorder %s16, 1
      %s174 = scalar_select %p173, %s16, 1
      %s175 = smul.addr %s174, 8
      %s176 = smul.addr %s175, 4
      %s177 = scalar_lea.vmem %s0, %s176
      %p178 = pneg %p37
      %p179 = pneg %p34
      %p180 = pneg %p58
      %p181 = pneg %p55
      %p182 = pneg %p84
      %p183 = pneg %p81
      %p184 = scmp.lt.s32.totalorder %s16, 1
      %s185 = scalar_select %p184, %s16, 1
      %s186 = smul.addr %s185, 4
      %s187 = smul.addr %s186, 8
      %s188 = scalar_lea.vmem %s2, %s187
      %p189 = pneg %p110
      %p190 = pneg %p107
      %p191 = scmp.lt.s32.totalorder %s16, 1
      %s192 = scalar_select %p191, %s16, 1
      %s193 = smul.addr %s192, 4
      %s194 = scalar_lea.vmem %s3, %s193
      %p195 = pneg %p136
      %p196 = pneg %p133
      %p197 = scmp.lt.s32.totalorder %s16, 1
      %s198 = scalar_select %p197, %s16, 1
      %s199 = smul.addr %s198, 4
      %s200 = scalar_lea.vmem %s4, %s199
      %p201 = scmp.lt.s32.totalorder %s16, 1
      %s202 = scalar_select %p201, %s16, 1
      %s203 = smul.addr %s202, 8
      %s204 = smul.addr %s203, 4
      %s205 = scalar_lea.vmem %s0, %s204
      %p206 = scmp.lt.s32.totalorder %s16, 1
      %s207 = scalar_select %p206, %s16, 1
      %s208 = smul.addr %s207, 4
      %s209 = smul.addr %s208, 8
      %s210 = scalar_lea.vmem %s2, %s209
      %p211 = scmp.lt.s32.totalorder %s16, 1
      %s212 = scalar_select %p211, %s16, 1
      %s213 = smul.addr %s212, 4
      %s214 = scalar_lea.vmem %s3, %s213
      %p215 = scmp.lt.s32.totalorder %s16, 1
      %s216 = scalar_select %p215, %s16, 1
      %s217 = smul.addr %s216, 4
      %s218 = scalar_lea.vmem %s4, %s217
      %v219 = vld [vmem:[%s205] sm:$0xff]
      %v220 = vld [vmem:[%s205 + $0x8] sm:$0xff]
      %v221 = vld [vmem:[%s205 + $0x10] sm:$0xff]
      %v222 = vld [vmem:[%s205 + $0x18] sm:$0xff]
      %s223 = scalar_lea.vmem %s1, 4096
      %v224 = vld [vmem:[%s223] sm:$0xff]
      %v225 = vld [vmem:[%s223 + $0x8] sm:$0xff]
      %v226 = vld [vmem:[%s223 + $0x10] sm:$0xff]
      %v227 = vld [vmem:[%s223 + $0x18] sm:$0xff]
      %v228 = vld [vmem:[%s223 + $0x20] sm:$0xff]
      %v229 = vld [vmem:[%s223 + $0x28] sm:$0xff]
      %v230 = vld [vmem:[%s223 + $0x30] sm:$0xff]
      %v231 = vld [vmem:[%s223 + $0x38] sm:$0xff]
      %v232 = vld [vmem:[%s223 + $0x40] sm:$0xff]
      %v233 = vld [vmem:[%s223 + $0x48] sm:$0xff]
      %v234 = vld [vmem:[%s223 + $0x50] sm:$0xff]
      %v235 = vld [vmem:[%s223 + $0x58] sm:$0xff]
      %v236 = vld [vmem:[%s223 + $0x60] sm:$0xff]
      %v237 = vld [vmem:[%s223 + $0x68] sm:$0xff]
      %v238 = vld [vmem:[%s223 + $0x70] sm:$0xff]
      %v239 = vld [vmem:[%s223 + $0x78] sm:$0xff]
      %v240 = vld [vmem:[%s223 + $0x80] sm:$0xff]
      %v241 = vld [vmem:[%s223 + $0x88] sm:$0xff]
      %v242 = vld [vmem:[%s223 + $0x90] sm:$0xff]
      %v243 = vld [vmem:[%s223 + $0x98] sm:$0xff]
      %v244 = vld [vmem:[%s223 + $0xa0] sm:$0xff]
      %v245 = vld [vmem:[%s223 + $0xa8] sm:$0xff]
      %v246 = vld [vmem:[%s223 + $0xb0] sm:$0xff]
      %v247 = vld [vmem:[%s223 + $0xb8] sm:$0xff]
      %v248 = vld [vmem:[%s223 + $0xc0] sm:$0xff]
      %v249 = vld [vmem:[%s223 + $0xc8] sm:$0xff]
      %v250 = vld [vmem:[%s223 + $0xd0] sm:$0xff]
      %v251 = vld [vmem:[%s223 + $0xd8] sm:$0xff]
      %v252 = vld [vmem:[%s223 + $0xe0] sm:$0xff]
      %v253 = vld [vmem:[%s223 + $0xe8] sm:$0xff]
      %v254 = vld [vmem:[%s223 + $0xf0] sm:$0xff]
      %v255 = vld [vmem:[%s223 + $0xf8] sm:$0xff]
      %v256 = vld [vmem:[%s223 + $0x100] sm:$0xff]
      %v257 = vld [vmem:[%s223 + $0x108] sm:$0xff]
      %v258 = vld [vmem:[%s223 + $0x110] sm:$0xff]
      %v259 = vld [vmem:[%s223 + $0x118] sm:$0xff]
      %v260 = vld [vmem:[%s223 + $0x120] sm:$0xff]
      %v261 = vld [vmem:[%s223 + $0x128] sm:$0xff]
      %v262 = vld [vmem:[%s223 + $0x130] sm:$0xff]
      %v263 = vld [vmem:[%s223 + $0x138] sm:$0xff]
      %v264 = vld [vmem:[%s223 + $0x140] sm:$0xff]
      %v265 = vld [vmem:[%s223 + $0x148] sm:$0xff]
      %v266 = vld [vmem:[%s223 + $0x150] sm:$0xff]
      %v267 = vld [vmem:[%s223 + $0x158] sm:$0xff]
      %v268 = vld [vmem:[%s223 + $0x160] sm:$0xff]
      %v269 = vld [vmem:[%s223 + $0x168] sm:$0xff]
      %v270 = vld [vmem:[%s223 + $0x170] sm:$0xff]
      %v271 = vld [vmem:[%s223 + $0x178] sm:$0xff]
      %v272 = vld [vmem:[%s223 + $0x180] sm:$0xff]
      %v273 = vld [vmem:[%s223 + $0x188] sm:$0xff]
      %v274 = vld [vmem:[%s223 + $0x190] sm:$0xff]
      %v275 = vld [vmem:[%s223 + $0x198] sm:$0xff]
      %v276 = vld [vmem:[%s223 + $0x1a0] sm:$0xff]
      %v277 = vld [vmem:[%s223 + $0x1a8] sm:$0xff]
      %v278 = vld [vmem:[%s223 + $0x1b0] sm:$0xff]
      %v279 = vld [vmem:[%s223 + $0x1b8] sm:$0xff]
      %v280 = vld [vmem:[%s223 + $0x1c0] sm:$0xff]
      %v281 = vld [vmem:[%s223 + $0x1c8] sm:$0xff]
      %v282 = vld [vmem:[%s223 + $0x1d0] sm:$0xff]
      %v283 = vld [vmem:[%s223 + $0x1d8] sm:$0xff]
      %v284 = vld [vmem:[%s223 + $0x1e0] sm:$0xff]
      %v285 = vld [vmem:[%s223 + $0x1e8] sm:$0xff]
      %v286 = vld [vmem:[%s223 + $0x1f0] sm:$0xff]
      %v287 = vld [vmem:[%s223 + $0x1f8] sm:$0xff]
      %v288 = vld [vmem:[%s223 + $0x200] sm:$0xff]
      %v289 = vld [vmem:[%s223 + $0x208] sm:$0xff]
      %v290 = vld [vmem:[%s223 + $0x210] sm:$0xff]
      %v291 = vld [vmem:[%s223 + $0x218] sm:$0xff]
      %v292 = vld [vmem:[%s223 + $0x220] sm:$0xff]
      %v293 = vld [vmem:[%s223 + $0x228] sm:$0xff]
      %v294 = vld [vmem:[%s223 + $0x230] sm:$0xff]
      %v295 = vld [vmem:[%s223 + $0x238] sm:$0xff]
      %v296 = vld [vmem:[%s223 + $0x240] sm:$0xff]
      %v297 = vld [vmem:[%s223 + $0x248] sm:$0xff]
      %v298 = vld [vmem:[%s223 + $0x250] sm:$0xff]
      %v299 = vld [vmem:[%s223 + $0x258] sm:$0xff]
      %v300 = vld [vmem:[%s223 + $0x260] sm:$0xff]
      %v301 = vld [vmem:[%s223 + $0x268] sm:$0xff]
      %v302 = vld [vmem:[%s223 + $0x270] sm:$0xff]
      %v303 = vld [vmem:[%s223 + $0x278] sm:$0xff]
      %v304 = vld [vmem:[%s223 + $0x280] sm:$0xff]
      %v305 = vld [vmem:[%s223 + $0x288] sm:$0xff]
      %v306 = vld [vmem:[%s223 + $0x290] sm:$0xff]
      %v307 = vld [vmem:[%s223 + $0x298] sm:$0xff]
      %v308 = vld [vmem:[%s223 + $0x2a0] sm:$0xff]
      %v309 = vld [vmem:[%s223 + $0x2a8] sm:$0xff]
      %v310 = vld [vmem:[%s223 + $0x2b0] sm:$0xff]
      %v311 = vld [vmem:[%s223 + $0x2b8] sm:$0xff]
      %v312 = vld [vmem:[%s223 + $0x2c0] sm:$0xff]
      %v313 = vld [vmem:[%s223 + $0x2c8] sm:$0xff]
      %v314 = vld [vmem:[%s223 + $0x2d0] sm:$0xff]
      %v315 = vld [vmem:[%s223 + $0x2d8] sm:$0xff]
      %v316 = vld [vmem:[%s223 + $0x2e0] sm:$0xff]
      %v317 = vld [vmem:[%s223 + $0x2e8] sm:$0xff]
      %v318 = vld [vmem:[%s223 + $0x2f0] sm:$0xff]
      %v319 = vld [vmem:[%s223 + $0x2f8] sm:$0xff]
      %v320 = vld [vmem:[%s223 + $0x300] sm:$0xff]
      %v321 = vld [vmem:[%s223 + $0x308] sm:$0xff]
      %v322 = vld [vmem:[%s223 + $0x310] sm:$0xff]
      %v323 = vld [vmem:[%s223 + $0x318] sm:$0xff]
      %v324 = vld [vmem:[%s223 + $0x320] sm:$0xff]
      %v325 = vld [vmem:[%s223 + $0x328] sm:$0xff]
      %v326 = vld [vmem:[%s223 + $0x330] sm:$0xff]
      %v327 = vld [vmem:[%s223 + $0x338] sm:$0xff]
      %v328 = vld [vmem:[%s223 + $0x340] sm:$0xff]
      %v329 = vld [vmem:[%s223 + $0x348] sm:$0xff]
      %v330 = vld [vmem:[%s223 + $0x350] sm:$0xff]
      %v331 = vld [vmem:[%s223 + $0x358] sm:$0xff]
      %v332 = vld [vmem:[%s223 + $0x360] sm:$0xff]
      %v333 = vld [vmem:[%s223 + $0x368] sm:$0xff]
      %v334 = vld [vmem:[%s223 + $0x370] sm:$0xff]
      %v335 = vld [vmem:[%s223 + $0x378] sm:$0xff]
      %v336 = vld [vmem:[%s223 + $0x380] sm:$0xff]
      %v337 = vld [vmem:[%s223 + $0x388] sm:$0xff]
      %v338 = vld [vmem:[%s223 + $0x390] sm:$0xff]
      %v339 = vld [vmem:[%s223 + $0x398] sm:$0xff]
      %v340 = vld [vmem:[%s223 + $0x3a0] sm:$0xff]
      %v341 = vld [vmem:[%s223 + $0x3a8] sm:$0xff]
      %v342 = vld [vmem:[%s223 + $0x3b0] sm:$0xff]
      %v343 = vld [vmem:[%s223 + $0x3b8] sm:$0xff]
      %v344 = vld [vmem:[%s223 + $0x3c0] sm:$0xff]
      %v345 = vld [vmem:[%s223 + $0x3c8] sm:$0xff]
      %v346 = vld [vmem:[%s223 + $0x3d0] sm:$0xff]
      %v347 = vld [vmem:[%s223 + $0x3d8] sm:$0xff]
      %v348 = vld [vmem:[%s223 + $0x3e0] sm:$0xff]
      %v349 = vld [vmem:[%s223 + $0x3e8] sm:$0xff]
      %v350 = vld [vmem:[%s223 + $0x3f0] sm:$0xff]
      %v351 = vld [vmem:[%s223 + $0x3f8] sm:$0xff]
      %v352 = vld [vmem:[%s223 + $0x400] sm:$0xff]
      %v353 = vld [vmem:[%s223 + $0x408] sm:$0xff]
      %v354 = vld [vmem:[%s223 + $0x410] sm:$0xff]
      %v355 = vld [vmem:[%s223 + $0x418] sm:$0xff]
      %v356 = vld [vmem:[%s223 + $0x420] sm:$0xff]
      %v357 = vld [vmem:[%s223 + $0x428] sm:$0xff]
      %v358 = vld [vmem:[%s223 + $0x430] sm:$0xff]
      %v359 = vld [vmem:[%s223 + $0x438] sm:$0xff]
      %v360 = vld [vmem:[%s223 + $0x440] sm:$0xff]
      %v361 = vld [vmem:[%s223 + $0x448] sm:$0xff]
      %v362 = vld [vmem:[%s223 + $0x450] sm:$0xff]
      %v363 = vld [vmem:[%s223 + $0x458] sm:$0xff]
      %v364 = vld [vmem:[%s223 + $0x460] sm:$0xff]
      %v365 = vld [vmem:[%s223 + $0x468] sm:$0xff]
      %v366 = vld [vmem:[%s223 + $0x470] sm:$0xff]
      %v367 = vld [vmem:[%s223 + $0x478] sm:$0xff]
      %v368 = vld [vmem:[%s223 + $0x480] sm:$0xff]
      %v369 = vld [vmem:[%s223 + $0x488] sm:$0xff]
      %v370 = vld [vmem:[%s223 + $0x490] sm:$0xff]
      %v371 = vld [vmem:[%s223 + $0x498] sm:$0xff]
      %v372 = vld [vmem:[%s223 + $0x4a0] sm:$0xff]
      %v373 = vld [vmem:[%s223 + $0x4a8] sm:$0xff]
      %v374 = vld [vmem:[%s223 + $0x4b0] sm:$0xff]
      %v375 = vld [vmem:[%s223 + $0x4b8] sm:$0xff]
      %v376 = vld [vmem:[%s223 + $0x4c0] sm:$0xff]
      %v377 = vld [vmem:[%s223 + $0x4c8] sm:$0xff]
      %v378 = vld [vmem:[%s223 + $0x4d0] sm:$0xff]
      %v379 = vld [vmem:[%s223 + $0x4d8] sm:$0xff]
      %v380 = vld [vmem:[%s223 + $0x4e0] sm:$0xff]
      %v381 = vld [vmem:[%s223 + $0x4e8] sm:$0xff]
      %v382 = vld [vmem:[%s223 + $0x4f0] sm:$0xff]
      %v383 = vld [vmem:[%s223 + $0x4f8] sm:$0xff]
      %v384 = vld [vmem:[%s223 + $0x500] sm:$0xff]
      %v385 = vld [vmem:[%s223 + $0x508] sm:$0xff]
      %v386 = vld [vmem:[%s223 + $0x510] sm:$0xff]
      %v387 = vld [vmem:[%s223 + $0x518] sm:$0xff]
      %v388 = vld [vmem:[%s223 + $0x520] sm:$0xff]
      %v389 = vld [vmem:[%s223 + $0x528] sm:$0xff]
      %v390 = vld [vmem:[%s223 + $0x530] sm:$0xff]
      %v391 = vld [vmem:[%s223 + $0x538] sm:$0xff]
      %v392 = vld [vmem:[%s223 + $0x540] sm:$0xff]
      %v393 = vld [vmem:[%s223 + $0x548] sm:$0xff]
      %v394 = vld [vmem:[%s223 + $0x550] sm:$0xff]
      %v395 = vld [vmem:[%s223 + $0x558] sm:$0xff]
      %v396 = vld [vmem:[%s223 + $0x560] sm:$0xff]
      %v397 = vld [vmem:[%s223 + $0x568] sm:$0xff]
      %v398 = vld [vmem:[%s223 + $0x570] sm:$0xff]
      %v399 = vld [vmem:[%s223 + $0x578] sm:$0xff]
      %v400 = vld [vmem:[%s223 + $0x580] sm:$0xff]
      %v401 = vld [vmem:[%s223 + $0x588] sm:$0xff]
      %v402 = vld [vmem:[%s223 + $0x590] sm:$0xff]
      %v403 = vld [vmem:[%s223 + $0x598] sm:$0xff]
      %v404 = vld [vmem:[%s223 + $0x5a0] sm:$0xff]
      %v405 = vld [vmem:[%s223 + $0x5a8] sm:$0xff]
      %v406 = vld [vmem:[%s223 + $0x5b0] sm:$0xff]
      %v407 = vld [vmem:[%s223 + $0x5b8] sm:$0xff]
      %v408 = vld [vmem:[%s223 + $0x5c0] sm:$0xff]
      %v409 = vld [vmem:[%s223 + $0x5c8] sm:$0xff]
      %v410 = vld [vmem:[%s223 + $0x5d0] sm:$0xff]
      %v411 = vld [vmem:[%s223 + $0x5d8] sm:$0xff]
      %v412 = vld [vmem:[%s223 + $0x5e0] sm:$0xff]
      %v413 = vld [vmem:[%s223 + $0x5e8] sm:$0xff]
      %v414 = vld [vmem:[%s223 + $0x5f0] sm:$0xff]
      %v415 = vld [vmem:[%s223 + $0x5f8] sm:$0xff]
      %v416 = vld [vmem:[%s223 + $0x600] sm:$0xff]
      %v417 = vld [vmem:[%s223 + $0x608] sm:$0xff]
      %v418 = vld [vmem:[%s223 + $0x610] sm:$0xff]
      %v419 = vld [vmem:[%s223 + $0x618] sm:$0xff]
      %v420 = vld [vmem:[%s223 + $0x620] sm:$0xff]
      %v421 = vld [vmem:[%s223 + $0x628] sm:$0xff]
      %v422 = vld [vmem:[%s223 + $0x630] sm:$0xff]
      %v423 = vld [vmem:[%s223 + $0x638] sm:$0xff]
      %v424 = vld [vmem:[%s223 + $0x640] sm:$0xff]
      %v425 = vld [vmem:[%s223 + $0x648] sm:$0xff]
      %v426 = vld [vmem:[%s223 + $0x650] sm:$0xff]
      %v427 = vld [vmem:[%s223 + $0x658] sm:$0xff]
      %v428 = vld [vmem:[%s223 + $0x660] sm:$0xff]
      %v429 = vld [vmem:[%s223 + $0x668] sm:$0xff]
      %v430 = vld [vmem:[%s223 + $0x670] sm:$0xff]
      %v431 = vld [vmem:[%s223 + $0x678] sm:$0xff]
      %v432 = vld [vmem:[%s223 + $0x680] sm:$0xff]
      %v433 = vld [vmem:[%s223 + $0x688] sm:$0xff]
      %v434 = vld [vmem:[%s223 + $0x690] sm:$0xff]
      %v435 = vld [vmem:[%s223 + $0x698] sm:$0xff]
      %v436 = vld [vmem:[%s223 + $0x6a0] sm:$0xff]
      %v437 = vld [vmem:[%s223 + $0x6a8] sm:$0xff]
      %v438 = vld [vmem:[%s223 + $0x6b0] sm:$0xff]
      %v439 = vld [vmem:[%s223 + $0x6b8] sm:$0xff]
      %v440 = vld [vmem:[%s223 + $0x6c0] sm:$0xff]
      %v441 = vld [vmem:[%s223 + $0x6c8] sm:$0xff]
      %v442 = vld [vmem:[%s223 + $0x6d0] sm:$0xff]
      %v443 = vld [vmem:[%s223 + $0x6d8] sm:$0xff]
      %v444 = vld [vmem:[%s223 + $0x6e0] sm:$0xff]
      %v445 = vld [vmem:[%s223 + $0x6e8] sm:$0xff]
      %v446 = vld [vmem:[%s223 + $0x6f0] sm:$0xff]
      %v447 = vld [vmem:[%s223 + $0x6f8] sm:$0xff]
      %v448 = vld [vmem:[%s223 + $0x700] sm:$0xff]
      %v449 = vld [vmem:[%s223 + $0x708] sm:$0xff]
      %v450 = vld [vmem:[%s223 + $0x710] sm:$0xff]
      %v451 = vld [vmem:[%s223 + $0x718] sm:$0xff]
      %v452 = vld [vmem:[%s223 + $0x720] sm:$0xff]
      %v453 = vld [vmem:[%s223 + $0x728] sm:$0xff]
      %v454 = vld [vmem:[%s223 + $0x730] sm:$0xff]
      %v455 = vld [vmem:[%s223 + $0x738] sm:$0xff]
      %v456 = vld [vmem:[%s223 + $0x740] sm:$0xff]
      %v457 = vld [vmem:[%s223 + $0x748] sm:$0xff]
      %v458 = vld [vmem:[%s223 + $0x750] sm:$0xff]
      %v459 = vld [vmem:[%s223 + $0x758] sm:$0xff]
      %v460 = vld [vmem:[%s223 + $0x760] sm:$0xff]
      %v461 = vld [vmem:[%s223 + $0x768] sm:$0xff]
      %v462 = vld [vmem:[%s223 + $0x770] sm:$0xff]
      %v463 = vld [vmem:[%s223 + $0x778] sm:$0xff]
      %v464 = vld [vmem:[%s223 + $0x780] sm:$0xff]
      %v465 = vld [vmem:[%s223 + $0x788] sm:$0xff]
      %v466 = vld [vmem:[%s223 + $0x790] sm:$0xff]
      %v467 = vld [vmem:[%s223 + $0x798] sm:$0xff]
      %v468 = vld [vmem:[%s223 + $0x7a0] sm:$0xff]
      %v469 = vld [vmem:[%s223 + $0x7a8] sm:$0xff]
      %v470 = vld [vmem:[%s223 + $0x7b0] sm:$0xff]
      %v471 = vld [vmem:[%s223 + $0x7b8] sm:$0xff]
      %v472 = vld [vmem:[%s223 + $0x7c0] sm:$0xff]
      %v473 = vld [vmem:[%s223 + $0x7c8] sm:$0xff]
      %v474 = vld [vmem:[%s223 + $0x7d0] sm:$0xff]
      %v475 = vld [vmem:[%s223 + $0x7d8] sm:$0xff]
      %v476 = vld [vmem:[%s223 + $0x7e0] sm:$0xff]
      %v477 = vld [vmem:[%s223 + $0x7e8] sm:$0xff]
      %v478 = vld [vmem:[%s223 + $0x7f0] sm:$0xff]
      %v479 = vld [vmem:[%s223 + $0x7f8] sm:$0xff]
      %v480 = vlaneseq
      %v481 = vshrl.u32 %v480, 7
      %v482 = vld [vmem:[%s1] sm:$0xff]
      %v483 = vld [vmem:[%s1 + $0x8] sm:$0xff]
      %v484 = vld [vmem:[%s1 + $0x10] sm:$0xff]
      %v485 = vld [vmem:[%s1 + $0x18] sm:$0xff]
      %v486 = vld [vmem:[%s1 + $0x20] sm:$0xff]
      %v487 = vld [vmem:[%s1 + $0x28] sm:$0xff]
      %v488 = vld [vmem:[%s1 + $0x30] sm:$0xff]
      %v489 = vld [vmem:[%s1 + $0x38] sm:$0xff]
      %v490 = vld [vmem:[%s1 + $0x40] sm:$0xff]
      %v491 = vld [vmem:[%s1 + $0x48] sm:$0xff]
      %v492 = vld [vmem:[%s1 + $0x50] sm:$0xff]
      %v493 = vld [vmem:[%s1 + $0x58] sm:$0xff]
      %v494 = vld [vmem:[%s1 + $0x60] sm:$0xff]
      %v495 = vld [vmem:[%s1 + $0x68] sm:$0xff]
      %v496 = vld [vmem:[%s1 + $0x70] sm:$0xff]
      %v497 = vld [vmem:[%s1 + $0x78] sm:$0xff]
      %v498 = vld [vmem:[%s1 + $0x80] sm:$0xff]
      %v499 = vld [vmem:[%s1 + $0x88] sm:$0xff]
      %v500 = vld [vmem:[%s1 + $0x90] sm:$0xff]
      %v501 = vld [vmem:[%s1 + $0x98] sm:$0xff]
      %v502 = vld [vmem:[%s1 + $0xa0] sm:$0xff]
      %v503 = vld [vmem:[%s1 + $0xa8] sm:$0xff]
      %v504 = vld [vmem:[%s1 + $0xb0] sm:$0xff]
      %v505 = vld [vmem:[%s1 + $0xb8] sm:$0xff]
      %v506 = vld [vmem:[%s1 + $0xc0] sm:$0xff]
      %v507 = vld [vmem:[%s1 + $0xc8] sm:$0xff]
      %v508 = vld [vmem:[%s1 + $0xd0] sm:$0xff]
      %v509 = vld [vmem:[%s1 + $0xd8] sm:$0xff]
      %v510 = vld [vmem:[%s1 + $0xe0] sm:$0xff]
      %v511 = vld [vmem:[%s1 + $0xe8] sm:$0xff]
      %v512 = vld [vmem:[%s1 + $0xf0] sm:$0xff]
      %v513 = vld [vmem:[%s1 + $0xf8] sm:$0xff]
      %v514 = vld [vmem:[%s1 + $0x100] sm:$0xff]
      %v515 = vld [vmem:[%s1 + $0x108] sm:$0xff]
      %v516 = vld [vmem:[%s1 + $0x110] sm:$0xff]
      %v517 = vld [vmem:[%s1 + $0x118] sm:$0xff]
      %v518 = vld [vmem:[%s1 + $0x120] sm:$0xff]
      %v519 = vld [vmem:[%s1 + $0x128] sm:$0xff]
      %v520 = vld [vmem:[%s1 + $0x130] sm:$0xff]
      %v521 = vld [vmem:[%s1 + $0x138] sm:$0xff]
      %v522 = vld [vmem:[%s1 + $0x140] sm:$0xff]
      %v523 = vld [vmem:[%s1 + $0x148] sm:$0xff]
      %v524 = vld [vmem:[%s1 + $0x150] sm:$0xff]
      %v525 = vld [vmem:[%s1 + $0x158] sm:$0xff]
      %v526 = vld [vmem:[%s1 + $0x160] sm:$0xff]
      %v527 = vld [vmem:[%s1 + $0x168] sm:$0xff]
      %v528 = vld [vmem:[%s1 + $0x170] sm:$0xff]
      %v529 = vld [vmem:[%s1 + $0x178] sm:$0xff]
      %v530 = vld [vmem:[%s1 + $0x180] sm:$0xff]
      %v531 = vld [vmem:[%s1 + $0x188] sm:$0xff]
      %v532 = vld [vmem:[%s1 + $0x190] sm:$0xff]
      %v533 = vld [vmem:[%s1 + $0x198] sm:$0xff]
      %v534 = vld [vmem:[%s1 + $0x1a0] sm:$0xff]
      %v535 = vld [vmem:[%s1 + $0x1a8] sm:$0xff]
      %v536 = vld [vmem:[%s1 + $0x1b0] sm:$0xff]
      %v537 = vld [vmem:[%s1 + $0x1b8] sm:$0xff]
      %v538 = vld [vmem:[%s1 + $0x1c0] sm:$0xff]
      %v539 = vld [vmem:[%s1 + $0x1c8] sm:$0xff]
      %v540 = vld [vmem:[%s1 + $0x1d0] sm:$0xff]
      %v541 = vld [vmem:[%s1 + $0x1d8] sm:$0xff]
      %v542 = vld [vmem:[%s1 + $0x1e0] sm:$0xff]
      %v543 = vld [vmem:[%s1 + $0x1e8] sm:$0xff]
      %v544 = vld [vmem:[%s1 + $0x1f0] sm:$0xff]
      %v545 = vld [vmem:[%s1 + $0x1f8] sm:$0xff]
      %v546 = vld [vmem:[%s1 + $0x200] sm:$0xff]
      %v547 = vld [vmem:[%s1 + $0x208] sm:$0xff]
      %v548 = vld [vmem:[%s1 + $0x210] sm:$0xff]
      %v549 = vld [vmem:[%s1 + $0x218] sm:$0xff]
      %v550 = vld [vmem:[%s1 + $0x220] sm:$0xff]
      %v551 = vld [vmem:[%s1 + $0x228] sm:$0xff]
      %v552 = vld [vmem:[%s1 + $0x230] sm:$0xff]
      %v553 = vld [vmem:[%s1 + $0x238] sm:$0xff]
      %v554 = vld [vmem:[%s1 + $0x240] sm:$0xff]
      %v555 = vld [vmem:[%s1 + $0x248] sm:$0xff]
      %v556 = vld [vmem:[%s1 + $0x250] sm:$0xff]
      %v557 = vld [vmem:[%s1 + $0x258] sm:$0xff]
      %v558 = vld [vmem:[%s1 + $0x260] sm:$0xff]
      %v559 = vld [vmem:[%s1 + $0x268] sm:$0xff]
      %v560 = vld [vmem:[%s1 + $0x270] sm:$0xff]
      %v561 = vld [vmem:[%s1 + $0x278] sm:$0xff]
      %v562 = vld [vmem:[%s1 + $0x280] sm:$0xff]
      %v563 = vld [vmem:[%s1 + $0x288] sm:$0xff]
      %v564 = vld [vmem:[%s1 + $0x290] sm:$0xff]
      %v565 = vld [vmem:[%s1 + $0x298] sm:$0xff]
      %v566 = vld [vmem:[%s1 + $0x2a0] sm:$0xff]
      %v567 = vld [vmem:[%s1 + $0x2a8] sm:$0xff]
      %v568 = vld [vmem:[%s1 + $0x2b0] sm:$0xff]
      %v569 = vld [vmem:[%s1 + $0x2b8] sm:$0xff]
      %v570 = vld [vmem:[%s1 + $0x2c0] sm:$0xff]
      %v571 = vld [vmem:[%s1 + $0x2c8] sm:$0xff]
      %v572 = vld [vmem:[%s1 + $0x2d0] sm:$0xff]
      %v573 = vld [vmem:[%s1 + $0x2d8] sm:$0xff]
      %v574 = vld [vmem:[%s1 + $0x2e0] sm:$0xff]
      %v575 = vld [vmem:[%s1 + $0x2e8] sm:$0xff]
      %v576 = vld [vmem:[%s1 + $0x2f0] sm:$0xff]
      %v577 = vld [vmem:[%s1 + $0x2f8] sm:$0xff]
      %v578 = vld [vmem:[%s1 + $0x300] sm:$0xff]
      %v579 = vld [vmem:[%s1 + $0x308] sm:$0xff]
      %v580 = vld [vmem:[%s1 + $0x310] sm:$0xff]
      %v581 = vld [vmem:[%s1 + $0x318] sm:$0xff]
      %v582 = vld [vmem:[%s1 + $0x320] sm:$0xff]
      %v583 = vld [vmem:[%s1 + $0x328] sm:$0xff]
      %v584 = vld [vmem:[%s1 + $0x330] sm:$0xff]
      %v585 = vld [vmem:[%s1 + $0x338] sm:$0xff]
      %v586 = vld [vmem:[%s1 + $0x340] sm:$0xff]
      %v587 = vld [vmem:[%s1 + $0x348] sm:$0xff]
      %v588 = vld [vmem:[%s1 + $0x350] sm:$0xff]
      %v589 = vld [vmem:[%s1 + $0x358] sm:$0xff]
      %v590 = vld [vmem:[%s1 + $0x360] sm:$0xff]
      %v591 = vld [vmem:[%s1 + $0x368] sm:$0xff]
      %v592 = vld [vmem:[%s1 + $0x370] sm:$0xff]
      %v593 = vld [vmem:[%s1 + $0x378] sm:$0xff]
      %v594 = vld [vmem:[%s1 + $0x380] sm:$0xff]
      %v595 = vld [vmem:[%s1 + $0x388] sm:$0xff]
      %v596 = vld [vmem:[%s1 + $0x390] sm:$0xff]
      %v597 = vld [vmem:[%s1 + $0x398] sm:$0xff]
      %v598 = vld [vmem:[%s1 + $0x3a0] sm:$0xff]
      %v599 = vld [vmem:[%s1 + $0x3a8] sm:$0xff]
      %v600 = vld [vmem:[%s1 + $0x3b0] sm:$0xff]
      %v601 = vld [vmem:[%s1 + $0x3b8] sm:$0xff]
      %v602 = vld [vmem:[%s1 + $0x3c0] sm:$0xff]
      %v603 = vld [vmem:[%s1 + $0x3c8] sm:$0xff]
      %v604 = vld [vmem:[%s1 + $0x3d0] sm:$0xff]
      %v605 = vld [vmem:[%s1 + $0x3d8] sm:$0xff]
      %v606 = vld [vmem:[%s1 + $0x3e0] sm:$0xff]
      %v607 = vld [vmem:[%s1 + $0x3e8] sm:$0xff]
      %v608 = vld [vmem:[%s1 + $0x3f0] sm:$0xff]
      %v609 = vld [vmem:[%s1 + $0x3f8] sm:$0xff]
      %v610 = vld [vmem:[%s1 + $0x400] sm:$0xff]
      %v611 = vld [vmem:[%s1 + $0x408] sm:$0xff]
      %v612 = vld [vmem:[%s1 + $0x410] sm:$0xff]
      %v613 = vld [vmem:[%s1 + $0x418] sm:$0xff]
      %v614 = vld [vmem:[%s1 + $0x420] sm:$0xff]
      %v615 = vld [vmem:[%s1 + $0x428] sm:$0xff]
      %v616 = vld [vmem:[%s1 + $0x430] sm:$0xff]
      %v617 = vld [vmem:[%s1 + $0x438] sm:$0xff]
      %v618 = vld [vmem:[%s1 + $0x440] sm:$0xff]
      %v619 = vld [vmem:[%s1 + $0x448] sm:$0xff]
      %v620 = vld [vmem:[%s1 + $0x450] sm:$0xff]
      %v621 = vld [vmem:[%s1 + $0x458] sm:$0xff]
      %v622 = vld [vmem:[%s1 + $0x460] sm:$0xff]
      %v623 = vld [vmem:[%s1 + $0x468] sm:$0xff]
      %v624 = vld [vmem:[%s1 + $0x470] sm:$0xff]
      %v625 = vld [vmem:[%s1 + $0x478] sm:$0xff]
      %v626 = vld [vmem:[%s1 + $0x480] sm:$0xff]
      %v627 = vld [vmem:[%s1 + $0x488] sm:$0xff]
      %v628 = vld [vmem:[%s1 + $0x490] sm:$0xff]
      %v629 = vld [vmem:[%s1 + $0x498] sm:$0xff]
      %v630 = vld [vmem:[%s1 + $0x4a0] sm:$0xff]
      %v631 = vld [vmem:[%s1 + $0x4a8] sm:$0xff]
      %v632 = vld [vmem:[%s1 + $0x4b0] sm:$0xff]
      %v633 = vld [vmem:[%s1 + $0x4b8] sm:$0xff]
      %v634 = vld [vmem:[%s1 + $0x4c0] sm:$0xff]
      %v635 = vld [vmem:[%s1 + $0x4c8] sm:$0xff]
      %v636 = vld [vmem:[%s1 + $0x4d0] sm:$0xff]
      %v637 = vld [vmem:[%s1 + $0x4d8] sm:$0xff]
      %v638 = vld [vmem:[%s1 + $0x4e0] sm:$0xff]
      %v639 = vld [vmem:[%s1 + $0x4e8] sm:$0xff]
      %v640 = vld [vmem:[%s1 + $0x4f0] sm:$0xff]
      %v641 = vld [vmem:[%s1 + $0x4f8] sm:$0xff]
      %v642 = vld [vmem:[%s1 + $0x500] sm:$0xff]
      %v643 = vld [vmem:[%s1 + $0x508] sm:$0xff]
      %v644 = vld [vmem:[%s1 + $0x510] sm:$0xff]
      %v645 = vld [vmem:[%s1 + $0x518] sm:$0xff]
      %v646 = vld [vmem:[%s1 + $0x520] sm:$0xff]
      %v647 = vld [vmem:[%s1 + $0x528] sm:$0xff]
      %v648 = vld [vmem:[%s1 + $0x530] sm:$0xff]
      %v649 = vld [vmem:[%s1 + $0x538] sm:$0xff]
      %v650 = vld [vmem:[%s1 + $0x540] sm:$0xff]
      %v651 = vld [vmem:[%s1 + $0x548] sm:$0xff]
      %v652 = vld [vmem:[%s1 + $0x550] sm:$0xff]
      %v653 = vld [vmem:[%s1 + $0x558] sm:$0xff]
      %v654 = vld [vmem:[%s1 + $0x560] sm:$0xff]
      %v655 = vld [vmem:[%s1 + $0x568] sm:$0xff]
      %v656 = vld [vmem:[%s1 + $0x570] sm:$0xff]
      %v657 = vld [vmem:[%s1 + $0x578] sm:$0xff]
      %v658 = vld [vmem:[%s1 + $0x580] sm:$0xff]
      %v659 = vld [vmem:[%s1 + $0x588] sm:$0xff]
      %v660 = vld [vmem:[%s1 + $0x590] sm:$0xff]
      %v661 = vld [vmem:[%s1 + $0x598] sm:$0xff]
      %v662 = vld [vmem:[%s1 + $0x5a0] sm:$0xff]
      %v663 = vld [vmem:[%s1 + $0x5a8] sm:$0xff]
      %v664 = vld [vmem:[%s1 + $0x5b0] sm:$0xff]
      %v665 = vld [vmem:[%s1 + $0x5b8] sm:$0xff]
      %v666 = vld [vmem:[%s1 + $0x5c0] sm:$0xff]
      %v667 = vld [vmem:[%s1 + $0x5c8] sm:$0xff]
      %v668 = vld [vmem:[%s1 + $0x5d0] sm:$0xff]
      %v669 = vld [vmem:[%s1 + $0x5d8] sm:$0xff]
      %v670 = vld [vmem:[%s1 + $0x5e0] sm:$0xff]
      %v671 = vld [vmem:[%s1 + $0x5e8] sm:$0xff]
      %v672 = vld [vmem:[%s1 + $0x5f0] sm:$0xff]
      %v673 = vld [vmem:[%s1 + $0x5f8] sm:$0xff]
      %v674 = vld [vmem:[%s1 + $0x600] sm:$0xff]
      %v675 = vld [vmem:[%s1 + $0x608] sm:$0xff]
      %v676 = vld [vmem:[%s1 + $0x610] sm:$0xff]
      %v677 = vld [vmem:[%s1 + $0x618] sm:$0xff]
      %v678 = vld [vmem:[%s1 + $0x620] sm:$0xff]
      %v679 = vld [vmem:[%s1 + $0x628] sm:$0xff]
      %v680 = vld [vmem:[%s1 + $0x630] sm:$0xff]
      %v681 = vld [vmem:[%s1 + $0x638] sm:$0xff]
      %v682 = vld [vmem:[%s1 + $0x640] sm:$0xff]
      %v683 = vld [vmem:[%s1 + $0x648] sm:$0xff]
      %v684 = vld [vmem:[%s1 + $0x650] sm:$0xff]
      %v685 = vld [vmem:[%s1 + $0x658] sm:$0xff]
      %v686 = vld [vmem:[%s1 + $0x660] sm:$0xff]
      %v687 = vld [vmem:[%s1 + $0x668] sm:$0xff]
      %v688 = vld [vmem:[%s1 + $0x670] sm:$0xff]
      %v689 = vld [vmem:[%s1 + $0x678] sm:$0xff]
      %v690 = vld [vmem:[%s1 + $0x680] sm:$0xff]
      %v691 = vld [vmem:[%s1 + $0x688] sm:$0xff]
      %v692 = vld [vmem:[%s1 + $0x690] sm:$0xff]
      %v693 = vld [vmem:[%s1 + $0x698] sm:$0xff]
      %v694 = vld [vmem:[%s1 + $0x6a0] sm:$0xff]
      %v695 = vld [vmem:[%s1 + $0x6a8] sm:$0xff]
      %v696 = vld [vmem:[%s1 + $0x6b0] sm:$0xff]
      %v697 = vld [vmem:[%s1 + $0x6b8] sm:$0xff]
      %v698 = vld [vmem:[%s1 + $0x6c0] sm:$0xff]
      %v699 = vld [vmem:[%s1 + $0x6c8] sm:$0xff]
      %v700 = vld [vmem:[%s1 + $0x6d0] sm:$0xff]
      %v701 = vld [vmem:[%s1 + $0x6d8] sm:$0xff]
      %v702 = vld [vmem:[%s1 + $0x6e0] sm:$0xff]
      %v703 = vld [vmem:[%s1 + $0x6e8] sm:$0xff]
      %v704 = vld [vmem:[%s1 + $0x6f0] sm:$0xff]
      %v705 = vld [vmem:[%s1 + $0x6f8] sm:$0xff]
      %v706 = vld [vmem:[%s1 + $0x700] sm:$0xff]
      %v707 = vld [vmem:[%s1 + $0x708] sm:$0xff]
      %v708 = vld [vmem:[%s1 + $0x710] sm:$0xff]
      %v709 = vld [vmem:[%s1 + $0x718] sm:$0xff]
      %v710 = vld [vmem:[%s1 + $0x720] sm:$0xff]
      %v711 = vld [vmem:[%s1 + $0x728] sm:$0xff]
      %v712 = vld [vmem:[%s1 + $0x730] sm:$0xff]
      %v713 = vld [vmem:[%s1 + $0x738] sm:$0xff]
      %v714 = vld [vmem:[%s1 + $0x740] sm:$0xff]
      %v715 = vld [vmem:[%s1 + $0x748] sm:$0xff]
      %v716 = vld [vmem:[%s1 + $0x750] sm:$0xff]
      %v717 = vld [vmem:[%s1 + $0x758] sm:$0xff]
      %v718 = vld [vmem:[%s1 + $0x760] sm:$0xff]
      %v719 = vld [vmem:[%s1 + $0x768] sm:$0xff]
      %v720 = vld [vmem:[%s1 + $0x770] sm:$0xff]
      %v721 = vld [vmem:[%s1 + $0x778] sm:$0xff]
      %v722 = vld [vmem:[%s1 + $0x780] sm:$0xff]
      %v723 = vld [vmem:[%s1 + $0x788] sm:$0xff]
      %v724 = vld [vmem:[%s1 + $0x790] sm:$0xff]
      %v725 = vld [vmem:[%s1 + $0x798] sm:$0xff]
      %v726 = vld [vmem:[%s1 + $0x7a0] sm:$0xff]
      %v727 = vld [vmem:[%s1 + $0x7a8] sm:$0xff]
      %v728 = vld [vmem:[%s1 + $0x7b0] sm:$0xff]
      %v729 = vld [vmem:[%s1 + $0x7b8] sm:$0xff]
      %v730 = vld [vmem:[%s1 + $0x7c0] sm:$0xff]
      %v731 = vld [vmem:[%s1 + $0x7c8] sm:$0xff]
      %v732 = vld [vmem:[%s1 + $0x7d0] sm:$0xff]
      %v733 = vld [vmem:[%s1 + $0x7d8] sm:$0xff]
      %v734 = vld [vmem:[%s1 + $0x7e0] sm:$0xff]
      %v735 = vld [vmem:[%s1 + $0x7e8] sm:$0xff]
      %v736 = vld [vmem:[%s1 + $0x7f0] sm:$0xff]
      %v737 = vld [vmem:[%s1 + $0x7f8] sm:$0xff]
      %v742 = vunpack.c.l.b16 %v219
      %v743 = vunpack.c.h.b16 %v219
      %v744 = vunpack.c.l.b16 %v220
      %v745 = vunpack.c.h.b16 %v220
      %v746 = vunpack.c.l.b16 %v221
      %v747 = vunpack.c.h.b16 %v221
      %v748 = vunpack.c.l.b16 %v222
      %v749 = vunpack.c.h.b16 %v222
      %v750 = vpack.c.b16 %v742, %v742
      %v751 = vpack.c.b16 %v743, %v743
      %v752 = vpack.c.b16 %v744, %v744
      %v753 = vpack.c.b16 %v745, %v745
      %v754 = vpack.c.b16 %v746, %v746
      %v755 = vpack.c.b16 %v747, %v747
      %v756 = vpack.c.b16 %v748, %v748
      %v757 = vpack.c.b16 %v749, %v749
      %v1022 = vunpack.c.l.b16 %v482
      %v1023 = vunpack.c.h.b16 %v482
      %v1024 = vunpack.c.l.b16 %v483
      %v1025 = vunpack.c.h.b16 %v483
      %v1026 = vunpack.c.l.b16 %v484
      %v1027 = vunpack.c.h.b16 %v484
      %v1028 = vunpack.c.l.b16 %v485
      %v1029 = vunpack.c.h.b16 %v485
      %v1030 = vunpack.c.l.b16 %v486
      %v1031 = vunpack.c.h.b16 %v486
      %v1032 = vunpack.c.l.b16 %v487
      %v1033 = vunpack.c.h.b16 %v487
      %v1034 = vunpack.c.l.b16 %v488
      %v1035 = vunpack.c.h.b16 %v488
      %v1036 = vunpack.c.l.b16 %v489
      %v1037 = vunpack.c.h.b16 %v489
      %v1038 = vunpack.c.l.b16 %v490
      %v1039 = vunpack.c.h.b16 %v490
      %v1040 = vunpack.c.l.b16 %v491
      %v1041 = vunpack.c.h.b16 %v491
      %v1042 = vunpack.c.l.b16 %v492
      %v1043 = vunpack.c.h.b16 %v492
      %v1044 = vunpack.c.l.b16 %v493
      %v1045 = vunpack.c.h.b16 %v493
      %v1046 = vunpack.c.l.b16 %v494
      %v1047 = vunpack.c.h.b16 %v494
      %v1048 = vunpack.c.l.b16 %v495
      %v1049 = vunpack.c.h.b16 %v495
      %v1050 = vunpack.c.l.b16 %v496
      %v1051 = vunpack.c.h.b16 %v496
      %v1052 = vunpack.c.l.b16 %v497
      %v1053 = vunpack.c.h.b16 %v497
      %v1054 = vunpack.c.l.b16 %v498
      %v1055 = vunpack.c.h.b16 %v498
      %v1056 = vunpack.c.l.b16 %v499
      %v1057 = vunpack.c.h.b16 %v499
      %v1058 = vunpack.c.l.b16 %v500
      %v1059 = vunpack.c.h.b16 %v500
      %v1060 = vunpack.c.l.b16 %v501
      %v1061 = vunpack.c.h.b16 %v501
      %v1062 = vunpack.c.l.b16 %v502
      %v1063 = vunpack.c.h.b16 %v502
      %v1064 = vunpack.c.l.b16 %v503
      %v1065 = vunpack.c.h.b16 %v503
      %v1066 = vunpack.c.l.b16 %v504
      %v1067 = vunpack.c.h.b16 %v504
      %v1068 = vunpack.c.l.b16 %v505
      %v1069 = vunpack.c.h.b16 %v505
      %v1070 = vunpack.c.l.b16 %v506
      %v1071 = vunpack.c.h.b16 %v506
      %v1072 = vunpack.c.l.b16 %v507
      %v1073 = vunpack.c.h.b16 %v507
      %v1074 = vunpack.c.l.b16 %v508
      %v1075 = vunpack.c.h.b16 %v508
      %v1076 = vunpack.c.l.b16 %v509
      %v1077 = vunpack.c.h.b16 %v509
      %v1078 = vunpack.c.l.b16 %v510
      %v1079 = vunpack.c.h.b16 %v510
      %v1080 = vunpack.c.l.b16 %v511
      %v1081 = vunpack.c.h.b16 %v511
      %v1082 = vunpack.c.l.b16 %v512
      %v1083 = vunpack.c.h.b16 %v512
      %v1084 = vunpack.c.l.b16 %v513
      %v1085 = vunpack.c.h.b16 %v513
      %v1086 = vunpack.c.l.b16 %v514
      %v1087 = vunpack.c.h.b16 %v514
      %v1088 = vunpack.c.l.b16 %v515
      %v1089 = vunpack.c.h.b16 %v515
      %v1090 = vunpack.c.l.b16 %v516
      %v1091 = vunpack.c.h.b16 %v516
      %v1092 = vunpack.c.l.b16 %v517
      %v1093 = vunpack.c.h.b16 %v517
      %v1094 = vunpack.c.l.b16 %v518
      %v1095 = vunpack.c.h.b16 %v518
      %v1096 = vunpack.c.l.b16 %v519
      %v1097 = vunpack.c.h.b16 %v519
      %v1098 = vunpack.c.l.b16 %v520
      %v1099 = vunpack.c.h.b16 %v520
      %v1100 = vunpack.c.l.b16 %v521
      %v1101 = vunpack.c.h.b16 %v521
      %v1102 = vunpack.c.l.b16 %v522
      %v1103 = vunpack.c.h.b16 %v522
      %v1104 = vunpack.c.l.b16 %v523
      %v1105 = vunpack.c.h.b16 %v523
      %v1106 = vunpack.c.l.b16 %v524
      %v1107 = vunpack.c.h.b16 %v524
      %v1108 = vunpack.c.l.b16 %v525
      %v1109 = vunpack.c.h.b16 %v525
      %v1110 = vunpack.c.l.b16 %v526
      %v1111 = vunpack.c.h.b16 %v526
      %v1112 = vunpack.c.l.b16 %v527
      %v1113 = vunpack.c.h.b16 %v527
      %v1114 = vunpack.c.l.b16 %v528
      %v1115 = vunpack.c.h.b16 %v528
      %v1116 = vunpack.c.l.b16 %v529
      %v1117 = vunpack.c.h.b16 %v529
      %v1118 = vunpack.c.l.b16 %v530
      %v1119 = vunpack.c.h.b16 %v530
      %v1120 = vunpack.c.l.b16 %v531
      %v1121 = vunpack.c.h.b16 %v531
      %v1122 = vunpack.c.l.b16 %v532
      %v1123 = vunpack.c.h.b16 %v532
      %v1124 = vunpack.c.l.b16 %v533
      %v1125 = vunpack.c.h.b16 %v533
      %v1126 = vunpack.c.l.b16 %v534
      %v1127 = vunpack.c.h.b16 %v534
      %v1128 = vunpack.c.l.b16 %v535
      %v1129 = vunpack.c.h.b16 %v535
      %v1130 = vunpack.c.l.b16 %v536
      %v1131 = vunpack.c.h.b16 %v536
      %v1132 = vunpack.c.l.b16 %v537
      %v1133 = vunpack.c.h.b16 %v537
      %v1134 = vunpack.c.l.b16 %v538
      %v1135 = vunpack.c.h.b16 %v538
      %v1136 = vunpack.c.l.b16 %v539
      %v1137 = vunpack.c.h.b16 %v539
      %v1138 = vunpack.c.l.b16 %v540
      %v1139 = vunpack.c.h.b16 %v540
      %v1140 = vunpack.c.l.b16 %v541
      %v1141 = vunpack.c.h.b16 %v541
      %v1142 = vunpack.c.l.b16 %v542
      %v1143 = vunpack.c.h.b16 %v542
      %v1144 = vunpack.c.l.b16 %v543
      %v1145 = vunpack.c.h.b16 %v543
      %v1146 = vunpack.c.l.b16 %v544
      %v1147 = vunpack.c.h.b16 %v544
      %v1148 = vunpack.c.l.b16 %v545
      %v1149 = vunpack.c.h.b16 %v545
      %v1150 = vunpack.c.l.b16 %v546
      %v1151 = vunpack.c.h.b16 %v546
      %v1152 = vunpack.c.l.b16 %v547
      %v1153 = vunpack.c.h.b16 %v547
      %v1154 = vunpack.c.l.b16 %v548
      %v1155 = vunpack.c.h.b16 %v548
      %v1156 = vunpack.c.l.b16 %v549
      %v1157 = vunpack.c.h.b16 %v549
      %v1158 = vunpack.c.l.b16 %v550
      %v1159 = vunpack.c.h.b16 %v550
      %v1160 = vunpack.c.l.b16 %v551
      %v1161 = vunpack.c.h.b16 %v551
      %v1162 = vunpack.c.l.b16 %v552
      %v1163 = vunpack.c.h.b16 %v552
      %v1164 = vunpack.c.l.b16 %v553
      %v1165 = vunpack.c.h.b16 %v553
      %v1166 = vunpack.c.l.b16 %v554
      %v1167 = vunpack.c.h.b16 %v554
      %v1168 = vunpack.c.l.b16 %v555
      %v1169 = vunpack.c.h.b16 %v555
      %v1170 = vunpack.c.l.b16 %v556
      %v1171 = vunpack.c.h.b16 %v556
      %v1172 = vunpack.c.l.b16 %v557
      %v1173 = vunpack.c.h.b16 %v557
      %v1174 = vunpack.c.l.b16 %v558
      %v1175 = vunpack.c.h.b16 %v558
      %v1176 = vunpack.c.l.b16 %v559
      %v1177 = vunpack.c.h.b16 %v559
      %v1178 = vunpack.c.l.b16 %v560
      %v1179 = vunpack.c.h.b16 %v560
      %v1180 = vunpack.c.l.b16 %v561
      %v1181 = vunpack.c.h.b16 %v561
      %v1182 = vunpack.c.l.b16 %v562
      %v1183 = vunpack.c.h.b16 %v562
      %v1184 = vunpack.c.l.b16 %v563
      %v1185 = vunpack.c.h.b16 %v563
      %v1186 = vunpack.c.l.b16 %v564
      %v1187 = vunpack.c.h.b16 %v564
      %v1188 = vunpack.c.l.b16 %v565
      %v1189 = vunpack.c.h.b16 %v565
      %v1190 = vunpack.c.l.b16 %v566
      %v1191 = vunpack.c.h.b16 %v566
      %v1192 = vunpack.c.l.b16 %v567
      %v1193 = vunpack.c.h.b16 %v567
      %v1194 = vunpack.c.l.b16 %v568
      %v1195 = vunpack.c.h.b16 %v568
      %v1196 = vunpack.c.l.b16 %v569
      %v1197 = vunpack.c.h.b16 %v569
      %v1198 = vunpack.c.l.b16 %v570
      %v1199 = vunpack.c.h.b16 %v570
      %v1200 = vunpack.c.l.b16 %v571
      %v1201 = vunpack.c.h.b16 %v571
      %v1202 = vunpack.c.l.b16 %v572
      %v1203 = vunpack.c.h.b16 %v572
      %v1204 = vunpack.c.l.b16 %v573
      %v1205 = vunpack.c.h.b16 %v573
      %v1206 = vunpack.c.l.b16 %v574
      %v1207 = vunpack.c.h.b16 %v574
      %v1208 = vunpack.c.l.b16 %v575
      %v1209 = vunpack.c.h.b16 %v575
      %v1210 = vunpack.c.l.b16 %v576
      %v1211 = vunpack.c.h.b16 %v576
      %v1212 = vunpack.c.l.b16 %v577
      %v1213 = vunpack.c.h.b16 %v577
      %v1214 = vunpack.c.l.b16 %v578
      %v1215 = vunpack.c.h.b16 %v578
      %v1216 = vunpack.c.l.b16 %v579
      %v1217 = vunpack.c.h.b16 %v579
      %v1218 = vunpack.c.l.b16 %v580
      %v1219 = vunpack.c.h.b16 %v580
      %v1220 = vunpack.c.l.b16 %v581
      %v1221 = vunpack.c.h.b16 %v581
      %v1222 = vunpack.c.l.b16 %v582
      %v1223 = vunpack.c.h.b16 %v582
      %v1224 = vunpack.c.l.b16 %v583
      %v1225 = vunpack.c.h.b16 %v583
      %v1226 = vunpack.c.l.b16 %v584
      %v1227 = vunpack.c.h.b16 %v584
      %v1228 = vunpack.c.l.b16 %v585
      %v1229 = vunpack.c.h.b16 %v585
      %v1230 = vunpack.c.l.b16 %v586
      %v1231 = vunpack.c.h.b16 %v586
      %v1232 = vunpack.c.l.b16 %v587
      %v1233 = vunpack.c.h.b16 %v587
      %v1234 = vunpack.c.l.b16 %v588
      %v1235 = vunpack.c.h.b16 %v588
      %v1236 = vunpack.c.l.b16 %v589
      %v1237 = vunpack.c.h.b16 %v589
      %v1238 = vunpack.c.l.b16 %v590
      %v1239 = vunpack.c.h.b16 %v590
      %v1240 = vunpack.c.l.b16 %v591
      %v1241 = vunpack.c.h.b16 %v591
      %v1242 = vunpack.c.l.b16 %v592
      %v1243 = vunpack.c.h.b16 %v592
      %v1244 = vunpack.c.l.b16 %v593
      %v1245 = vunpack.c.h.b16 %v593
      %v1246 = vunpack.c.l.b16 %v594
      %v1247 = vunpack.c.h.b16 %v594
      %v1248 = vunpack.c.l.b16 %v595
      %v1249 = vunpack.c.h.b16 %v595
      %v1250 = vunpack.c.l.b16 %v596
      %v1251 = vunpack.c.h.b16 %v596
      %v1252 = vunpack.c.l.b16 %v597
      %v1253 = vunpack.c.h.b16 %v597
      %v1254 = vunpack.c.l.b16 %v598
      %v1255 = vunpack.c.h.b16 %v598
      %v1256 = vunpack.c.l.b16 %v599
      %v1257 = vunpack.c.h.b16 %v599
      %v1258 = vunpack.c.l.b16 %v600
      %v1259 = vunpack.c.h.b16 %v600
      %v1260 = vunpack.c.l.b16 %v601
      %v1261 = vunpack.c.h.b16 %v601
      %v1262 = vunpack.c.l.b16 %v602
      %v1263 = vunpack.c.h.b16 %v602
      %v1264 = vunpack.c.l.b16 %v603
      %v1265 = vunpack.c.h.b16 %v603
      %v1266 = vunpack.c.l.b16 %v604
      %v1267 = vunpack.c.h.b16 %v604
      %v1268 = vunpack.c.l.b16 %v605
      %v1269 = vunpack.c.h.b16 %v605
      %v1270 = vunpack.c.l.b16 %v606
      %v1271 = vunpack.c.h.b16 %v606
      %v1272 = vunpack.c.l.b16 %v607
      %v1273 = vunpack.c.h.b16 %v607
      %v1274 = vunpack.c.l.b16 %v608
      %v1275 = vunpack.c.h.b16 %v608
      %v1276 = vunpack.c.l.b16 %v609
      %v1277 = vunpack.c.h.b16 %v609
      %v1278 = vunpack.c.l.b16 %v610
      %v1279 = vunpack.c.h.b16 %v610
      %v1280 = vunpack.c.l.b16 %v611
      %v1281 = vunpack.c.h.b16 %v611
      %v1282 = vunpack.c.l.b16 %v612
      %v1283 = vunpack.c.h.b16 %v612
      %v1284 = vunpack.c.l.b16 %v613
      %v1285 = vunpack.c.h.b16 %v613
      %v1286 = vunpack.c.l.b16 %v614
      %v1287 = vunpack.c.h.b16 %v614
      %v1288 = vunpack.c.l.b16 %v615
      %v1289 = vunpack.c.h.b16 %v615
      %v1290 = vunpack.c.l.b16 %v616
      %v1291 = vunpack.c.h.b16 %v616
      %v1292 = vunpack.c.l.b16 %v617
      %v1293 = vunpack.c.h.b16 %v617
      %v1294 = vunpack.c.l.b16 %v618
      %v1295 = vunpack.c.h.b16 %v618
      %v1296 = vunpack.c.l.b16 %v619
      %v1297 = vunpack.c.h.b16 %v619
      %v1298 = vunpack.c.l.b16 %v620
      %v1299 = vunpack.c.h.b16 %v620
      %v1300 = vunpack.c.l.b16 %v621
      %v1301 = vunpack.c.h.b16 %v621
      %v1302 = vunpack.c.l.b16 %v622
      %v1303 = vunpack.c.h.b16 %v622
      %v1304 = vunpack.c.l.b16 %v623
      %v1305 = vunpack.c.h.b16 %v623
      %v1306 = vunpack.c.l.b16 %v624
      %v1307 = vunpack.c.h.b16 %v624
      %v1308 = vunpack.c.l.b16 %v625
      %v1309 = vunpack.c.h.b16 %v625
      %v1310 = vunpack.c.l.b16 %v626
      %v1311 = vunpack.c.h.b16 %v626
      %v1312 = vunpack.c.l.b16 %v627
      %v1313 = vunpack.c.h.b16 %v627
      %v1314 = vunpack.c.l.b16 %v628
      %v1315 = vunpack.c.h.b16 %v628
      %v1316 = vunpack.c.l.b16 %v629
      %v1317 = vunpack.c.h.b16 %v629
      %v1318 = vunpack.c.l.b16 %v630
      %v1319 = vunpack.c.h.b16 %v630
      %v1320 = vunpack.c.l.b16 %v631
      %v1321 = vunpack.c.h.b16 %v631
      %v1322 = vunpack.c.l.b16 %v632
      %v1323 = vunpack.c.h.b16 %v632
      %v1324 = vunpack.c.l.b16 %v633
      %v1325 = vunpack.c.h.b16 %v633
      %v1326 = vunpack.c.l.b16 %v634
      %v1327 = vunpack.c.h.b16 %v634
      %v1328 = vunpack.c.l.b16 %v635
      %v1329 = vunpack.c.h.b16 %v635
      %v1330 = vunpack.c.l.b16 %v636
      %v1331 = vunpack.c.h.b16 %v636
      %v1332 = vunpack.c.l.b16 %v637
      %v1333 = vunpack.c.h.b16 %v637
      %v1334 = vunpack.c.l.b16 %v638
      %v1335 = vunpack.c.h.b16 %v638
      %v1336 = vunpack.c.l.b16 %v639
      %v1337 = vunpack.c.h.b16 %v639
      %v1338 = vunpack.c.l.b16 %v640
      %v1339 = vunpack.c.h.b16 %v640
      %v1340 = vunpack.c.l.b16 %v641
      %v1341 = vunpack.c.h.b16 %v641
      %v1342 = vunpack.c.l.b16 %v642
      %v1343 = vunpack.c.h.b16 %v642
      %v1344 = vunpack.c.l.b16 %v643
      %v1345 = vunpack.c.h.b16 %v643
      %v1346 = vunpack.c.l.b16 %v644
      %v1347 = vunpack.c.h.b16 %v644
      %v1348 = vunpack.c.l.b16 %v645
      %v1349 = vunpack.c.h.b16 %v645
      %v1350 = vunpack.c.l.b16 %v646
      %v1351 = vunpack.c.h.b16 %v646
      %v1352 = vunpack.c.l.b16 %v647
      %v1353 = vunpack.c.h.b16 %v647
      %v1354 = vunpack.c.l.b16 %v648
      %v1355 = vunpack.c.h.b16 %v648
      %v1356 = vunpack.c.l.b16 %v649
      %v1357 = vunpack.c.h.b16 %v649
      %v1358 = vunpack.c.l.b16 %v650
      %v1359 = vunpack.c.h.b16 %v650
      %v1360 = vunpack.c.l.b16 %v651
      %v1361 = vunpack.c.h.b16 %v651
      %v1362 = vunpack.c.l.b16 %v652
      %v1363 = vunpack.c.h.b16 %v652
      %v1364 = vunpack.c.l.b16 %v653
      %v1365 = vunpack.c.h.b16 %v653
      %v1366 = vunpack.c.l.b16 %v654
      %v1367 = vunpack.c.h.b16 %v654
      %v1368 = vunpack.c.l.b16 %v655
      %v1369 = vunpack.c.h.b16 %v655
      %v1370 = vunpack.c.l.b16 %v656
      %v1371 = vunpack.c.h.b16 %v656
      %v1372 = vunpack.c.l.b16 %v657
      %v1373 = vunpack.c.h.b16 %v657
      %v1374 = vunpack.c.l.b16 %v658
      %v1375 = vunpack.c.h.b16 %v658
      %v1376 = vunpack.c.l.b16 %v659
      %v1377 = vunpack.c.h.b16 %v659
      %v1378 = vunpack.c.l.b16 %v660
      %v1379 = vunpack.c.h.b16 %v660
      %v1380 = vunpack.c.l.b16 %v661
      %v1381 = vunpack.c.h.b16 %v661
      %v1382 = vunpack.c.l.b16 %v662
      %v1383 = vunpack.c.h.b16 %v662
      %v1384 = vunpack.c.l.b16 %v663
      %v1385 = vunpack.c.h.b16 %v663
      %v1386 = vunpack.c.l.b16 %v664
      %v1387 = vunpack.c.h.b16 %v664
      %v1388 = vunpack.c.l.b16 %v665
      %v1389 = vunpack.c.h.b16 %v665
      %v1390 = vunpack.c.l.b16 %v666
      %v1391 = vunpack.c.h.b16 %v666
      %v1392 = vunpack.c.l.b16 %v667
      %v1393 = vunpack.c.h.b16 %v667
      %v1394 = vunpack.c.l.b16 %v668
      %v1395 = vunpack.c.h.b16 %v668
      %v1396 = vunpack.c.l.b16 %v669
      %v1397 = vunpack.c.h.b16 %v669
      %v1398 = vunpack.c.l.b16 %v670
      %v1399 = vunpack.c.h.b16 %v670
      %v1400 = vunpack.c.l.b16 %v671
      %v1401 = vunpack.c.h.b16 %v671
      %v1402 = vunpack.c.l.b16 %v672
      %v1403 = vunpack.c.h.b16 %v672
      %v1404 = vunpack.c.l.b16 %v673
      %v1405 = vunpack.c.h.b16 %v673
      %v1406 = vunpack.c.l.b16 %v674
      %v1407 = vunpack.c.h.b16 %v674
      %v1408 = vunpack.c.l.b16 %v675
      %v1409 = vunpack.c.h.b16 %v675
      %v1410 = vunpack.c.l.b16 %v676
      %v1411 = vunpack.c.h.b16 %v676
      %v1412 = vunpack.c.l.b16 %v677
      %v1413 = vunpack.c.h.b16 %v677
      %v1414 = vunpack.c.l.b16 %v678
      %v1415 = vunpack.c.h.b16 %v678
      %v1416 = vunpack.c.l.b16 %v679
      %v1417 = vunpack.c.h.b16 %v679
      %v1418 = vunpack.c.l.b16 %v680
      %v1419 = vunpack.c.h.b16 %v680
      %v1420 = vunpack.c.l.b16 %v681
      %v1421 = vunpack.c.h.b16 %v681
      %v1422 = vunpack.c.l.b16 %v682
      %v1423 = vunpack.c.h.b16 %v682
      %v1424 = vunpack.c.l.b16 %v683
      %v1425 = vunpack.c.h.b16 %v683
      %v1426 = vunpack.c.l.b16 %v684
      %v1427 = vunpack.c.h.b16 %v684
      %v1428 = vunpack.c.l.b16 %v685
      %v1429 = vunpack.c.h.b16 %v685
      %v1430 = vunpack.c.l.b16 %v686
      %v1431 = vunpack.c.h.b16 %v686
      %v1432 = vunpack.c.l.b16 %v687
      %v1433 = vunpack.c.h.b16 %v687
      %v1434 = vunpack.c.l.b16 %v688
      %v1435 = vunpack.c.h.b16 %v688
      %v1436 = vunpack.c.l.b16 %v689
      %v1437 = vunpack.c.h.b16 %v689
      %v1438 = vunpack.c.l.b16 %v690
      %v1439 = vunpack.c.h.b16 %v690
      %v1440 = vunpack.c.l.b16 %v691
      %v1441 = vunpack.c.h.b16 %v691
      %v1442 = vunpack.c.l.b16 %v692
      %v1443 = vunpack.c.h.b16 %v692
      %v1444 = vunpack.c.l.b16 %v693
      %v1445 = vunpack.c.h.b16 %v693
      %v1446 = vunpack.c.l.b16 %v694
      %v1447 = vunpack.c.h.b16 %v694
      %v1448 = vunpack.c.l.b16 %v695
      %v1449 = vunpack.c.h.b16 %v695
      %v1450 = vunpack.c.l.b16 %v696
      %v1451 = vunpack.c.h.b16 %v696
      %v1452 = vunpack.c.l.b16 %v697
      %v1453 = vunpack.c.h.b16 %v697
      %v1454 = vunpack.c.l.b16 %v698
      %v1455 = vunpack.c.h.b16 %v698
      %v1456 = vunpack.c.l.b16 %v699
      %v1457 = vunpack.c.h.b16 %v699
      %v1458 = vunpack.c.l.b16 %v700
      %v1459 = vunpack.c.h.b16 %v700
      %v1460 = vunpack.c.l.b16 %v701
      %v1461 = vunpack.c.h.b16 %v701
      %v1462 = vunpack.c.l.b16 %v702
      %v1463 = vunpack.c.h.b16 %v702
      %v1464 = vunpack.c.l.b16 %v703
      %v1465 = vunpack.c.h.b16 %v703
      %v1466 = vunpack.c.l.b16 %v704
      %v1467 = vunpack.c.h.b16 %v704
      %v1468 = vunpack.c.l.b16 %v705
      %v1469 = vunpack.c.h.b16 %v705
      %v1470 = vunpack.c.l.b16 %v706
      %v1471 = vunpack.c.h.b16 %v706
      %v1472 = vunpack.c.l.b16 %v707
      %v1473 = vunpack.c.h.b16 %v707
      %v1474 = vunpack.c.l.b16 %v708
      %v1475 = vunpack.c.h.b16 %v708
      %v1476 = vunpack.c.l.b16 %v709
      %v1477 = vunpack.c.h.b16 %v709
      %v1478 = vunpack.c.l.b16 %v710
      %v1479 = vunpack.c.h.b16 %v710
      %v1480 = vunpack.c.l.b16 %v711
      %v1481 = vunpack.c.h.b16 %v711
      %v1482 = vunpack.c.l.b16 %v712
      %v1483 = vunpack.c.h.b16 %v712
      %v1484 = vunpack.c.l.b16 %v713
      %v1485 = vunpack.c.h.b16 %v713
      %v1486 = vunpack.c.l.b16 %v714
      %v1487 = vunpack.c.h.b16 %v714
      %v1488 = vunpack.c.l.b16 %v715
      %v1489 = vunpack.c.h.b16 %v715
      %v1490 = vunpack.c.l.b16 %v716
      %v1491 = vunpack.c.h.b16 %v716
      %v1492 = vunpack.c.l.b16 %v717
      %v1493 = vunpack.c.h.b16 %v717
      %v1494 = vunpack.c.l.b16 %v718
      %v1495 = vunpack.c.h.b16 %v718
      %v1496 = vunpack.c.l.b16 %v719
      %v1497 = vunpack.c.h.b16 %v719
      %v1498 = vunpack.c.l.b16 %v720
      %v1499 = vunpack.c.h.b16 %v720
      %v1500 = vunpack.c.l.b16 %v721
      %v1501 = vunpack.c.h.b16 %v721
      %v1502 = vunpack.c.l.b16 %v722
      %v1503 = vunpack.c.h.b16 %v722
      %v1504 = vunpack.c.l.b16 %v723
      %v1505 = vunpack.c.h.b16 %v723
      %v1506 = vunpack.c.l.b16 %v724
      %v1507 = vunpack.c.h.b16 %v724
      %v1508 = vunpack.c.l.b16 %v725
      %v1509 = vunpack.c.h.b16 %v725
      %v1510 = vunpack.c.l.b16 %v726
      %v1511 = vunpack.c.h.b16 %v726
      %v1512 = vunpack.c.l.b16 %v727
      %v1513 = vunpack.c.h.b16 %v727
      %v1514 = vunpack.c.l.b16 %v728
      %v1515 = vunpack.c.h.b16 %v728
      %v1516 = vunpack.c.l.b16 %v729
      %v1517 = vunpack.c.h.b16 %v729
      %v1518 = vunpack.c.l.b16 %v730
      %v1519 = vunpack.c.h.b16 %v730
      %v1520 = vunpack.c.l.b16 %v731
      %v1521 = vunpack.c.h.b16 %v731
      %v1522 = vunpack.c.l.b16 %v732
      %v1523 = vunpack.c.h.b16 %v732
      %v1524 = vunpack.c.l.b16 %v733
      %v1525 = vunpack.c.h.b16 %v733
      %v1526 = vunpack.c.l.b16 %v734
      %v1527 = vunpack.c.h.b16 %v734
      %v1528 = vunpack.c.l.b16 %v735
      %v1529 = vunpack.c.h.b16 %v735
      %v1530 = vunpack.c.l.b16 %v736
      %v1531 = vunpack.c.h.b16 %v736
      %v1532 = vunpack.c.l.b16 %v737
      %v1533 = vunpack.c.h.b16 %v737
      %v1534 = vpack.c.b16 %v1026, %v1022
      %v1535 = vpack.c.b16 %v1027, %v1023
      %v1536 = vpack.c.b16 %v1028, %v1024
      %v1537 = vpack.c.b16 %v1029, %v1025
      %v1538 = vpack.c.b16 %v1034, %v1030
      %v1539 = vpack.c.b16 %v1035, %v1031
      %v1540 = vpack.c.b16 %v1036, %v1032
      %v1541 = vpack.c.b16 %v1037, %v1033
      %v1542 = vpack.c.b16 %v1042, %v1038
      %v1543 = vpack.c.b16 %v1043, %v1039
      %v1544 = vpack.c.b16 %v1044, %v1040
      %v1545 = vpack.c.b16 %v1045, %v1041
      %v1546 = vpack.c.b16 %v1050, %v1046
      %v1547 = vpack.c.b16 %v1051, %v1047
      %v1548 = vpack.c.b16 %v1052, %v1048
      %v1549 = vpack.c.b16 %v1053, %v1049
      %v1550 = vpack.c.b16 %v1058, %v1054
      %v1551 = vpack.c.b16 %v1059, %v1055
      %v1552 = vpack.c.b16 %v1060, %v1056
      %v1553 = vpack.c.b16 %v1061, %v1057
      %v1554 = vpack.c.b16 %v1066, %v1062
      %v1555 = vpack.c.b16 %v1067, %v1063
      %v1556 = vpack.c.b16 %v1068, %v1064
      %v1557 = vpack.c.b16 %v1069, %v1065
      %v1558 = vpack.c.b16 %v1074, %v1070
      %v1559 = vpack.c.b16 %v1075, %v1071
      %v1560 = vpack.c.b16 %v1076, %v1072
      %v1561 = vpack.c.b16 %v1077, %v1073
      %v1562 = vpack.c.b16 %v1082, %v1078
      %v1563 = vpack.c.b16 %v1083, %v1079
      %v1564 = vpack.c.b16 %v1084, %v1080
      %v1565 = vpack.c.b16 %v1085, %v1081
      %v1566 = vpack.c.b16 %v1090, %v1086
      %v1567 = vpack.c.b16 %v1091, %v1087
      %v1568 = vpack.c.b16 %v1092, %v1088
      %v1569 = vpack.c.b16 %v1093, %v1089
      %v1570 = vpack.c.b16 %v1098, %v1094
      %v1571 = vpack.c.b16 %v1099, %v1095
      %v1572 = vpack.c.b16 %v1100, %v1096
      %v1573 = vpack.c.b16 %v1101, %v1097
      %v1574 = vpack.c.b16 %v1106, %v1102
      %v1575 = vpack.c.b16 %v1107, %v1103
      %v1576 = vpack.c.b16 %v1108, %v1104
      %v1577 = vpack.c.b16 %v1109, %v1105
      %v1578 = vpack.c.b16 %v1114, %v1110
      %v1579 = vpack.c.b16 %v1115, %v1111
      %v1580 = vpack.c.b16 %v1116, %v1112
      %v1581 = vpack.c.b16 %v1117, %v1113
      %v1582 = vpack.c.b16 %v1122, %v1118
      %v1583 = vpack.c.b16 %v1123, %v1119
      %v1584 = vpack.c.b16 %v1124, %v1120
      %v1585 = vpack.c.b16 %v1125, %v1121
      %v1586 = vpack.c.b16 %v1130, %v1126
      %v1587 = vpack.c.b16 %v1131, %v1127
      %v1588 = vpack.c.b16 %v1132, %v1128
      %v1589 = vpack.c.b16 %v1133, %v1129
      %v1590 = vpack.c.b16 %v1138, %v1134
      %v1591 = vpack.c.b16 %v1139, %v1135
      %v1592 = vpack.c.b16 %v1140, %v1136
      %v1593 = vpack.c.b16 %v1141, %v1137
      %v1594 = vpack.c.b16 %v1146, %v1142
      %v1595 = vpack.c.b16 %v1147, %v1143
      %v1596 = vpack.c.b16 %v1148, %v1144
      %v1597 = vpack.c.b16 %v1149, %v1145
      %v1598 = vpack.c.b16 %v1154, %v1150
      %v1599 = vpack.c.b16 %v1155, %v1151
      %v1600 = vpack.c.b16 %v1156, %v1152
      %v1601 = vpack.c.b16 %v1157, %v1153
      %v1602 = vpack.c.b16 %v1162, %v1158
      %v1603 = vpack.c.b16 %v1163, %v1159
      %v1604 = vpack.c.b16 %v1164, %v1160
      %v1605 = vpack.c.b16 %v1165, %v1161
      %v1606 = vpack.c.b16 %v1170, %v1166
      %v1607 = vpack.c.b16 %v1171, %v1167
      %v1608 = vpack.c.b16 %v1172, %v1168
      %v1609 = vpack.c.b16 %v1173, %v1169
      %v1610 = vpack.c.b16 %v1178, %v1174
      %v1611 = vpack.c.b16 %v1179, %v1175
      %v1612 = vpack.c.b16 %v1180, %v1176
      %v1613 = vpack.c.b16 %v1181, %v1177
      %v1614 = vpack.c.b16 %v1186, %v1182
      %v1615 = vpack.c.b16 %v1187, %v1183
      %v1616 = vpack.c.b16 %v1188, %v1184
      %v1617 = vpack.c.b16 %v1189, %v1185
      %v1618 = vpack.c.b16 %v1194, %v1190
      %v1619 = vpack.c.b16 %v1195, %v1191
      %v1620 = vpack.c.b16 %v1196, %v1192
      %v1621 = vpack.c.b16 %v1197, %v1193
      %v1622 = vpack.c.b16 %v1202, %v1198
      %v1623 = vpack.c.b16 %v1203, %v1199
      %v1624 = vpack.c.b16 %v1204, %v1200
      %v1625 = vpack.c.b16 %v1205, %v1201
      %v1626 = vpack.c.b16 %v1210, %v1206
      %v1627 = vpack.c.b16 %v1211, %v1207
      %v1628 = vpack.c.b16 %v1212, %v1208
      %v1629 = vpack.c.b16 %v1213, %v1209
      %v1630 = vpack.c.b16 %v1218, %v1214
      %v1631 = vpack.c.b16 %v1219, %v1215
      %v1632 = vpack.c.b16 %v1220, %v1216
      %v1633 = vpack.c.b16 %v1221, %v1217
      %v1634 = vpack.c.b16 %v1226, %v1222
      %v1635 = vpack.c.b16 %v1227, %v1223
      %v1636 = vpack.c.b16 %v1228, %v1224
      %v1637 = vpack.c.b16 %v1229, %v1225
      %v1638 = vpack.c.b16 %v1234, %v1230
      %v1639 = vpack.c.b16 %v1235, %v1231
      %v1640 = vpack.c.b16 %v1236, %v1232
      %v1641 = vpack.c.b16 %v1237, %v1233
      %v1642 = vpack.c.b16 %v1242, %v1238
      %v1643 = vpack.c.b16 %v1243, %v1239
      %v1644 = vpack.c.b16 %v1244, %v1240
      %v1645 = vpack.c.b16 %v1245, %v1241
      %v1646 = vpack.c.b16 %v1250, %v1246
      %v1647 = vpack.c.b16 %v1251, %v1247
      %v1648 = vpack.c.b16 %v1252, %v1248
      %v1649 = vpack.c.b16 %v1253, %v1249
      %v1650 = vpack.c.b16 %v1258, %v1254
      %v1651 = vpack.c.b16 %v1259, %v1255
      %v1652 = vpack.c.b16 %v1260, %v1256
      %v1653 = vpack.c.b16 %v1261, %v1257
      %v1654 = vpack.c.b16 %v1266, %v1262
      %v1655 = vpack.c.b16 %v1267, %v1263
      %v1656 = vpack.c.b16 %v1268, %v1264
      %v1657 = vpack.c.b16 %v1269, %v1265
      %v1658 = vpack.c.b16 %v1274, %v1270
      %v1659 = vpack.c.b16 %v1275, %v1271
      %v1660 = vpack.c.b16 %v1276, %v1272
      %v1661 = vpack.c.b16 %v1277, %v1273
      %v1662 = vpack.c.b16 %v1282, %v1278
      %v1663 = vpack.c.b16 %v1283, %v1279
      %v1664 = vpack.c.b16 %v1284, %v1280
      %v1665 = vpack.c.b16 %v1285, %v1281
      %v1666 = vpack.c.b16 %v1290, %v1286
      %v1667 = vpack.c.b16 %v1291, %v1287
      %v1668 = vpack.c.b16 %v1292, %v1288
      %v1669 = vpack.c.b16 %v1293, %v1289
      %v1670 = vpack.c.b16 %v1298, %v1294
      %v1671 = vpack.c.b16 %v1299, %v1295
      %v1672 = vpack.c.b16 %v1300, %v1296
      %v1673 = vpack.c.b16 %v1301, %v1297
      %v1674 = vpack.c.b16 %v1306, %v1302
      %v1675 = vpack.c.b16 %v1307, %v1303
      %v1676 = vpack.c.b16 %v1308, %v1304
      %v1677 = vpack.c.b16 %v1309, %v1305
      %v1678 = vpack.c.b16 %v1314, %v1310
      %v1679 = vpack.c.b16 %v1315, %v1311
      %v1680 = vpack.c.b16 %v1316, %v1312
      %v1681 = vpack.c.b16 %v1317, %v1313
      %v1682 = vpack.c.b16 %v1322, %v1318
      %v1683 = vpack.c.b16 %v1323, %v1319
      %v1684 = vpack.c.b16 %v1324, %v1320
      %v1685 = vpack.c.b16 %v1325, %v1321
      %v1686 = vpack.c.b16 %v1330, %v1326
      %v1687 = vpack.c.b16 %v1331, %v1327
      %v1688 = vpack.c.b16 %v1332, %v1328
      %v1689 = vpack.c.b16 %v1333, %v1329
      %v1690 = vpack.c.b16 %v1338, %v1334
      %v1691 = vpack.c.b16 %v1339, %v1335
      %v1692 = vpack.c.b16 %v1340, %v1336
      %v1693 = vpack.c.b16 %v1341, %v1337
      %v1694 = vpack.c.b16 %v1346, %v1342
      %v1695 = vpack.c.b16 %v1347, %v1343
      %v1696 = vpack.c.b16 %v1348, %v1344
      %v1697 = vpack.c.b16 %v1349, %v1345
      %v1698 = vpack.c.b16 %v1354, %v1350
      %v1699 = vpack.c.b16 %v1355, %v1351
      %v1700 = vpack.c.b16 %v1356, %v1352
      %v1701 = vpack.c.b16 %v1357, %v1353
      %v1702 = vpack.c.b16 %v1362, %v1358
      %v1703 = vpack.c.b16 %v1363, %v1359
      %v1704 = vpack.c.b16 %v1364, %v1360
      %v1705 = vpack.c.b16 %v1365, %v1361
      %v1706 = vpack.c.b16 %v1370, %v1366
      %v1707 = vpack.c.b16 %v1371, %v1367
      %v1708 = vpack.c.b16 %v1372, %v1368
      %v1709 = vpack.c.b16 %v1373, %v1369
      %v1710 = vpack.c.b16 %v1378, %v1374
      %v1711 = vpack.c.b16 %v1379, %v1375
      %v1712 = vpack.c.b16 %v1380, %v1376
      %v1713 = vpack.c.b16 %v1381, %v1377
      %v1714 = vpack.c.b16 %v1386, %v1382
      %v1715 = vpack.c.b16 %v1387, %v1383
      %v1716 = vpack.c.b16 %v1388, %v1384
      %v1717 = vpack.c.b16 %v1389, %v1385
      %v1718 = vpack.c.b16 %v1394, %v1390
      %v1719 = vpack.c.b16 %v1395, %v1391
      %v1720 = vpack.c.b16 %v1396, %v1392
      %v1721 = vpack.c.b16 %v1397, %v1393
      %v1722 = vpack.c.b16 %v1402, %v1398
      %v1723 = vpack.c.b16 %v1403, %v1399
      %v1724 = vpack.c.b16 %v1404, %v1400
      %v1725 = vpack.c.b16 %v1405, %v1401
      %v1726 = vpack.c.b16 %v1410, %v1406
      %v1727 = vpack.c.b16 %v1411, %v1407
      %v1728 = vpack.c.b16 %v1412, %v1408
      %v1729 = vpack.c.b16 %v1413, %v1409
      %v1730 = vpack.c.b16 %v1418, %v1414
      %v1731 = vpack.c.b16 %v1419, %v1415
      %v1732 = vpack.c.b16 %v1420, %v1416
      %v1733 = vpack.c.b16 %v1421, %v1417
      %v1734 = vpack.c.b16 %v1426, %v1422
      %v1735 = vpack.c.b16 %v1427, %v1423
      %v1736 = vpack.c.b16 %v1428, %v1424
      %v1737 = vpack.c.b16 %v1429, %v1425
      %v1738 = vpack.c.b16 %v1434, %v1430
      %v1739 = vpack.c.b16 %v1435, %v1431
      %v1740 = vpack.c.b16 %v1436, %v1432
      %v1741 = vpack.c.b16 %v1437, %v1433
      %v1742 = vpack.c.b16 %v1442, %v1438
      %v1743 = vpack.c.b16 %v1443, %v1439
      %v1744 = vpack.c.b16 %v1444, %v1440
      %v1745 = vpack.c.b16 %v1445, %v1441
      %v1746 = vpack.c.b16 %v1450, %v1446
      %v1747 = vpack.c.b16 %v1451, %v1447
      %v1748 = vpack.c.b16 %v1452, %v1448
      %v1749 = vpack.c.b16 %v1453, %v1449
      %v1750 = vpack.c.b16 %v1458, %v1454
      %v1751 = vpack.c.b16 %v1459, %v1455
      %v1752 = vpack.c.b16 %v1460, %v1456
      %v1753 = vpack.c.b16 %v1461, %v1457
      %v1754 = vpack.c.b16 %v1466, %v1462
      %v1755 = vpack.c.b16 %v1467, %v1463
      %v1756 = vpack.c.b16 %v1468, %v1464
      %v1757 = vpack.c.b16 %v1469, %v1465
      %v1758 = vpack.c.b16 %v1474, %v1470
      %v1759 = vpack.c.b16 %v1475, %v1471
      %v1760 = vpack.c.b16 %v1476, %v1472
      %v1761 = vpack.c.b16 %v1477, %v1473
      %v1762 = vpack.c.b16 %v1482, %v1478
      %v1763 = vpack.c.b16 %v1483, %v1479
      %v1764 = vpack.c.b16 %v1484, %v1480
      %v1765 = vpack.c.b16 %v1485, %v1481
      %v1766 = vpack.c.b16 %v1490, %v1486
      %v1767 = vpack.c.b16 %v1491, %v1487
      %v1768 = vpack.c.b16 %v1492, %v1488
      %v1769 = vpack.c.b16 %v1493, %v1489
      %v1770 = vpack.c.b16 %v1498, %v1494
      %v1771 = vpack.c.b16 %v1499, %v1495
      %v1772 = vpack.c.b16 %v1500, %v1496
      %v1773 = vpack.c.b16 %v1501, %v1497
      %v1774 = vpack.c.b16 %v1506, %v1502
      %v1775 = vpack.c.b16 %v1507, %v1503
      %v1776 = vpack.c.b16 %v1508, %v1504
      %v1777 = vpack.c.b16 %v1509, %v1505
      %v1778 = vpack.c.b16 %v1514, %v1510
      %v1779 = vpack.c.b16 %v1515, %v1511
      %v1780 = vpack.c.b16 %v1516, %v1512
      %v1781 = vpack.c.b16 %v1517, %v1513
      %v1782 = vpack.c.b16 %v1522, %v1518
      %v1783 = vpack.c.b16 %v1523, %v1519
      %v1784 = vpack.c.b16 %v1524, %v1520
      %v1785 = vpack.c.b16 %v1525, %v1521
      %v1786 = vpack.c.b16 %v1530, %v1526
      %v1787 = vpack.c.b16 %v1531, %v1527
      %v1788 = vpack.c.b16 %v1532, %v1528
      %v1789 = vpack.c.b16 %v1533, %v1529
      %2046 = vmatpush.bf16.msra.mxu0 %v1562
      %2047 = vmatpush.bf16.msra.mxu0 %v1558
      %2048 = vmatpush.bf16.msra.mxu0 %v1554
      %2049 = vmatpush.bf16.msra.mxu0 %v1550
      %2050 = vmatpush.bf16.msra.mxu0 %v1546
      %2051 = vmatpush.bf16.msra.mxu0 %v1542
      %2052 = vmatpush.bf16.msra.mxu0 %v1538
      %2053 = vmatpush.bf16.msra.mxu0 %v1534
      %2054 = vmatmul.bf16.gmra.mxu0 %v750
      %v2055 = vpop.f32.mrf.mxu0
      %v2056 = vadd.f32 0.0, %v2055
      %v2057 = vpop.f32.mrf.mxu0
      %2058 = vdwg.mxu0
      %2059 = vmatpush.bf16.msra.mxu0 %v1594
      %2060 = vmatpush.bf16.msra.mxu0 %v1590
      %2061 = vmatpush.bf16.msra.mxu0 %v1586
      %2062 = vmatpush.bf16.msra.mxu0 %v1582
      %2063 = vmatpush.bf16.msra.mxu0 %v1578
      %2064 = vmatpush.bf16.msra.mxu0 %v1574
      %2065 = vmatpush.bf16.msra.mxu0 %v1570
      %2066 = vmatpush.bf16.msra.mxu0 %v1566
      %2067 = vmatmul.bf16.gmra.mxu0 %v751
      %v2068 = vpop.f32.mrf.mxu0
      %v2069 = vadd.f32 %v2056, %v2068
      %v2070 = vpop.f32.mrf.mxu0
      %2071 = vdwg.mxu0
      %2072 = vmatpush.bf16.msra.mxu0 %v1626
      %2073 = vmatpush.bf16.msra.mxu0 %v1622
      %2074 = vmatpush.bf16.msra.mxu0 %v1618
      %2075 = vmatpush.bf16.msra.mxu0 %v1614
      %2076 = vmatpush.bf16.msra.mxu0 %v1610
      %2077 = vmatpush.bf16.msra.mxu0 %v1606
      %2078 = vmatpush.bf16.msra.mxu0 %v1602
      %2079 = vmatpush.bf16.msra.mxu0 %v1598
      %2080 = vmatmul.bf16.gmra.mxu0 %v752
      %v2081 = vpop.f32.mrf.mxu0
      %v2082 = vadd.f32 %v2069, %v2081
      %v2083 = vpop.f32.mrf.mxu0
      %2084 = vdwg.mxu0
      %2085 = vmatpush.bf16.msra.mxu0 %v1658
      %2086 = vmatpush.bf16.msra.mxu0 %v1654
      %2087 = vmatpush.bf16.msra.mxu0 %v1650
      %2088 = vmatpush.bf16.msra.mxu0 %v1646
      %2089 = vmatpush.bf16.msra.mxu0 %v1642
      %2090 = vmatpush.bf16.msra.mxu0 %v1638
      %2091 = vmatpush.bf16.msra.mxu0 %v1634
      %2092 = vmatpush.bf16.msra.mxu0 %v1630
      %2093 = vmatmul.bf16.gmra.mxu0 %v753
      %v2094 = vpop.f32.mrf.mxu0
      %v2095 = vadd.f32 %v2082, %v2094
      %v2096 = vpop.f32.mrf.mxu0
      %2097 = vdwg.mxu0
      %2098 = vmatpush.bf16.msra.mxu0 %v1690
      %2099 = vmatpush.bf16.msra.mxu0 %v1686
      %2100 = vmatpush.bf16.msra.mxu0 %v1682
      %2101 = vmatpush.bf16.msra.mxu0 %v1678
      %2102 = vmatpush.bf16.msra.mxu0 %v1674
      %2103 = vmatpush.bf16.msra.mxu0 %v1670
      %2104 = vmatpush.bf16.msra.mxu0 %v1666
      %2105 = vmatpush.bf16.msra.mxu0 %v1662
      %2106 = vmatmul.bf16.gmra.mxu0 %v754
      %v2107 = vpop.f32.mrf.mxu0
      %v2108 = vadd.f32 %v2095, %v2107
      %v2109 = vpop.f32.mrf.mxu0
      %2110 = vdwg.mxu0
      %2111 = vmatpush.bf16.msra.mxu0 %v1722
      %2112 = vmatpush.bf16.msra.mxu0 %v1718
      %2113 = vmatpush.bf16.msra.mxu0 %v1714
      %2114 = vmatpush.bf16.msra.mxu0 %v1710
      %2115 = vmatpush.bf16.msra.mxu0 %v1706
      %2116 = vmatpush.bf16.msra.mxu0 %v1702
      %2117 = vmatpush.bf16.msra.mxu0 %v1698
      %2118 = vmatpush.bf16.msra.mxu0 %v1694
      %2119 = vmatmul.bf16.gmra.mxu0 %v755
      %v2120 = vpop.f32.mrf.mxu0
      %v2121 = vadd.f32 %v2108, %v2120
      %v2122 = vpop.f32.mrf.mxu0
      %2123 = vdwg.mxu0
      %2124 = vmatpush.bf16.msra.mxu0 %v1754
      %2125 = vmatpush.bf16.msra.mxu0 %v1750
      %2126 = vmatpush.bf16.msra.mxu0 %v1746
      %2127 = vmatpush.bf16.msra.mxu0 %v1742
      %2128 = vmatpush.bf16.msra.mxu0 %v1738
      %2129 = vmatpush.bf16.msra.mxu0 %v1734
      %2130 = vmatpush.bf16.msra.mxu0 %v1730
      %2131 = vmatpush.bf16.msra.mxu0 %v1726
      %2132 = vmatmul.bf16.gmra.mxu0 %v756
      %v2133 = vpop.f32.mrf.mxu0
      %v2134 = vadd.f32 %v2121, %v2133
      %v2135 = vpop.f32.mrf.mxu0
      %2136 = vdwg.mxu0
      %2137 = vmatpush.bf16.msra.mxu0 %v1786
      %2138 = vmatpush.bf16.msra.mxu0 %v1782
      %2139 = vmatpush.bf16.msra.mxu0 %v1778
      %2140 = vmatpush.bf16.msra.mxu0 %v1774
      %2141 = vmatpush.bf16.msra.mxu0 %v1770
      %2142 = vmatpush.bf16.msra.mxu0 %v1766
      %2143 = vmatpush.bf16.msra.mxu0 %v1762
      %2144 = vmatpush.bf16.msra.mxu0 %v1758
      %2145 = vmatmul.bf16.gmra.mxu0 %v757
      %v2146 = vpop.f32.mrf.mxu0
      %v2147 = vadd.f32 %v2134, %v2146
      %v2148 = vpop.f32.mrf.mxu0
      %2149 = vdwg.mxu0
      %2150 = vmatpush.bf16.msra.mxu0 %v1563
      %2151 = vmatpush.bf16.msra.mxu0 %v1559
      %2152 = vmatpush.bf16.msra.mxu0 %v1555
      %2153 = vmatpush.bf16.msra.mxu0 %v1551
      %2154 = vmatpush.bf16.msra.mxu0 %v1547
      %2155 = vmatpush.bf16.msra.mxu0 %v1543
      %2156 = vmatpush.bf16.msra.mxu0 %v1539
      %2157 = vmatpush.bf16.msra.mxu0 %v1535
      %2158 = vmatmul.bf16.gmra.mxu0 %v750
      %v2159 = vpop.f32.mrf.mxu0
      %v2160 = vadd.f32 0.0, %v2159
      %v2161 = vpop.f32.mrf.mxu0
      %2162 = vdwg.mxu0
      %2163 = vmatpush.bf16.msra.mxu0 %v1595
      %2164 = vmatpush.bf16.msra.mxu0 %v1591
      %2165 = vmatpush.bf16.msra.mxu0 %v1587
      %2166 = vmatpush.bf16.msra.mxu0 %v1583
      %2167 = vmatpush.bf16.msra.mxu0 %v1579
      %2168 = vmatpush.bf16.msra.mxu0 %v1575
      %2169 = vmatpush.bf16.msra.mxu0 %v1571
      %2170 = vmatpush.bf16.msra.mxu0 %v1567
      %2171 = vmatmul.bf16.gmra.mxu0 %v751
      %v2172 = vpop.f32.mrf.mxu0
      %v2173 = vadd.f32 %v2160, %v2172
      %v2174 = vpop.f32.mrf.mxu0
      %2175 = vdwg.mxu0
      %2176 = vmatpush.bf16.msra.mxu0 %v1627
      %2177 = vmatpush.bf16.msra.mxu0 %v1623
      %2178 = vmatpush.bf16.msra.mxu0 %v1619
      %2179 = vmatpush.bf16.msra.mxu0 %v1615
      %2180 = vmatpush.bf16.msra.mxu0 %v1611
      %2181 = vmatpush.bf16.msra.mxu0 %v1607
      %2182 = vmatpush.bf16.msra.mxu0 %v1603
      %2183 = vmatpush.bf16.msra.mxu0 %v1599
      %2184 = vmatmul.bf16.gmra.mxu0 %v752
      %v2185 = vpop.f32.mrf.mxu0
      %v2186 = vadd.f32 %v2173, %v2185
      %v2187 = vpop.f32.mrf.mxu0
      %2188 = vdwg.mxu0
      %2189 = vmatpush.bf16.msra.mxu0 %v1659
      %2190 = vmatpush.bf16.msra.mxu0 %v1655
      %2191 = vmatpush.bf16.msra.mxu0 %v1651
      %2192 = vmatpush.bf16.msra.mxu0 %v1647
      %2193 = vmatpush.bf16.msra.mxu0 %v1643
      %2194 = vmatpush.bf16.msra.mxu0 %v1639
      %2195 = vmatpush.bf16.msra.mxu0 %v1635
      %2196 = vmatpush.bf16.msra.mxu0 %v1631
      %2197 = vmatmul.bf16.gmra.mxu0 %v753
      %v2198 = vpop.f32.mrf.mxu0
      %v2199 = vadd.f32 %v2186, %v2198
      %v2200 = vpop.f32.mrf.mxu0
      %2201 = vdwg.mxu0
      %2202 = vmatpush.bf16.msra.mxu0 %v1691
      %2203 = vmatpush.bf16.msra.mxu0 %v1687
      %2204 = vmatpush.bf16.msra.mxu0 %v1683
      %2205 = vmatpush.bf16.msra.mxu0 %v1679
      %2206 = vmatpush.bf16.msra.mxu0 %v1675
      %2207 = vmatpush.bf16.msra.mxu0 %v1671
      %2208 = vmatpush.bf16.msra.mxu0 %v1667
      %2209 = vmatpush.bf16.msra.mxu0 %v1663
      %2210 = vmatmul.bf16.gmra.mxu0 %v754
      %v2211 = vpop.f32.mrf.mxu0
      %v2212 = vadd.f32 %v2199, %v2211
      %v2213 = vpop.f32.mrf.mxu0
      %2214 = vdwg.mxu0
      %2215 = vmatpush.bf16.msra.mxu0 %v1723
      %2216 = vmatpush.bf16.msra.mxu0 %v1719
      %2217 = vmatpush.bf16.msra.mxu0 %v1715
      %2218 = vmatpush.bf16.msra.mxu0 %v1711
      %2219 = vmatpush.bf16.msra.mxu0 %v1707
      %2220 = vmatpush.bf16.msra.mxu0 %v1703
      %2221 = vmatpush.bf16.msra.mxu0 %v1699
      %2222 = vmatpush.bf16.msra.mxu0 %v1695
      %2223 = vmatmul.bf16.gmra.mxu0 %v755
      %v2224 = vpop.f32.mrf.mxu0
      %v2225 = vadd.f32 %v2212, %v2224
      %v2226 = vpop.f32.mrf.mxu0
      %2227 = vdwg.mxu0
      %2228 = vmatpush.bf16.msra.mxu0 %v1755
      %2229 = vmatpush.bf16.msra.mxu0 %v1751
      %2230 = vmatpush.bf16.msra.mxu0 %v1747
      %2231 = vmatpush.bf16.msra.mxu0 %v1743
      %2232 = vmatpush.bf16.msra.mxu0 %v1739
      %2233 = vmatpush.bf16.msra.mxu0 %v1735
      %2234 = vmatpush.bf16.msra.mxu0 %v1731
      %2235 = vmatpush.bf16.msra.mxu0 %v1727
      %2236 = vmatmul.bf16.gmra.mxu0 %v756
      %v2237 = vpop.f32.mrf.mxu0
      %v2238 = vadd.f32 %v2225, %v2237
      %v2239 = vpop.f32.mrf.mxu0
      %2240 = vdwg.mxu0
      %2241 = vmatpush.bf16.msra.mxu0 %v1787
      %2242 = vmatpush.bf16.msra.mxu0 %v1783
      %2243 = vmatpush.bf16.msra.mxu0 %v1779
      %2244 = vmatpush.bf16.msra.mxu0 %v1775
      %2245 = vmatpush.bf16.msra.mxu0 %v1771
      %2246 = vmatpush.bf16.msra.mxu0 %v1767
      %2247 = vmatpush.bf16.msra.mxu0 %v1763
      %2248 = vmatpush.bf16.msra.mxu0 %v1759
      %2249 = vmatmul.bf16.gmra.mxu0 %v757
      %v2250 = vpop.f32.mrf.mxu0
      %v2251 = vadd.f32 %v2238, %v2250
      %v2252 = vpop.f32.mrf.mxu0
      %2253 = vdwg.mxu0
      %2254 = vmatpush.bf16.msra.mxu0 %v1564
      %2255 = vmatpush.bf16.msra.mxu0 %v1560
      %2256 = vmatpush.bf16.msra.mxu0 %v1556
      %2257 = vmatpush.bf16.msra.mxu0 %v1552
      %2258 = vmatpush.bf16.msra.mxu0 %v1548
      %2259 = vmatpush.bf16.msra.mxu0 %v1544
      %2260 = vmatpush.bf16.msra.mxu0 %v1540
      %2261 = vmatpush.bf16.msra.mxu0 %v1536
      %2262 = vmatmul.bf16.gmra.mxu0 %v750
      %v2263 = vpop.f32.mrf.mxu0
      %v2264 = vadd.f32 0.0, %v2263
      %v2265 = vpop.f32.mrf.mxu0
      %2266 = vdwg.mxu0
      %2267 = vmatpush.bf16.msra.mxu0 %v1596
      %2268 = vmatpush.bf16.msra.mxu0 %v1592
      %2269 = vmatpush.bf16.msra.mxu0 %v1588
      %2270 = vmatpush.bf16.msra.mxu0 %v1584
      %2271 = vmatpush.bf16.msra.mxu0 %v1580
      %2272 = vmatpush.bf16.msra.mxu0 %v1576
      %2273 = vmatpush.bf16.msra.mxu0 %v1572
      %2274 = vmatpush.bf16.msra.mxu0 %v1568
      %2275 = vmatmul.bf16.gmra.mxu0 %v751
      %v2276 = vpop.f32.mrf.mxu0
      %v2277 = vadd.f32 %v2264, %v2276
      %v2278 = vpop.f32.mrf.mxu0
      %2279 = vdwg.mxu0
      %2280 = vmatpush.bf16.msra.mxu0 %v1628
      %2281 = vmatpush.bf16.msra.mxu0 %v1624
      %2282 = vmatpush.bf16.msra.mxu0 %v1620
      %2283 = vmatpush.bf16.msra.mxu0 %v1616
      %2284 = vmatpush.bf16.msra.mxu0 %v1612
      %2285 = vmatpush.bf16.msra.mxu0 %v1608
      %2286 = vmatpush.bf16.msra.mxu0 %v1604
      %2287 = vmatpush.bf16.msra.mxu0 %v1600
      %2288 = vmatmul.bf16.gmra.mxu0 %v752
      %v2289 = vpop.f32.mrf.mxu0
      %v2290 = vadd.f32 %v2277, %v2289
      %v2291 = vpop.f32.mrf.mxu0
      %2292 = vdwg.mxu0
      %2293 = vmatpush.bf16.msra.mxu0 %v1660
      %2294 = vmatpush.bf16.msra.mxu0 %v1656
      %2295 = vmatpush.bf16.msra.mxu0 %v1652
      %2296 = vmatpush.bf16.msra.mxu0 %v1648
      %2297 = vmatpush.bf16.msra.mxu0 %v1644
      %2298 = vmatpush.bf16.msra.mxu0 %v1640
      %2299 = vmatpush.bf16.msra.mxu0 %v1636
      %2300 = vmatpush.bf16.msra.mxu0 %v1632
      %2301 = vmatmul.bf16.gmra.mxu0 %v753
      %v2302 = vpop.f32.mrf.mxu0
      %v2303 = vadd.f32 %v2290, %v2302
      %v2304 = vpop.f32.mrf.mxu0
      %2305 = vdwg.mxu0
      %2306 = vmatpush.bf16.msra.mxu0 %v1692
      %2307 = vmatpush.bf16.msra.mxu0 %v1688
      %2308 = vmatpush.bf16.msra.mxu0 %v1684
      %2309 = vmatpush.bf16.msra.mxu0 %v1680
      %2310 = vmatpush.bf16.msra.mxu0 %v1676
      %2311 = vmatpush.bf16.msra.mxu0 %v1672
      %2312 = vmatpush.bf16.msra.mxu0 %v1668
      %2313 = vmatpush.bf16.msra.mxu0 %v1664
      %2314 = vmatmul.bf16.gmra.mxu0 %v754
      %v2315 = vpop.f32.mrf.mxu0
      %v2316 = vadd.f32 %v2303, %v2315
      %v2317 = vpop.f32.mrf.mxu0
      %2318 = vdwg.mxu0
      %2319 = vmatpush.bf16.msra.mxu0 %v1724
      %2320 = vmatpush.bf16.msra.mxu0 %v1720
      %2321 = vmatpush.bf16.msra.mxu0 %v1716
      %2322 = vmatpush.bf16.msra.mxu0 %v1712
      %2323 = vmatpush.bf16.msra.mxu0 %v1708
      %2324 = vmatpush.bf16.msra.mxu0 %v1704
      %2325 = vmatpush.bf16.msra.mxu0 %v1700
      %2326 = vmatpush.bf16.msra.mxu0 %v1696
      %2327 = vmatmul.bf16.gmra.mxu0 %v755
      %v2328 = vpop.f32.mrf.mxu0
      %v2329 = vadd.f32 %v2316, %v2328
      %v2330 = vpop.f32.mrf.mxu0
      %2331 = vdwg.mxu0
      %2332 = vmatpush.bf16.msra.mxu0 %v1756
      %2333 = vmatpush.bf16.msra.mxu0 %v1752
      %2334 = vmatpush.bf16.msra.mxu0 %v1748
      %2335 = vmatpush.bf16.msra.mxu0 %v1744
      %2336 = vmatpush.bf16.msra.mxu0 %v1740
      %2337 = vmatpush.bf16.msra.mxu0 %v1736
      %2338 = vmatpush.bf16.msra.mxu0 %v1732
      %2339 = vmatpush.bf16.msra.mxu0 %v1728
      %2340 = vmatmul.bf16.gmra.mxu0 %v756
      %v2341 = vpop.f32.mrf.mxu0
      %v2342 = vadd.f32 %v2329, %v2341
      %v2343 = vpop.f32.mrf.mxu0
      %2344 = vdwg.mxu0
      %2345 = vmatpush.bf16.msra.mxu0 %v1788
      %2346 = vmatpush.bf16.msra.mxu0 %v1784
      %2347 = vmatpush.bf16.msra.mxu0 %v1780
      %2348 = vmatpush.bf16.msra.mxu0 %v1776
      %2349 = vmatpush.bf16.msra.mxu0 %v1772
      %2350 = vmatpush.bf16.msra.mxu0 %v1768
      %2351 = vmatpush.bf16.msra.mxu0 %v1764
      %2352 = vmatpush.bf16.msra.mxu0 %v1760
      %2353 = vmatmul.bf16.gmra.mxu0 %v757
      %v2354 = vpop.f32.mrf.mxu0
      %v2355 = vadd.f32 %v2342, %v2354
      %v2356 = vpop.f32.mrf.mxu0
      %2357 = vdwg.mxu0
      %2358 = vmatpush.bf16.msra.mxu0 %v1565
      %2359 = vmatpush.bf16.msra.mxu0 %v1561
      %2360 = vmatpush.bf16.msra.mxu0 %v1557
      %2361 = vmatpush.bf16.msra.mxu0 %v1553
      %2362 = vmatpush.bf16.msra.mxu0 %v1549
      %2363 = vmatpush.bf16.msra.mxu0 %v1545
      %2364 = vmatpush.bf16.msra.mxu0 %v1541
      %2365 = vmatpush.bf16.msra.mxu0 %v1537
      %2366 = vmatmul.bf16.gmra.mxu0 %v750
      %v2367 = vpop.f32.mrf.mxu0
      %v2368 = vadd.f32 0.0, %v2367
      %v2369 = vpop.f32.mrf.mxu0
      %2370 = vdwg.mxu0
      %2371 = vmatpush.bf16.msra.mxu0 %v1597
      %2372 = vmatpush.bf16.msra.mxu0 %v1593
      %2373 = vmatpush.bf16.msra.mxu0 %v1589
      %2374 = vmatpush.bf16.msra.mxu0 %v1585
      %2375 = vmatpush.bf16.msra.mxu0 %v1581
      %2376 = vmatpush.bf16.msra.mxu0 %v1577
      %2377 = vmatpush.bf16.msra.mxu0 %v1573
      %2378 = vmatpush.bf16.msra.mxu0 %v1569
      %2379 = vmatmul.bf16.gmra.mxu0 %v751
      %v2380 = vpop.f32.mrf.mxu0
      %v2381 = vadd.f32 %v2368, %v2380
      %v2382 = vpop.f32.mrf.mxu0
      %2383 = vdwg.mxu0
      %2384 = vmatpush.bf16.msra.mxu0 %v1629
      %2385 = vmatpush.bf16.msra.mxu0 %v1625
      %2386 = vmatpush.bf16.msra.mxu0 %v1621
      %2387 = vmatpush.bf16.msra.mxu0 %v1617
      %2388 = vmatpush.bf16.msra.mxu0 %v1613
      %2389 = vmatpush.bf16.msra.mxu0 %v1609
      %2390 = vmatpush.bf16.msra.mxu0 %v1605
      %2391 = vmatpush.bf16.msra.mxu0 %v1601
      %2392 = vmatmul.bf16.gmra.mxu0 %v752
      %v2393 = vpop.f32.mrf.mxu0
      %v2394 = vadd.f32 %v2381, %v2393
      %v2395 = vpop.f32.mrf.mxu0
      %2396 = vdwg.mxu0
      %2397 = vmatpush.bf16.msra.mxu0 %v1661
      %2398 = vmatpush.bf16.msra.mxu0 %v1657
      %2399 = vmatpush.bf16.msra.mxu0 %v1653
      %2400 = vmatpush.bf16.msra.mxu0 %v1649
      %2401 = vmatpush.bf16.msra.mxu0 %v1645
      %2402 = vmatpush.bf16.msra.mxu0 %v1641
      %2403 = vmatpush.bf16.msra.mxu0 %v1637
      %2404 = vmatpush.bf16.msra.mxu0 %v1633
      %2405 = vmatmul.bf16.gmra.mxu0 %v753
      %v2406 = vpop.f32.mrf.mxu0
      %v2407 = vadd.f32 %v2394, %v2406
      %v2408 = vpop.f32.mrf.mxu0
      %2409 = vdwg.mxu0
      %2410 = vmatpush.bf16.msra.mxu0 %v1693
      %2411 = vmatpush.bf16.msra.mxu0 %v1689
      %2412 = vmatpush.bf16.msra.mxu0 %v1685
      %2413 = vmatpush.bf16.msra.mxu0 %v1681
      %2414 = vmatpush.bf16.msra.mxu0 %v1677
      %2415 = vmatpush.bf16.msra.mxu0 %v1673
      %2416 = vmatpush.bf16.msra.mxu0 %v1669
      %2417 = vmatpush.bf16.msra.mxu0 %v1665
      %2418 = vmatmul.bf16.gmra.mxu0 %v754
      %v2419 = vpop.f32.mrf.mxu0
      %v2420 = vadd.f32 %v2407, %v2419
      %v2421 = vpop.f32.mrf.mxu0
      %2422 = vdwg.mxu0
      %2423 = vmatpush.bf16.msra.mxu0 %v1725
      %2424 = vmatpush.bf16.msra.mxu0 %v1721
      %2425 = vmatpush.bf16.msra.mxu0 %v1717
      %2426 = vmatpush.bf16.msra.mxu0 %v1713
      %2427 = vmatpush.bf16.msra.mxu0 %v1709
      %2428 = vmatpush.bf16.msra.mxu0 %v1705
      %2429 = vmatpush.bf16.msra.mxu0 %v1701
      %2430 = vmatpush.bf16.msra.mxu0 %v1697
      %2431 = vmatmul.bf16.gmra.mxu0 %v755
      %v2432 = vpop.f32.mrf.mxu0
      %v2433 = vadd.f32 %v2420, %v2432
      %v2434 = vpop.f32.mrf.mxu0
      %2435 = vdwg.mxu0
      %2436 = vmatpush.bf16.msra.mxu0 %v1757
      %2437 = vmatpush.bf16.msra.mxu0 %v1753
      %2438 = vmatpush.bf16.msra.mxu0 %v1749
      %2439 = vmatpush.bf16.msra.mxu0 %v1745
      %2440 = vmatpush.bf16.msra.mxu0 %v1741
      %2441 = vmatpush.bf16.msra.mxu0 %v1737
      %2442 = vmatpush.bf16.msra.mxu0 %v1733
      %2443 = vmatpush.bf16.msra.mxu0 %v1729
      %2444 = vmatmul.bf16.gmra.mxu0 %v756
      %v2445 = vpop.f32.mrf.mxu0
      %v2446 = vadd.f32 %v2433, %v2445
      %v2447 = vpop.f32.mrf.mxu0
      %2448 = vdwg.mxu0
      %2449 = vmatpush.bf16.msra.mxu0 %v1789
      %2450 = vmatpush.bf16.msra.mxu0 %v1785
      %2451 = vmatpush.bf16.msra.mxu0 %v1781
      %2452 = vmatpush.bf16.msra.mxu0 %v1777
      %2453 = vmatpush.bf16.msra.mxu0 %v1773
      %2454 = vmatpush.bf16.msra.mxu0 %v1769
      %2455 = vmatpush.bf16.msra.mxu0 %v1765
      %2456 = vmatpush.bf16.msra.mxu0 %v1761
      %2457 = vmatmul.bf16.gmra.mxu0 %v757
      %v2458 = vpop.f32.mrf.mxu0
      %v2459 = vadd.f32 %v2446, %v2458
      %v2460 = vpop.f32.mrf.mxu0
      %2461 = vdwg.mxu0
      %v2462 = vrot.slane %v2147, 6
      %v2463 = vrot.slane %v2251, 6
      %v2464 = vrot.slane %v2355, 6
      %v2465 = vrot.slane %v2459, 6
      %vm2466 = vcmp.ge.s32.totalorder %v481, 2
      %vm2467 = vcmp.lt.s32.totalorder %v481, 8
      %vm2468 = vmand %vm2466, %vm2467
      %v2469 = vsel %vm2468, 1, 0
      %vm2470 = vcmp.eq.s32.totalorder %v2469, 1
      %v2471 = vsel %vm2470, %v2462, 0.0
      %v2472 = vsel %vm2470, %v2463, 0.0
      %v2473 = vsel %vm2470, %v2464, 0.0
      %v2474 = vsel %vm2470, %v2465, 0.0
      %v2731 = vunpack.c.l.b16 %v224
      %v2732 = vunpack.c.h.b16 %v224
      %v2733 = vunpack.c.l.b16 %v225
      %v2734 = vunpack.c.h.b16 %v225
      %v2735 = vunpack.c.l.b16 %v226
      %v2736 = vunpack.c.h.b16 %v226
      %v2737 = vunpack.c.l.b16 %v227
      %v2738 = vunpack.c.h.b16 %v227
      %v2739 = vunpack.c.l.b16 %v228
      %v2740 = vunpack.c.h.b16 %v228
      %v2741 = vunpack.c.l.b16 %v229
      %v2742 = vunpack.c.h.b16 %v229
      %v2743 = vunpack.c.l.b16 %v230
      %v2744 = vunpack.c.h.b16 %v230
      %v2745 = vunpack.c.l.b16 %v231
      %v2746 = vunpack.c.h.b16 %v231
      %v2747 = vunpack.c.l.b16 %v232
      %v2748 = vunpack.c.h.b16 %v232
      %v2749 = vunpack.c.l.b16 %v233
      %v2750 = vunpack.c.h.b16 %v233
      %v2751 = vunpack.c.l.b16 %v234
      %v2752 = vunpack.c.h.b16 %v234
      %v2753 = vunpack.c.l.b16 %v235
      %v2754 = vunpack.c.h.b16 %v235
      %v2755 = vunpack.c.l.b16 %v236
      %v2756 = vunpack.c.h.b16 %v236
      %v2757 = vunpack.c.l.b16 %v237
      %v2758 = vunpack.c.h.b16 %v237
      %v2759 = vunpack.c.l.b16 %v238
      %v2760 = vunpack.c.h.b16 %v238
      %v2761 = vunpack.c.l.b16 %v239
      %v2762 = vunpack.c.h.b16 %v239
      %v2763 = vunpack.c.l.b16 %v240
      %v2764 = vunpack.c.h.b16 %v240
      %v2765 = vunpack.c.l.b16 %v241
      %v2766 = vunpack.c.h.b16 %v241
      %v2767 = vunpack.c.l.b16 %v242
      %v2768 = vunpack.c.h.b16 %v242
      %v2769 = vunpack.c.l.b16 %v243
      %v2770 = vunpack.c.h.b16 %v243
      %v2771 = vunpack.c.l.b16 %v244
      %v2772 = vunpack.c.h.b16 %v244
      %v2773 = vunpack.c.l.b16 %v245
      %v2774 = vunpack.c.h.b16 %v245
      %v2775 = vunpack.c.l.b16 %v246
      %v2776 = vunpack.c.h.b16 %v246
      %v2777 = vunpack.c.l.b16 %v247
      %v2778 = vunpack.c.h.b16 %v247
      %v2779 = vunpack.c.l.b16 %v248
      %v2780 = vunpack.c.h.b16 %v248
      %v2781 = vunpack.c.l.b16 %v249
      %v2782 = vunpack.c.h.b16 %v249
      %v2783 = vunpack.c.l.b16 %v250
      %v2784 = vunpack.c.h.b16 %v250
      %v2785 = vunpack.c.l.b16 %v251
      %v2786 = vunpack.c.h.b16 %v251
      %v2787 = vunpack.c.l.b16 %v252
      %v2788 = vunpack.c.h.b16 %v252
      %v2789 = vunpack.c.l.b16 %v253
      %v2790 = vunpack.c.h.b16 %v253
      %v2791 = vunpack.c.l.b16 %v254
      %v2792 = vunpack.c.h.b16 %v254
      %v2793 = vunpack.c.l.b16 %v255
      %v2794 = vunpack.c.h.b16 %v255
      %v2795 = vunpack.c.l.b16 %v256
      %v2796 = vunpack.c.h.b16 %v256
      %v2797 = vunpack.c.l.b16 %v257
      %v2798 = vunpack.c.h.b16 %v257
      %v2799 = vunpack.c.l.b16 %v258
      %v2800 = vunpack.c.h.b16 %v258
      %v2801 = vunpack.c.l.b16 %v259
      %v2802 = vunpack.c.h.b16 %v259
      %v2803 = vunpack.c.l.b16 %v260
      %v2804 = vunpack.c.h.b16 %v260
      %v2805 = vunpack.c.l.b16 %v261
      %v2806 = vunpack.c.h.b16 %v261
      %v2807 = vunpack.c.l.b16 %v262
      %v2808 = vunpack.c.h.b16 %v262
      %v2809 = vunpack.c.l.b16 %v263
      %v2810 = vunpack.c.h.b16 %v263
      %v2811 = vunpack.c.l.b16 %v264
      %v2812 = vunpack.c.h.b16 %v264
      %v2813 = vunpack.c.l.b16 %v265
      %v2814 = vunpack.c.h.b16 %v265
      %v2815 = vunpack.c.l.b16 %v266
      %v2816 = vunpack.c.h.b16 %v266
      %v2817 = vunpack.c.l.b16 %v267
      %v2818 = vunpack.c.h.b16 %v267
      %v2819 = vunpack.c.l.b16 %v268
      %v2820 = vunpack.c.h.b16 %v268
      %v2821 = vunpack.c.l.b16 %v269
      %v2822 = vunpack.c.h.b16 %v269
      %v2823 = vunpack.c.l.b16 %v270
      %v2824 = vunpack.c.h.b16 %v270
      %v2825 = vunpack.c.l.b16 %v271
      %v2826 = vunpack.c.h.b16 %v271
      %v2827 = vunpack.c.l.b16 %v272
      %v2828 = vunpack.c.h.b16 %v272
      %v2829 = vunpack.c.l.b16 %v273
      %v2830 = vunpack.c.h.b16 %v273
      %v2831 = vunpack.c.l.b16 %v274
      %v2832 = vunpack.c.h.b16 %v274
      %v2833 = vunpack.c.l.b16 %v275
      %v2834 = vunpack.c.h.b16 %v275
      %v2835 = vunpack.c.l.b16 %v276
      %v2836 = vunpack.c.h.b16 %v276
      %v2837 = vunpack.c.l.b16 %v277
      %v2838 = vunpack.c.h.b16 %v277
      %v2839 = vunpack.c.l.b16 %v278
      %v2840 = vunpack.c.h.b16 %v278
      %v2841 = vunpack.c.l.b16 %v279
      %v2842 = vunpack.c.h.b16 %v279
      %v2843 = vunpack.c.l.b16 %v280
      %v2844 = vunpack.c.h.b16 %v280
      %v2845 = vunpack.c.l.b16 %v281
      %v2846 = vunpack.c.h.b16 %v281
      %v2847 = vunpack.c.l.b16 %v282
      %v2848 = vunpack.c.h.b16 %v282
      %v2849 = vunpack.c.l.b16 %v283
      %v2850 = vunpack.c.h.b16 %v283
      %v2851 = vunpack.c.l.b16 %v284
      %v2852 = vunpack.c.h.b16 %v284
      %v2853 = vunpack.c.l.b16 %v285
      %v2854 = vunpack.c.h.b16 %v285
      %v2855 = vunpack.c.l.b16 %v286
      %v2856 = vunpack.c.h.b16 %v286
      %v2857 = vunpack.c.l.b16 %v287
      %v2858 = vunpack.c.h.b16 %v287
      %v2859 = vunpack.c.l.b16 %v288
      %v2860 = vunpack.c.h.b16 %v288
      %v2861 = vunpack.c.l.b16 %v289
      %v2862 = vunpack.c.h.b16 %v289
      %v2863 = vunpack.c.l.b16 %v290
      %v2864 = vunpack.c.h.b16 %v290
      %v2865 = vunpack.c.l.b16 %v291
      %v2866 = vunpack.c.h.b16 %v291
      %v2867 = vunpack.c.l.b16 %v292
      %v2868 = vunpack.c.h.b16 %v292
      %v2869 = vunpack.c.l.b16 %v293
      %v2870 = vunpack.c.h.b16 %v293
      %v2871 = vunpack.c.l.b16 %v294
      %v2872 = vunpack.c.h.b16 %v294
      %v2873 = vunpack.c.l.b16 %v295
      %v2874 = vunpack.c.h.b16 %v295
      %v2875 = vunpack.c.l.b16 %v296
      %v2876 = vunpack.c.h.b16 %v296
      %v2877 = vunpack.c.l.b16 %v297
      %v2878 = vunpack.c.h.b16 %v297
      %v2879 = vunpack.c.l.b16 %v298
      %v2880 = vunpack.c.h.b16 %v298
      %v2881 = vunpack.c.l.b16 %v299
      %v2882 = vunpack.c.h.b16 %v299
      %v2883 = vunpack.c.l.b16 %v300
      %v2884 = vunpack.c.h.b16 %v300
      %v2885 = vunpack.c.l.b16 %v301
      %v2886 = vunpack.c.h.b16 %v301
      %v2887 = vunpack.c.l.b16 %v302
      %v2888 = vunpack.c.h.b16 %v302
      %v2889 = vunpack.c.l.b16 %v303
      %v2890 = vunpack.c.h.b16 %v303
      %v2891 = vunpack.c.l.b16 %v304
      %v2892 = vunpack.c.h.b16 %v304
      %v2893 = vunpack.c.l.b16 %v305
      %v2894 = vunpack.c.h.b16 %v305
      %v2895 = vunpack.c.l.b16 %v306
      %v2896 = vunpack.c.h.b16 %v306
      %v2897 = vunpack.c.l.b16 %v307
      %v2898 = vunpack.c.h.b16 %v307
      %v2899 = vunpack.c.l.b16 %v308
      %v2900 = vunpack.c.h.b16 %v308
      %v2901 = vunpack.c.l.b16 %v309
      %v2902 = vunpack.c.h.b16 %v309
      %v2903 = vunpack.c.l.b16 %v310
      %v2904 = vunpack.c.h.b16 %v310
      %v2905 = vunpack.c.l.b16 %v311
      %v2906 = vunpack.c.h.b16 %v311
      %v2907 = vunpack.c.l.b16 %v312
      %v2908 = vunpack.c.h.b16 %v312
      %v2909 = vunpack.c.l.b16 %v313
      %v2910 = vunpack.c.h.b16 %v313
      %v2911 = vunpack.c.l.b16 %v314
      %v2912 = vunpack.c.h.b16 %v314
      %v2913 = vunpack.c.l.b16 %v315
      %v2914 = vunpack.c.h.b16 %v315
      %v2915 = vunpack.c.l.b16 %v316
      %v2916 = vunpack.c.h.b16 %v316
      %v2917 = vunpack.c.l.b16 %v317
      %v2918 = vunpack.c.h.b16 %v317
      %v2919 = vunpack.c.l.b16 %v318
      %v2920 = vunpack.c.h.b16 %v318
      %v2921 = vunpack.c.l.b16 %v319
      %v2922 = vunpack.c.h.b16 %v319
      %v2923 = vunpack.c.l.b16 %v320
      %v2924 = vunpack.c.h.b16 %v320
      %v2925 = vunpack.c.l.b16 %v321
      %v2926 = vunpack.c.h.b16 %v321
      %v2927 = vunpack.c.l.b16 %v322
      %v2928 = vunpack.c.h.b16 %v322
      %v2929 = vunpack.c.l.b16 %v323
      %v2930 = vunpack.c.h.b16 %v323
      %v2931 = vunpack.c.l.b16 %v324
      %v2932 = vunpack.c.h.b16 %v324
      %v2933 = vunpack.c.l.b16 %v325
      %v2934 = vunpack.c.h.b16 %v325
      %v2935 = vunpack.c.l.b16 %v326
      %v2936 = vunpack.c.h.b16 %v326
      %v2937 = vunpack.c.l.b16 %v327
      %v2938 = vunpack.c.h.b16 %v327
      %v2939 = vunpack.c.l.b16 %v328
      %v2940 = vunpack.c.h.b16 %v328
      %v2941 = vunpack.c.l.b16 %v329
      %v2942 = vunpack.c.h.b16 %v329
      %v2943 = vunpack.c.l.b16 %v330
      %v2944 = vunpack.c.h.b16 %v330
      %v2945 = vunpack.c.l.b16 %v331
      %v2946 = vunpack.c.h.b16 %v331
      %v2947 = vunpack.c.l.b16 %v332
      %v2948 = vunpack.c.h.b16 %v332
      %v2949 = vunpack.c.l.b16 %v333
      %v2950 = vunpack.c.h.b16 %v333
      %v2951 = vunpack.c.l.b16 %v334
      %v2952 = vunpack.c.h.b16 %v334
      %v2953 = vunpack.c.l.b16 %v335
      %v2954 = vunpack.c.h.b16 %v335
      %v2955 = vunpack.c.l.b16 %v336
      %v2956 = vunpack.c.h.b16 %v336
      %v2957 = vunpack.c.l.b16 %v337
      %v2958 = vunpack.c.h.b16 %v337
      %v2959 = vunpack.c.l.b16 %v338
      %v2960 = vunpack.c.h.b16 %v338
      %v2961 = vunpack.c.l.b16 %v339
      %v2962 = vunpack.c.h.b16 %v339
      %v2963 = vunpack.c.l.b16 %v340
      %v2964 = vunpack.c.h.b16 %v340
      %v2965 = vunpack.c.l.b16 %v341
      %v2966 = vunpack.c.h.b16 %v341
      %v2967 = vunpack.c.l.b16 %v342
      %v2968 = vunpack.c.h.b16 %v342
      %v2969 = vunpack.c.l.b16 %v343
      %v2970 = vunpack.c.h.b16 %v343
      %v2971 = vunpack.c.l.b16 %v344
      %v2972 = vunpack.c.h.b16 %v344
      %v2973 = vunpack.c.l.b16 %v345
      %v2974 = vunpack.c.h.b16 %v345
      %v2975 = vunpack.c.l.b16 %v346
      %v2976 = vunpack.c.h.b16 %v346
      %v2977 = vunpack.c.l.b16 %v347
      %v2978 = vunpack.c.h.b16 %v347
      %v2979 = vunpack.c.l.b16 %v348
      %v2980 = vunpack.c.h.b16 %v348
      %v2981 = vunpack.c.l.b16 %v349
      %v2982 = vunpack.c.h.b16 %v349
      %v2983 = vunpack.c.l.b16 %v350
      %v2984 = vunpack.c.h.b16 %v350
      %v2985 = vunpack.c.l.b16 %v351
      %v2986 = vunpack.c.h.b16 %v351
      %v2987 = vunpack.c.l.b16 %v352
      %v2988 = vunpack.c.h.b16 %v352
      %v2989 = vunpack.c.l.b16 %v353
      %v2990 = vunpack.c.h.b16 %v353
      %v2991 = vunpack.c.l.b16 %v354
      %v2992 = vunpack.c.h.b16 %v354
      %v2993 = vunpack.c.l.b16 %v355
      %v2994 = vunpack.c.h.b16 %v355
      %v2995 = vunpack.c.l.b16 %v356
      %v2996 = vunpack.c.h.b16 %v356
      %v2997 = vunpack.c.l.b16 %v357
      %v2998 = vunpack.c.h.b16 %v357
      %v2999 = vunpack.c.l.b16 %v358
      %v3000 = vunpack.c.h.b16 %v358
      %v3001 = vunpack.c.l.b16 %v359
      %v3002 = vunpack.c.h.b16 %v359
      %v3003 = vunpack.c.l.b16 %v360
      %v3004 = vunpack.c.h.b16 %v360
      %v3005 = vunpack.c.l.b16 %v361
      %v3006 = vunpack.c.h.b16 %v361
      %v3007 = vunpack.c.l.b16 %v362
      %v3008 = vunpack.c.h.b16 %v362
      %v3009 = vunpack.c.l.b16 %v363
      %v3010 = vunpack.c.h.b16 %v363
      %v3011 = vunpack.c.l.b16 %v364
      %v3012 = vunpack.c.h.b16 %v364
      %v3013 = vunpack.c.l.b16 %v365
      %v3014 = vunpack.c.h.b16 %v365
      %v3015 = vunpack.c.l.b16 %v366
      %v3016 = vunpack.c.h.b16 %v366
      %v3017 = vunpack.c.l.b16 %v367
      %v3018 = vunpack.c.h.b16 %v367
      %v3019 = vunpack.c.l.b16 %v368
      %v3020 = vunpack.c.h.b16 %v368
      %v3021 = vunpack.c.l.b16 %v369
      %v3022 = vunpack.c.h.b16 %v369
      %v3023 = vunpack.c.l.b16 %v370
      %v3024 = vunpack.c.h.b16 %v370
      %v3025 = vunpack.c.l.b16 %v371
      %v3026 = vunpack.c.h.b16 %v371
      %v3027 = vunpack.c.l.b16 %v372
      %v3028 = vunpack.c.h.b16 %v372
      %v3029 = vunpack.c.l.b16 %v373
      %v3030 = vunpack.c.h.b16 %v373
      %v3031 = vunpack.c.l.b16 %v374
      %v3032 = vunpack.c.h.b16 %v374
      %v3033 = vunpack.c.l.b16 %v375
      %v3034 = vunpack.c.h.b16 %v375
      %v3035 = vunpack.c.l.b16 %v376
      %v3036 = vunpack.c.h.b16 %v376
      %v3037 = vunpack.c.l.b16 %v377
      %v3038 = vunpack.c.h.b16 %v377
      %v3039 = vunpack.c.l.b16 %v378
      %v3040 = vunpack.c.h.b16 %v378
      %v3041 = vunpack.c.l.b16 %v379
      %v3042 = vunpack.c.h.b16 %v379
      %v3043 = vunpack.c.l.b16 %v380
      %v3044 = vunpack.c.h.b16 %v380
      %v3045 = vunpack.c.l.b16 %v381
      %v3046 = vunpack.c.h.b16 %v381
      %v3047 = vunpack.c.l.b16 %v382
      %v3048 = vunpack.c.h.b16 %v382
      %v3049 = vunpack.c.l.b16 %v383
      %v3050 = vunpack.c.h.b16 %v383
      %v3051 = vunpack.c.l.b16 %v384
      %v3052 = vunpack.c.h.b16 %v384
      %v3053 = vunpack.c.l.b16 %v385
      %v3054 = vunpack.c.h.b16 %v385
      %v3055 = vunpack.c.l.b16 %v386
      %v3056 = vunpack.c.h.b16 %v386
      %v3057 = vunpack.c.l.b16 %v387
      %v3058 = vunpack.c.h.b16 %v387
      %v3059 = vunpack.c.l.b16 %v388
      %v3060 = vunpack.c.h.b16 %v388
      %v3061 = vunpack.c.l.b16 %v389
      %v3062 = vunpack.c.h.b16 %v389
      %v3063 = vunpack.c.l.b16 %v390
      %v3064 = vunpack.c.h.b16 %v390
      %v3065 = vunpack.c.l.b16 %v391
      %v3066 = vunpack.c.h.b16 %v391
      %v3067 = vunpack.c.l.b16 %v392
      %v3068 = vunpack.c.h.b16 %v392
      %v3069 = vunpack.c.l.b16 %v393
      %v3070 = vunpack.c.h.b16 %v393
      %v3071 = vunpack.c.l.b16 %v394
      %v3072 = vunpack.c.h.b16 %v394
      %v3073 = vunpack.c.l.b16 %v395
      %v3074 = vunpack.c.h.b16 %v395
      %v3075 = vunpack.c.l.b16 %v396
      %v3076 = vunpack.c.h.b16 %v396
      %v3077 = vunpack.c.l.b16 %v397
      %v3078 = vunpack.c.h.b16 %v397
      %v3079 = vunpack.c.l.b16 %v398
      %v3080 = vunpack.c.h.b16 %v398
      %v3081 = vunpack.c.l.b16 %v399
      %v3082 = vunpack.c.h.b16 %v399
      %v3083 = vunpack.c.l.b16 %v400
      %v3084 = vunpack.c.h.b16 %v400
      %v3085 = vunpack.c.l.b16 %v401
      %v3086 = vunpack.c.h.b16 %v401
      %v3087 = vunpack.c.l.b16 %v402
      %v3088 = vunpack.c.h.b16 %v402
      %v3089 = vunpack.c.l.b16 %v403
      %v3090 = vunpack.c.h.b16 %v403
      %v3091 = vunpack.c.l.b16 %v404
      %v3092 = vunpack.c.h.b16 %v404
      %v3093 = vunpack.c.l.b16 %v405
      %v3094 = vunpack.c.h.b16 %v405
      %v3095 = vunpack.c.l.b16 %v406
      %v3096 = vunpack.c.h.b16 %v406
      %v3097 = vunpack.c.l.b16 %v407
      %v3098 = vunpack.c.h.b16 %v407
      %v3099 = vunpack.c.l.b16 %v408
      %v3100 = vunpack.c.h.b16 %v408
      %v3101 = vunpack.c.l.b16 %v409
      %v3102 = vunpack.c.h.b16 %v409
      %v3103 = vunpack.c.l.b16 %v410
      %v3104 = vunpack.c.h.b16 %v410
      %v3105 = vunpack.c.l.b16 %v411
      %v3106 = vunpack.c.h.b16 %v411
      %v3107 = vunpack.c.l.b16 %v412
      %v3108 = vunpack.c.h.b16 %v412
      %v3109 = vunpack.c.l.b16 %v413
      %v3110 = vunpack.c.h.b16 %v413
      %v3111 = vunpack.c.l.b16 %v414
      %v3112 = vunpack.c.h.b16 %v414
      %v3113 = vunpack.c.l.b16 %v415
      %v3114 = vunpack.c.h.b16 %v415
      %v3115 = vunpack.c.l.b16 %v416
      %v3116 = vunpack.c.h.b16 %v416
      %v3117 = vunpack.c.l.b16 %v417
      %v3118 = vunpack.c.h.b16 %v417
      %v3119 = vunpack.c.l.b16 %v418
      %v3120 = vunpack.c.h.b16 %v418
      %v3121 = vunpack.c.l.b16 %v419
      %v3122 = vunpack.c.h.b16 %v419
      %v3123 = vunpack.c.l.b16 %v420
      %v3124 = vunpack.c.h.b16 %v420
      %v3125 = vunpack.c.l.b16 %v421
      %v3126 = vunpack.c.h.b16 %v421
      %v3127 = vunpack.c.l.b16 %v422
      %v3128 = vunpack.c.h.b16 %v422
      %v3129 = vunpack.c.l.b16 %v423
      %v3130 = vunpack.c.h.b16 %v423
      %v3131 = vunpack.c.l.b16 %v424
      %v3132 = vunpack.c.h.b16 %v424
      %v3133 = vunpack.c.l.b16 %v425
      %v3134 = vunpack.c.h.b16 %v425
      %v3135 = vunpack.c.l.b16 %v426
      %v3136 = vunpack.c.h.b16 %v426
      %v3137 = vunpack.c.l.b16 %v427
      %v3138 = vunpack.c.h.b16 %v427
      %v3139 = vunpack.c.l.b16 %v428
      %v3140 = vunpack.c.h.b16 %v428
      %v3141 = vunpack.c.l.b16 %v429
      %v3142 = vunpack.c.h.b16 %v429
      %v3143 = vunpack.c.l.b16 %v430
      %v3144 = vunpack.c.h.b16 %v430
      %v3145 = vunpack.c.l.b16 %v431
      %v3146 = vunpack.c.h.b16 %v431
      %v3147 = vunpack.c.l.b16 %v432
      %v3148 = vunpack.c.h.b16 %v432
      %v3149 = vunpack.c.l.b16 %v433
      %v3150 = vunpack.c.h.b16 %v433
      %v3151 = vunpack.c.l.b16 %v434
      %v3152 = vunpack.c.h.b16 %v434
      %v3153 = vunpack.c.l.b16 %v435
      %v3154 = vunpack.c.h.b16 %v435
      %v3155 = vunpack.c.l.b16 %v436
      %v3156 = vunpack.c.h.b16 %v436
      %v3157 = vunpack.c.l.b16 %v437
      %v3158 = vunpack.c.h.b16 %v437
      %v3159 = vunpack.c.l.b16 %v438
      %v3160 = vunpack.c.h.b16 %v438
      %v3161 = vunpack.c.l.b16 %v439
      %v3162 = vunpack.c.h.b16 %v439
      %v3163 = vunpack.c.l.b16 %v440
      %v3164 = vunpack.c.h.b16 %v440
      %v3165 = vunpack.c.l.b16 %v441
      %v3166 = vunpack.c.h.b16 %v441
      %v3167 = vunpack.c.l.b16 %v442
      %v3168 = vunpack.c.h.b16 %v442
      %v3169 = vunpack.c.l.b16 %v443
      %v3170 = vunpack.c.h.b16 %v443
      %v3171 = vunpack.c.l.b16 %v444
      %v3172 = vunpack.c.h.b16 %v444
      %v3173 = vunpack.c.l.b16 %v445
      %v3174 = vunpack.c.h.b16 %v445
      %v3175 = vunpack.c.l.b16 %v446
      %v3176 = vunpack.c.h.b16 %v446
      %v3177 = vunpack.c.l.b16 %v447
      %v3178 = vunpack.c.h.b16 %v447
      %v3179 = vunpack.c.l.b16 %v448
      %v3180 = vunpack.c.h.b16 %v448
      %v3181 = vunpack.c.l.b16 %v449
      %v3182 = vunpack.c.h.b16 %v449
      %v3183 = vunpack.c.l.b16 %v450
      %v3184 = vunpack.c.h.b16 %v450
      %v3185 = vunpack.c.l.b16 %v451
      %v3186 = vunpack.c.h.b16 %v451
      %v3187 = vunpack.c.l.b16 %v452
      %v3188 = vunpack.c.h.b16 %v452
      %v3189 = vunpack.c.l.b16 %v453
      %v3190 = vunpack.c.h.b16 %v453
      %v3191 = vunpack.c.l.b16 %v454
      %v3192 = vunpack.c.h.b16 %v454
      %v3193 = vunpack.c.l.b16 %v455
      %v3194 = vunpack.c.h.b16 %v455
      %v3195 = vunpack.c.l.b16 %v456
      %v3196 = vunpack.c.h.b16 %v456
      %v3197 = vunpack.c.l.b16 %v457
      %v3198 = vunpack.c.h.b16 %v457
      %v3199 = vunpack.c.l.b16 %v458
      %v3200 = vunpack.c.h.b16 %v458
      %v3201 = vunpack.c.l.b16 %v459
      %v3202 = vunpack.c.h.b16 %v459
      %v3203 = vunpack.c.l.b16 %v460
      %v3204 = vunpack.c.h.b16 %v460
      %v3205 = vunpack.c.l.b16 %v461
      %v3206 = vunpack.c.h.b16 %v461
      %v3207 = vunpack.c.l.b16 %v462
      %v3208 = vunpack.c.h.b16 %v462
      %v3209 = vunpack.c.l.b16 %v463
      %v3210 = vunpack.c.h.b16 %v463
      %v3211 = vunpack.c.l.b16 %v464
      %v3212 = vunpack.c.h.b16 %v464
      %v3213 = vunpack.c.l.b16 %v465
      %v3214 = vunpack.c.h.b16 %v465
      %v3215 = vunpack.c.l.b16 %v466
      %v3216 = vunpack.c.h.b16 %v466
      %v3217 = vunpack.c.l.b16 %v467
      %v3218 = vunpack.c.h.b16 %v467
      %v3219 = vunpack.c.l.b16 %v468
      %v3220 = vunpack.c.h.b16 %v468
      %v3221 = vunpack.c.l.b16 %v469
      %v3222 = vunpack.c.h.b16 %v469
      %v3223 = vunpack.c.l.b16 %v470
      %v3224 = vunpack.c.h.b16 %v470
      %v3225 = vunpack.c.l.b16 %v471
      %v3226 = vunpack.c.h.b16 %v471
      %v3227 = vunpack.c.l.b16 %v472
      %v3228 = vunpack.c.h.b16 %v472
      %v3229 = vunpack.c.l.b16 %v473
      %v3230 = vunpack.c.h.b16 %v473
      %v3231 = vunpack.c.l.b16 %v474
      %v3232 = vunpack.c.h.b16 %v474
      %v3233 = vunpack.c.l.b16 %v475
      %v3234 = vunpack.c.h.b16 %v475
      %v3235 = vunpack.c.l.b16 %v476
      %v3236 = vunpack.c.h.b16 %v476
      %v3237 = vunpack.c.l.b16 %v477
      %v3238 = vunpack.c.h.b16 %v477
      %v3239 = vunpack.c.l.b16 %v478
      %v3240 = vunpack.c.h.b16 %v478
      %v3241 = vunpack.c.l.b16 %v479
      %v3242 = vunpack.c.h.b16 %v479
      %v3243 = vpack.c.b16 %v2735, %v2731
      %v3244 = vpack.c.b16 %v2736, %v2732
      %v3245 = vpack.c.b16 %v2737, %v2733
      %v3246 = vpack.c.b16 %v2738, %v2734
      %v3247 = vpack.c.b16 %v2743, %v2739
      %v3248 = vpack.c.b16 %v2744, %v2740
      %v3249 = vpack.c.b16 %v2745, %v2741
      %v3250 = vpack.c.b16 %v2746, %v2742
      %v3251 = vpack.c.b16 %v2751, %v2747
      %v3252 = vpack.c.b16 %v2752, %v2748
      %v3253 = vpack.c.b16 %v2753, %v2749
      %v3254 = vpack.c.b16 %v2754, %v2750
      %v3255 = vpack.c.b16 %v2759, %v2755
      %v3256 = vpack.c.b16 %v2760, %v2756
      %v3257 = vpack.c.b16 %v2761, %v2757
      %v3258 = vpack.c.b16 %v2762, %v2758
      %v3259 = vpack.c.b16 %v2767, %v2763
      %v3260 = vpack.c.b16 %v2768, %v2764
      %v3261 = vpack.c.b16 %v2769, %v2765
      %v3262 = vpack.c.b16 %v2770, %v2766
      %v3263 = vpack.c.b16 %v2775, %v2771
      %v3264 = vpack.c.b16 %v2776, %v2772
      %v3265 = vpack.c.b16 %v2777, %v2773
      %v3266 = vpack.c.b16 %v2778, %v2774
      %v3267 = vpack.c.b16 %v2783, %v2779
      %v3268 = vpack.c.b16 %v2784, %v2780
      %v3269 = vpack.c.b16 %v2785, %v2781
      %v3270 = vpack.c.b16 %v2786, %v2782
      %v3271 = vpack.c.b16 %v2791, %v2787
      %v3272 = vpack.c.b16 %v2792, %v2788
      %v3273 = vpack.c.b16 %v2793, %v2789
      %v3274 = vpack.c.b16 %v2794, %v2790
      %v3275 = vpack.c.b16 %v2799, %v2795
      %v3276 = vpack.c.b16 %v2800, %v2796
      %v3277 = vpack.c.b16 %v2801, %v2797
      %v3278 = vpack.c.b16 %v2802, %v2798
      %v3279 = vpack.c.b16 %v2807, %v2803
      %v3280 = vpack.c.b16 %v2808, %v2804
      %v3281 = vpack.c.b16 %v2809, %v2805
      %v3282 = vpack.c.b16 %v2810, %v2806
      %v3283 = vpack.c.b16 %v2815, %v2811
      %v3284 = vpack.c.b16 %v2816, %v2812
      %v3285 = vpack.c.b16 %v2817, %v2813
      %v3286 = vpack.c.b16 %v2818, %v2814
      %v3287 = vpack.c.b16 %v2823, %v2819
      %v3288 = vpack.c.b16 %v2824, %v2820
      %v3289 = vpack.c.b16 %v2825, %v2821
      %v3290 = vpack.c.b16 %v2826, %v2822
      %v3291 = vpack.c.b16 %v2831, %v2827
      %v3292 = vpack.c.b16 %v2832, %v2828
      %v3293 = vpack.c.b16 %v2833, %v2829
      %v3294 = vpack.c.b16 %v2834, %v2830
      %v3295 = vpack.c.b16 %v2839, %v2835
      %v3296 = vpack.c.b16 %v2840, %v2836
      %v3297 = vpack.c.b16 %v2841, %v2837
      %v3298 = vpack.c.b16 %v2842, %v2838
      %v3299 = vpack.c.b16 %v2847, %v2843
      %v3300 = vpack.c.b16 %v2848, %v2844
      %v3301 = vpack.c.b16 %v2849, %v2845
      %v3302 = vpack.c.b16 %v2850, %v2846
      %v3303 = vpack.c.b16 %v2855, %v2851
      %v3304 = vpack.c.b16 %v2856, %v2852
      %v3305 = vpack.c.b16 %v2857, %v2853
      %v3306 = vpack.c.b16 %v2858, %v2854
      %v3307 = vpack.c.b16 %v2863, %v2859
      %v3308 = vpack.c.b16 %v2864, %v2860
      %v3309 = vpack.c.b16 %v2865, %v2861
      %v3310 = vpack.c.b16 %v2866, %v2862
      %v3311 = vpack.c.b16 %v2871, %v2867
      %v3312 = vpack.c.b16 %v2872, %v2868
      %v3313 = vpack.c.b16 %v2873, %v2869
      %v3314 = vpack.c.b16 %v2874, %v2870
      %v3315 = vpack.c.b16 %v2879, %v2875
      %v3316 = vpack.c.b16 %v2880, %v2876
      %v3317 = vpack.c.b16 %v2881, %v2877
      %v3318 = vpack.c.b16 %v2882, %v2878
      %v3319 = vpack.c.b16 %v2887, %v2883
      %v3320 = vpack.c.b16 %v2888, %v2884
      %v3321 = vpack.c.b16 %v2889, %v2885
      %v3322 = vpack.c.b16 %v2890, %v2886
      %v3323 = vpack.c.b16 %v2895, %v2891
      %v3324 = vpack.c.b16 %v2896, %v2892
      %v3325 = vpack.c.b16 %v2897, %v2893
      %v3326 = vpack.c.b16 %v2898, %v2894
      %v3327 = vpack.c.b16 %v2903, %v2899
      %v3328 = vpack.c.b16 %v2904, %v2900
      %v3329 = vpack.c.b16 %v2905, %v2901
      %v3330 = vpack.c.b16 %v2906, %v2902
      %v3331 = vpack.c.b16 %v2911, %v2907
      %v3332 = vpack.c.b16 %v2912, %v2908
      %v3333 = vpack.c.b16 %v2913, %v2909
      %v3334 = vpack.c.b16 %v2914, %v2910
      %v3335 = vpack.c.b16 %v2919, %v2915
      %v3336 = vpack.c.b16 %v2920, %v2916
      %v3337 = vpack.c.b16 %v2921, %v2917
      %v3338 = vpack.c.b16 %v2922, %v2918
      %v3339 = vpack.c.b16 %v2927, %v2923
      %v3340 = vpack.c.b16 %v2928, %v2924
      %v3341 = vpack.c.b16 %v2929, %v2925
      %v3342 = vpack.c.b16 %v2930, %v2926
      %v3343 = vpack.c.b16 %v2935, %v2931
      %v3344 = vpack.c.b16 %v2936, %v2932
      %v3345 = vpack.c.b16 %v2937, %v2933
      %v3346 = vpack.c.b16 %v2938, %v2934
      %v3347 = vpack.c.b16 %v2943, %v2939
      %v3348 = vpack.c.b16 %v2944, %v2940
      %v3349 = vpack.c.b16 %v2945, %v2941
      %v3350 = vpack.c.b16 %v2946, %v2942
      %v3351 = vpack.c.b16 %v2951, %v2947
      %v3352 = vpack.c.b16 %v2952, %v2948
      %v3353 = vpack.c.b16 %v2953, %v2949
      %v3354 = vpack.c.b16 %v2954, %v2950
      %v3355 = vpack.c.b16 %v2959, %v2955
      %v3356 = vpack.c.b16 %v2960, %v2956
      %v3357 = vpack.c.b16 %v2961, %v2957
      %v3358 = vpack.c.b16 %v2962, %v2958
      %v3359 = vpack.c.b16 %v2967, %v2963
      %v3360 = vpack.c.b16 %v2968, %v2964
      %v3361 = vpack.c.b16 %v2969, %v2965
      %v3362 = vpack.c.b16 %v2970, %v2966
      %v3363 = vpack.c.b16 %v2975, %v2971
      %v3364 = vpack.c.b16 %v2976, %v2972
      %v3365 = vpack.c.b16 %v2977, %v2973
      %v3366 = vpack.c.b16 %v2978, %v2974
      %v3367 = vpack.c.b16 %v2983, %v2979
      %v3368 = vpack.c.b16 %v2984, %v2980
      %v3369 = vpack.c.b16 %v2985, %v2981
      %v3370 = vpack.c.b16 %v2986, %v2982
      %v3371 = vpack.c.b16 %v2991, %v2987
      %v3372 = vpack.c.b16 %v2992, %v2988
      %v3373 = vpack.c.b16 %v2993, %v2989
      %v3374 = vpack.c.b16 %v2994, %v2990
      %v3375 = vpack.c.b16 %v2999, %v2995
      %v3376 = vpack.c.b16 %v3000, %v2996
      %v3377 = vpack.c.b16 %v3001, %v2997
      %v3378 = vpack.c.b16 %v3002, %v2998
      %v3379 = vpack.c.b16 %v3007, %v3003
      %v3380 = vpack.c.b16 %v3008, %v3004
      %v3381 = vpack.c.b16 %v3009, %v3005
      %v3382 = vpack.c.b16 %v3010, %v3006
      %v3383 = vpack.c.b16 %v3015, %v3011
      %v3384 = vpack.c.b16 %v3016, %v3012
      %v3385 = vpack.c.b16 %v3017, %v3013
      %v3386 = vpack.c.b16 %v3018, %v3014
      %v3387 = vpack.c.b16 %v3023, %v3019
      %v3388 = vpack.c.b16 %v3024, %v3020
      %v3389 = vpack.c.b16 %v3025, %v3021
      %v3390 = vpack.c.b16 %v3026, %v3022
      %v3391 = vpack.c.b16 %v3031, %v3027
      %v3392 = vpack.c.b16 %v3032, %v3028
      %v3393 = vpack.c.b16 %v3033, %v3029
      %v3394 = vpack.c.b16 %v3034, %v3030
      %v3395 = vpack.c.b16 %v3039, %v3035
      %v3396 = vpack.c.b16 %v3040, %v3036
      %v3397 = vpack.c.b16 %v3041, %v3037
      %v3398 = vpack.c.b16 %v3042, %v3038
      %v3399 = vpack.c.b16 %v3047, %v3043
      %v3400 = vpack.c.b16 %v3048, %v3044
      %v3401 = vpack.c.b16 %v3049, %v3045
      %v3402 = vpack.c.b16 %v3050, %v3046
      %v3403 = vpack.c.b16 %v3055, %v3051
      %v3404 = vpack.c.b16 %v3056, %v3052
      %v3405 = vpack.c.b16 %v3057, %v3053
      %v3406 = vpack.c.b16 %v3058, %v3054
      %v3407 = vpack.c.b16 %v3063, %v3059
      %v3408 = vpack.c.b16 %v3064, %v3060
      %v3409 = vpack.c.b16 %v3065, %v3061
      %v3410 = vpack.c.b16 %v3066, %v3062
      %v3411 = vpack.c.b16 %v3071, %v3067
      %v3412 = vpack.c.b16 %v3072, %v3068
      %v3413 = vpack.c.b16 %v3073, %v3069
      %v3414 = vpack.c.b16 %v3074, %v3070
      %v3415 = vpack.c.b16 %v3079, %v3075
      %v3416 = vpack.c.b16 %v3080, %v3076
      %v3417 = vpack.c.b16 %v3081, %v3077
      %v3418 = vpack.c.b16 %v3082, %v3078
      %v3419 = vpack.c.b16 %v3087, %v3083
      %v3420 = vpack.c.b16 %v3088, %v3084
      %v3421 = vpack.c.b16 %v3089, %v3085
      %v3422 = vpack.c.b16 %v3090, %v3086
      %v3423 = vpack.c.b16 %v3095, %v3091
      %v3424 = vpack.c.b16 %v3096, %v3092
      %v3425 = vpack.c.b16 %v3097, %v3093
      %v3426 = vpack.c.b16 %v3098, %v3094
      %v3427 = vpack.c.b16 %v3103, %v3099
      %v3428 = vpack.c.b16 %v3104, %v3100
      %v3429 = vpack.c.b16 %v3105, %v3101
      %v3430 = vpack.c.b16 %v3106, %v3102
      %v3431 = vpack.c.b16 %v3111, %v3107
      %v3432 = vpack.c.b16 %v3112, %v3108
      %v3433 = vpack.c.b16 %v3113, %v3109
      %v3434 = vpack.c.b16 %v3114, %v3110
      %v3435 = vpack.c.b16 %v3119, %v3115
      %v3436 = vpack.c.b16 %v3120, %v3116
      %v3437 = vpack.c.b16 %v3121, %v3117
      %v3438 = vpack.c.b16 %v3122, %v3118
      %v3439 = vpack.c.b16 %v3127, %v3123
      %v3440 = vpack.c.b16 %v3128, %v3124
      %v3441 = vpack.c.b16 %v3129, %v3125
      %v3442 = vpack.c.b16 %v3130, %v3126
      %v3443 = vpack.c.b16 %v3135, %v3131
      %v3444 = vpack.c.b16 %v3136, %v3132
      %v3445 = vpack.c.b16 %v3137, %v3133
      %v3446 = vpack.c.b16 %v3138, %v3134
      %v3447 = vpack.c.b16 %v3143, %v3139
      %v3448 = vpack.c.b16 %v3144, %v3140
      %v3449 = vpack.c.b16 %v3145, %v3141
      %v3450 = vpack.c.b16 %v3146, %v3142
      %v3451 = vpack.c.b16 %v3151, %v3147
      %v3452 = vpack.c.b16 %v3152, %v3148
      %v3453 = vpack.c.b16 %v3153, %v3149
      %v3454 = vpack.c.b16 %v3154, %v3150
      %v3455 = vpack.c.b16 %v3159, %v3155
      %v3456 = vpack.c.b16 %v3160, %v3156
      %v3457 = vpack.c.b16 %v3161, %v3157
      %v3458 = vpack.c.b16 %v3162, %v3158
      %v3459 = vpack.c.b16 %v3167, %v3163
      %v3460 = vpack.c.b16 %v3168, %v3164
      %v3461 = vpack.c.b16 %v3169, %v3165
      %v3462 = vpack.c.b16 %v3170, %v3166
      %v3463 = vpack.c.b16 %v3175, %v3171
      %v3464 = vpack.c.b16 %v3176, %v3172
      %v3465 = vpack.c.b16 %v3177, %v3173
      %v3466 = vpack.c.b16 %v3178, %v3174
      %v3467 = vpack.c.b16 %v3183, %v3179
      %v3468 = vpack.c.b16 %v3184, %v3180
      %v3469 = vpack.c.b16 %v3185, %v3181
      %v3470 = vpack.c.b16 %v3186, %v3182
      %v3471 = vpack.c.b16 %v3191, %v3187
      %v3472 = vpack.c.b16 %v3192, %v3188
      %v3473 = vpack.c.b16 %v3193, %v3189
      %v3474 = vpack.c.b16 %v3194, %v3190
      %v3475 = vpack.c.b16 %v3199, %v3195
      %v3476 = vpack.c.b16 %v3200, %v3196
      %v3477 = vpack.c.b16 %v3201, %v3197
      %v3478 = vpack.c.b16 %v3202, %v3198
      %v3479 = vpack.c.b16 %v3207, %v3203
      %v3480 = vpack.c.b16 %v3208, %v3204
      %v3481 = vpack.c.b16 %v3209, %v3205
      %v3482 = vpack.c.b16 %v3210, %v3206
      %v3483 = vpack.c.b16 %v3215, %v3211
      %v3484 = vpack.c.b16 %v3216, %v3212
      %v3485 = vpack.c.b16 %v3217, %v3213
      %v3486 = vpack.c.b16 %v3218, %v3214
      %v3487 = vpack.c.b16 %v3223, %v3219
      %v3488 = vpack.c.b16 %v3224, %v3220
      %v3489 = vpack.c.b16 %v3225, %v3221
      %v3490 = vpack.c.b16 %v3226, %v3222
      %v3491 = vpack.c.b16 %v3231, %v3227
      %v3492 = vpack.c.b16 %v3232, %v3228
      %v3493 = vpack.c.b16 %v3233, %v3229
      %v3494 = vpack.c.b16 %v3234, %v3230
      %v3495 = vpack.c.b16 %v3239, %v3235
      %v3496 = vpack.c.b16 %v3240, %v3236
      %v3497 = vpack.c.b16 %v3241, %v3237
      %v3498 = vpack.c.b16 %v3242, %v3238
      %3755 = vmatpush.bf16.msra.mxu0 %v3271
      %3756 = vmatpush.bf16.msra.mxu0 %v3267
      %3757 = vmatpush.bf16.msra.mxu0 %v3263
      %3758 = vmatpush.bf16.msra.mxu0 %v3259
      %3759 = vmatpush.bf16.msra.mxu0 %v3255
      %3760 = vmatpush.bf16.msra.mxu0 %v3251
      %3761 = vmatpush.bf16.msra.mxu0 %v3247
      %3762 = vmatpush.bf16.msra.mxu0 %v3243
      %3763 = vmatmul.bf16.gmra.mxu0 %v750
      %v3764 = vpop.f32.mrf.mxu0
      %v3765 = vadd.f32 %v2471, %v3764
      %v3766 = vpop.f32.mrf.mxu0
      %3767 = vdwg.mxu0
      %3768 = vmatpush.bf16.msra.mxu0 %v3303
      %3769 = vmatpush.bf16.msra.mxu0 %v3299
      %3770 = vmatpush.bf16.msra.mxu0 %v3295
      %3771 = vmatpush.bf16.msra.mxu0 %v3291
      %3772 = vmatpush.bf16.msra.mxu0 %v3287
      %3773 = vmatpush.bf16.msra.mxu0 %v3283
      %3774 = vmatpush.bf16.msra.mxu0 %v3279
      %3775 = vmatpush.bf16.msra.mxu0 %v3275
      %3776 = vmatmul.bf16.gmra.mxu0 %v751
      %v3777 = vpop.f32.mrf.mxu0
      %v3778 = vadd.f32 %v3765, %v3777
      %v3779 = vpop.f32.mrf.mxu0
      %3780 = vdwg.mxu0
      %3781 = vmatpush.bf16.msra.mxu0 %v3335
      %3782 = vmatpush.bf16.msra.mxu0 %v3331
      %3783 = vmatpush.bf16.msra.mxu0 %v3327
      %3784 = vmatpush.bf16.msra.mxu0 %v3323
      %3785 = vmatpush.bf16.msra.mxu0 %v3319
      %3786 = vmatpush.bf16.msra.mxu0 %v3315
      %3787 = vmatpush.bf16.msra.mxu0 %v3311
      %3788 = vmatpush.bf16.msra.mxu0 %v3307
      %3789 = vmatmul.bf16.gmra.mxu0 %v752
      %v3790 = vpop.f32.mrf.mxu0
      %v3791 = vadd.f32 %v3778, %v3790
      %v3792 = vpop.f32.mrf.mxu0
      %3793 = vdwg.mxu0
      %3794 = vmatpush.bf16.msra.mxu0 %v3367
      %3795 = vmatpush.bf16.msra.mxu0 %v3363
      %3796 = vmatpush.bf16.msra.mxu0 %v3359
      %3797 = vmatpush.bf16.msra.mxu0 %v3355
      %3798 = vmatpush.bf16.msra.mxu0 %v3351
      %3799 = vmatpush.bf16.msra.mxu0 %v3347
      %3800 = vmatpush.bf16.msra.mxu0 %v3343
      %3801 = vmatpush.bf16.msra.mxu0 %v3339
      %3802 = vmatmul.bf16.gmra.mxu0 %v753
      %v3803 = vpop.f32.mrf.mxu0
      %v3804 = vadd.f32 %v3791, %v3803
      %v3805 = vpop.f32.mrf.mxu0
      %3806 = vdwg.mxu0
      %3807 = vmatpush.bf16.msra.mxu0 %v3399
      %3808 = vmatpush.bf16.msra.mxu0 %v3395
      %3809 = vmatpush.bf16.msra.mxu0 %v3391
      %3810 = vmatpush.bf16.msra.mxu0 %v3387
      %3811 = vmatpush.bf16.msra.mxu0 %v3383
      %3812 = vmatpush.bf16.msra.mxu0 %v3379
      %3813 = vmatpush.bf16.msra.mxu0 %v3375
      %3814 = vmatpush.bf16.msra.mxu0 %v3371
      %3815 = vmatmul.bf16.gmra.mxu0 %v754
      %v3816 = vpop.f32.mrf.mxu0
      %v3817 = vadd.f32 %v3804, %v3816
      %v3818 = vpop.f32.mrf.mxu0
      %3819 = vdwg.mxu0
      %3820 = vmatpush.bf16.msra.mxu0 %v3431
      %3821 = vmatpush.bf16.msra.mxu0 %v3427
      %3822 = vmatpush.bf16.msra.mxu0 %v3423
      %3823 = vmatpush.bf16.msra.mxu0 %v3419
      %3824 = vmatpush.bf16.msra.mxu0 %v3415
      %3825 = vmatpush.bf16.msra.mxu0 %v3411
      %3826 = vmatpush.bf16.msra.mxu0 %v3407
      %3827 = vmatpush.bf16.msra.mxu0 %v3403
      %3828 = vmatmul.bf16.gmra.mxu0 %v755
      %v3829 = vpop.f32.mrf.mxu0
      %v3830 = vadd.f32 %v3817, %v3829
      %v3831 = vpop.f32.mrf.mxu0
      %3832 = vdwg.mxu0
      %3833 = vmatpush.bf16.msra.mxu0 %v3463
      %3834 = vmatpush.bf16.msra.mxu0 %v3459
      %3835 = vmatpush.bf16.msra.mxu0 %v3455
      %3836 = vmatpush.bf16.msra.mxu0 %v3451
      %3837 = vmatpush.bf16.msra.mxu0 %v3447
      %3838 = vmatpush.bf16.msra.mxu0 %v3443
      %3839 = vmatpush.bf16.msra.mxu0 %v3439
      %3840 = vmatpush.bf16.msra.mxu0 %v3435
      %3841 = vmatmul.bf16.gmra.mxu0 %v756
      %v3842 = vpop.f32.mrf.mxu0
      %v3843 = vadd.f32 %v3830, %v3842
      %v3844 = vpop.f32.mrf.mxu0
      %3845 = vdwg.mxu0
      %3846 = vmatpush.bf16.msra.mxu0 %v3495
      %3847 = vmatpush.bf16.msra.mxu0 %v3491
      %3848 = vmatpush.bf16.msra.mxu0 %v3487
      %3849 = vmatpush.bf16.msra.mxu0 %v3483
      %3850 = vmatpush.bf16.msra.mxu0 %v3479
      %3851 = vmatpush.bf16.msra.mxu0 %v3475
      %3852 = vmatpush.bf16.msra.mxu0 %v3471
      %3853 = vmatpush.bf16.msra.mxu0 %v3467
      %3854 = vmatmul.bf16.gmra.mxu0 %v757
      %v3855 = vpop.f32.mrf.mxu0
      %v3856 = vadd.f32 %v3843, %v3855
      %v3857 = vpop.f32.mrf.mxu0
      %3858 = vdwg.mxu0
      %3859 = vmatpush.bf16.msra.mxu0 %v3272
      %3860 = vmatpush.bf16.msra.mxu0 %v3268
      %3861 = vmatpush.bf16.msra.mxu0 %v3264
      %3862 = vmatpush.bf16.msra.mxu0 %v3260
      %3863 = vmatpush.bf16.msra.mxu0 %v3256
      %3864 = vmatpush.bf16.msra.mxu0 %v3252
      %3865 = vmatpush.bf16.msra.mxu0 %v3248
      %3866 = vmatpush.bf16.msra.mxu0 %v3244
      %3867 = vmatmul.bf16.gmra.mxu0 %v750
      %v3868 = vpop.f32.mrf.mxu0
      %v3869 = vadd.f32 %v2472, %v3868
      %v3870 = vpop.f32.mrf.mxu0
      %3871 = vdwg.mxu0
      %3872 = vmatpush.bf16.msra.mxu0 %v3304
      %3873 = vmatpush.bf16.msra.mxu0 %v3300
      %3874 = vmatpush.bf16.msra.mxu0 %v3296
      %3875 = vmatpush.bf16.msra.mxu0 %v3292
      %3876 = vmatpush.bf16.msra.mxu0 %v3288
      %3877 = vmatpush.bf16.msra.mxu0 %v3284
      %3878 = vmatpush.bf16.msra.mxu0 %v3280
      %3879 = vmatpush.bf16.msra.mxu0 %v3276
      %3880 = vmatmul.bf16.gmra.mxu0 %v751
      %v3881 = vpop.f32.mrf.mxu0
      %v3882 = vadd.f32 %v3869, %v3881
      %v3883 = vpop.f32.mrf.mxu0
      %3884 = vdwg.mxu0
      %3885 = vmatpush.bf16.msra.mxu0 %v3336
      %3886 = vmatpush.bf16.msra.mxu0 %v3332
      %3887 = vmatpush.bf16.msra.mxu0 %v3328
      %3888 = vmatpush.bf16.msra.mxu0 %v3324
      %3889 = vmatpush.bf16.msra.mxu0 %v3320
      %3890 = vmatpush.bf16.msra.mxu0 %v3316
      %3891 = vmatpush.bf16.msra.mxu0 %v3312
      %3892 = vmatpush.bf16.msra.mxu0 %v3308
      %3893 = vmatmul.bf16.gmra.mxu0 %v752
      %v3894 = vpop.f32.mrf.mxu0
      %v3895 = vadd.f32 %v3882, %v3894
      %v3896 = vpop.f32.mrf.mxu0
      %3897 = vdwg.mxu0
      %3898 = vmatpush.bf16.msra.mxu0 %v3368
      %3899 = vmatpush.bf16.msra.mxu0 %v3364
      %3900 = vmatpush.bf16.msra.mxu0 %v3360
      %3901 = vmatpush.bf16.msra.mxu0 %v3356
      %3902 = vmatpush.bf16.msra.mxu0 %v3352
      %3903 = vmatpush.bf16.msra.mxu0 %v3348
      %3904 = vmatpush.bf16.msra.mxu0 %v3344
      %3905 = vmatpush.bf16.msra.mxu0 %v3340
      %3906 = vmatmul.bf16.gmra.mxu0 %v753
      %v3907 = vpop.f32.mrf.mxu0
      %v3908 = vadd.f32 %v3895, %v3907
      %v3909 = vpop.f32.mrf.mxu0
      %3910 = vdwg.mxu0
      %3911 = vmatpush.bf16.msra.mxu0 %v3400
      %3912 = vmatpush.bf16.msra.mxu0 %v3396
      %3913 = vmatpush.bf16.msra.mxu0 %v3392
      %3914 = vmatpush.bf16.msra.mxu0 %v3388
      %3915 = vmatpush.bf16.msra.mxu0 %v3384
      %3916 = vmatpush.bf16.msra.mxu0 %v3380
      %3917 = vmatpush.bf16.msra.mxu0 %v3376
      %3918 = vmatpush.bf16.msra.mxu0 %v3372
      %3919 = vmatmul.bf16.gmra.mxu0 %v754
      %v3920 = vpop.f32.mrf.mxu0
      %v3921 = vadd.f32 %v3908, %v3920
      %v3922 = vpop.f32.mrf.mxu0
      %3923 = vdwg.mxu0
      %3924 = vmatpush.bf16.msra.mxu0 %v3432
      %3925 = vmatpush.bf16.msra.mxu0 %v3428
      %3926 = vmatpush.bf16.msra.mxu0 %v3424
      %3927 = vmatpush.bf16.msra.mxu0 %v3420
      %3928 = vmatpush.bf16.msra.mxu0 %v3416
      %3929 = vmatpush.bf16.msra.mxu0 %v3412
      %3930 = vmatpush.bf16.msra.mxu0 %v3408
      %3931 = vmatpush.bf16.msra.mxu0 %v3404
      %3932 = vmatmul.bf16.gmra.mxu0 %v755
      %v3933 = vpop.f32.mrf.mxu0
      %v3934 = vadd.f32 %v3921, %v3933
      %v3935 = vpop.f32.mrf.mxu0
      %3936 = vdwg.mxu0
      %3937 = vmatpush.bf16.msra.mxu0 %v3464
      %3938 = vmatpush.bf16.msra.mxu0 %v3460
      %3939 = vmatpush.bf16.msra.mxu0 %v3456
      %3940 = vmatpush.bf16.msra.mxu0 %v3452
      %3941 = vmatpush.bf16.msra.mxu0 %v3448
      %3942 = vmatpush.bf16.msra.mxu0 %v3444
      %3943 = vmatpush.bf16.msra.mxu0 %v3440
      %3944 = vmatpush.bf16.msra.mxu0 %v3436
      %3945 = vmatmul.bf16.gmra.mxu0 %v756
      %v3946 = vpop.f32.mrf.mxu0
      %v3947 = vadd.f32 %v3934, %v3946
      %v3948 = vpop.f32.mrf.mxu0
      %3949 = vdwg.mxu0
      %3950 = vmatpush.bf16.msra.mxu0 %v3496
      %3951 = vmatpush.bf16.msra.mxu0 %v3492
      %3952 = vmatpush.bf16.msra.mxu0 %v3488
      %3953 = vmatpush.bf16.msra.mxu0 %v3484
      %3954 = vmatpush.bf16.msra.mxu0 %v3480
      %3955 = vmatpush.bf16.msra.mxu0 %v3476
      %3956 = vmatpush.bf16.msra.mxu0 %v3472
      %3957 = vmatpush.bf16.msra.mxu0 %v3468
      %3958 = vmatmul.bf16.gmra.mxu0 %v757
      %v3959 = vpop.f32.mrf.mxu0
      %v3960 = vadd.f32 %v3947, %v3959
      %v3961 = vpop.f32.mrf.mxu0
      %3962 = vdwg.mxu0
      %3963 = vmatpush.bf16.msra.mxu0 %v3273
      %3964 = vmatpush.bf16.msra.mxu0 %v3269
      %3965 = vmatpush.bf16.msra.mxu0 %v3265
      %3966 = vmatpush.bf16.msra.mxu0 %v3261
      %3967 = vmatpush.bf16.msra.mxu0 %v3257
      %3968 = vmatpush.bf16.msra.mxu0 %v3253
      %3969 = vmatpush.bf16.msra.mxu0 %v3249
      %3970 = vmatpush.bf16.msra.mxu0 %v3245
      %3971 = vmatmul.bf16.gmra.mxu0 %v750
      %v3972 = vpop.f32.mrf.mxu0
      %v3973 = vadd.f32 %v2473, %v3972
      %v3974 = vpop.f32.mrf.mxu0
      %3975 = vdwg.mxu0
      %3976 = vmatpush.bf16.msra.mxu0 %v3305
      %3977 = vmatpush.bf16.msra.mxu0 %v3301
      %3978 = vmatpush.bf16.msra.mxu0 %v3297
      %3979 = vmatpush.bf16.msra.mxu0 %v3293
      %3980 = vmatpush.bf16.msra.mxu0 %v3289
      %3981 = vmatpush.bf16.msra.mxu0 %v3285
      %3982 = vmatpush.bf16.msra.mxu0 %v3281
      %3983 = vmatpush.bf16.msra.mxu0 %v3277
      %3984 = vmatmul.bf16.gmra.mxu0 %v751
      %v3985 = vpop.f32.mrf.mxu0
      %v3986 = vadd.f32 %v3973, %v3985
      %v3987 = vpop.f32.mrf.mxu0
      %3988 = vdwg.mxu0
      %3989 = vmatpush.bf16.msra.mxu0 %v3337
      %3990 = vmatpush.bf16.msra.mxu0 %v3333
      %3991 = vmatpush.bf16.msra.mxu0 %v3329
      %3992 = vmatpush.bf16.msra.mxu0 %v3325
      %3993 = vmatpush.bf16.msra.mxu0 %v3321
      %3994 = vmatpush.bf16.msra.mxu0 %v3317
      %3995 = vmatpush.bf16.msra.mxu0 %v3313
      %3996 = vmatpush.bf16.msra.mxu0 %v3309
      %3997 = vmatmul.bf16.gmra.mxu0 %v752
      %v3998 = vpop.f32.mrf.mxu0
      %v3999 = vadd.f32 %v3986, %v3998
      %v4000 = vpop.f32.mrf.mxu0
      %4001 = vdwg.mxu0
      %4002 = vmatpush.bf16.msra.mxu0 %v3369
      %4003 = vmatpush.bf16.msra.mxu0 %v3365
      %4004 = vmatpush.bf16.msra.mxu0 %v3361
      %4005 = vmatpush.bf16.msra.mxu0 %v3357
      %4006 = vmatpush.bf16.msra.mxu0 %v3353
      %4007 = vmatpush.bf16.msra.mxu0 %v3349
      %4008 = vmatpush.bf16.msra.mxu0 %v3345
      %4009 = vmatpush.bf16.msra.mxu0 %v3341
      %4010 = vmatmul.bf16.gmra.mxu0 %v753
      %v4011 = vpop.f32.mrf.mxu0
      %v4012 = vadd.f32 %v3999, %v4011
      %v4013 = vpop.f32.mrf.mxu0
      %4014 = vdwg.mxu0
      %4015 = vmatpush.bf16.msra.mxu0 %v3401
      %4016 = vmatpush.bf16.msra.mxu0 %v3397
      %4017 = vmatpush.bf16.msra.mxu0 %v3393
      %4018 = vmatpush.bf16.msra.mxu0 %v3389
      %4019 = vmatpush.bf16.msra.mxu0 %v3385
      %4020 = vmatpush.bf16.msra.mxu0 %v3381
      %4021 = vmatpush.bf16.msra.mxu0 %v3377
      %4022 = vmatpush.bf16.msra.mxu0 %v3373
      %4023 = vmatmul.bf16.gmra.mxu0 %v754
      %v4024 = vpop.f32.mrf.mxu0
      %v4025 = vadd.f32 %v4012, %v4024
      %v4026 = vpop.f32.mrf.mxu0
      %4027 = vdwg.mxu0
      %4028 = vmatpush.bf16.msra.mxu0 %v3433
      %4029 = vmatpush.bf16.msra.mxu0 %v3429
      %4030 = vmatpush.bf16.msra.mxu0 %v3425
      %4031 = vmatpush.bf16.msra.mxu0 %v3421
      %4032 = vmatpush.bf16.msra.mxu0 %v3417
      %4033 = vmatpush.bf16.msra.mxu0 %v3413
      %4034 = vmatpush.bf16.msra.mxu0 %v3409
      %4035 = vmatpush.bf16.msra.mxu0 %v3405
      %4036 = vmatmul.bf16.gmra.mxu0 %v755
      %v4037 = vpop.f32.mrf.mxu0
      %v4038 = vadd.f32 %v4025, %v4037
      %v4039 = vpop.f32.mrf.mxu0
      %4040 = vdwg.mxu0
      %4041 = vmatpush.bf16.msra.mxu0 %v3465
      %4042 = vmatpush.bf16.msra.mxu0 %v3461
      %4043 = vmatpush.bf16.msra.mxu0 %v3457
      %4044 = vmatpush.bf16.msra.mxu0 %v3453
      %4045 = vmatpush.bf16.msra.mxu0 %v3449
      %4046 = vmatpush.bf16.msra.mxu0 %v3445
      %4047 = vmatpush.bf16.msra.mxu0 %v3441
      %4048 = vmatpush.bf16.msra.mxu0 %v3437
      %4049 = vmatmul.bf16.gmra.mxu0 %v756
      %v4050 = vpop.f32.mrf.mxu0
      %v4051 = vadd.f32 %v4038, %v4050
      %v4052 = vpop.f32.mrf.mxu0
      %4053 = vdwg.mxu0
      %4054 = vmatpush.bf16.msra.mxu0 %v3497
      %4055 = vmatpush.bf16.msra.mxu0 %v3493
      %4056 = vmatpush.bf16.msra.mxu0 %v3489
      %4057 = vmatpush.bf16.msra.mxu0 %v3485
      %4058 = vmatpush.bf16.msra.mxu0 %v3481
      %4059 = vmatpush.bf16.msra.mxu0 %v3477
      %4060 = vmatpush.bf16.msra.mxu0 %v3473
      %4061 = vmatpush.bf16.msra.mxu0 %v3469
      %4062 = vmatmul.bf16.gmra.mxu0 %v757
      %v4063 = vpop.f32.mrf.mxu0
      %v4064 = vadd.f32 %v4051, %v4063
      %v4065 = vpop.f32.mrf.mxu0
      %4066 = vdwg.mxu0
      %4067 = vmatpush.bf16.msra.mxu0 %v3274
      %4068 = vmatpush.bf16.msra.mxu0 %v3270
      %4069 = vmatpush.bf16.msra.mxu0 %v3266
      %4070 = vmatpush.bf16.msra.mxu0 %v3262
      %4071 = vmatpush.bf16.msra.mxu0 %v3258
      %4072 = vmatpush.bf16.msra.mxu0 %v3254
      %4073 = vmatpush.bf16.msra.mxu0 %v3250
      %4074 = vmatpush.bf16.msra.mxu0 %v3246
      %4075 = vmatmul.bf16.gmra.mxu0 %v750
      %v4076 = vpop.f32.mrf.mxu0
      %v4077 = vadd.f32 %v2474, %v4076
      %v4078 = vpop.f32.mrf.mxu0
      %4079 = vdwg.mxu0
      %4080 = vmatpush.bf16.msra.mxu0 %v3306
      %4081 = vmatpush.bf16.msra.mxu0 %v3302
      %4082 = vmatpush.bf16.msra.mxu0 %v3298
      %4083 = vmatpush.bf16.msra.mxu0 %v3294
      %4084 = vmatpush.bf16.msra.mxu0 %v3290
      %4085 = vmatpush.bf16.msra.mxu0 %v3286
      %4086 = vmatpush.bf16.msra.mxu0 %v3282
      %4087 = vmatpush.bf16.msra.mxu0 %v3278
      %4088 = vmatmul.bf16.gmra.mxu0 %v751
      %v4089 = vpop.f32.mrf.mxu0
      %v4090 = vadd.f32 %v4077, %v4089
      %v4091 = vpop.f32.mrf.mxu0
      %4092 = vdwg.mxu0
      %4093 = vmatpush.bf16.msra.mxu0 %v3338
      %4094 = vmatpush.bf16.msra.mxu0 %v3334
      %4095 = vmatpush.bf16.msra.mxu0 %v3330
      %4096 = vmatpush.bf16.msra.mxu0 %v3326
      %4097 = vmatpush.bf16.msra.mxu0 %v3322
      %4098 = vmatpush.bf16.msra.mxu0 %v3318
      %4099 = vmatpush.bf16.msra.mxu0 %v3314
      %4100 = vmatpush.bf16.msra.mxu0 %v3310
      %4101 = vmatmul.bf16.gmra.mxu0 %v752
      %v4102 = vpop.f32.mrf.mxu0
      %v4103 = vadd.f32 %v4090, %v4102
      %v4104 = vpop.f32.mrf.mxu0
      %4105 = vdwg.mxu0
      %4106 = vmatpush.bf16.msra.mxu0 %v3370
      %4107 = vmatpush.bf16.msra.mxu0 %v3366
      %4108 = vmatpush.bf16.msra.mxu0 %v3362
      %4109 = vmatpush.bf16.msra.mxu0 %v3358
      %4110 = vmatpush.bf16.msra.mxu0 %v3354
      %4111 = vmatpush.bf16.msra.mxu0 %v3350
      %4112 = vmatpush.bf16.msra.mxu0 %v3346
      %4113 = vmatpush.bf16.msra.mxu0 %v3342
      %4114 = vmatmul.bf16.gmra.mxu0 %v753
      %v4115 = vpop.f32.mrf.mxu0
      %v4116 = vadd.f32 %v4103, %v4115
      %v4117 = vpop.f32.mrf.mxu0
      %4118 = vdwg.mxu0
      %4119 = vmatpush.bf16.msra.mxu0 %v3402
      %4120 = vmatpush.bf16.msra.mxu0 %v3398
      %4121 = vmatpush.bf16.msra.mxu0 %v3394
      %4122 = vmatpush.bf16.msra.mxu0 %v3390
      %4123 = vmatpush.bf16.msra.mxu0 %v3386
      %4124 = vmatpush.bf16.msra.mxu0 %v3382
      %4125 = vmatpush.bf16.msra.mxu0 %v3378
      %4126 = vmatpush.bf16.msra.mxu0 %v3374
      %4127 = vmatmul.bf16.gmra.mxu0 %v754
      %v4128 = vpop.f32.mrf.mxu0
      %v4129 = vadd.f32 %v4116, %v4128
      %v4130 = vpop.f32.mrf.mxu0
      %4131 = vdwg.mxu0
      %4132 = vmatpush.bf16.msra.mxu0 %v3434
      %4133 = vmatpush.bf16.msra.mxu0 %v3430
      %4134 = vmatpush.bf16.msra.mxu0 %v3426
      %4135 = vmatpush.bf16.msra.mxu0 %v3422
      %4136 = vmatpush.bf16.msra.mxu0 %v3418
      %4137 = vmatpush.bf16.msra.mxu0 %v3414
      %4138 = vmatpush.bf16.msra.mxu0 %v3410
      %4139 = vmatpush.bf16.msra.mxu0 %v3406
      %4140 = vmatmul.bf16.gmra.mxu0 %v755
      %v4141 = vpop.f32.mrf.mxu0
      %v4142 = vadd.f32 %v4129, %v4141
      %v4143 = vpop.f32.mrf.mxu0
      %4144 = vdwg.mxu0
      %4145 = vmatpush.bf16.msra.mxu0 %v3466
      %4146 = vmatpush.bf16.msra.mxu0 %v3462
      %4147 = vmatpush.bf16.msra.mxu0 %v3458
      %4148 = vmatpush.bf16.msra.mxu0 %v3454
      %4149 = vmatpush.bf16.msra.mxu0 %v3450
      %4150 = vmatpush.bf16.msra.mxu0 %v3446
      %4151 = vmatpush.bf16.msra.mxu0 %v3442
      %4152 = vmatpush.bf16.msra.mxu0 %v3438
      %4153 = vmatmul.bf16.gmra.mxu0 %v756
      %v4154 = vpop.f32.mrf.mxu0
      %v4155 = vadd.f32 %v4142, %v4154
      %v4156 = vpop.f32.mrf.mxu0
      %4157 = vdwg.mxu0
      %4158 = vmatpush.bf16.msra.mxu0 %v3498
      %4159 = vmatpush.bf16.msra.mxu0 %v3494
      %4160 = vmatpush.bf16.msra.mxu0 %v3490
      %4161 = vmatpush.bf16.msra.mxu0 %v3486
      %4162 = vmatpush.bf16.msra.mxu0 %v3482
      %4163 = vmatpush.bf16.msra.mxu0 %v3478
      %4164 = vmatpush.bf16.msra.mxu0 %v3474
      %4165 = vmatpush.bf16.msra.mxu0 %v3470
      %4166 = vmatmul.bf16.gmra.mxu0 %v757
      %v4167 = vpop.f32.mrf.mxu0
      %v4168 = vadd.f32 %v4155, %v4167
      %v4169 = vpop.f32.mrf.mxu0
      %4170 = vdwg.mxu0
      %s4171 = scalar_lea.vmem %s1, 2048
      %v4172 = vld [vmem:[%s4171] sm:$0xff]
      %v4173 = vld [vmem:[%s4171 + $0x8] sm:$0xff]
      %v4174 = vld [vmem:[%s4171 + $0x10] sm:$0xff]
      %v4175 = vld [vmem:[%s4171 + $0x18] sm:$0xff]
      %v4176 = vld [vmem:[%s4171 + $0x20] sm:$0xff]
      %v4177 = vld [vmem:[%s4171 + $0x28] sm:$0xff]
      %v4178 = vld [vmem:[%s4171 + $0x30] sm:$0xff]
      %v4179 = vld [vmem:[%s4171 + $0x38] sm:$0xff]
      %v4180 = vld [vmem:[%s4171 + $0x40] sm:$0xff]
      %v4181 = vld [vmem:[%s4171 + $0x48] sm:$0xff]
      %v4182 = vld [vmem:[%s4171 + $0x50] sm:$0xff]
      %v4183 = vld [vmem:[%s4171 + $0x58] sm:$0xff]
      %v4184 = vld [vmem:[%s4171 + $0x60] sm:$0xff]
      %v4185 = vld [vmem:[%s4171 + $0x68] sm:$0xff]
      %v4186 = vld [vmem:[%s4171 + $0x70] sm:$0xff]
      %v4187 = vld [vmem:[%s4171 + $0x78] sm:$0xff]
      %v4188 = vld [vmem:[%s4171 + $0x80] sm:$0xff]
      %v4189 = vld [vmem:[%s4171 + $0x88] sm:$0xff]
      %v4190 = vld [vmem:[%s4171 + $0x90] sm:$0xff]
      %v4191 = vld [vmem:[%s4171 + $0x98] sm:$0xff]
      %v4192 = vld [vmem:[%s4171 + $0xa0] sm:$0xff]
      %v4193 = vld [vmem:[%s4171 + $0xa8] sm:$0xff]
      %v4194 = vld [vmem:[%s4171 + $0xb0] sm:$0xff]
      %v4195 = vld [vmem:[%s4171 + $0xb8] sm:$0xff]
      %v4196 = vld [vmem:[%s4171 + $0xc0] sm:$0xff]
      %v4197 = vld [vmem:[%s4171 + $0xc8] sm:$0xff]
      %v4198 = vld [vmem:[%s4171 + $0xd0] sm:$0xff]
      %v4199 = vld [vmem:[%s4171 + $0xd8] sm:$0xff]
      %v4200 = vld [vmem:[%s4171 + $0xe0] sm:$0xff]
      %v4201 = vld [vmem:[%s4171 + $0xe8] sm:$0xff]
      %v4202 = vld [vmem:[%s4171 + $0xf0] sm:$0xff]
      %v4203 = vld [vmem:[%s4171 + $0xf8] sm:$0xff]
      %v4204 = vld [vmem:[%s4171 + $0x100] sm:$0xff]
      %v4205 = vld [vmem:[%s4171 + $0x108] sm:$0xff]
      %v4206 = vld [vmem:[%s4171 + $0x110] sm:$0xff]
      %v4207 = vld [vmem:[%s4171 + $0x118] sm:$0xff]
      %v4208 = vld [vmem:[%s4171 + $0x120] sm:$0xff]
      %v4209 = vld [vmem:[%s4171 + $0x128] sm:$0xff]
      %v4210 = vld [vmem:[%s4171 + $0x130] sm:$0xff]
      %v4211 = vld [vmem:[%s4171 + $0x138] sm:$0xff]
      %v4212 = vld [vmem:[%s4171 + $0x140] sm:$0xff]
      %v4213 = vld [vmem:[%s4171 + $0x148] sm:$0xff]
      %v4214 = vld [vmem:[%s4171 + $0x150] sm:$0xff]
      %v4215 = vld [vmem:[%s4171 + $0x158] sm:$0xff]
      %v4216 = vld [vmem:[%s4171 + $0x160] sm:$0xff]
      %v4217 = vld [vmem:[%s4171 + $0x168] sm:$0xff]
      %v4218 = vld [vmem:[%s4171 + $0x170] sm:$0xff]
      %v4219 = vld [vmem:[%s4171 + $0x178] sm:$0xff]
      %v4220 = vld [vmem:[%s4171 + $0x180] sm:$0xff]
      %v4221 = vld [vmem:[%s4171 + $0x188] sm:$0xff]
      %v4222 = vld [vmem:[%s4171 + $0x190] sm:$0xff]
      %v4223 = vld [vmem:[%s4171 + $0x198] sm:$0xff]
      %v4224 = vld [vmem:[%s4171 + $0x1a0] sm:$0xff]
      %v4225 = vld [vmem:[%s4171 + $0x1a8] sm:$0xff]
      %v4226 = vld [vmem:[%s4171 + $0x1b0] sm:$0xff]
      %v4227 = vld [vmem:[%s4171 + $0x1b8] sm:$0xff]
      %v4228 = vld [vmem:[%s4171 + $0x1c0] sm:$0xff]
      %v4229 = vld [vmem:[%s4171 + $0x1c8] sm:$0xff]
      %v4230 = vld [vmem:[%s4171 + $0x1d0] sm:$0xff]
      %v4231 = vld [vmem:[%s4171 + $0x1d8] sm:$0xff]
      %v4232 = vld [vmem:[%s4171 + $0x1e0] sm:$0xff]
      %v4233 = vld [vmem:[%s4171 + $0x1e8] sm:$0xff]
      %v4234 = vld [vmem:[%s4171 + $0x1f0] sm:$0xff]
      %v4235 = vld [vmem:[%s4171 + $0x1f8] sm:$0xff]
      %v4236 = vld [vmem:[%s4171 + $0x200] sm:$0xff]
      %v4237 = vld [vmem:[%s4171 + $0x208] sm:$0xff]
      %v4238 = vld [vmem:[%s4171 + $0x210] sm:$0xff]
      %v4239 = vld [vmem:[%s4171 + $0x218] sm:$0xff]
      %v4240 = vld [vmem:[%s4171 + $0x220] sm:$0xff]
      %v4241 = vld [vmem:[%s4171 + $0x228] sm:$0xff]
      %v4242 = vld [vmem:[%s4171 + $0x230] sm:$0xff]
      %v4243 = vld [vmem:[%s4171 + $0x238] sm:$0xff]
      %v4244 = vld [vmem:[%s4171 + $0x240] sm:$0xff]
      %v4245 = vld [vmem:[%s4171 + $0x248] sm:$0xff]
      %v4246 = vld [vmem:[%s4171 + $0x250] sm:$0xff]
      %v4247 = vld [vmem:[%s4171 + $0x258] sm:$0xff]
      %v4248 = vld [vmem:[%s4171 + $0x260] sm:$0xff]
      %v4249 = vld [vmem:[%s4171 + $0x268] sm:$0xff]
      %v4250 = vld [vmem:[%s4171 + $0x270] sm:$0xff]
      %v4251 = vld [vmem:[%s4171 + $0x278] sm:$0xff]
      %v4252 = vld [vmem:[%s4171 + $0x280] sm:$0xff]
      %v4253 = vld [vmem:[%s4171 + $0x288] sm:$0xff]
      %v4254 = vld [vmem:[%s4171 + $0x290] sm:$0xff]
      %v4255 = vld [vmem:[%s4171 + $0x298] sm:$0xff]
      %v4256 = vld [vmem:[%s4171 + $0x2a0] sm:$0xff]
      %v4257 = vld [vmem:[%s4171 + $0x2a8] sm:$0xff]
      %v4258 = vld [vmem:[%s4171 + $0x2b0] sm:$0xff]
      %v4259 = vld [vmem:[%s4171 + $0x2b8] sm:$0xff]
      %v4260 = vld [vmem:[%s4171 + $0x2c0] sm:$0xff]
      %v4261 = vld [vmem:[%s4171 + $0x2c8] sm:$0xff]
      %v4262 = vld [vmem:[%s4171 + $0x2d0] sm:$0xff]
      %v4263 = vld [vmem:[%s4171 + $0x2d8] sm:$0xff]
      %v4264 = vld [vmem:[%s4171 + $0x2e0] sm:$0xff]
      %v4265 = vld [vmem:[%s4171 + $0x2e8] sm:$0xff]
      %v4266 = vld [vmem:[%s4171 + $0x2f0] sm:$0xff]
      %v4267 = vld [vmem:[%s4171 + $0x2f8] sm:$0xff]
      %v4268 = vld [vmem:[%s4171 + $0x300] sm:$0xff]
      %v4269 = vld [vmem:[%s4171 + $0x308] sm:$0xff]
      %v4270 = vld [vmem:[%s4171 + $0x310] sm:$0xff]
      %v4271 = vld [vmem:[%s4171 + $0x318] sm:$0xff]
      %v4272 = vld [vmem:[%s4171 + $0x320] sm:$0xff]
      %v4273 = vld [vmem:[%s4171 + $0x328] sm:$0xff]
      %v4274 = vld [vmem:[%s4171 + $0x330] sm:$0xff]
      %v4275 = vld [vmem:[%s4171 + $0x338] sm:$0xff]
      %v4276 = vld [vmem:[%s4171 + $0x340] sm:$0xff]
      %v4277 = vld [vmem:[%s4171 + $0x348] sm:$0xff]
      %v4278 = vld [vmem:[%s4171 + $0x350] sm:$0xff]
      %v4279 = vld [vmem:[%s4171 + $0x358] sm:$0xff]
      %v4280 = vld [vmem:[%s4171 + $0x360] sm:$0xff]
      %v4281 = vld [vmem:[%s4171 + $0x368] sm:$0xff]
      %v4282 = vld [vmem:[%s4171 + $0x370] sm:$0xff]
      %v4283 = vld [vmem:[%s4171 + $0x378] sm:$0xff]
      %v4284 = vld [vmem:[%s4171 + $0x380] sm:$0xff]
      %v4285 = vld [vmem:[%s4171 + $0x388] sm:$0xff]
      %v4286 = vld [vmem:[%s4171 + $0x390] sm:$0xff]
      %v4287 = vld [vmem:[%s4171 + $0x398] sm:$0xff]
      %v4288 = vld [vmem:[%s4171 + $0x3a0] sm:$0xff]
      %v4289 = vld [vmem:[%s4171 + $0x3a8] sm:$0xff]
      %v4290 = vld [vmem:[%s4171 + $0x3b0] sm:$0xff]
      %v4291 = vld [vmem:[%s4171 + $0x3b8] sm:$0xff]
      %v4292 = vld [vmem:[%s4171 + $0x3c0] sm:$0xff]
      %v4293 = vld [vmem:[%s4171 + $0x3c8] sm:$0xff]
      %v4294 = vld [vmem:[%s4171 + $0x3d0] sm:$0xff]
      %v4295 = vld [vmem:[%s4171 + $0x3d8] sm:$0xff]
      %v4296 = vld [vmem:[%s4171 + $0x3e0] sm:$0xff]
      %v4297 = vld [vmem:[%s4171 + $0x3e8] sm:$0xff]
      %v4298 = vld [vmem:[%s4171 + $0x3f0] sm:$0xff]
      %v4299 = vld [vmem:[%s4171 + $0x3f8] sm:$0xff]
      %v4300 = vld [vmem:[%s4171 + $0x400] sm:$0xff]
      %v4301 = vld [vmem:[%s4171 + $0x408] sm:$0xff]
      %v4302 = vld [vmem:[%s4171 + $0x410] sm:$0xff]
      %v4303 = vld [vmem:[%s4171 + $0x418] sm:$0xff]
      %v4304 = vld [vmem:[%s4171 + $0x420] sm:$0xff]
      %v4305 = vld [vmem:[%s4171 + $0x428] sm:$0xff]
      %v4306 = vld [vmem:[%s4171 + $0x430] sm:$0xff]
      %v4307 = vld [vmem:[%s4171 + $0x438] sm:$0xff]
      %v4308 = vld [vmem:[%s4171 + $0x440] sm:$0xff]
      %v4309 = vld [vmem:[%s4171 + $0x448] sm:$0xff]
      %v4310 = vld [vmem:[%s4171 + $0x450] sm:$0xff]
      %v4311 = vld [vmem:[%s4171 + $0x458] sm:$0xff]
      %v4312 = vld [vmem:[%s4171 + $0x460] sm:$0xff]
      %v4313 = vld [vmem:[%s4171 + $0x468] sm:$0xff]
      %v4314 = vld [vmem:[%s4171 + $0x470] sm:$0xff]
      %v4315 = vld [vmem:[%s4171 + $0x478] sm:$0xff]
      %v4316 = vld [vmem:[%s4171 + $0x480] sm:$0xff]
      %v4317 = vld [vmem:[%s4171 + $0x488] sm:$0xff]
      %v4318 = vld [vmem:[%s4171 + $0x490] sm:$0xff]
      %v4319 = vld [vmem:[%s4171 + $0x498] sm:$0xff]
      %v4320 = vld [vmem:[%s4171 + $0x4a0] sm:$0xff]
      %v4321 = vld [vmem:[%s4171 + $0x4a8] sm:$0xff]
      %v4322 = vld [vmem:[%s4171 + $0x4b0] sm:$0xff]
      %v4323 = vld [vmem:[%s4171 + $0x4b8] sm:$0xff]
      %v4324 = vld [vmem:[%s4171 + $0x4c0] sm:$0xff]
      %v4325 = vld [vmem:[%s4171 + $0x4c8] sm:$0xff]
      %v4326 = vld [vmem:[%s4171 + $0x4d0] sm:$0xff]
      %v4327 = vld [vmem:[%s4171 + $0x4d8] sm:$0xff]
      %v4328 = vld [vmem:[%s4171 + $0x4e0] sm:$0xff]
      %v4329 = vld [vmem:[%s4171 + $0x4e8] sm:$0xff]
      %v4330 = vld [vmem:[%s4171 + $0x4f0] sm:$0xff]
      %v4331 = vld [vmem:[%s4171 + $0x4f8] sm:$0xff]
      %v4332 = vld [vmem:[%s4171 + $0x500] sm:$0xff]
      %v4333 = vld [vmem:[%s4171 + $0x508] sm:$0xff]
      %v4334 = vld [vmem:[%s4171 + $0x510] sm:$0xff]
      %v4335 = vld [vmem:[%s4171 + $0x518] sm:$0xff]
      %v4336 = vld [vmem:[%s4171 + $0x520] sm:$0xff]
      %v4337 = vld [vmem:[%s4171 + $0x528] sm:$0xff]
      %v4338 = vld [vmem:[%s4171 + $0x530] sm:$0xff]
      %v4339 = vld [vmem:[%s4171 + $0x538] sm:$0xff]
      %v4340 = vld [vmem:[%s4171 + $0x540] sm:$0xff]
      %v4341 = vld [vmem:[%s4171 + $0x548] sm:$0xff]
      %v4342 = vld [vmem:[%s4171 + $0x550] sm:$0xff]
      %v4343 = vld [vmem:[%s4171 + $0x558] sm:$0xff]
      %v4344 = vld [vmem:[%s4171 + $0x560] sm:$0xff]
      %v4345 = vld [vmem:[%s4171 + $0x568] sm:$0xff]
      %v4346 = vld [vmem:[%s4171 + $0x570] sm:$0xff]
      %v4347 = vld [vmem:[%s4171 + $0x578] sm:$0xff]
      %v4348 = vld [vmem:[%s4171 + $0x580] sm:$0xff]
      %v4349 = vld [vmem:[%s4171 + $0x588] sm:$0xff]
      %v4350 = vld [vmem:[%s4171 + $0x590] sm:$0xff]
      %v4351 = vld [vmem:[%s4171 + $0x598] sm:$0xff]
      %v4352 = vld [vmem:[%s4171 + $0x5a0] sm:$0xff]
      %v4353 = vld [vmem:[%s4171 + $0x5a8] sm:$0xff]
      %v4354 = vld [vmem:[%s4171 + $0x5b0] sm:$0xff]
      %v4355 = vld [vmem:[%s4171 + $0x5b8] sm:$0xff]
      %v4356 = vld [vmem:[%s4171 + $0x5c0] sm:$0xff]
      %v4357 = vld [vmem:[%s4171 + $0x5c8] sm:$0xff]
      %v4358 = vld [vmem:[%s4171 + $0x5d0] sm:$0xff]
      %v4359 = vld [vmem:[%s4171 + $0x5d8] sm:$0xff]
      %v4360 = vld [vmem:[%s4171 + $0x5e0] sm:$0xff]
      %v4361 = vld [vmem:[%s4171 + $0x5e8] sm:$0xff]
      %v4362 = vld [vmem:[%s4171 + $0x5f0] sm:$0xff]
      %v4363 = vld [vmem:[%s4171 + $0x5f8] sm:$0xff]
      %v4364 = vld [vmem:[%s4171 + $0x600] sm:$0xff]
      %v4365 = vld [vmem:[%s4171 + $0x608] sm:$0xff]
      %v4366 = vld [vmem:[%s4171 + $0x610] sm:$0xff]
      %v4367 = vld [vmem:[%s4171 + $0x618] sm:$0xff]
      %v4368 = vld [vmem:[%s4171 + $0x620] sm:$0xff]
      %v4369 = vld [vmem:[%s4171 + $0x628] sm:$0xff]
      %v4370 = vld [vmem:[%s4171 + $0x630] sm:$0xff]
      %v4371 = vld [vmem:[%s4171 + $0x638] sm:$0xff]
      %v4372 = vld [vmem:[%s4171 + $0x640] sm:$0xff]
      %v4373 = vld [vmem:[%s4171 + $0x648] sm:$0xff]
      %v4374 = vld [vmem:[%s4171 + $0x650] sm:$0xff]
      %v4375 = vld [vmem:[%s4171 + $0x658] sm:$0xff]
      %v4376 = vld [vmem:[%s4171 + $0x660] sm:$0xff]
      %v4377 = vld [vmem:[%s4171 + $0x668] sm:$0xff]
      %v4378 = vld [vmem:[%s4171 + $0x670] sm:$0xff]
      %v4379 = vld [vmem:[%s4171 + $0x678] sm:$0xff]
      %v4380 = vld [vmem:[%s4171 + $0x680] sm:$0xff]
      %v4381 = vld [vmem:[%s4171 + $0x688] sm:$0xff]
      %v4382 = vld [vmem:[%s4171 + $0x690] sm:$0xff]
      %v4383 = vld [vmem:[%s4171 + $0x698] sm:$0xff]
      %v4384 = vld [vmem:[%s4171 + $0x6a0] sm:$0xff]
      %v4385 = vld [vmem:[%s4171 + $0x6a8] sm:$0xff]
      %v4386 = vld [vmem:[%s4171 + $0x6b0] sm:$0xff]
      %v4387 = vld [vmem:[%s4171 + $0x6b8] sm:$0xff]
      %v4388 = vld [vmem:[%s4171 + $0x6c0] sm:$0xff]
      %v4389 = vld [vmem:[%s4171 + $0x6c8] sm:$0xff]
      %v4390 = vld [vmem:[%s4171 + $0x6d0] sm:$0xff]
      %v4391 = vld [vmem:[%s4171 + $0x6d8] sm:$0xff]
      %v4392 = vld [vmem:[%s4171 + $0x6e0] sm:$0xff]
      %v4393 = vld [vmem:[%s4171 + $0x6e8] sm:$0xff]
      %v4394 = vld [vmem:[%s4171 + $0x6f0] sm:$0xff]
      %v4395 = vld [vmem:[%s4171 + $0x6f8] sm:$0xff]
      %v4396 = vld [vmem:[%s4171 + $0x700] sm:$0xff]
      %v4397 = vld [vmem:[%s4171 + $0x708] sm:$0xff]
      %v4398 = vld [vmem:[%s4171 + $0x710] sm:$0xff]
      %v4399 = vld [vmem:[%s4171 + $0x718] sm:$0xff]
      %v4400 = vld [vmem:[%s4171 + $0x720] sm:$0xff]
      %v4401 = vld [vmem:[%s4171 + $0x728] sm:$0xff]
      %v4402 = vld [vmem:[%s4171 + $0x730] sm:$0xff]
      %v4403 = vld [vmem:[%s4171 + $0x738] sm:$0xff]
      %v4404 = vld [vmem:[%s4171 + $0x740] sm:$0xff]
      %v4405 = vld [vmem:[%s4171 + $0x748] sm:$0xff]
      %v4406 = vld [vmem:[%s4171 + $0x750] sm:$0xff]
      %v4407 = vld [vmem:[%s4171 + $0x758] sm:$0xff]
      %v4408 = vld [vmem:[%s4171 + $0x760] sm:$0xff]
      %v4409 = vld [vmem:[%s4171 + $0x768] sm:$0xff]
      %v4410 = vld [vmem:[%s4171 + $0x770] sm:$0xff]
      %v4411 = vld [vmem:[%s4171 + $0x778] sm:$0xff]
      %v4412 = vld [vmem:[%s4171 + $0x780] sm:$0xff]
      %v4413 = vld [vmem:[%s4171 + $0x788] sm:$0xff]
      %v4414 = vld [vmem:[%s4171 + $0x790] sm:$0xff]
      %v4415 = vld [vmem:[%s4171 + $0x798] sm:$0xff]
      %v4416 = vld [vmem:[%s4171 + $0x7a0] sm:$0xff]
      %v4417 = vld [vmem:[%s4171 + $0x7a8] sm:$0xff]
      %v4418 = vld [vmem:[%s4171 + $0x7b0] sm:$0xff]
      %v4419 = vld [vmem:[%s4171 + $0x7b8] sm:$0xff]
      %v4420 = vld [vmem:[%s4171 + $0x7c0] sm:$0xff]
      %v4421 = vld [vmem:[%s4171 + $0x7c8] sm:$0xff]
      %v4422 = vld [vmem:[%s4171 + $0x7d0] sm:$0xff]
      %v4423 = vld [vmem:[%s4171 + $0x7d8] sm:$0xff]
      %v4424 = vld [vmem:[%s4171 + $0x7e0] sm:$0xff]
      %v4425 = vld [vmem:[%s4171 + $0x7e8] sm:$0xff]
      %v4426 = vld [vmem:[%s4171 + $0x7f0] sm:$0xff]
      %v4427 = vld [vmem:[%s4171 + $0x7f8] sm:$0xff]
      %v4684 = vunpack.c.l.b16 %v4172
      %v4685 = vunpack.c.h.b16 %v4172
      %v4686 = vunpack.c.l.b16 %v4173
      %v4687 = vunpack.c.h.b16 %v4173
      %v4688 = vunpack.c.l.b16 %v4174
      %v4689 = vunpack.c.h.b16 %v4174
      %v4690 = vunpack.c.l.b16 %v4175
      %v4691 = vunpack.c.h.b16 %v4175
      %v4692 = vunpack.c.l.b16 %v4176
      %v4693 = vunpack.c.h.b16 %v4176
      %v4694 = vunpack.c.l.b16 %v4177
      %v4695 = vunpack.c.h.b16 %v4177
      %v4696 = vunpack.c.l.b16 %v4178
      %v4697 = vunpack.c.h.b16 %v4178
      %v4698 = vunpack.c.l.b16 %v4179
      %v4699 = vunpack.c.h.b16 %v4179
      %v4700 = vunpack.c.l.b16 %v4180
      %v4701 = vunpack.c.h.b16 %v4180
      %v4702 = vunpack.c.l.b16 %v4181
      %v4703 = vunpack.c.h.b16 %v4181
      %v4704 = vunpack.c.l.b16 %v4182
      %v4705 = vunpack.c.h.b16 %v4182
      %v4706 = vunpack.c.l.b16 %v4183
      %v4707 = vunpack.c.h.b16 %v4183
      %v4708 = vunpack.c.l.b16 %v4184
      %v4709 = vunpack.c.h.b16 %v4184
      %v4710 = vunpack.c.l.b16 %v4185
      %v4711 = vunpack.c.h.b16 %v4185
      %v4712 = vunpack.c.l.b16 %v4186
      %v4713 = vunpack.c.h.b16 %v4186
      %v4714 = vunpack.c.l.b16 %v4187
      %v4715 = vunpack.c.h.b16 %v4187
      %v4716 = vunpack.c.l.b16 %v4188
      %v4717 = vunpack.c.h.b16 %v4188
      %v4718 = vunpack.c.l.b16 %v4189
      %v4719 = vunpack.c.h.b16 %v4189
      %v4720 = vunpack.c.l.b16 %v4190
      %v4721 = vunpack.c.h.b16 %v4190
      %v4722 = vunpack.c.l.b16 %v4191
      %v4723 = vunpack.c.h.b16 %v4191
      %v4724 = vunpack.c.l.b16 %v4192
      %v4725 = vunpack.c.h.b16 %v4192
      %v4726 = vunpack.c.l.b16 %v4193
      %v4727 = vunpack.c.h.b16 %v4193
      %v4728 = vunpack.c.l.b16 %v4194
      %v4729 = vunpack.c.h.b16 %v4194
      %v4730 = vunpack.c.l.b16 %v4195
      %v4731 = vunpack.c.h.b16 %v4195
      %v4732 = vunpack.c.l.b16 %v4196
      %v4733 = vunpack.c.h.b16 %v4196
      %v4734 = vunpack.c.l.b16 %v4197
      %v4735 = vunpack.c.h.b16 %v4197
      %v4736 = vunpack.c.l.b16 %v4198
      %v4737 = vunpack.c.h.b16 %v4198
      %v4738 = vunpack.c.l.b16 %v4199
      %v4739 = vunpack.c.h.b16 %v4199
      %v4740 = vunpack.c.l.b16 %v4200
      %v4741 = vunpack.c.h.b16 %v4200
      %v4742 = vunpack.c.l.b16 %v4201
      %v4743 = vunpack.c.h.b16 %v4201
      %v4744 = vunpack.c.l.b16 %v4202
      %v4745 = vunpack.c.h.b16 %v4202
      %v4746 = vunpack.c.l.b16 %v4203
      %v4747 = vunpack.c.h.b16 %v4203
      %v4748 = vunpack.c.l.b16 %v4204
      %v4749 = vunpack.c.h.b16 %v4204
      %v4750 = vunpack.c.l.b16 %v4205
      %v4751 = vunpack.c.h.b16 %v4205
      %v4752 = vunpack.c.l.b16 %v4206
      %v4753 = vunpack.c.h.b16 %v4206
      %v4754 = vunpack.c.l.b16 %v4207
      %v4755 = vunpack.c.h.b16 %v4207
      %v4756 = vunpack.c.l.b16 %v4208
      %v4757 = vunpack.c.h.b16 %v4208
      %v4758 = vunpack.c.l.b16 %v4209
      %v4759 = vunpack.c.h.b16 %v4209
      %v4760 = vunpack.c.l.b16 %v4210
      %v4761 = vunpack.c.h.b16 %v4210
      %v4762 = vunpack.c.l.b16 %v4211
      %v4763 = vunpack.c.h.b16 %v4211
      %v4764 = vunpack.c.l.b16 %v4212
      %v4765 = vunpack.c.h.b16 %v4212
      %v4766 = vunpack.c.l.b16 %v4213
      %v4767 = vunpack.c.h.b16 %v4213
      %v4768 = vunpack.c.l.b16 %v4214
      %v4769 = vunpack.c.h.b16 %v4214
      %v4770 = vunpack.c.l.b16 %v4215
      %v4771 = vunpack.c.h.b16 %v4215
      %v4772 = vunpack.c.l.b16 %v4216
      %v4773 = vunpack.c.h.b16 %v4216
      %v4774 = vunpack.c.l.b16 %v4217
      %v4775 = vunpack.c.h.b16 %v4217
      %v4776 = vunpack.c.l.b16 %v4218
      %v4777 = vunpack.c.h.b16 %v4218
      %v4778 = vunpack.c.l.b16 %v4219
      %v4779 = vunpack.c.h.b16 %v4219
      %v4780 = vunpack.c.l.b16 %v4220
      %v4781 = vunpack.c.h.b16 %v4220
      %v4782 = vunpack.c.l.b16 %v4221
      %v4783 = vunpack.c.h.b16 %v4221
      %v4784 = vunpack.c.l.b16 %v4222
      %v4785 = vunpack.c.h.b16 %v4222
      %v4786 = vunpack.c.l.b16 %v4223
      %v4787 = vunpack.c.h.b16 %v4223
      %v4788 = vunpack.c.l.b16 %v4224
      %v4789 = vunpack.c.h.b16 %v4224
      %v4790 = vunpack.c.l.b16 %v4225
      %v4791 = vunpack.c.h.b16 %v4225
      %v4792 = vunpack.c.l.b16 %v4226
      %v4793 = vunpack.c.h.b16 %v4226
      %v4794 = vunpack.c.l.b16 %v4227
      %v4795 = vunpack.c.h.b16 %v4227
      %v4796 = vunpack.c.l.b16 %v4228
      %v4797 = vunpack.c.h.b16 %v4228
      %v4798 = vunpack.c.l.b16 %v4229
      %v4799 = vunpack.c.h.b16 %v4229
      %v4800 = vunpack.c.l.b16 %v4230
      %v4801 = vunpack.c.h.b16 %v4230
      %v4802 = vunpack.c.l.b16 %v4231
      %v4803 = vunpack.c.h.b16 %v4231
      %v4804 = vunpack.c.l.b16 %v4232
      %v4805 = vunpack.c.h.b16 %v4232
      %v4806 = vunpack.c.l.b16 %v4233
      %v4807 = vunpack.c.h.b16 %v4233
      %v4808 = vunpack.c.l.b16 %v4234
      %v4809 = vunpack.c.h.b16 %v4234
      %v4810 = vunpack.c.l.b16 %v4235
      %v4811 = vunpack.c.h.b16 %v4235
      %v4812 = vunpack.c.l.b16 %v4236
      %v4813 = vunpack.c.h.b16 %v4236
      %v4814 = vunpack.c.l.b16 %v4237
      %v4815 = vunpack.c.h.b16 %v4237
      %v4816 = vunpack.c.l.b16 %v4238
      %v4817 = vunpack.c.h.b16 %v4238
      %v4818 = vunpack.c.l.b16 %v4239
      %v4819 = vunpack.c.h.b16 %v4239
      %v4820 = vunpack.c.l.b16 %v4240
      %v4821 = vunpack.c.h.b16 %v4240
      %v4822 = vunpack.c.l.b16 %v4241
      %v4823 = vunpack.c.h.b16 %v4241
      %v4824 = vunpack.c.l.b16 %v4242
      %v4825 = vunpack.c.h.b16 %v4242
      %v4826 = vunpack.c.l.b16 %v4243
      %v4827 = vunpack.c.h.b16 %v4243
      %v4828 = vunpack.c.l.b16 %v4244
      %v4829 = vunpack.c.h.b16 %v4244
      %v4830 = vunpack.c.l.b16 %v4245
      %v4831 = vunpack.c.h.b16 %v4245
      %v4832 = vunpack.c.l.b16 %v4246
      %v4833 = vunpack.c.h.b16 %v4246
      %v4834 = vunpack.c.l.b16 %v4247
      %v4835 = vunpack.c.h.b16 %v4247
      %v4836 = vunpack.c.l.b16 %v4248
      %v4837 = vunpack.c.h.b16 %v4248
      %v4838 = vunpack.c.l.b16 %v4249
      %v4839 = vunpack.c.h.b16 %v4249
      %v4840 = vunpack.c.l.b16 %v4250
      %v4841 = vunpack.c.h.b16 %v4250
      %v4842 = vunpack.c.l.b16 %v4251
      %v4843 = vunpack.c.h.b16 %v4251
      %v4844 = vunpack.c.l.b16 %v4252
      %v4845 = vunpack.c.h.b16 %v4252
      %v4846 = vunpack.c.l.b16 %v4253
      %v4847 = vunpack.c.h.b16 %v4253
      %v4848 = vunpack.c.l.b16 %v4254
      %v4849 = vunpack.c.h.b16 %v4254
      %v4850 = vunpack.c.l.b16 %v4255
      %v4851 = vunpack.c.h.b16 %v4255
      %v4852 = vunpack.c.l.b16 %v4256
      %v4853 = vunpack.c.h.b16 %v4256
      %v4854 = vunpack.c.l.b16 %v4257
      %v4855 = vunpack.c.h.b16 %v4257
      %v4856 = vunpack.c.l.b16 %v4258
      %v4857 = vunpack.c.h.b16 %v4258
      %v4858 = vunpack.c.l.b16 %v4259
      %v4859 = vunpack.c.h.b16 %v4259
      %v4860 = vunpack.c.l.b16 %v4260
      %v4861 = vunpack.c.h.b16 %v4260
      %v4862 = vunpack.c.l.b16 %v4261
      %v4863 = vunpack.c.h.b16 %v4261
      %v4864 = vunpack.c.l.b16 %v4262
      %v4865 = vunpack.c.h.b16 %v4262
      %v4866 = vunpack.c.l.b16 %v4263
      %v4867 = vunpack.c.h.b16 %v4263
      %v4868 = vunpack.c.l.b16 %v4264
      %v4869 = vunpack.c.h.b16 %v4264
      %v4870 = vunpack.c.l.b16 %v4265
      %v4871 = vunpack.c.h.b16 %v4265
      %v4872 = vunpack.c.l.b16 %v4266
      %v4873 = vunpack.c.h.b16 %v4266
      %v4874 = vunpack.c.l.b16 %v4267
      %v4875 = vunpack.c.h.b16 %v4267
      %v4876 = vunpack.c.l.b16 %v4268
      %v4877 = vunpack.c.h.b16 %v4268
      %v4878 = vunpack.c.l.b16 %v4269
      %v4879 = vunpack.c.h.b16 %v4269
      %v4880 = vunpack.c.l.b16 %v4270
      %v4881 = vunpack.c.h.b16 %v4270
      %v4882 = vunpack.c.l.b16 %v4271
      %v4883 = vunpack.c.h.b16 %v4271
      %v4884 = vunpack.c.l.b16 %v4272
      %v4885 = vunpack.c.h.b16 %v4272
      %v4886 = vunpack.c.l.b16 %v4273
      %v4887 = vunpack.c.h.b16 %v4273
      %v4888 = vunpack.c.l.b16 %v4274
      %v4889 = vunpack.c.h.b16 %v4274
      %v4890 = vunpack.c.l.b16 %v4275
      %v4891 = vunpack.c.h.b16 %v4275
      %v4892 = vunpack.c.l.b16 %v4276
      %v4893 = vunpack.c.h.b16 %v4276
      %v4894 = vunpack.c.l.b16 %v4277
      %v4895 = vunpack.c.h.b16 %v4277
      %v4896 = vunpack.c.l.b16 %v4278
      %v4897 = vunpack.c.h.b16 %v4278
      %v4898 = vunpack.c.l.b16 %v4279
      %v4899 = vunpack.c.h.b16 %v4279
      %v4900 = vunpack.c.l.b16 %v4280
      %v4901 = vunpack.c.h.b16 %v4280
      %v4902 = vunpack.c.l.b16 %v4281
      %v4903 = vunpack.c.h.b16 %v4281
      %v4904 = vunpack.c.l.b16 %v4282
      %v4905 = vunpack.c.h.b16 %v4282
      %v4906 = vunpack.c.l.b16 %v4283
      %v4907 = vunpack.c.h.b16 %v4283
      %v4908 = vunpack.c.l.b16 %v4284
      %v4909 = vunpack.c.h.b16 %v4284
      %v4910 = vunpack.c.l.b16 %v4285
      %v4911 = vunpack.c.h.b16 %v4285
      %v4912 = vunpack.c.l.b16 %v4286
      %v4913 = vunpack.c.h.b16 %v4286
      %v4914 = vunpack.c.l.b16 %v4287
      %v4915 = vunpack.c.h.b16 %v4287
      %v4916 = vunpack.c.l.b16 %v4288
      %v4917 = vunpack.c.h.b16 %v4288
      %v4918 = vunpack.c.l.b16 %v4289
      %v4919 = vunpack.c.h.b16 %v4289
      %v4920 = vunpack.c.l.b16 %v4290
      %v4921 = vunpack.c.h.b16 %v4290
      %v4922 = vunpack.c.l.b16 %v4291
      %v4923 = vunpack.c.h.b16 %v4291
      %v4924 = vunpack.c.l.b16 %v4292
      %v4925 = vunpack.c.h.b16 %v4292
      %v4926 = vunpack.c.l.b16 %v4293
      %v4927 = vunpack.c.h.b16 %v4293
      %v4928 = vunpack.c.l.b16 %v4294
      %v4929 = vunpack.c.h.b16 %v4294
      %v4930 = vunpack.c.l.b16 %v4295
      %v4931 = vunpack.c.h.b16 %v4295
      %v4932 = vunpack.c.l.b16 %v4296
      %v4933 = vunpack.c.h.b16 %v4296
      %v4934 = vunpack.c.l.b16 %v4297
      %v4935 = vunpack.c.h.b16 %v4297
      %v4936 = vunpack.c.l.b16 %v4298
      %v4937 = vunpack.c.h.b16 %v4298
      %v4938 = vunpack.c.l.b16 %v4299
      %v4939 = vunpack.c.h.b16 %v4299
      %v4940 = vunpack.c.l.b16 %v4300
      %v4941 = vunpack.c.h.b16 %v4300
      %v4942 = vunpack.c.l.b16 %v4301
      %v4943 = vunpack.c.h.b16 %v4301
      %v4944 = vunpack.c.l.b16 %v4302
      %v4945 = vunpack.c.h.b16 %v4302
      %v4946 = vunpack.c.l.b16 %v4303
      %v4947 = vunpack.c.h.b16 %v4303
      %v4948 = vunpack.c.l.b16 %v4304
      %v4949 = vunpack.c.h.b16 %v4304
      %v4950 = vunpack.c.l.b16 %v4305
      %v4951 = vunpack.c.h.b16 %v4305
      %v4952 = vunpack.c.l.b16 %v4306
      %v4953 = vunpack.c.h.b16 %v4306
      %v4954 = vunpack.c.l.b16 %v4307
      %v4955 = vunpack.c.h.b16 %v4307
      %v4956 = vunpack.c.l.b16 %v4308
      %v4957 = vunpack.c.h.b16 %v4308
      %v4958 = vunpack.c.l.b16 %v4309
      %v4959 = vunpack.c.h.b16 %v4309
      %v4960 = vunpack.c.l.b16 %v4310
      %v4961 = vunpack.c.h.b16 %v4310
      %v4962 = vunpack.c.l.b16 %v4311
      %v4963 = vunpack.c.h.b16 %v4311
      %v4964 = vunpack.c.l.b16 %v4312
      %v4965 = vunpack.c.h.b16 %v4312
      %v4966 = vunpack.c.l.b16 %v4313
      %v4967 = vunpack.c.h.b16 %v4313
      %v4968 = vunpack.c.l.b16 %v4314
      %v4969 = vunpack.c.h.b16 %v4314
      %v4970 = vunpack.c.l.b16 %v4315
      %v4971 = vunpack.c.h.b16 %v4315
      %v4972 = vunpack.c.l.b16 %v4316
      %v4973 = vunpack.c.h.b16 %v4316
      %v4974 = vunpack.c.l.b16 %v4317
      %v4975 = vunpack.c.h.b16 %v4317
      %v4976 = vunpack.c.l.b16 %v4318
      %v4977 = vunpack.c.h.b16 %v4318
      %v4978 = vunpack.c.l.b16 %v4319
      %v4979 = vunpack.c.h.b16 %v4319
      %v4980 = vunpack.c.l.b16 %v4320
      %v4981 = vunpack.c.h.b16 %v4320
      %v4982 = vunpack.c.l.b16 %v4321
      %v4983 = vunpack.c.h.b16 %v4321
      %v4984 = vunpack.c.l.b16 %v4322
      %v4985 = vunpack.c.h.b16 %v4322
      %v4986 = vunpack.c.l.b16 %v4323
      %v4987 = vunpack.c.h.b16 %v4323
      %v4988 = vunpack.c.l.b16 %v4324
      %v4989 = vunpack.c.h.b16 %v4324
      %v4990 = vunpack.c.l.b16 %v4325
      %v4991 = vunpack.c.h.b16 %v4325
      %v4992 = vunpack.c.l.b16 %v4326
      %v4993 = vunpack.c.h.b16 %v4326
      %v4994 = vunpack.c.l.b16 %v4327
      %v4995 = vunpack.c.h.b16 %v4327
      %v4996 = vunpack.c.l.b16 %v4328
      %v4997 = vunpack.c.h.b16 %v4328
      %v4998 = vunpack.c.l.b16 %v4329
      %v4999 = vunpack.c.h.b16 %v4329
      %v5000 = vunpack.c.l.b16 %v4330
      %v5001 = vunpack.c.h.b16 %v4330
      %v5002 = vunpack.c.l.b16 %v4331
      %v5003 = vunpack.c.h.b16 %v4331
      %v5004 = vunpack.c.l.b16 %v4332
      %v5005 = vunpack.c.h.b16 %v4332
      %v5006 = vunpack.c.l.b16 %v4333
      %v5007 = vunpack.c.h.b16 %v4333
      %v5008 = vunpack.c.l.b16 %v4334
      %v5009 = vunpack.c.h.b16 %v4334
      %v5010 = vunpack.c.l.b16 %v4335
      %v5011 = vunpack.c.h.b16 %v4335
      %v5012 = vunpack.c.l.b16 %v4336
      %v5013 = vunpack.c.h.b16 %v4336
      %v5014 = vunpack.c.l.b16 %v4337
      %v5015 = vunpack.c.h.b16 %v4337
      %v5016 = vunpack.c.l.b16 %v4338
      %v5017 = vunpack.c.h.b16 %v4338
      %v5018 = vunpack.c.l.b16 %v4339
      %v5019 = vunpack.c.h.b16 %v4339
      %v5020 = vunpack.c.l.b16 %v4340
      %v5021 = vunpack.c.h.b16 %v4340
      %v5022 = vunpack.c.l.b16 %v4341
      %v5023 = vunpack.c.h.b16 %v4341
      %v5024 = vunpack.c.l.b16 %v4342
      %v5025 = vunpack.c.h.b16 %v4342
      %v5026 = vunpack.c.l.b16 %v4343
      %v5027 = vunpack.c.h.b16 %v4343
      %v5028 = vunpack.c.l.b16 %v4344
      %v5029 = vunpack.c.h.b16 %v4344
      %v5030 = vunpack.c.l.b16 %v4345
      %v5031 = vunpack.c.h.b16 %v4345
      %v5032 = vunpack.c.l.b16 %v4346
      %v5033 = vunpack.c.h.b16 %v4346
      %v5034 = vunpack.c.l.b16 %v4347
      %v5035 = vunpack.c.h.b16 %v4347
      %v5036 = vunpack.c.l.b16 %v4348
      %v5037 = vunpack.c.h.b16 %v4348
      %v5038 = vunpack.c.l.b16 %v4349
      %v5039 = vunpack.c.h.b16 %v4349
      %v5040 = vunpack.c.l.b16 %v4350
      %v5041 = vunpack.c.h.b16 %v4350
      %v5042 = vunpack.c.l.b16 %v4351
      %v5043 = vunpack.c.h.b16 %v4351
      %v5044 = vunpack.c.l.b16 %v4352
      %v5045 = vunpack.c.h.b16 %v4352
      %v5046 = vunpack.c.l.b16 %v4353
      %v5047 = vunpack.c.h.b16 %v4353
      %v5048 = vunpack.c.l.b16 %v4354
      %v5049 = vunpack.c.h.b16 %v4354
      %v5050 = vunpack.c.l.b16 %v4355
      %v5051 = vunpack.c.h.b16 %v4355
      %v5052 = vunpack.c.l.b16 %v4356
      %v5053 = vunpack.c.h.b16 %v4356
      %v5054 = vunpack.c.l.b16 %v4357
      %v5055 = vunpack.c.h.b16 %v4357
      %v5056 = vunpack.c.l.b16 %v4358
      %v5057 = vunpack.c.h.b16 %v4358
      %v5058 = vunpack.c.l.b16 %v4359
      %v5059 = vunpack.c.h.b16 %v4359
      %v5060 = vunpack.c.l.b16 %v4360
      %v5061 = vunpack.c.h.b16 %v4360
      %v5062 = vunpack.c.l.b16 %v4361
      %v5063 = vunpack.c.h.b16 %v4361
      %v5064 = vunpack.c.l.b16 %v4362
      %v5065 = vunpack.c.h.b16 %v4362
      %v5066 = vunpack.c.l.b16 %v4363
      %v5067 = vunpack.c.h.b16 %v4363
      %v5068 = vunpack.c.l.b16 %v4364
      %v5069 = vunpack.c.h.b16 %v4364
      %v5070 = vunpack.c.l.b16 %v4365
      %v5071 = vunpack.c.h.b16 %v4365
      %v5072 = vunpack.c.l.b16 %v4366
      %v5073 = vunpack.c.h.b16 %v4366
      %v5074 = vunpack.c.l.b16 %v4367
      %v5075 = vunpack.c.h.b16 %v4367
      %v5076 = vunpack.c.l.b16 %v4368
      %v5077 = vunpack.c.h.b16 %v4368
      %v5078 = vunpack.c.l.b16 %v4369
      %v5079 = vunpack.c.h.b16 %v4369
      %v5080 = vunpack.c.l.b16 %v4370
      %v5081 = vunpack.c.h.b16 %v4370
      %v5082 = vunpack.c.l.b16 %v4371
      %v5083 = vunpack.c.h.b16 %v4371
      %v5084 = vunpack.c.l.b16 %v4372
      %v5085 = vunpack.c.h.b16 %v4372
      %v5086 = vunpack.c.l.b16 %v4373
      %v5087 = vunpack.c.h.b16 %v4373
      %v5088 = vunpack.c.l.b16 %v4374
      %v5089 = vunpack.c.h.b16 %v4374
      %v5090 = vunpack.c.l.b16 %v4375
      %v5091 = vunpack.c.h.b16 %v4375
      %v5092 = vunpack.c.l.b16 %v4376
      %v5093 = vunpack.c.h.b16 %v4376
      %v5094 = vunpack.c.l.b16 %v4377
      %v5095 = vunpack.c.h.b16 %v4377
      %v5096 = vunpack.c.l.b16 %v4378
      %v5097 = vunpack.c.h.b16 %v4378
      %v5098 = vunpack.c.l.b16 %v4379
      %v5099 = vunpack.c.h.b16 %v4379
      %v5100 = vunpack.c.l.b16 %v4380
      %v5101 = vunpack.c.h.b16 %v4380
      %v5102 = vunpack.c.l.b16 %v4381
      %v5103 = vunpack.c.h.b16 %v4381
      %v5104 = vunpack.c.l.b16 %v4382
      %v5105 = vunpack.c.h.b16 %v4382
      %v5106 = vunpack.c.l.b16 %v4383
      %v5107 = vunpack.c.h.b16 %v4383
      %v5108 = vunpack.c.l.b16 %v4384
      %v5109 = vunpack.c.h.b16 %v4384
      %v5110 = vunpack.c.l.b16 %v4385
      %v5111 = vunpack.c.h.b16 %v4385
      %v5112 = vunpack.c.l.b16 %v4386
      %v5113 = vunpack.c.h.b16 %v4386
      %v5114 = vunpack.c.l.b16 %v4387
      %v5115 = vunpack.c.h.b16 %v4387
      %v5116 = vunpack.c.l.b16 %v4388
      %v5117 = vunpack.c.h.b16 %v4388
      %v5118 = vunpack.c.l.b16 %v4389
      %v5119 = vunpack.c.h.b16 %v4389
      %v5120 = vunpack.c.l.b16 %v4390
      %v5121 = vunpack.c.h.b16 %v4390
      %v5122 = vunpack.c.l.b16 %v4391
      %v5123 = vunpack.c.h.b16 %v4391
      %v5124 = vunpack.c.l.b16 %v4392
      %v5125 = vunpack.c.h.b16 %v4392
      %v5126 = vunpack.c.l.b16 %v4393
      %v5127 = vunpack.c.h.b16 %v4393
      %v5128 = vunpack.c.l.b16 %v4394
      %v5129 = vunpack.c.h.b16 %v4394
      %v5130 = vunpack.c.l.b16 %v4395
      %v5131 = vunpack.c.h.b16 %v4395
      %v5132 = vunpack.c.l.b16 %v4396
      %v5133 = vunpack.c.h.b16 %v4396
      %v5134 = vunpack.c.l.b16 %v4397
      %v5135 = vunpack.c.h.b16 %v4397
      %v5136 = vunpack.c.l.b16 %v4398
      %v5137 = vunpack.c.h.b16 %v4398
      %v5138 = vunpack.c.l.b16 %v4399
      %v5139 = vunpack.c.h.b16 %v4399
      %v5140 = vunpack.c.l.b16 %v4400
      %v5141 = vunpack.c.h.b16 %v4400
      %v5142 = vunpack.c.l.b16 %v4401
      %v5143 = vunpack.c.h.b16 %v4401
      %v5144 = vunpack.c.l.b16 %v4402
      %v5145 = vunpack.c.h.b16 %v4402
      %v5146 = vunpack.c.l.b16 %v4403
      %v5147 = vunpack.c.h.b16 %v4403
      %v5148 = vunpack.c.l.b16 %v4404
      %v5149 = vunpack.c.h.b16 %v4404
      %v5150 = vunpack.c.l.b16 %v4405
      %v5151 = vunpack.c.h.b16 %v4405
      %v5152 = vunpack.c.l.b16 %v4406
      %v5153 = vunpack.c.h.b16 %v4406
      %v5154 = vunpack.c.l.b16 %v4407
      %v5155 = vunpack.c.h.b16 %v4407
      %v5156 = vunpack.c.l.b16 %v4408
      %v5157 = vunpack.c.h.b16 %v4408
      %v5158 = vunpack.c.l.b16 %v4409
      %v5159 = vunpack.c.h.b16 %v4409
      %v5160 = vunpack.c.l.b16 %v4410
      %v5161 = vunpack.c.h.b16 %v4410
      %v5162 = vunpack.c.l.b16 %v4411
      %v5163 = vunpack.c.h.b16 %v4411
      %v5164 = vunpack.c.l.b16 %v4412
      %v5165 = vunpack.c.h.b16 %v4412
      %v5166 = vunpack.c.l.b16 %v4413
      %v5167 = vunpack.c.h.b16 %v4413
      %v5168 = vunpack.c.l.b16 %v4414
      %v5169 = vunpack.c.h.b16 %v4414
      %v5170 = vunpack.c.l.b16 %v4415
      %v5171 = vunpack.c.h.b16 %v4415
      %v5172 = vunpack.c.l.b16 %v4416
      %v5173 = vunpack.c.h.b16 %v4416
      %v5174 = vunpack.c.l.b16 %v4417
      %v5175 = vunpack.c.h.b16 %v4417
      %v5176 = vunpack.c.l.b16 %v4418
      %v5177 = vunpack.c.h.b16 %v4418
      %v5178 = vunpack.c.l.b16 %v4419
      %v5179 = vunpack.c.h.b16 %v4419
      %v5180 = vunpack.c.l.b16 %v4420
      %v5181 = vunpack.c.h.b16 %v4420
      %v5182 = vunpack.c.l.b16 %v4421
      %v5183 = vunpack.c.h.b16 %v4421
      %v5184 = vunpack.c.l.b16 %v4422
      %v5185 = vunpack.c.h.b16 %v4422
      %v5186 = vunpack.c.l.b16 %v4423
      %v5187 = vunpack.c.h.b16 %v4423
      %v5188 = vunpack.c.l.b16 %v4424
      %v5189 = vunpack.c.h.b16 %v4424
      %v5190 = vunpack.c.l.b16 %v4425
      %v5191 = vunpack.c.h.b16 %v4425
      %v5192 = vunpack.c.l.b16 %v4426
      %v5193 = vunpack.c.h.b16 %v4426
      %v5194 = vunpack.c.l.b16 %v4427
      %v5195 = vunpack.c.h.b16 %v4427
      %v5196 = vpack.c.b16 %v4688, %v4684
      %v5197 = vpack.c.b16 %v4689, %v4685
      %v5198 = vpack.c.b16 %v4690, %v4686
      %v5199 = vpack.c.b16 %v4691, %v4687
      %v5200 = vpack.c.b16 %v4696, %v4692
      %v5201 = vpack.c.b16 %v4697, %v4693
      %v5202 = vpack.c.b16 %v4698, %v4694
      %v5203 = vpack.c.b16 %v4699, %v4695
      %v5204 = vpack.c.b16 %v4704, %v4700
      %v5205 = vpack.c.b16 %v4705, %v4701
      %v5206 = vpack.c.b16 %v4706, %v4702
      %v5207 = vpack.c.b16 %v4707, %v4703
      %v5208 = vpack.c.b16 %v4712, %v4708
      %v5209 = vpack.c.b16 %v4713, %v4709
      %v5210 = vpack.c.b16 %v4714, %v4710
      %v5211 = vpack.c.b16 %v4715, %v4711
      %v5212 = vpack.c.b16 %v4720, %v4716
      %v5213 = vpack.c.b16 %v4721, %v4717
      %v5214 = vpack.c.b16 %v4722, %v4718
      %v5215 = vpack.c.b16 %v4723, %v4719
      %v5216 = vpack.c.b16 %v4728, %v4724
      %v5217 = vpack.c.b16 %v4729, %v4725
      %v5218 = vpack.c.b16 %v4730, %v4726
      %v5219 = vpack.c.b16 %v4731, %v4727
      %v5220 = vpack.c.b16 %v4736, %v4732
      %v5221 = vpack.c.b16 %v4737, %v4733
      %v5222 = vpack.c.b16 %v4738, %v4734
      %v5223 = vpack.c.b16 %v4739, %v4735
      %v5224 = vpack.c.b16 %v4744, %v4740
      %v5225 = vpack.c.b16 %v4745, %v4741
      %v5226 = vpack.c.b16 %v4746, %v4742
      %v5227 = vpack.c.b16 %v4747, %v4743
      %v5228 = vpack.c.b16 %v4752, %v4748
      %v5229 = vpack.c.b16 %v4753, %v4749
      %v5230 = vpack.c.b16 %v4754, %v4750
      %v5231 = vpack.c.b16 %v4755, %v4751
      %v5232 = vpack.c.b16 %v4760, %v4756
      %v5233 = vpack.c.b16 %v4761, %v4757
      %v5234 = vpack.c.b16 %v4762, %v4758
      %v5235 = vpack.c.b16 %v4763, %v4759
      %v5236 = vpack.c.b16 %v4768, %v4764
      %v5237 = vpack.c.b16 %v4769, %v4765
      %v5238 = vpack.c.b16 %v4770, %v4766
      %v5239 = vpack.c.b16 %v4771, %v4767
      %v5240 = vpack.c.b16 %v4776, %v4772
      %v5241 = vpack.c.b16 %v4777, %v4773
      %v5242 = vpack.c.b16 %v4778, %v4774
      %v5243 = vpack.c.b16 %v4779, %v4775
      %v5244 = vpack.c.b16 %v4784, %v4780
      %v5245 = vpack.c.b16 %v4785, %v4781
      %v5246 = vpack.c.b16 %v4786, %v4782
      %v5247 = vpack.c.b16 %v4787, %v4783
      %v5248 = vpack.c.b16 %v4792, %v4788
      %v5249 = vpack.c.b16 %v4793, %v4789
      %v5250 = vpack.c.b16 %v4794, %v4790
      %v5251 = vpack.c.b16 %v4795, %v4791
      %v5252 = vpack.c.b16 %v4800, %v4796
      %v5253 = vpack.c.b16 %v4801, %v4797
      %v5254 = vpack.c.b16 %v4802, %v4798
      %v5255 = vpack.c.b16 %v4803, %v4799
      %v5256 = vpack.c.b16 %v4808, %v4804
      %v5257 = vpack.c.b16 %v4809, %v4805
      %v5258 = vpack.c.b16 %v4810, %v4806
      %v5259 = vpack.c.b16 %v4811, %v4807
      %v5260 = vpack.c.b16 %v4816, %v4812
      %v5261 = vpack.c.b16 %v4817, %v4813
      %v5262 = vpack.c.b16 %v4818, %v4814
      %v5263 = vpack.c.b16 %v4819, %v4815
      %v5264 = vpack.c.b16 %v4824, %v4820
      %v5265 = vpack.c.b16 %v4825, %v4821
      %v5266 = vpack.c.b16 %v4826, %v4822
      %v5267 = vpack.c.b16 %v4827, %v4823
      %v5268 = vpack.c.b16 %v4832, %v4828
      %v5269 = vpack.c.b16 %v4833, %v4829
      %v5270 = vpack.c.b16 %v4834, %v4830
      %v5271 = vpack.c.b16 %v4835, %v4831
      %v5272 = vpack.c.b16 %v4840, %v4836
      %v5273 = vpack.c.b16 %v4841, %v4837
      %v5274 = vpack.c.b16 %v4842, %v4838
      %v5275 = vpack.c.b16 %v4843, %v4839
      %v5276 = vpack.c.b16 %v4848, %v4844
      %v5277 = vpack.c.b16 %v4849, %v4845
      %v5278 = vpack.c.b16 %v4850, %v4846
      %v5279 = vpack.c.b16 %v4851, %v4847
      %v5280 = vpack.c.b16 %v4856, %v4852
      %v5281 = vpack.c.b16 %v4857, %v4853
      %v5282 = vpack.c.b16 %v4858, %v4854
      %v5283 = vpack.c.b16 %v4859, %v4855
      %v5284 = vpack.c.b16 %v4864, %v4860
      %v5285 = vpack.c.b16 %v4865, %v4861
      %v5286 = vpack.c.b16 %v4866, %v4862
      %v5287 = vpack.c.b16 %v4867, %v4863
      %v5288 = vpack.c.b16 %v4872, %v4868
      %v5289 = vpack.c.b16 %v4873, %v4869
      %v5290 = vpack.c.b16 %v4874, %v4870
      %v5291 = vpack.c.b16 %v4875, %v4871
      %v5292 = vpack.c.b16 %v4880, %v4876
      %v5293 = vpack.c.b16 %v4881, %v4877
      %v5294 = vpack.c.b16 %v4882, %v4878
      %v5295 = vpack.c.b16 %v4883, %v4879
      %v5296 = vpack.c.b16 %v4888, %v4884
      %v5297 = vpack.c.b16 %v4889, %v4885
      %v5298 = vpack.c.b16 %v4890, %v4886
      %v5299 = vpack.c.b16 %v4891, %v4887
      %v5300 = vpack.c.b16 %v4896, %v4892
      %v5301 = vpack.c.b16 %v4897, %v4893
      %v5302 = vpack.c.b16 %v4898, %v4894
      %v5303 = vpack.c.b16 %v4899, %v4895
      %v5304 = vpack.c.b16 %v4904, %v4900
      %v5305 = vpack.c.b16 %v4905, %v4901
      %v5306 = vpack.c.b16 %v4906, %v4902
      %v5307 = vpack.c.b16 %v4907, %v4903
      %v5308 = vpack.c.b16 %v4912, %v4908
      %v5309 = vpack.c.b16 %v4913, %v4909
      %v5310 = vpack.c.b16 %v4914, %v4910
      %v5311 = vpack.c.b16 %v4915, %v4911
      %v5312 = vpack.c.b16 %v4920, %v4916
      %v5313 = vpack.c.b16 %v4921, %v4917
      %v5314 = vpack.c.b16 %v4922, %v4918
      %v5315 = vpack.c.b16 %v4923, %v4919
      %v5316 = vpack.c.b16 %v4928, %v4924
      %v5317 = vpack.c.b16 %v4929, %v4925
      %v5318 = vpack.c.b16 %v4930, %v4926
      %v5319 = vpack.c.b16 %v4931, %v4927
      %v5320 = vpack.c.b16 %v4936, %v4932
      %v5321 = vpack.c.b16 %v4937, %v4933
      %v5322 = vpack.c.b16 %v4938, %v4934
      %v5323 = vpack.c.b16 %v4939, %v4935
      %v5324 = vpack.c.b16 %v4944, %v4940
      %v5325 = vpack.c.b16 %v4945, %v4941
      %v5326 = vpack.c.b16 %v4946, %v4942
      %v5327 = vpack.c.b16 %v4947, %v4943
      %v5328 = vpack.c.b16 %v4952, %v4948
      %v5329 = vpack.c.b16 %v4953, %v4949
      %v5330 = vpack.c.b16 %v4954, %v4950
      %v5331 = vpack.c.b16 %v4955, %v4951
      %v5332 = vpack.c.b16 %v4960, %v4956
      %v5333 = vpack.c.b16 %v4961, %v4957
      %v5334 = vpack.c.b16 %v4962, %v4958
      %v5335 = vpack.c.b16 %v4963, %v4959
      %v5336 = vpack.c.b16 %v4968, %v4964
      %v5337 = vpack.c.b16 %v4969, %v4965
      %v5338 = vpack.c.b16 %v4970, %v4966
      %v5339 = vpack.c.b16 %v4971, %v4967
      %v5340 = vpack.c.b16 %v4976, %v4972
      %v5341 = vpack.c.b16 %v4977, %v4973
      %v5342 = vpack.c.b16 %v4978, %v4974
      %v5343 = vpack.c.b16 %v4979, %v4975
      %v5344 = vpack.c.b16 %v4984, %v4980
      %v5345 = vpack.c.b16 %v4985, %v4981
      %v5346 = vpack.c.b16 %v4986, %v4982
      %v5347 = vpack.c.b16 %v4987, %v4983
      %v5348 = vpack.c.b16 %v4992, %v4988
      %v5349 = vpack.c.b16 %v4993, %v4989
      %v5350 = vpack.c.b16 %v4994, %v4990
      %v5351 = vpack.c.b16 %v4995, %v4991
      %v5352 = vpack.c.b16 %v5000, %v4996
      %v5353 = vpack.c.b16 %v5001, %v4997
      %v5354 = vpack.c.b16 %v5002, %v4998
      %v5355 = vpack.c.b16 %v5003, %v4999
      %v5356 = vpack.c.b16 %v5008, %v5004
      %v5357 = vpack.c.b16 %v5009, %v5005
      %v5358 = vpack.c.b16 %v5010, %v5006
      %v5359 = vpack.c.b16 %v5011, %v5007
      %v5360 = vpack.c.b16 %v5016, %v5012
      %v5361 = vpack.c.b16 %v5017, %v5013
      %v5362 = vpack.c.b16 %v5018, %v5014
      %v5363 = vpack.c.b16 %v5019, %v5015
      %v5364 = vpack.c.b16 %v5024, %v5020
      %v5365 = vpack.c.b16 %v5025, %v5021
      %v5366 = vpack.c.b16 %v5026, %v5022
      %v5367 = vpack.c.b16 %v5027, %v5023
      %v5368 = vpack.c.b16 %v5032, %v5028
      %v5369 = vpack.c.b16 %v5033, %v5029
      %v5370 = vpack.c.b16 %v5034, %v5030
      %v5371 = vpack.c.b16 %v5035, %v5031
      %v5372 = vpack.c.b16 %v5040, %v5036
      %v5373 = vpack.c.b16 %v5041, %v5037
      %v5374 = vpack.c.b16 %v5042, %v5038
      %v5375 = vpack.c.b16 %v5043, %v5039
      %v5376 = vpack.c.b16 %v5048, %v5044
      %v5377 = vpack.c.b16 %v5049, %v5045
      %v5378 = vpack.c.b16 %v5050, %v5046
      %v5379 = vpack.c.b16 %v5051, %v5047
      %v5380 = vpack.c.b16 %v5056, %v5052
      %v5381 = vpack.c.b16 %v5057, %v5053
      %v5382 = vpack.c.b16 %v5058, %v5054
      %v5383 = vpack.c.b16 %v5059, %v5055
      %v5384 = vpack.c.b16 %v5064, %v5060
      %v5385 = vpack.c.b16 %v5065, %v5061
      %v5386 = vpack.c.b16 %v5066, %v5062
      %v5387 = vpack.c.b16 %v5067, %v5063
      %v5388 = vpack.c.b16 %v5072, %v5068
      %v5389 = vpack.c.b16 %v5073, %v5069
      %v5390 = vpack.c.b16 %v5074, %v5070
      %v5391 = vpack.c.b16 %v5075, %v5071
      %v5392 = vpack.c.b16 %v5080, %v5076
      %v5393 = vpack.c.b16 %v5081, %v5077
      %v5394 = vpack.c.b16 %v5082, %v5078
      %v5395 = vpack.c.b16 %v5083, %v5079
      %v5396 = vpack.c.b16 %v5088, %v5084
      %v5397 = vpack.c.b16 %v5089, %v5085
      %v5398 = vpack.c.b16 %v5090, %v5086
      %v5399 = vpack.c.b16 %v5091, %v5087
      %v5400 = vpack.c.b16 %v5096, %v5092
      %v5401 = vpack.c.b16 %v5097, %v5093
      %v5402 = vpack.c.b16 %v5098, %v5094
      %v5403 = vpack.c.b16 %v5099, %v5095
      %v5404 = vpack.c.b16 %v5104, %v5100
      %v5405 = vpack.c.b16 %v5105, %v5101
      %v5406 = vpack.c.b16 %v5106, %v5102
      %v5407 = vpack.c.b16 %v5107, %v5103
      %v5408 = vpack.c.b16 %v5112, %v5108
      %v5409 = vpack.c.b16 %v5113, %v5109
      %v5410 = vpack.c.b16 %v5114, %v5110
      %v5411 = vpack.c.b16 %v5115, %v5111
      %v5412 = vpack.c.b16 %v5120, %v5116
      %v5413 = vpack.c.b16 %v5121, %v5117
      %v5414 = vpack.c.b16 %v5122, %v5118
      %v5415 = vpack.c.b16 %v5123, %v5119
      %v5416 = vpack.c.b16 %v5128, %v5124
      %v5417 = vpack.c.b16 %v5129, %v5125
      %v5418 = vpack.c.b16 %v5130, %v5126
      %v5419 = vpack.c.b16 %v5131, %v5127
      %v5420 = vpack.c.b16 %v5136, %v5132
      %v5421 = vpack.c.b16 %v5137, %v5133
      %v5422 = vpack.c.b16 %v5138, %v5134
      %v5423 = vpack.c.b16 %v5139, %v5135
      %v5424 = vpack.c.b16 %v5144, %v5140
      %v5425 = vpack.c.b16 %v5145, %v5141
      %v5426 = vpack.c.b16 %v5146, %v5142
      %v5427 = vpack.c.b16 %v5147, %v5143
      %v5428 = vpack.c.b16 %v5152, %v5148
      %v5429 = vpack.c.b16 %v5153, %v5149
      %v5430 = vpack.c.b16 %v5154, %v5150
      %v5431 = vpack.c.b16 %v5155, %v5151
      %v5432 = vpack.c.b16 %v5160, %v5156
      %v5433 = vpack.c.b16 %v5161, %v5157
      %v5434 = vpack.c.b16 %v5162, %v5158
      %v5435 = vpack.c.b16 %v5163, %v5159
      %v5436 = vpack.c.b16 %v5168, %v5164
      %v5437 = vpack.c.b16 %v5169, %v5165
      %v5438 = vpack.c.b16 %v5170, %v5166
      %v5439 = vpack.c.b16 %v5171, %v5167
      %v5440 = vpack.c.b16 %v5176, %v5172
      %v5441 = vpack.c.b16 %v5177, %v5173
      %v5442 = vpack.c.b16 %v5178, %v5174
      %v5443 = vpack.c.b16 %v5179, %v5175
      %v5444 = vpack.c.b16 %v5184, %v5180
      %v5445 = vpack.c.b16 %v5185, %v5181
      %v5446 = vpack.c.b16 %v5186, %v5182
      %v5447 = vpack.c.b16 %v5187, %v5183
      %v5448 = vpack.c.b16 %v5192, %v5188
      %v5449 = vpack.c.b16 %v5193, %v5189
      %v5450 = vpack.c.b16 %v5194, %v5190
      %v5451 = vpack.c.b16 %v5195, %v5191
      %5708 = vmatpush.bf16.msra.mxu0 %v5224
      %5709 = vmatpush.bf16.msra.mxu0 %v5220
      %5710 = vmatpush.bf16.msra.mxu0 %v5216
      %5711 = vmatpush.bf16.msra.mxu0 %v5212
      %5712 = vmatpush.bf16.msra.mxu0 %v5208
      %5713 = vmatpush.bf16.msra.mxu0 %v5204
      %5714 = vmatpush.bf16.msra.mxu0 %v5200
      %5715 = vmatpush.bf16.msra.mxu0 %v5196
      %5716 = vmatmul.bf16.gmra.mxu0 %v750
      %v5717 = vpop.f32.mrf.mxu0
      %v5718 = vadd.f32 0.0, %v5717
      %v5719 = vpop.f32.mrf.mxu0
      %5720 = vdwg.mxu0
      %5721 = vmatpush.bf16.msra.mxu0 %v5256
      %5722 = vmatpush.bf16.msra.mxu0 %v5252
      %5723 = vmatpush.bf16.msra.mxu0 %v5248
      %5724 = vmatpush.bf16.msra.mxu0 %v5244
      %5725 = vmatpush.bf16.msra.mxu0 %v5240
      %5726 = vmatpush.bf16.msra.mxu0 %v5236
      %5727 = vmatpush.bf16.msra.mxu0 %v5232
      %5728 = vmatpush.bf16.msra.mxu0 %v5228
      %5729 = vmatmul.bf16.gmra.mxu0 %v751
      %v5730 = vpop.f32.mrf.mxu0
      %v5731 = vadd.f32 %v5718, %v5730
      %v5732 = vpop.f32.mrf.mxu0
      %5733 = vdwg.mxu0
      %5734 = vmatpush.bf16.msra.mxu0 %v5288
      %5735 = vmatpush.bf16.msra.mxu0 %v5284
      %5736 = vmatpush.bf16.msra.mxu0 %v5280
      %5737 = vmatpush.bf16.msra.mxu0 %v5276
      %5738 = vmatpush.bf16.msra.mxu0 %v5272
      %5739 = vmatpush.bf16.msra.mxu0 %v5268
      %5740 = vmatpush.bf16.msra.mxu0 %v5264
      %5741 = vmatpush.bf16.msra.mxu0 %v5260
      %5742 = vmatmul.bf16.gmra.mxu0 %v752
      %v5743 = vpop.f32.mrf.mxu0
      %v5744 = vadd.f32 %v5731, %v5743
      %v5745 = vpop.f32.mrf.mxu0
      %5746 = vdwg.mxu0
      %5747 = vmatpush.bf16.msra.mxu0 %v5320
      %5748 = vmatpush.bf16.msra.mxu0 %v5316
      %5749 = vmatpush.bf16.msra.mxu0 %v5312
      %5750 = vmatpush.bf16.msra.mxu0 %v5308
      %5751 = vmatpush.bf16.msra.mxu0 %v5304
      %5752 = vmatpush.bf16.msra.mxu0 %v5300
      %5753 = vmatpush.bf16.msra.mxu0 %v5296
      %5754 = vmatpush.bf16.msra.mxu0 %v5292
      %5755 = vmatmul.bf16.gmra.mxu0 %v753
      %v5756 = vpop.f32.mrf.mxu0
      %v5757 = vadd.f32 %v5744, %v5756
      %v5758 = vpop.f32.mrf.mxu0
      %5759 = vdwg.mxu0
      %5760 = vmatpush.bf16.msra.mxu0 %v5352
      %5761 = vmatpush.bf16.msra.mxu0 %v5348
      %5762 = vmatpush.bf16.msra.mxu0 %v5344
      %5763 = vmatpush.bf16.msra.mxu0 %v5340
      %5764 = vmatpush.bf16.msra.mxu0 %v5336
      %5765 = vmatpush.bf16.msra.mxu0 %v5332
      %5766 = vmatpush.bf16.msra.mxu0 %v5328
      %5767 = vmatpush.bf16.msra.mxu0 %v5324
      %5768 = vmatmul.bf16.gmra.mxu0 %v754
      %v5769 = vpop.f32.mrf.mxu0
      %v5770 = vadd.f32 %v5757, %v5769
      %v5771 = vpop.f32.mrf.mxu0
      %5772 = vdwg.mxu0
      %5773 = vmatpush.bf16.msra.mxu0 %v5384
      %5774 = vmatpush.bf16.msra.mxu0 %v5380
      %5775 = vmatpush.bf16.msra.mxu0 %v5376
      %5776 = vmatpush.bf16.msra.mxu0 %v5372
      %5777 = vmatpush.bf16.msra.mxu0 %v5368
      %5778 = vmatpush.bf16.msra.mxu0 %v5364
      %5779 = vmatpush.bf16.msra.mxu0 %v5360
      %5780 = vmatpush.bf16.msra.mxu0 %v5356
      %5781 = vmatmul.bf16.gmra.mxu0 %v755
      %v5782 = vpop.f32.mrf.mxu0
      %v5783 = vadd.f32 %v5770, %v5782
      %v5784 = vpop.f32.mrf.mxu0
      %5785 = vdwg.mxu0
      %5786 = vmatpush.bf16.msra.mxu0 %v5416
      %5787 = vmatpush.bf16.msra.mxu0 %v5412
      %5788 = vmatpush.bf16.msra.mxu0 %v5408
      %5789 = vmatpush.bf16.msra.mxu0 %v5404
      %5790 = vmatpush.bf16.msra.mxu0 %v5400
      %5791 = vmatpush.bf16.msra.mxu0 %v5396
      %5792 = vmatpush.bf16.msra.mxu0 %v5392
      %5793 = vmatpush.bf16.msra.mxu0 %v5388
      %5794 = vmatmul.bf16.gmra.mxu0 %v756
      %v5795 = vpop.f32.mrf.mxu0
      %v5796 = vadd.f32 %v5783, %v5795
      %v5797 = vpop.f32.mrf.mxu0
      %5798 = vdwg.mxu0
      %5799 = vmatpush.bf16.msra.mxu0 %v5448
      %5800 = vmatpush.bf16.msra.mxu0 %v5444
      %5801 = vmatpush.bf16.msra.mxu0 %v5440
      %5802 = vmatpush.bf16.msra.mxu0 %v5436
      %5803 = vmatpush.bf16.msra.mxu0 %v5432
      %5804 = vmatpush.bf16.msra.mxu0 %v5428
      %5805 = vmatpush.bf16.msra.mxu0 %v5424
      %5806 = vmatpush.bf16.msra.mxu0 %v5420
      %5807 = vmatmul.bf16.gmra.mxu0 %v757
      %v5808 = vpop.f32.mrf.mxu0
      %v5809 = vadd.f32 %v5796, %v5808
      %v5810 = vpop.f32.mrf.mxu0
      %5811 = vdwg.mxu0
      %5812 = vmatpush.bf16.msra.mxu0 %v5225
      %5813 = vmatpush.bf16.msra.mxu0 %v5221
      %5814 = vmatpush.bf16.msra.mxu0 %v5217
      %5815 = vmatpush.bf16.msra.mxu0 %v5213
      %5816 = vmatpush.bf16.msra.mxu0 %v5209
      %5817 = vmatpush.bf16.msra.mxu0 %v5205
      %5818 = vmatpush.bf16.msra.mxu0 %v5201
      %5819 = vmatpush.bf16.msra.mxu0 %v5197
      %5820 = vmatmul.bf16.gmra.mxu0 %v750
      %v5821 = vpop.f32.mrf.mxu0
      %v5822 = vadd.f32 0.0, %v5821
      %v5823 = vpop.f32.mrf.mxu0
      %5824 = vdwg.mxu0
      %5825 = vmatpush.bf16.msra.mxu0 %v5257
      %5826 = vmatpush.bf16.msra.mxu0 %v5253
      %5827 = vmatpush.bf16.msra.mxu0 %v5249
      %5828 = vmatpush.bf16.msra.mxu0 %v5245
      %5829 = vmatpush.bf16.msra.mxu0 %v5241
      %5830 = vmatpush.bf16.msra.mxu0 %v5237
      %5831 = vmatpush.bf16.msra.mxu0 %v5233
      %5832 = vmatpush.bf16.msra.mxu0 %v5229
      %5833 = vmatmul.bf16.gmra.mxu0 %v751
      %v5834 = vpop.f32.mrf.mxu0
      %v5835 = vadd.f32 %v5822, %v5834
      %v5836 = vpop.f32.mrf.mxu0
      %5837 = vdwg.mxu0
      %5838 = vmatpush.bf16.msra.mxu0 %v5289
      %5839 = vmatpush.bf16.msra.mxu0 %v5285
      %5840 = vmatpush.bf16.msra.mxu0 %v5281
      %5841 = vmatpush.bf16.msra.mxu0 %v5277
      %5842 = vmatpush.bf16.msra.mxu0 %v5273
      %5843 = vmatpush.bf16.msra.mxu0 %v5269
      %5844 = vmatpush.bf16.msra.mxu0 %v5265
      %5845 = vmatpush.bf16.msra.mxu0 %v5261
      %5846 = vmatmul.bf16.gmra.mxu0 %v752
      %v5847 = vpop.f32.mrf.mxu0
      %v5848 = vadd.f32 %v5835, %v5847
      %v5849 = vpop.f32.mrf.mxu0
      %5850 = vdwg.mxu0
      %5851 = vmatpush.bf16.msra.mxu0 %v5321
      %5852 = vmatpush.bf16.msra.mxu0 %v5317
      %5853 = vmatpush.bf16.msra.mxu0 %v5313
      %5854 = vmatpush.bf16.msra.mxu0 %v5309
      %5855 = vmatpush.bf16.msra.mxu0 %v5305
      %5856 = vmatpush.bf16.msra.mxu0 %v5301
      %5857 = vmatpush.bf16.msra.mxu0 %v5297
      %5858 = vmatpush.bf16.msra.mxu0 %v5293
      %5859 = vmatmul.bf16.gmra.mxu0 %v753
      %v5860 = vpop.f32.mrf.mxu0
      %v5861 = vadd.f32 %v5848, %v5860
      %v5862 = vpop.f32.mrf.mxu0
      %5863 = vdwg.mxu0
      %5864 = vmatpush.bf16.msra.mxu0 %v5353
      %5865 = vmatpush.bf16.msra.mxu0 %v5349
      %5866 = vmatpush.bf16.msra.mxu0 %v5345
      %5867 = vmatpush.bf16.msra.mxu0 %v5341
      %5868 = vmatpush.bf16.msra.mxu0 %v5337
      %5869 = vmatpush.bf16.msra.mxu0 %v5333
      %5870 = vmatpush.bf16.msra.mxu0 %v5329
      %5871 = vmatpush.bf16.msra.mxu0 %v5325
      %5872 = vmatmul.bf16.gmra.mxu0 %v754
      %v5873 = vpop.f32.mrf.mxu0
      %v5874 = vadd.f32 %v5861, %v5873
      %v5875 = vpop.f32.mrf.mxu0
      %5876 = vdwg.mxu0
      %5877 = vmatpush.bf16.msra.mxu0 %v5385
      %5878 = vmatpush.bf16.msra.mxu0 %v5381
      %5879 = vmatpush.bf16.msra.mxu0 %v5377
      %5880 = vmatpush.bf16.msra.mxu0 %v5373
      %5881 = vmatpush.bf16.msra.mxu0 %v5369
      %5882 = vmatpush.bf16.msra.mxu0 %v5365
      %5883 = vmatpush.bf16.msra.mxu0 %v5361
      %5884 = vmatpush.bf16.msra.mxu0 %v5357
      %5885 = vmatmul.bf16.gmra.mxu0 %v755
      %v5886 = vpop.f32.mrf.mxu0
      %v5887 = vadd.f32 %v5874, %v5886
      %v5888 = vpop.f32.mrf.mxu0
      %5889 = vdwg.mxu0
      %5890 = vmatpush.bf16.msra.mxu0 %v5417
      %5891 = vmatpush.bf16.msra.mxu0 %v5413
      %5892 = vmatpush.bf16.msra.mxu0 %v5409
      %5893 = vmatpush.bf16.msra.mxu0 %v5405
      %5894 = vmatpush.bf16.msra.mxu0 %v5401
      %5895 = vmatpush.bf16.msra.mxu0 %v5397
      %5896 = vmatpush.bf16.msra.mxu0 %v5393
      %5897 = vmatpush.bf16.msra.mxu0 %v5389
      %5898 = vmatmul.bf16.gmra.mxu0 %v756
      %v5899 = vpop.f32.mrf.mxu0
      %v5900 = vadd.f32 %v5887, %v5899
      %v5901 = vpop.f32.mrf.mxu0
      %5902 = vdwg.mxu0
      %5903 = vmatpush.bf16.msra.mxu0 %v5449
      %5904 = vmatpush.bf16.msra.mxu0 %v5445
      %5905 = vmatpush.bf16.msra.mxu0 %v5441
      %5906 = vmatpush.bf16.msra.mxu0 %v5437
      %5907 = vmatpush.bf16.msra.mxu0 %v5433
      %5908 = vmatpush.bf16.msra.mxu0 %v5429
      %5909 = vmatpush.bf16.msra.mxu0 %v5425
      %5910 = vmatpush.bf16.msra.mxu0 %v5421
      %5911 = vmatmul.bf16.gmra.mxu0 %v757
      %v5912 = vpop.f32.mrf.mxu0
      %v5913 = vadd.f32 %v5900, %v5912
      %v5914 = vpop.f32.mrf.mxu0
      %5915 = vdwg.mxu0
      %5916 = vmatpush.bf16.msra.mxu0 %v5226
      %5917 = vmatpush.bf16.msra.mxu0 %v5222
      %5918 = vmatpush.bf16.msra.mxu0 %v5218
      %5919 = vmatpush.bf16.msra.mxu0 %v5214
      %5920 = vmatpush.bf16.msra.mxu0 %v5210
      %5921 = vmatpush.bf16.msra.mxu0 %v5206
      %5922 = vmatpush.bf16.msra.mxu0 %v5202
      %5923 = vmatpush.bf16.msra.mxu0 %v5198
      %5924 = vmatmul.bf16.gmra.mxu0 %v750
      %v5925 = vpop.f32.mrf.mxu0
      %v5926 = vadd.f32 0.0, %v5925
      %v5927 = vpop.f32.mrf.mxu0
      %5928 = vdwg.mxu0
      %5929 = vmatpush.bf16.msra.mxu0 %v5258
      %5930 = vmatpush.bf16.msra.mxu0 %v5254
      %5931 = vmatpush.bf16.msra.mxu0 %v5250
      %5932 = vmatpush.bf16.msra.mxu0 %v5246
      %5933 = vmatpush.bf16.msra.mxu0 %v5242
      %5934 = vmatpush.bf16.msra.mxu0 %v5238
      %5935 = vmatpush.bf16.msra.mxu0 %v5234
      %5936 = vmatpush.bf16.msra.mxu0 %v5230
      %5937 = vmatmul.bf16.gmra.mxu0 %v751
      %v5938 = vpop.f32.mrf.mxu0
      %v5939 = vadd.f32 %v5926, %v5938
      %v5940 = vpop.f32.mrf.mxu0
      %5941 = vdwg.mxu0
      %5942 = vmatpush.bf16.msra.mxu0 %v5290
      %5943 = vmatpush.bf16.msra.mxu0 %v5286
      %5944 = vmatpush.bf16.msra.mxu0 %v5282
      %5945 = vmatpush.bf16.msra.mxu0 %v5278
      %5946 = vmatpush.bf16.msra.mxu0 %v5274
      %5947 = vmatpush.bf16.msra.mxu0 %v5270
      %5948 = vmatpush.bf16.msra.mxu0 %v5266
      %5949 = vmatpush.bf16.msra.mxu0 %v5262
      %5950 = vmatmul.bf16.gmra.mxu0 %v752
      %v5951 = vpop.f32.mrf.mxu0
      %v5952 = vadd.f32 %v5939, %v5951
      %v5953 = vpop.f32.mrf.mxu0
      %5954 = vdwg.mxu0
      %5955 = vmatpush.bf16.msra.mxu0 %v5322
      %5956 = vmatpush.bf16.msra.mxu0 %v5318
      %5957 = vmatpush.bf16.msra.mxu0 %v5314
      %5958 = vmatpush.bf16.msra.mxu0 %v5310
      %5959 = vmatpush.bf16.msra.mxu0 %v5306
      %5960 = vmatpush.bf16.msra.mxu0 %v5302
      %5961 = vmatpush.bf16.msra.mxu0 %v5298
      %5962 = vmatpush.bf16.msra.mxu0 %v5294
      %5963 = vmatmul.bf16.gmra.mxu0 %v753
      %v5964 = vpop.f32.mrf.mxu0
      %v5965 = vadd.f32 %v5952, %v5964
      %v5966 = vpop.f32.mrf.mxu0
      %5967 = vdwg.mxu0
      %5968 = vmatpush.bf16.msra.mxu0 %v5354
      %5969 = vmatpush.bf16.msra.mxu0 %v5350
      %5970 = vmatpush.bf16.msra.mxu0 %v5346
      %5971 = vmatpush.bf16.msra.mxu0 %v5342
      %5972 = vmatpush.bf16.msra.mxu0 %v5338
      %5973 = vmatpush.bf16.msra.mxu0 %v5334
      %5974 = vmatpush.bf16.msra.mxu0 %v5330
      %5975 = vmatpush.bf16.msra.mxu0 %v5326
      %5976 = vmatmul.bf16.gmra.mxu0 %v754
      %v5977 = vpop.f32.mrf.mxu0
      %v5978 = vadd.f32 %v5965, %v5977
      %v5979 = vpop.f32.mrf.mxu0
      %5980 = vdwg.mxu0
      %5981 = vmatpush.bf16.msra.mxu0 %v5386
      %5982 = vmatpush.bf16.msra.mxu0 %v5382
      %5983 = vmatpush.bf16.msra.mxu0 %v5378
      %5984 = vmatpush.bf16.msra.mxu0 %v5374
      %5985 = vmatpush.bf16.msra.mxu0 %v5370
      %5986 = vmatpush.bf16.msra.mxu0 %v5366
      %5987 = vmatpush.bf16.msra.mxu0 %v5362
      %5988 = vmatpush.bf16.msra.mxu0 %v5358
      %5989 = vmatmul.bf16.gmra.mxu0 %v755
      %v5990 = vpop.f32.mrf.mxu0
      %v5991 = vadd.f32 %v5978, %v5990
      %v5992 = vpop.f32.mrf.mxu0
      %5993 = vdwg.mxu0
      %5994 = vmatpush.bf16.msra.mxu0 %v5418
      %5995 = vmatpush.bf16.msra.mxu0 %v5414
      %5996 = vmatpush.bf16.msra.mxu0 %v5410
      %5997 = vmatpush.bf16.msra.mxu0 %v5406
      %5998 = vmatpush.bf16.msra.mxu0 %v5402
      %5999 = vmatpush.bf16.msra.mxu0 %v5398
      %6000 = vmatpush.bf16.msra.mxu0 %v5394
      %6001 = vmatpush.bf16.msra.mxu0 %v5390
      %6002 = vmatmul.bf16.gmra.mxu0 %v756
      %v6003 = vpop.f32.mrf.mxu0
      %v6004 = vadd.f32 %v5991, %v6003
      %v6005 = vpop.f32.mrf.mxu0
      %6006 = vdwg.mxu0
      %6007 = vmatpush.bf16.msra.mxu0 %v5450
      %6008 = vmatpush.bf16.msra.mxu0 %v5446
      %6009 = vmatpush.bf16.msra.mxu0 %v5442
      %6010 = vmatpush.bf16.msra.mxu0 %v5438
      %6011 = vmatpush.bf16.msra.mxu0 %v5434
      %6012 = vmatpush.bf16.msra.mxu0 %v5430
      %6013 = vmatpush.bf16.msra.mxu0 %v5426
      %6014 = vmatpush.bf16.msra.mxu0 %v5422
      %6015 = vmatmul.bf16.gmra.mxu0 %v757
      %v6016 = vpop.f32.mrf.mxu0
      %v6017 = vadd.f32 %v6004, %v6016
      %v6018 = vpop.f32.mrf.mxu0
      %6019 = vdwg.mxu0
      %6020 = vmatpush.bf16.msra.mxu0 %v5227
      %6021 = vmatpush.bf16.msra.mxu0 %v5223
      %6022 = vmatpush.bf16.msra.mxu0 %v5219
      %6023 = vmatpush.bf16.msra.mxu0 %v5215
      %6024 = vmatpush.bf16.msra.mxu0 %v5211
      %6025 = vmatpush.bf16.msra.mxu0 %v5207
      %6026 = vmatpush.bf16.msra.mxu0 %v5203
      %6027 = vmatpush.bf16.msra.mxu0 %v5199
      %6028 = vmatmul.bf16.gmra.mxu0 %v750
      %v6029 = vpop.f32.mrf.mxu0
      %v6030 = vadd.f32 0.0, %v6029
      %v6031 = vpop.f32.mrf.mxu0
      %6032 = vdwg.mxu0
      %6033 = vmatpush.bf16.msra.mxu0 %v5259
      %6034 = vmatpush.bf16.msra.mxu0 %v5255
      %6035 = vmatpush.bf16.msra.mxu0 %v5251
      %6036 = vmatpush.bf16.msra.mxu0 %v5247
      %6037 = vmatpush.bf16.msra.mxu0 %v5243
      %6038 = vmatpush.bf16.msra.mxu0 %v5239
      %6039 = vmatpush.bf16.msra.mxu0 %v5235
      %6040 = vmatpush.bf16.msra.mxu0 %v5231
      %6041 = vmatmul.bf16.gmra.mxu0 %v751
      %v6042 = vpop.f32.mrf.mxu0
      %v6043 = vadd.f32 %v6030, %v6042
      %v6044 = vpop.f32.mrf.mxu0
      %6045 = vdwg.mxu0
      %6046 = vmatpush.bf16.msra.mxu0 %v5291
      %6047 = vmatpush.bf16.msra.mxu0 %v5287
      %6048 = vmatpush.bf16.msra.mxu0 %v5283
      %6049 = vmatpush.bf16.msra.mxu0 %v5279
      %6050 = vmatpush.bf16.msra.mxu0 %v5275
      %6051 = vmatpush.bf16.msra.mxu0 %v5271
      %6052 = vmatpush.bf16.msra.mxu0 %v5267
      %6053 = vmatpush.bf16.msra.mxu0 %v5263
      %6054 = vmatmul.bf16.gmra.mxu0 %v752
      %v6055 = vpop.f32.mrf.mxu0
      %v6056 = vadd.f32 %v6043, %v6055
      %v6057 = vpop.f32.mrf.mxu0
      %6058 = vdwg.mxu0
      %6059 = vmatpush.bf16.msra.mxu0 %v5323
      %6060 = vmatpush.bf16.msra.mxu0 %v5319
      %6061 = vmatpush.bf16.msra.mxu0 %v5315
      %6062 = vmatpush.bf16.msra.mxu0 %v5311
      %6063 = vmatpush.bf16.msra.mxu0 %v5307
      %6064 = vmatpush.bf16.msra.mxu0 %v5303
      %6065 = vmatpush.bf16.msra.mxu0 %v5299
      %6066 = vmatpush.bf16.msra.mxu0 %v5295
      %6067 = vmatmul.bf16.gmra.mxu0 %v753
      %v6068 = vpop.f32.mrf.mxu0
      %v6069 = vadd.f32 %v6056, %v6068
      %v6070 = vpop.f32.mrf.mxu0
      %6071 = vdwg.mxu0
      %6072 = vmatpush.bf16.msra.mxu0 %v5355
      %6073 = vmatpush.bf16.msra.mxu0 %v5351
      %6074 = vmatpush.bf16.msra.mxu0 %v5347
      %6075 = vmatpush.bf16.msra.mxu0 %v5343
      %6076 = vmatpush.bf16.msra.mxu0 %v5339
      %6077 = vmatpush.bf16.msra.mxu0 %v5335
      %6078 = vmatpush.bf16.msra.mxu0 %v5331
      %6079 = vmatpush.bf16.msra.mxu0 %v5327
      %6080 = vmatmul.bf16.gmra.mxu0 %v754
      %v6081 = vpop.f32.mrf.mxu0
      %v6082 = vadd.f32 %v6069, %v6081
      %v6083 = vpop.f32.mrf.mxu0
      %6084 = vdwg.mxu0
      %6085 = vmatpush.bf16.msra.mxu0 %v5387
      %6086 = vmatpush.bf16.msra.mxu0 %v5383
      %6087 = vmatpush.bf16.msra.mxu0 %v5379
      %6088 = vmatpush.bf16.msra.mxu0 %v5375
      %6089 = vmatpush.bf16.msra.mxu0 %v5371
      %6090 = vmatpush.bf16.msra.mxu0 %v5367
      %6091 = vmatpush.bf16.msra.mxu0 %v5363
      %6092 = vmatpush.bf16.msra.mxu0 %v5359
      %6093 = vmatmul.bf16.gmra.mxu0 %v755
      %v6094 = vpop.f32.mrf.mxu0
      %v6095 = vadd.f32 %v6082, %v6094
      %v6096 = vpop.f32.mrf.mxu0
      %6097 = vdwg.mxu0
      %6098 = vmatpush.bf16.msra.mxu0 %v5419
      %6099 = vmatpush.bf16.msra.mxu0 %v5415
      %6100 = vmatpush.bf16.msra.mxu0 %v5411
      %6101 = vmatpush.bf16.msra.mxu0 %v5407
      %6102 = vmatpush.bf16.msra.mxu0 %v5403
      %6103 = vmatpush.bf16.msra.mxu0 %v5399
      %6104 = vmatpush.bf16.msra.mxu0 %v5395
      %6105 = vmatpush.bf16.msra.mxu0 %v5391
      %6106 = vmatmul.bf16.gmra.mxu0 %v756
      %v6107 = vpop.f32.mrf.mxu0
      %v6108 = vadd.f32 %v6095, %v6107
      %v6109 = vpop.f32.mrf.mxu0
      %6110 = vdwg.mxu0
      %6111 = vmatpush.bf16.msra.mxu0 %v5451
      %6112 = vmatpush.bf16.msra.mxu0 %v5447
      %6113 = vmatpush.bf16.msra.mxu0 %v5443
      %6114 = vmatpush.bf16.msra.mxu0 %v5439
      %6115 = vmatpush.bf16.msra.mxu0 %v5435
      %6116 = vmatpush.bf16.msra.mxu0 %v5431
      %6117 = vmatpush.bf16.msra.mxu0 %v5427
      %6118 = vmatpush.bf16.msra.mxu0 %v5423
      %6119 = vmatmul.bf16.gmra.mxu0 %v757
      %v6120 = vpop.f32.mrf.mxu0
      %v6121 = vadd.f32 %v6108, %v6120
      %v6122 = vpop.f32.mrf.mxu0
      %6123 = vdwg.mxu0
      %v6124 = vrot.slane %v5809, 7
      %v6125 = vrot.slane %v5913, 7
      %v6126 = vrot.slane %v6017, 7
      %v6127 = vrot.slane %v6121, 7
      %vm6128 = vcmp.ge.s32.totalorder %v481, 1
      %vm6129 = vmand %vm6128, %vm2467
      %v6130 = vsel %vm6129, 1, 0
      %vm6131 = vcmp.eq.s32.totalorder %v6130, 1
      %v6132 = vsel %vm6131, %v6124, 0.0
      %v6133 = vsel %vm6131, %v6125, 0.0
      %v6134 = vsel %vm6131, %v6126, 0.0
      %v6135 = vsel %vm6131, %v6127, 0.0
      %v6136 = vadd.f32 %v3856, %v6132
      %v6137 = vadd.f32 %v3960, %v6133
      %v6138 = vadd.f32 %v4064, %v6134
      %v6139 = vadd.f32 %v4168, %v6135
      %s6140 = scalar_lea.vmem %s1, 6144
      %v6141 = vld [vmem:[%s6140] sm:$0xff]
      %v6142 = vld [vmem:[%s6140 + $0x8] sm:$0xff]
      %v6143 = vld [vmem:[%s6140 + $0x10] sm:$0xff]
      %v6144 = vld [vmem:[%s6140 + $0x18] sm:$0xff]
      %v6145 = vld [vmem:[%s6140 + $0x20] sm:$0xff]
      %v6146 = vld [vmem:[%s6140 + $0x28] sm:$0xff]
      %v6147 = vld [vmem:[%s6140 + $0x30] sm:$0xff]
      %v6148 = vld [vmem:[%s6140 + $0x38] sm:$0xff]
      %v6149 = vld [vmem:[%s6140 + $0x40] sm:$0xff]
      %v6150 = vld [vmem:[%s6140 + $0x48] sm:$0xff]
      %v6151 = vld [vmem:[%s6140 + $0x50] sm:$0xff]
      %v6152 = vld [vmem:[%s6140 + $0x58] sm:$0xff]
      %v6153 = vld [vmem:[%s6140 + $0x60] sm:$0xff]
      %v6154 = vld [vmem:[%s6140 + $0x68] sm:$0xff]
      %v6155 = vld [vmem:[%s6140 + $0x70] sm:$0xff]
      %v6156 = vld [vmem:[%s6140 + $0x78] sm:$0xff]
      %v6157 = vld [vmem:[%s6140 + $0x80] sm:$0xff]
      %v6158 = vld [vmem:[%s6140 + $0x88] sm:$0xff]
      %v6159 = vld [vmem:[%s6140 + $0x90] sm:$0xff]
      %v6160 = vld [vmem:[%s6140 + $0x98] sm:$0xff]
      %v6161 = vld [vmem:[%s6140 + $0xa0] sm:$0xff]
      %v6162 = vld [vmem:[%s6140 + $0xa8] sm:$0xff]
      %v6163 = vld [vmem:[%s6140 + $0xb0] sm:$0xff]
      %v6164 = vld [vmem:[%s6140 + $0xb8] sm:$0xff]
      %v6165 = vld [vmem:[%s6140 + $0xc0] sm:$0xff]
      %v6166 = vld [vmem:[%s6140 + $0xc8] sm:$0xff]
      %v6167 = vld [vmem:[%s6140 + $0xd0] sm:$0xff]
      %v6168 = vld [vmem:[%s6140 + $0xd8] sm:$0xff]
      %v6169 = vld [vmem:[%s6140 + $0xe0] sm:$0xff]
      %v6170 = vld [vmem:[%s6140 + $0xe8] sm:$0xff]
      %v6171 = vld [vmem:[%s6140 + $0xf0] sm:$0xff]
      %v6172 = vld [vmem:[%s6140 + $0xf8] sm:$0xff]
      %v6173 = vld [vmem:[%s6140 + $0x100] sm:$0xff]
      %v6174 = vld [vmem:[%s6140 + $0x108] sm:$0xff]
      %v6175 = vld [vmem:[%s6140 + $0x110] sm:$0xff]
      %v6176 = vld [vmem:[%s6140 + $0x118] sm:$0xff]
      %v6177 = vld [vmem:[%s6140 + $0x120] sm:$0xff]
      %v6178 = vld [vmem:[%s6140 + $0x128] sm:$0xff]
      %v6179 = vld [vmem:[%s6140 + $0x130] sm:$0xff]
      %v6180 = vld [vmem:[%s6140 + $0x138] sm:$0xff]
      %v6181 = vld [vmem:[%s6140 + $0x140] sm:$0xff]
      %v6182 = vld [vmem:[%s6140 + $0x148] sm:$0xff]
      %v6183 = vld [vmem:[%s6140 + $0x150] sm:$0xff]
      %v6184 = vld [vmem:[%s6140 + $0x158] sm:$0xff]
      %v6185 = vld [vmem:[%s6140 + $0x160] sm:$0xff]
      %v6186 = vld [vmem:[%s6140 + $0x168] sm:$0xff]
      %v6187 = vld [vmem:[%s6140 + $0x170] sm:$0xff]
      %v6188 = vld [vmem:[%s6140 + $0x178] sm:$0xff]
      %v6189 = vld [vmem:[%s6140 + $0x180] sm:$0xff]
      %v6190 = vld [vmem:[%s6140 + $0x188] sm:$0xff]
      %v6191 = vld [vmem:[%s6140 + $0x190] sm:$0xff]
      %v6192 = vld [vmem:[%s6140 + $0x198] sm:$0xff]
      %v6193 = vld [vmem:[%s6140 + $0x1a0] sm:$0xff]
      %v6194 = vld [vmem:[%s6140 + $0x1a8] sm:$0xff]
      %v6195 = vld [vmem:[%s6140 + $0x1b0] sm:$0xff]
      %v6196 = vld [vmem:[%s6140 + $0x1b8] sm:$0xff]
      %v6197 = vld [vmem:[%s6140 + $0x1c0] sm:$0xff]
      %v6198 = vld [vmem:[%s6140 + $0x1c8] sm:$0xff]
      %v6199 = vld [vmem:[%s6140 + $0x1d0] sm:$0xff]
      %v6200 = vld [vmem:[%s6140 + $0x1d8] sm:$0xff]
      %v6201 = vld [vmem:[%s6140 + $0x1e0] sm:$0xff]
      %v6202 = vld [vmem:[%s6140 + $0x1e8] sm:$0xff]
      %v6203 = vld [vmem:[%s6140 + $0x1f0] sm:$0xff]
      %v6204 = vld [vmem:[%s6140 + $0x1f8] sm:$0xff]
      %v6205 = vld [vmem:[%s6140 + $0x200] sm:$0xff]
      %v6206 = vld [vmem:[%s6140 + $0x208] sm:$0xff]
      %v6207 = vld [vmem:[%s6140 + $0x210] sm:$0xff]
      %v6208 = vld [vmem:[%s6140 + $0x218] sm:$0xff]
      %v6209 = vld [vmem:[%s6140 + $0x220] sm:$0xff]
      %v6210 = vld [vmem:[%s6140 + $0x228] sm:$0xff]
      %v6211 = vld [vmem:[%s6140 + $0x230] sm:$0xff]
      %v6212 = vld [vmem:[%s6140 + $0x238] sm:$0xff]
      %v6213 = vld [vmem:[%s6140 + $0x240] sm:$0xff]
      %v6214 = vld [vmem:[%s6140 + $0x248] sm:$0xff]
      %v6215 = vld [vmem:[%s6140 + $0x250] sm:$0xff]
      %v6216 = vld [vmem:[%s6140 + $0x258] sm:$0xff]
      %v6217 = vld [vmem:[%s6140 + $0x260] sm:$0xff]
      %v6218 = vld [vmem:[%s6140 + $0x268] sm:$0xff]
      %v6219 = vld [vmem:[%s6140 + $0x270] sm:$0xff]
      %v6220 = vld [vmem:[%s6140 + $0x278] sm:$0xff]
      %v6221 = vld [vmem:[%s6140 + $0x280] sm:$0xff]
      %v6222 = vld [vmem:[%s6140 + $0x288] sm:$0xff]
      %v6223 = vld [vmem:[%s6140 + $0x290] sm:$0xff]
      %v6224 = vld [vmem:[%s6140 + $0x298] sm:$0xff]
      %v6225 = vld [vmem:[%s6140 + $0x2a0] sm:$0xff]
      %v6226 = vld [vmem:[%s6140 + $0x2a8] sm:$0xff]
      %v6227 = vld [vmem:[%s6140 + $0x2b0] sm:$0xff]
      %v6228 = vld [vmem:[%s6140 + $0x2b8] sm:$0xff]
      %v6229 = vld [vmem:[%s6140 + $0x2c0] sm:$0xff]
      %v6230 = vld [vmem:[%s6140 + $0x2c8] sm:$0xff]
      %v6231 = vld [vmem:[%s6140 + $0x2d0] sm:$0xff]
      %v6232 = vld [vmem:[%s6140 + $0x2d8] sm:$0xff]
      %v6233 = vld [vmem:[%s6140 + $0x2e0] sm:$0xff]
      %v6234 = vld [vmem:[%s6140 + $0x2e8] sm:$0xff]
      %v6235 = vld [vmem:[%s6140 + $0x2f0] sm:$0xff]
      %v6236 = vld [vmem:[%s6140 + $0x2f8] sm:$0xff]
      %v6237 = vld [vmem:[%s6140 + $0x300] sm:$0xff]
      %v6238 = vld [vmem:[%s6140 + $0x308] sm:$0xff]
      %v6239 = vld [vmem:[%s6140 + $0x310] sm:$0xff]
      %v6240 = vld [vmem:[%s6140 + $0x318] sm:$0xff]
      %v6241 = vld [vmem:[%s6140 + $0x320] sm:$0xff]
      %v6242 = vld [vmem:[%s6140 + $0x328] sm:$0xff]
      %v6243 = vld [vmem:[%s6140 + $0x330] sm:$0xff]
      %v6244 = vld [vmem:[%s6140 + $0x338] sm:$0xff]
      %v6245 = vld [vmem:[%s6140 + $0x340] sm:$0xff]
      %v6246 = vld [vmem:[%s6140 + $0x348] sm:$0xff]
      %v6247 = vld [vmem:[%s6140 + $0x350] sm:$0xff]
      %v6248 = vld [vmem:[%s6140 + $0x358] sm:$0xff]
      %v6249 = vld [vmem:[%s6140 + $0x360] sm:$0xff]
      %v6250 = vld [vmem:[%s6140 + $0x368] sm:$0xff]
      %v6251 = vld [vmem:[%s6140 + $0x370] sm:$0xff]
      %v6252 = vld [vmem:[%s6140 + $0x378] sm:$0xff]
      %v6253 = vld [vmem:[%s6140 + $0x380] sm:$0xff]
      %v6254 = vld [vmem:[%s6140 + $0x388] sm:$0xff]
      %v6255 = vld [vmem:[%s6140 + $0x390] sm:$0xff]
      %v6256 = vld [vmem:[%s6140 + $0x398] sm:$0xff]
      %v6257 = vld [vmem:[%s6140 + $0x3a0] sm:$0xff]
      %v6258 = vld [vmem:[%s6140 + $0x3a8] sm:$0xff]
      %v6259 = vld [vmem:[%s6140 + $0x3b0] sm:$0xff]
      %v6260 = vld [vmem:[%s6140 + $0x3b8] sm:$0xff]
      %v6261 = vld [vmem:[%s6140 + $0x3c0] sm:$0xff]
      %v6262 = vld [vmem:[%s6140 + $0x3c8] sm:$0xff]
      %v6263 = vld [vmem:[%s6140 + $0x3d0] sm:$0xff]
      %v6264 = vld [vmem:[%s6140 + $0x3d8] sm:$0xff]
      %v6265 = vld [vmem:[%s6140 + $0x3e0] sm:$0xff]
      %v6266 = vld [vmem:[%s6140 + $0x3e8] sm:$0xff]
      %v6267 = vld [vmem:[%s6140 + $0x3f0] sm:$0xff]
      %v6268 = vld [vmem:[%s6140 + $0x3f8] sm:$0xff]
      %v6269 = vld [vmem:[%s6140 + $0x400] sm:$0xff]
      %v6270 = vld [vmem:[%s6140 + $0x408] sm:$0xff]
      %v6271 = vld [vmem:[%s6140 + $0x410] sm:$0xff]
      %v6272 = vld [vmem:[%s6140 + $0x418] sm:$0xff]
      %v6273 = vld [vmem:[%s6140 + $0x420] sm:$0xff]
      %v6274 = vld [vmem:[%s6140 + $0x428] sm:$0xff]
      %v6275 = vld [vmem:[%s6140 + $0x430] sm:$0xff]
      %v6276 = vld [vmem:[%s6140 + $0x438] sm:$0xff]
      %v6277 = vld [vmem:[%s6140 + $0x440] sm:$0xff]
      %v6278 = vld [vmem:[%s6140 + $0x448] sm:$0xff]
      %v6279 = vld [vmem:[%s6140 + $0x450] sm:$0xff]
      %v6280 = vld [vmem:[%s6140 + $0x458] sm:$0xff]
      %v6281 = vld [vmem:[%s6140 + $0x460] sm:$0xff]
      %v6282 = vld [vmem:[%s6140 + $0x468] sm:$0xff]
      %v6283 = vld [vmem:[%s6140 + $0x470] sm:$0xff]
      %v6284 = vld [vmem:[%s6140 + $0x478] sm:$0xff]
      %v6285 = vld [vmem:[%s6140 + $0x480] sm:$0xff]
      %v6286 = vld [vmem:[%s6140 + $0x488] sm:$0xff]
      %v6287 = vld [vmem:[%s6140 + $0x490] sm:$0xff]
      %v6288 = vld [vmem:[%s6140 + $0x498] sm:$0xff]
      %v6289 = vld [vmem:[%s6140 + $0x4a0] sm:$0xff]
      %v6290 = vld [vmem:[%s6140 + $0x4a8] sm:$0xff]
      %v6291 = vld [vmem:[%s6140 + $0x4b0] sm:$0xff]
      %v6292 = vld [vmem:[%s6140 + $0x4b8] sm:$0xff]
      %v6293 = vld [vmem:[%s6140 + $0x4c0] sm:$0xff]
      %v6294 = vld [vmem:[%s6140 + $0x4c8] sm:$0xff]
      %v6295 = vld [vmem:[%s6140 + $0x4d0] sm:$0xff]
      %v6296 = vld [vmem:[%s6140 + $0x4d8] sm:$0xff]
      %v6297 = vld [vmem:[%s6140 + $0x4e0] sm:$0xff]
      %v6298 = vld [vmem:[%s6140 + $0x4e8] sm:$0xff]
      %v6299 = vld [vmem:[%s6140 + $0x4f0] sm:$0xff]
      %v6300 = vld [vmem:[%s6140 + $0x4f8] sm:$0xff]
      %v6301 = vld [vmem:[%s6140 + $0x500] sm:$0xff]
      %v6302 = vld [vmem:[%s6140 + $0x508] sm:$0xff]
      %v6303 = vld [vmem:[%s6140 + $0x510] sm:$0xff]
      %v6304 = vld [vmem:[%s6140 + $0x518] sm:$0xff]
      %v6305 = vld [vmem:[%s6140 + $0x520] sm:$0xff]
      %v6306 = vld [vmem:[%s6140 + $0x528] sm:$0xff]
      %v6307 = vld [vmem:[%s6140 + $0x530] sm:$0xff]
      %v6308 = vld [vmem:[%s6140 + $0x538] sm:$0xff]
      %v6309 = vld [vmem:[%s6140 + $0x540] sm:$0xff]
      %v6310 = vld [vmem:[%s6140 + $0x548] sm:$0xff]
      %v6311 = vld [vmem:[%s6140 + $0x550] sm:$0xff]
      %v6312 = vld [vmem:[%s6140 + $0x558] sm:$0xff]
      %v6313 = vld [vmem:[%s6140 + $0x560] sm:$0xff]
      %v6314 = vld [vmem:[%s6140 + $0x568] sm:$0xff]
      %v6315 = vld [vmem:[%s6140 + $0x570] sm:$0xff]
      %v6316 = vld [vmem:[%s6140 + $0x578] sm:$0xff]
      %v6317 = vld [vmem:[%s6140 + $0x580] sm:$0xff]
      %v6318 = vld [vmem:[%s6140 + $0x588] sm:$0xff]
      %v6319 = vld [vmem:[%s6140 + $0x590] sm:$0xff]
      %v6320 = vld [vmem:[%s6140 + $0x598] sm:$0xff]
      %v6321 = vld [vmem:[%s6140 + $0x5a0] sm:$0xff]
      %v6322 = vld [vmem:[%s6140 + $0x5a8] sm:$0xff]
      %v6323 = vld [vmem:[%s6140 + $0x5b0] sm:$0xff]
      %v6324 = vld [vmem:[%s6140 + $0x5b8] sm:$0xff]
      %v6325 = vld [vmem:[%s6140 + $0x5c0] sm:$0xff]
      %v6326 = vld [vmem:[%s6140 + $0x5c8] sm:$0xff]
      %v6327 = vld [vmem:[%s6140 + $0x5d0] sm:$0xff]
      %v6328 = vld [vmem:[%s6140 + $0x5d8] sm:$0xff]
      %v6329 = vld [vmem:[%s6140 + $0x5e0] sm:$0xff]
      %v6330 = vld [vmem:[%s6140 + $0x5e8] sm:$0xff]
      %v6331 = vld [vmem:[%s6140 + $0x5f0] sm:$0xff]
      %v6332 = vld [vmem:[%s6140 + $0x5f8] sm:$0xff]
      %v6333 = vld [vmem:[%s6140 + $0x600] sm:$0xff]
      %v6334 = vld [vmem:[%s6140 + $0x608] sm:$0xff]
      %v6335 = vld [vmem:[%s6140 + $0x610] sm:$0xff]
      %v6336 = vld [vmem:[%s6140 + $0x618] sm:$0xff]
      %v6337 = vld [vmem:[%s6140 + $0x620] sm:$0xff]
      %v6338 = vld [vmem:[%s6140 + $0x628] sm:$0xff]
      %v6339 = vld [vmem:[%s6140 + $0x630] sm:$0xff]
      %v6340 = vld [vmem:[%s6140 + $0x638] sm:$0xff]
      %v6341 = vld [vmem:[%s6140 + $0x640] sm:$0xff]
      %v6342 = vld [vmem:[%s6140 + $0x648] sm:$0xff]
      %v6343 = vld [vmem:[%s6140 + $0x650] sm:$0xff]
      %v6344 = vld [vmem:[%s6140 + $0x658] sm:$0xff]
      %v6345 = vld [vmem:[%s6140 + $0x660] sm:$0xff]
      %v6346 = vld [vmem:[%s6140 + $0x668] sm:$0xff]
      %v6347 = vld [vmem:[%s6140 + $0x670] sm:$0xff]
      %v6348 = vld [vmem:[%s6140 + $0x678] sm:$0xff]
      %v6349 = vld [vmem:[%s6140 + $0x680] sm:$0xff]
      %v6350 = vld [vmem:[%s6140 + $0x688] sm:$0xff]
      %v6351 = vld [vmem:[%s6140 + $0x690] sm:$0xff]
      %v6352 = vld [vmem:[%s6140 + $0x698] sm:$0xff]
      %v6353 = vld [vmem:[%s6140 + $0x6a0] sm:$0xff]
      %v6354 = vld [vmem:[%s6140 + $0x6a8] sm:$0xff]
      %v6355 = vld [vmem:[%s6140 + $0x6b0] sm:$0xff]
      %v6356 = vld [vmem:[%s6140 + $0x6b8] sm:$0xff]
      %v6357 = vld [vmem:[%s6140 + $0x6c0] sm:$0xff]
      %v6358 = vld [vmem:[%s6140 + $0x6c8] sm:$0xff]
      %v6359 = vld [vmem:[%s6140 + $0x6d0] sm:$0xff]
      %v6360 = vld [vmem:[%s6140 + $0x6d8] sm:$0xff]
      %v6361 = vld [vmem:[%s6140 + $0x6e0] sm:$0xff]
      %v6362 = vld [vmem:[%s6140 + $0x6e8] sm:$0xff]
      %v6363 = vld [vmem:[%s6140 + $0x6f0] sm:$0xff]
      %v6364 = vld [vmem:[%s6140 + $0x6f8] sm:$0xff]
      %v6365 = vld [vmem:[%s6140 + $0x700] sm:$0xff]
      %v6366 = vld [vmem:[%s6140 + $0x708] sm:$0xff]
      %v6367 = vld [vmem:[%s6140 + $0x710] sm:$0xff]
      %v6368 = vld [vmem:[%s6140 + $0x718] sm:$0xff]
      %v6369 = vld [vmem:[%s6140 + $0x720] sm:$0xff]
      %v6370 = vld [vmem:[%s6140 + $0x728] sm:$0xff]
      %v6371 = vld [vmem:[%s6140 + $0x730] sm:$0xff]
      %v6372 = vld [vmem:[%s6140 + $0x738] sm:$0xff]
      %v6373 = vld [vmem:[%s6140 + $0x740] sm:$0xff]
      %v6374 = vld [vmem:[%s6140 + $0x748] sm:$0xff]
      %v6375 = vld [vmem:[%s6140 + $0x750] sm:$0xff]
      %v6376 = vld [vmem:[%s6140 + $0x758] sm:$0xff]
      %v6377 = vld [vmem:[%s6140 + $0x760] sm:$0xff]
      %v6378 = vld [vmem:[%s6140 + $0x768] sm:$0xff]
      %v6379 = vld [vmem:[%s6140 + $0x770] sm:$0xff]
      %v6380 = vld [vmem:[%s6140 + $0x778] sm:$0xff]
      %v6381 = vld [vmem:[%s6140 + $0x780] sm:$0xff]
      %v6382 = vld [vmem:[%s6140 + $0x788] sm:$0xff]
      %v6383 = vld [vmem:[%s6140 + $0x790] sm:$0xff]
      %v6384 = vld [vmem:[%s6140 + $0x798] sm:$0xff]
      %v6385 = vld [vmem:[%s6140 + $0x7a0] sm:$0xff]
      %v6386 = vld [vmem:[%s6140 + $0x7a8] sm:$0xff]
      %v6387 = vld [vmem:[%s6140 + $0x7b0] sm:$0xff]
      %v6388 = vld [vmem:[%s6140 + $0x7b8] sm:$0xff]
      %v6389 = vld [vmem:[%s6140 + $0x7c0] sm:$0xff]
      %v6390 = vld [vmem:[%s6140 + $0x7c8] sm:$0xff]
      %v6391 = vld [vmem:[%s6140 + $0x7d0] sm:$0xff]
      %v6392 = vld [vmem:[%s6140 + $0x7d8] sm:$0xff]
      %v6393 = vld [vmem:[%s6140 + $0x7e0] sm:$0xff]
      %v6394 = vld [vmem:[%s6140 + $0x7e8] sm:$0xff]
      %v6395 = vld [vmem:[%s6140 + $0x7f0] sm:$0xff]
      %v6396 = vld [vmem:[%s6140 + $0x7f8] sm:$0xff]
      %v6653 = vunpack.c.l.b16 %v6141
      %v6654 = vunpack.c.h.b16 %v6141
      %v6655 = vunpack.c.l.b16 %v6142
      %v6656 = vunpack.c.h.b16 %v6142
      %v6657 = vunpack.c.l.b16 %v6143
      %v6658 = vunpack.c.h.b16 %v6143
      %v6659 = vunpack.c.l.b16 %v6144
      %v6660 = vunpack.c.h.b16 %v6144
      %v6661 = vunpack.c.l.b16 %v6145
      %v6662 = vunpack.c.h.b16 %v6145
      %v6663 = vunpack.c.l.b16 %v6146
      %v6664 = vunpack.c.h.b16 %v6146
      %v6665 = vunpack.c.l.b16 %v6147
      %v6666 = vunpack.c.h.b16 %v6147
      %v6667 = vunpack.c.l.b16 %v6148
      %v6668 = vunpack.c.h.b16 %v6148
      %v6669 = vunpack.c.l.b16 %v6149
      %v6670 = vunpack.c.h.b16 %v6149
      %v6671 = vunpack.c.l.b16 %v6150
      %v6672 = vunpack.c.h.b16 %v6150
      %v6673 = vunpack.c.l.b16 %v6151
      %v6674 = vunpack.c.h.b16 %v6151
      %v6675 = vunpack.c.l.b16 %v6152
      %v6676 = vunpack.c.h.b16 %v6152
      %v6677 = vunpack.c.l.b16 %v6153
      %v6678 = vunpack.c.h.b16 %v6153
      %v6679 = vunpack.c.l.b16 %v6154
      %v6680 = vunpack.c.h.b16 %v6154
      %v6681 = vunpack.c.l.b16 %v6155
      %v6682 = vunpack.c.h.b16 %v6155
      %v6683 = vunpack.c.l.b16 %v6156
      %v6684 = vunpack.c.h.b16 %v6156
      %v6685 = vunpack.c.l.b16 %v6157
      %v6686 = vunpack.c.h.b16 %v6157
      %v6687 = vunpack.c.l.b16 %v6158
      %v6688 = vunpack.c.h.b16 %v6158
      %v6689 = vunpack.c.l.b16 %v6159
      %v6690 = vunpack.c.h.b16 %v6159
      %v6691 = vunpack.c.l.b16 %v6160
      %v6692 = vunpack.c.h.b16 %v6160
      %v6693 = vunpack.c.l.b16 %v6161
      %v6694 = vunpack.c.h.b16 %v6161
      %v6695 = vunpack.c.l.b16 %v6162
      %v6696 = vunpack.c.h.b16 %v6162
      %v6697 = vunpack.c.l.b16 %v6163
      %v6698 = vunpack.c.h.b16 %v6163
      %v6699 = vunpack.c.l.b16 %v6164
      %v6700 = vunpack.c.h.b16 %v6164
      %v6701 = vunpack.c.l.b16 %v6165
      %v6702 = vunpack.c.h.b16 %v6165
      %v6703 = vunpack.c.l.b16 %v6166
      %v6704 = vunpack.c.h.b16 %v6166
      %v6705 = vunpack.c.l.b16 %v6167
      %v6706 = vunpack.c.h.b16 %v6167
      %v6707 = vunpack.c.l.b16 %v6168
      %v6708 = vunpack.c.h.b16 %v6168
      %v6709 = vunpack.c.l.b16 %v6169
      %v6710 = vunpack.c.h.b16 %v6169
      %v6711 = vunpack.c.l.b16 %v6170
      %v6712 = vunpack.c.h.b16 %v6170
      %v6713 = vunpack.c.l.b16 %v6171
      %v6714 = vunpack.c.h.b16 %v6171
      %v6715 = vunpack.c.l.b16 %v6172
      %v6716 = vunpack.c.h.b16 %v6172
      %v6717 = vunpack.c.l.b16 %v6173
      %v6718 = vunpack.c.h.b16 %v6173
      %v6719 = vunpack.c.l.b16 %v6174
      %v6720 = vunpack.c.h.b16 %v6174
      %v6721 = vunpack.c.l.b16 %v6175
      %v6722 = vunpack.c.h.b16 %v6175
      %v6723 = vunpack.c.l.b16 %v6176
      %v6724 = vunpack.c.h.b16 %v6176
      %v6725 = vunpack.c.l.b16 %v6177
      %v6726 = vunpack.c.h.b16 %v6177
      %v6727 = vunpack.c.l.b16 %v6178
      %v6728 = vunpack.c.h.b16 %v6178
      %v6729 = vunpack.c.l.b16 %v6179
      %v6730 = vunpack.c.h.b16 %v6179
      %v6731 = vunpack.c.l.b16 %v6180
      %v6732 = vunpack.c.h.b16 %v6180
      %v6733 = vunpack.c.l.b16 %v6181
      %v6734 = vunpack.c.h.b16 %v6181
      %v6735 = vunpack.c.l.b16 %v6182
      %v6736 = vunpack.c.h.b16 %v6182
      %v6737 = vunpack.c.l.b16 %v6183
      %v6738 = vunpack.c.h.b16 %v6183
      %v6739 = vunpack.c.l.b16 %v6184
      %v6740 = vunpack.c.h.b16 %v6184
      %v6741 = vunpack.c.l.b16 %v6185
      %v6742 = vunpack.c.h.b16 %v6185
      %v6743 = vunpack.c.l.b16 %v6186
      %v6744 = vunpack.c.h.b16 %v6186
      %v6745 = vunpack.c.l.b16 %v6187
      %v6746 = vunpack.c.h.b16 %v6187
      %v6747 = vunpack.c.l.b16 %v6188
      %v6748 = vunpack.c.h.b16 %v6188
      %v6749 = vunpack.c.l.b16 %v6189
      %v6750 = vunpack.c.h.b16 %v6189
      %v6751 = vunpack.c.l.b16 %v6190
      %v6752 = vunpack.c.h.b16 %v6190
      %v6753 = vunpack.c.l.b16 %v6191
      %v6754 = vunpack.c.h.b16 %v6191
      %v6755 = vunpack.c.l.b16 %v6192
      %v6756 = vunpack.c.h.b16 %v6192
      %v6757 = vunpack.c.l.b16 %v6193
      %v6758 = vunpack.c.h.b16 %v6193
      %v6759 = vunpack.c.l.b16 %v6194
      %v6760 = vunpack.c.h.b16 %v6194
      %v6761 = vunpack.c.l.b16 %v6195
      %v6762 = vunpack.c.h.b16 %v6195
      %v6763 = vunpack.c.l.b16 %v6196
      %v6764 = vunpack.c.h.b16 %v6196
      %v6765 = vunpack.c.l.b16 %v6197
      %v6766 = vunpack.c.h.b16 %v6197
      %v6767 = vunpack.c.l.b16 %v6198
      %v6768 = vunpack.c.h.b16 %v6198
      %v6769 = vunpack.c.l.b16 %v6199
      %v6770 = vunpack.c.h.b16 %v6199
      %v6771 = vunpack.c.l.b16 %v6200
      %v6772 = vunpack.c.h.b16 %v6200
      %v6773 = vunpack.c.l.b16 %v6201
      %v6774 = vunpack.c.h.b16 %v6201
      %v6775 = vunpack.c.l.b16 %v6202
      %v6776 = vunpack.c.h.b16 %v6202
      %v6777 = vunpack.c.l.b16 %v6203
      %v6778 = vunpack.c.h.b16 %v6203
      %v6779 = vunpack.c.l.b16 %v6204
      %v6780 = vunpack.c.h.b16 %v6204
      %v6781 = vunpack.c.l.b16 %v6205
      %v6782 = vunpack.c.h.b16 %v6205
      %v6783 = vunpack.c.l.b16 %v6206
      %v6784 = vunpack.c.h.b16 %v6206
      %v6785 = vunpack.c.l.b16 %v6207
      %v6786 = vunpack.c.h.b16 %v6207
      %v6787 = vunpack.c.l.b16 %v6208
      %v6788 = vunpack.c.h.b16 %v6208
      %v6789 = vunpack.c.l.b16 %v6209
      %v6790 = vunpack.c.h.b16 %v6209
      %v6791 = vunpack.c.l.b16 %v6210
      %v6792 = vunpack.c.h.b16 %v6210
      %v6793 = vunpack.c.l.b16 %v6211
      %v6794 = vunpack.c.h.b16 %v6211
      %v6795 = vunpack.c.l.b16 %v6212
      %v6796 = vunpack.c.h.b16 %v6212
      %v6797 = vunpack.c.l.b16 %v6213
      %v6798 = vunpack.c.h.b16 %v6213
      %v6799 = vunpack.c.l.b16 %v6214
      %v6800 = vunpack.c.h.b16 %v6214
      %v6801 = vunpack.c.l.b16 %v6215
      %v6802 = vunpack.c.h.b16 %v6215
      %v6803 = vunpack.c.l.b16 %v6216
      %v6804 = vunpack.c.h.b16 %v6216
      %v6805 = vunpack.c.l.b16 %v6217
      %v6806 = vunpack.c.h.b16 %v6217
      %v6807 = vunpack.c.l.b16 %v6218
      %v6808 = vunpack.c.h.b16 %v6218
      %v6809 = vunpack.c.l.b16 %v6219
      %v6810 = vunpack.c.h.b16 %v6219
      %v6811 = vunpack.c.l.b16 %v6220
      %v6812 = vunpack.c.h.b16 %v6220
      %v6813 = vunpack.c.l.b16 %v6221
      %v6814 = vunpack.c.h.b16 %v6221
      %v6815 = vunpack.c.l.b16 %v6222
      %v6816 = vunpack.c.h.b16 %v6222
      %v6817 = vunpack.c.l.b16 %v6223
      %v6818 = vunpack.c.h.b16 %v6223
      %v6819 = vunpack.c.l.b16 %v6224
      %v6820 = vunpack.c.h.b16 %v6224
      %v6821 = vunpack.c.l.b16 %v6225
      %v6822 = vunpack.c.h.b16 %v6225
      %v6823 = vunpack.c.l.b16 %v6226
      %v6824 = vunpack.c.h.b16 %v6226
      %v6825 = vunpack.c.l.b16 %v6227
      %v6826 = vunpack.c.h.b16 %v6227
      %v6827 = vunpack.c.l.b16 %v6228
      %v6828 = vunpack.c.h.b16 %v6228
      %v6829 = vunpack.c.l.b16 %v6229
      %v6830 = vunpack.c.h.b16 %v6229
      %v6831 = vunpack.c.l.b16 %v6230
      %v6832 = vunpack.c.h.b16 %v6230
      %v6833 = vunpack.c.l.b16 %v6231
      %v6834 = vunpack.c.h.b16 %v6231
      %v6835 = vunpack.c.l.b16 %v6232
      %v6836 = vunpack.c.h.b16 %v6232
      %v6837 = vunpack.c.l.b16 %v6233
      %v6838 = vunpack.c.h.b16 %v6233
      %v6839 = vunpack.c.l.b16 %v6234
      %v6840 = vunpack.c.h.b16 %v6234
      %v6841 = vunpack.c.l.b16 %v6235
      %v6842 = vunpack.c.h.b16 %v6235
      %v6843 = vunpack.c.l.b16 %v6236
      %v6844 = vunpack.c.h.b16 %v6236
      %v6845 = vunpack.c.l.b16 %v6237
      %v6846 = vunpack.c.h.b16 %v6237
      %v6847 = vunpack.c.l.b16 %v6238
      %v6848 = vunpack.c.h.b16 %v6238
      %v6849 = vunpack.c.l.b16 %v6239
      %v6850 = vunpack.c.h.b16 %v6239
      %v6851 = vunpack.c.l.b16 %v6240
      %v6852 = vunpack.c.h.b16 %v6240
      %v6853 = vunpack.c.l.b16 %v6241
      %v6854 = vunpack.c.h.b16 %v6241
      %v6855 = vunpack.c.l.b16 %v6242
      %v6856 = vunpack.c.h.b16 %v6242
      %v6857 = vunpack.c.l.b16 %v6243
      %v6858 = vunpack.c.h.b16 %v6243
      %v6859 = vunpack.c.l.b16 %v6244
      %v6860 = vunpack.c.h.b16 %v6244
      %v6861 = vunpack.c.l.b16 %v6245
      %v6862 = vunpack.c.h.b16 %v6245
      %v6863 = vunpack.c.l.b16 %v6246
      %v6864 = vunpack.c.h.b16 %v6246
      %v6865 = vunpack.c.l.b16 %v6247
      %v6866 = vunpack.c.h.b16 %v6247
      %v6867 = vunpack.c.l.b16 %v6248
      %v6868 = vunpack.c.h.b16 %v6248
      %v6869 = vunpack.c.l.b16 %v6249
      %v6870 = vunpack.c.h.b16 %v6249
      %v6871 = vunpack.c.l.b16 %v6250
      %v6872 = vunpack.c.h.b16 %v6250
      %v6873 = vunpack.c.l.b16 %v6251
      %v6874 = vunpack.c.h.b16 %v6251
      %v6875 = vunpack.c.l.b16 %v6252
      %v6876 = vunpack.c.h.b16 %v6252
      %v6877 = vunpack.c.l.b16 %v6253
      %v6878 = vunpack.c.h.b16 %v6253
      %v6879 = vunpack.c.l.b16 %v6254
      %v6880 = vunpack.c.h.b16 %v6254
      %v6881 = vunpack.c.l.b16 %v6255
      %v6882 = vunpack.c.h.b16 %v6255
      %v6883 = vunpack.c.l.b16 %v6256
      %v6884 = vunpack.c.h.b16 %v6256
      %v6885 = vunpack.c.l.b16 %v6257
      %v6886 = vunpack.c.h.b16 %v6257
      %v6887 = vunpack.c.l.b16 %v6258
      %v6888 = vunpack.c.h.b16 %v6258
      %v6889 = vunpack.c.l.b16 %v6259
      %v6890 = vunpack.c.h.b16 %v6259
      %v6891 = vunpack.c.l.b16 %v6260
      %v6892 = vunpack.c.h.b16 %v6260
      %v6893 = vunpack.c.l.b16 %v6261
      %v6894 = vunpack.c.h.b16 %v6261
      %v6895 = vunpack.c.l.b16 %v6262
      %v6896 = vunpack.c.h.b16 %v6262
      %v6897 = vunpack.c.l.b16 %v6263
      %v6898 = vunpack.c.h.b16 %v6263
      %v6899 = vunpack.c.l.b16 %v6264
      %v6900 = vunpack.c.h.b16 %v6264
      %v6901 = vunpack.c.l.b16 %v6265
      %v6902 = vunpack.c.h.b16 %v6265
      %v6903 = vunpack.c.l.b16 %v6266
      %v6904 = vunpack.c.h.b16 %v6266
      %v6905 = vunpack.c.l.b16 %v6267
      %v6906 = vunpack.c.h.b16 %v6267
      %v6907 = vunpack.c.l.b16 %v6268
      %v6908 = vunpack.c.h.b16 %v6268
      %v6909 = vunpack.c.l.b16 %v6269
      %v6910 = vunpack.c.h.b16 %v6269
      %v6911 = vunpack.c.l.b16 %v6270
      %v6912 = vunpack.c.h.b16 %v6270
      %v6913 = vunpack.c.l.b16 %v6271
      %v6914 = vunpack.c.h.b16 %v6271
      %v6915 = vunpack.c.l.b16 %v6272
      %v6916 = vunpack.c.h.b16 %v6272
      %v6917 = vunpack.c.l.b16 %v6273
      %v6918 = vunpack.c.h.b16 %v6273
      %v6919 = vunpack.c.l.b16 %v6274
      %v6920 = vunpack.c.h.b16 %v6274
      %v6921 = vunpack.c.l.b16 %v6275
      %v6922 = vunpack.c.h.b16 %v6275
      %v6923 = vunpack.c.l.b16 %v6276
      %v6924 = vunpack.c.h.b16 %v6276
      %v6925 = vunpack.c.l.b16 %v6277
      %v6926 = vunpack.c.h.b16 %v6277
      %v6927 = vunpack.c.l.b16 %v6278
      %v6928 = vunpack.c.h.b16 %v6278
      %v6929 = vunpack.c.l.b16 %v6279
      %v6930 = vunpack.c.h.b16 %v6279
      %v6931 = vunpack.c.l.b16 %v6280
      %v6932 = vunpack.c.h.b16 %v6280
      %v6933 = vunpack.c.l.b16 %v6281
      %v6934 = vunpack.c.h.b16 %v6281
      %v6935 = vunpack.c.l.b16 %v6282
      %v6936 = vunpack.c.h.b16 %v6282
      %v6937 = vunpack.c.l.b16 %v6283
      %v6938 = vunpack.c.h.b16 %v6283
      %v6939 = vunpack.c.l.b16 %v6284
      %v6940 = vunpack.c.h.b16 %v6284
      %v6941 = vunpack.c.l.b16 %v6285
      %v6942 = vunpack.c.h.b16 %v6285
      %v6943 = vunpack.c.l.b16 %v6286
      %v6944 = vunpack.c.h.b16 %v6286
      %v6945 = vunpack.c.l.b16 %v6287
      %v6946 = vunpack.c.h.b16 %v6287
      %v6947 = vunpack.c.l.b16 %v6288
      %v6948 = vunpack.c.h.b16 %v6288
      %v6949 = vunpack.c.l.b16 %v6289
      %v6950 = vunpack.c.h.b16 %v6289
      %v6951 = vunpack.c.l.b16 %v6290
      %v6952 = vunpack.c.h.b16 %v6290
      %v6953 = vunpack.c.l.b16 %v6291
      %v6954 = vunpack.c.h.b16 %v6291
      %v6955 = vunpack.c.l.b16 %v6292
      %v6956 = vunpack.c.h.b16 %v6292
      %v6957 = vunpack.c.l.b16 %v6293
      %v6958 = vunpack.c.h.b16 %v6293
      %v6959 = vunpack.c.l.b16 %v6294
      %v6960 = vunpack.c.h.b16 %v6294
      %v6961 = vunpack.c.l.b16 %v6295
      %v6962 = vunpack.c.h.b16 %v6295
      %v6963 = vunpack.c.l.b16 %v6296
      %v6964 = vunpack.c.h.b16 %v6296
      %v6965 = vunpack.c.l.b16 %v6297
      %v6966 = vunpack.c.h.b16 %v6297
      %v6967 = vunpack.c.l.b16 %v6298
      %v6968 = vunpack.c.h.b16 %v6298
      %v6969 = vunpack.c.l.b16 %v6299
      %v6970 = vunpack.c.h.b16 %v6299
      %v6971 = vunpack.c.l.b16 %v6300
      %v6972 = vunpack.c.h.b16 %v6300
      %v6973 = vunpack.c.l.b16 %v6301
      %v6974 = vunpack.c.h.b16 %v6301
      %v6975 = vunpack.c.l.b16 %v6302
      %v6976 = vunpack.c.h.b16 %v6302
      %v6977 = vunpack.c.l.b16 %v6303
      %v6978 = vunpack.c.h.b16 %v6303
      %v6979 = vunpack.c.l.b16 %v6304
      %v6980 = vunpack.c.h.b16 %v6304
      %v6981 = vunpack.c.l.b16 %v6305
      %v6982 = vunpack.c.h.b16 %v6305
      %v6983 = vunpack.c.l.b16 %v6306
      %v6984 = vunpack.c.h.b16 %v6306
      %v6985 = vunpack.c.l.b16 %v6307
      %v6986 = vunpack.c.h.b16 %v6307
      %v6987 = vunpack.c.l.b16 %v6308
      %v6988 = vunpack.c.h.b16 %v6308
      %v6989 = vunpack.c.l.b16 %v6309
      %v6990 = vunpack.c.h.b16 %v6309
      %v6991 = vunpack.c.l.b16 %v6310
      %v6992 = vunpack.c.h.b16 %v6310
      %v6993 = vunpack.c.l.b16 %v6311
      %v6994 = vunpack.c.h.b16 %v6311
      %v6995 = vunpack.c.l.b16 %v6312
      %v6996 = vunpack.c.h.b16 %v6312
      %v6997 = vunpack.c.l.b16 %v6313
      %v6998 = vunpack.c.h.b16 %v6313
      %v6999 = vunpack.c.l.b16 %v6314
      %v7000 = vunpack.c.h.b16 %v6314
      %v7001 = vunpack.c.l.b16 %v6315
      %v7002 = vunpack.c.h.b16 %v6315
      %v7003 = vunpack.c.l.b16 %v6316
      %v7004 = vunpack.c.h.b16 %v6316
      %v7005 = vunpack.c.l.b16 %v6317
      %v7006 = vunpack.c.h.b16 %v6317
      %v7007 = vunpack.c.l.b16 %v6318
      %v7008 = vunpack.c.h.b16 %v6318
      %v7009 = vunpack.c.l.b16 %v6319
      %v7010 = vunpack.c.h.b16 %v6319
      %v7011 = vunpack.c.l.b16 %v6320
      %v7012 = vunpack.c.h.b16 %v6320
      %v7013 = vunpack.c.l.b16 %v6321
      %v7014 = vunpack.c.h.b16 %v6321
      %v7015 = vunpack.c.l.b16 %v6322
      %v7016 = vunpack.c.h.b16 %v6322
      %v7017 = vunpack.c.l.b16 %v6323
      %v7018 = vunpack.c.h.b16 %v6323
      %v7019 = vunpack.c.l.b16 %v6324
      %v7020 = vunpack.c.h.b16 %v6324
      %v7021 = vunpack.c.l.b16 %v6325
      %v7022 = vunpack.c.h.b16 %v6325
      %v7023 = vunpack.c.l.b16 %v6326
      %v7024 = vunpack.c.h.b16 %v6326
      %v7025 = vunpack.c.l.b16 %v6327
      %v7026 = vunpack.c.h.b16 %v6327
      %v7027 = vunpack.c.l.b16 %v6328
      %v7028 = vunpack.c.h.b16 %v6328
      %v7029 = vunpack.c.l.b16 %v6329
      %v7030 = vunpack.c.h.b16 %v6329
      %v7031 = vunpack.c.l.b16 %v6330
      %v7032 = vunpack.c.h.b16 %v6330
      %v7033 = vunpack.c.l.b16 %v6331
      %v7034 = vunpack.c.h.b16 %v6331
      %v7035 = vunpack.c.l.b16 %v6332
      %v7036 = vunpack.c.h.b16 %v6332
      %v7037 = vunpack.c.l.b16 %v6333
      %v7038 = vunpack.c.h.b16 %v6333
      %v7039 = vunpack.c.l.b16 %v6334
      %v7040 = vunpack.c.h.b16 %v6334
      %v7041 = vunpack.c.l.b16 %v6335
      %v7042 = vunpack.c.h.b16 %v6335
      %v7043 = vunpack.c.l.b16 %v6336
      %v7044 = vunpack.c.h.b16 %v6336
      %v7045 = vunpack.c.l.b16 %v6337
      %v7046 = vunpack.c.h.b16 %v6337
      %v7047 = vunpack.c.l.b16 %v6338
      %v7048 = vunpack.c.h.b16 %v6338
      %v7049 = vunpack.c.l.b16 %v6339
      %v7050 = vunpack.c.h.b16 %v6339
      %v7051 = vunpack.c.l.b16 %v6340
      %v7052 = vunpack.c.h.b16 %v6340
      %v7053 = vunpack.c.l.b16 %v6341
      %v7054 = vunpack.c.h.b16 %v6341
      %v7055 = vunpack.c.l.b16 %v6342
      %v7056 = vunpack.c.h.b16 %v6342
      %v7057 = vunpack.c.l.b16 %v6343
      %v7058 = vunpack.c.h.b16 %v6343
      %v7059 = vunpack.c.l.b16 %v6344
      %v7060 = vunpack.c.h.b16 %v6344
      %v7061 = vunpack.c.l.b16 %v6345
      %v7062 = vunpack.c.h.b16 %v6345
      %v7063 = vunpack.c.l.b16 %v6346
      %v7064 = vunpack.c.h.b16 %v6346
      %v7065 = vunpack.c.l.b16 %v6347
      %v7066 = vunpack.c.h.b16 %v6347
      %v7067 = vunpack.c.l.b16 %v6348
      %v7068 = vunpack.c.h.b16 %v6348
      %v7069 = vunpack.c.l.b16 %v6349
      %v7070 = vunpack.c.h.b16 %v6349
      %v7071 = vunpack.c.l.b16 %v6350
      %v7072 = vunpack.c.h.b16 %v6350
      %v7073 = vunpack.c.l.b16 %v6351
      %v7074 = vunpack.c.h.b16 %v6351
      %v7075 = vunpack.c.l.b16 %v6352
      %v7076 = vunpack.c.h.b16 %v6352
      %v7077 = vunpack.c.l.b16 %v6353
      %v7078 = vunpack.c.h.b16 %v6353
      %v7079 = vunpack.c.l.b16 %v6354
      %v7080 = vunpack.c.h.b16 %v6354
      %v7081 = vunpack.c.l.b16 %v6355
      %v7082 = vunpack.c.h.b16 %v6355
      %v7083 = vunpack.c.l.b16 %v6356
      %v7084 = vunpack.c.h.b16 %v6356
      %v7085 = vunpack.c.l.b16 %v6357
      %v7086 = vunpack.c.h.b16 %v6357
      %v7087 = vunpack.c.l.b16 %v6358
      %v7088 = vunpack.c.h.b16 %v6358
      %v7089 = vunpack.c.l.b16 %v6359
      %v7090 = vunpack.c.h.b16 %v6359
      %v7091 = vunpack.c.l.b16 %v6360
      %v7092 = vunpack.c.h.b16 %v6360
      %v7093 = vunpack.c.l.b16 %v6361
      %v7094 = vunpack.c.h.b16 %v6361
      %v7095 = vunpack.c.l.b16 %v6362
      %v7096 = vunpack.c.h.b16 %v6362
      %v7097 = vunpack.c.l.b16 %v6363
      %v7098 = vunpack.c.h.b16 %v6363
      %v7099 = vunpack.c.l.b16 %v6364
      %v7100 = vunpack.c.h.b16 %v6364
      %v7101 = vunpack.c.l.b16 %v6365
      %v7102 = vunpack.c.h.b16 %v6365
      %v7103 = vunpack.c.l.b16 %v6366
      %v7104 = vunpack.c.h.b16 %v6366
      %v7105 = vunpack.c.l.b16 %v6367
      %v7106 = vunpack.c.h.b16 %v6367
      %v7107 = vunpack.c.l.b16 %v6368
      %v7108 = vunpack.c.h.b16 %v6368
      %v7109 = vunpack.c.l.b16 %v6369
      %v7110 = vunpack.c.h.b16 %v6369
      %v7111 = vunpack.c.l.b16 %v6370
      %v7112 = vunpack.c.h.b16 %v6370
      %v7113 = vunpack.c.l.b16 %v6371
      %v7114 = vunpack.c.h.b16 %v6371
      %v7115 = vunpack.c.l.b16 %v6372
      %v7116 = vunpack.c.h.b16 %v6372
      %v7117 = vunpack.c.l.b16 %v6373
      %v7118 = vunpack.c.h.b16 %v6373
      %v7119 = vunpack.c.l.b16 %v6374
      %v7120 = vunpack.c.h.b16 %v6374
      %v7121 = vunpack.c.l.b16 %v6375
      %v7122 = vunpack.c.h.b16 %v6375
      %v7123 = vunpack.c.l.b16 %v6376
      %v7124 = vunpack.c.h.b16 %v6376
      %v7125 = vunpack.c.l.b16 %v6377
      %v7126 = vunpack.c.h.b16 %v6377
      %v7127 = vunpack.c.l.b16 %v6378
      %v7128 = vunpack.c.h.b16 %v6378
      %v7129 = vunpack.c.l.b16 %v6379
      %v7130 = vunpack.c.h.b16 %v6379
      %v7131 = vunpack.c.l.b16 %v6380
      %v7132 = vunpack.c.h.b16 %v6380
      %v7133 = vunpack.c.l.b16 %v6381
      %v7134 = vunpack.c.h.b16 %v6381
      %v7135 = vunpack.c.l.b16 %v6382
      %v7136 = vunpack.c.h.b16 %v6382
      %v7137 = vunpack.c.l.b16 %v6383
      %v7138 = vunpack.c.h.b16 %v6383
      %v7139 = vunpack.c.l.b16 %v6384
      %v7140 = vunpack.c.h.b16 %v6384
      %v7141 = vunpack.c.l.b16 %v6385
      %v7142 = vunpack.c.h.b16 %v6385
      %v7143 = vunpack.c.l.b16 %v6386
      %v7144 = vunpack.c.h.b16 %v6386
      %v7145 = vunpack.c.l.b16 %v6387
      %v7146 = vunpack.c.h.b16 %v6387
      %v7147 = vunpack.c.l.b16 %v6388
      %v7148 = vunpack.c.h.b16 %v6388
      %v7149 = vunpack.c.l.b16 %v6389
      %v7150 = vunpack.c.h.b16 %v6389
      %v7151 = vunpack.c.l.b16 %v6390
      %v7152 = vunpack.c.h.b16 %v6390
      %v7153 = vunpack.c.l.b16 %v6391
      %v7154 = vunpack.c.h.b16 %v6391
      %v7155 = vunpack.c.l.b16 %v6392
      %v7156 = vunpack.c.h.b16 %v6392
      %v7157 = vunpack.c.l.b16 %v6393
      %v7158 = vunpack.c.h.b16 %v6393
      %v7159 = vunpack.c.l.b16 %v6394
      %v7160 = vunpack.c.h.b16 %v6394
      %v7161 = vunpack.c.l.b16 %v6395
      %v7162 = vunpack.c.h.b16 %v6395
      %v7163 = vunpack.c.l.b16 %v6396
      %v7164 = vunpack.c.h.b16 %v6396
      %v7165 = vpack.c.b16 %v6657, %v6653
      %v7166 = vpack.c.b16 %v6658, %v6654
      %v7167 = vpack.c.b16 %v6659, %v6655
      %v7168 = vpack.c.b16 %v6660, %v6656
      %v7169 = vpack.c.b16 %v6665, %v6661
      %v7170 = vpack.c.b16 %v6666, %v6662
      %v7171 = vpack.c.b16 %v6667, %v6663
      %v7172 = vpack.c.b16 %v6668, %v6664
      %v7173 = vpack.c.b16 %v6673, %v6669
      %v7174 = vpack.c.b16 %v6674, %v6670
      %v7175 = vpack.c.b16 %v6675, %v6671
      %v7176 = vpack.c.b16 %v6676, %v6672
      %v7177 = vpack.c.b16 %v6681, %v6677
      %v7178 = vpack.c.b16 %v6682, %v6678
      %v7179 = vpack.c.b16 %v6683, %v6679
      %v7180 = vpack.c.b16 %v6684, %v6680
      %v7181 = vpack.c.b16 %v6689, %v6685
      %v7182 = vpack.c.b16 %v6690, %v6686
      %v7183 = vpack.c.b16 %v6691, %v6687
      %v7184 = vpack.c.b16 %v6692, %v6688
      %v7185 = vpack.c.b16 %v6697, %v6693
      %v7186 = vpack.c.b16 %v6698, %v6694
      %v7187 = vpack.c.b16 %v6699, %v6695
      %v7188 = vpack.c.b16 %v6700, %v6696
      %v7189 = vpack.c.b16 %v6705, %v6701
      %v7190 = vpack.c.b16 %v6706, %v6702
      %v7191 = vpack.c.b16 %v6707, %v6703
      %v7192 = vpack.c.b16 %v6708, %v6704
      %v7193 = vpack.c.b16 %v6713, %v6709
      %v7194 = vpack.c.b16 %v6714, %v6710
      %v7195 = vpack.c.b16 %v6715, %v6711
      %v7196 = vpack.c.b16 %v6716, %v6712
      %v7197 = vpack.c.b16 %v6721, %v6717
      %v7198 = vpack.c.b16 %v6722, %v6718
      %v7199 = vpack.c.b16 %v6723, %v6719
      %v7200 = vpack.c.b16 %v6724, %v6720
      %v7201 = vpack.c.b16 %v6729, %v6725
      %v7202 = vpack.c.b16 %v6730, %v6726
      %v7203 = vpack.c.b16 %v6731, %v6727
      %v7204 = vpack.c.b16 %v6732, %v6728
      %v7205 = vpack.c.b16 %v6737, %v6733
      %v7206 = vpack.c.b16 %v6738, %v6734
      %v7207 = vpack.c.b16 %v6739, %v6735
      %v7208 = vpack.c.b16 %v6740, %v6736
      %v7209 = vpack.c.b16 %v6745, %v6741
      %v7210 = vpack.c.b16 %v6746, %v6742
      %v7211 = vpack.c.b16 %v6747, %v6743
      %v7212 = vpack.c.b16 %v6748, %v6744
      %v7213 = vpack.c.b16 %v6753, %v6749
      %v7214 = vpack.c.b16 %v6754, %v6750
      %v7215 = vpack.c.b16 %v6755, %v6751
      %v7216 = vpack.c.b16 %v6756, %v6752
      %v7217 = vpack.c.b16 %v6761, %v6757
      %v7218 = vpack.c.b16 %v6762, %v6758
      %v7219 = vpack.c.b16 %v6763, %v6759
      %v7220 = vpack.c.b16 %v6764, %v6760
      %v7221 = vpack.c.b16 %v6769, %v6765
      %v7222 = vpack.c.b16 %v6770, %v6766
      %v7223 = vpack.c.b16 %v6771, %v6767
      %v7224 = vpack.c.b16 %v6772, %v6768
      %v7225 = vpack.c.b16 %v6777, %v6773
      %v7226 = vpack.c.b16 %v6778, %v6774
      %v7227 = vpack.c.b16 %v6779, %v6775
      %v7228 = vpack.c.b16 %v6780, %v6776
      %v7229 = vpack.c.b16 %v6785, %v6781
      %v7230 = vpack.c.b16 %v6786, %v6782
      %v7231 = vpack.c.b16 %v6787, %v6783
      %v7232 = vpack.c.b16 %v6788, %v6784
      %v7233 = vpack.c.b16 %v6793, %v6789
      %v7234 = vpack.c.b16 %v6794, %v6790
      %v7235 = vpack.c.b16 %v6795, %v6791
      %v7236 = vpack.c.b16 %v6796, %v6792
      %v7237 = vpack.c.b16 %v6801, %v6797
      %v7238 = vpack.c.b16 %v6802, %v6798
      %v7239 = vpack.c.b16 %v6803, %v6799
      %v7240 = vpack.c.b16 %v6804, %v6800
      %v7241 = vpack.c.b16 %v6809, %v6805
      %v7242 = vpack.c.b16 %v6810, %v6806
      %v7243 = vpack.c.b16 %v6811, %v6807
      %v7244 = vpack.c.b16 %v6812, %v6808
      %v7245 = vpack.c.b16 %v6817, %v6813
      %v7246 = vpack.c.b16 %v6818, %v6814
      %v7247 = vpack.c.b16 %v6819, %v6815
      %v7248 = vpack.c.b16 %v6820, %v6816
      %v7249 = vpack.c.b16 %v6825, %v6821
      %v7250 = vpack.c.b16 %v6826, %v6822
      %v7251 = vpack.c.b16 %v6827, %v6823
      %v7252 = vpack.c.b16 %v6828, %v6824
      %v7253 = vpack.c.b16 %v6833, %v6829
      %v7254 = vpack.c.b16 %v6834, %v6830
      %v7255 = vpack.c.b16 %v6835, %v6831
      %v7256 = vpack.c.b16 %v6836, %v6832
      %v7257 = vpack.c.b16 %v6841, %v6837
      %v7258 = vpack.c.b16 %v6842, %v6838
      %v7259 = vpack.c.b16 %v6843, %v6839
      %v7260 = vpack.c.b16 %v6844, %v6840
      %v7261 = vpack.c.b16 %v6849, %v6845
      %v7262 = vpack.c.b16 %v6850, %v6846
      %v7263 = vpack.c.b16 %v6851, %v6847
      %v7264 = vpack.c.b16 %v6852, %v6848
      %v7265 = vpack.c.b16 %v6857, %v6853
      %v7266 = vpack.c.b16 %v6858, %v6854
      %v7267 = vpack.c.b16 %v6859, %v6855
      %v7268 = vpack.c.b16 %v6860, %v6856
      %v7269 = vpack.c.b16 %v6865, %v6861
      %v7270 = vpack.c.b16 %v6866, %v6862
      %v7271 = vpack.c.b16 %v6867, %v6863
      %v7272 = vpack.c.b16 %v6868, %v6864
      %v7273 = vpack.c.b16 %v6873, %v6869
      %v7274 = vpack.c.b16 %v6874, %v6870
      %v7275 = vpack.c.b16 %v6875, %v6871
      %v7276 = vpack.c.b16 %v6876, %v6872
      %v7277 = vpack.c.b16 %v6881, %v6877
      %v7278 = vpack.c.b16 %v6882, %v6878
      %v7279 = vpack.c.b16 %v6883, %v6879
      %v7280 = vpack.c.b16 %v6884, %v6880
      %v7281 = vpack.c.b16 %v6889, %v6885
      %v7282 = vpack.c.b16 %v6890, %v6886
      %v7283 = vpack.c.b16 %v6891, %v6887
      %v7284 = vpack.c.b16 %v6892, %v6888
      %v7285 = vpack.c.b16 %v6897, %v6893
      %v7286 = vpack.c.b16 %v6898, %v6894
      %v7287 = vpack.c.b16 %v6899, %v6895
      %v7288 = vpack.c.b16 %v6900, %v6896
      %v7289 = vpack.c.b16 %v6905, %v6901
      %v7290 = vpack.c.b16 %v6906, %v6902
      %v7291 = vpack.c.b16 %v6907, %v6903
      %v7292 = vpack.c.b16 %v6908, %v6904
      %v7293 = vpack.c.b16 %v6913, %v6909
      %v7294 = vpack.c.b16 %v6914, %v6910
      %v7295 = vpack.c.b16 %v6915, %v6911
      %v7296 = vpack.c.b16 %v6916, %v6912
      %v7297 = vpack.c.b16 %v6921, %v6917
      %v7298 = vpack.c.b16 %v6922, %v6918
      %v7299 = vpack.c.b16 %v6923, %v6919
      %v7300 = vpack.c.b16 %v6924, %v6920
      %v7301 = vpack.c.b16 %v6929, %v6925
      %v7302 = vpack.c.b16 %v6930, %v6926
      %v7303 = vpack.c.b16 %v6931, %v6927
      %v7304 = vpack.c.b16 %v6932, %v6928
      %v7305 = vpack.c.b16 %v6937, %v6933
      %v7306 = vpack.c.b16 %v6938, %v6934
      %v7307 = vpack.c.b16 %v6939, %v6935
      %v7308 = vpack.c.b16 %v6940, %v6936
      %v7309 = vpack.c.b16 %v6945, %v6941
      %v7310 = vpack.c.b16 %v6946, %v6942
      %v7311 = vpack.c.b16 %v6947, %v6943
      %v7312 = vpack.c.b16 %v6948, %v6944
      %v7313 = vpack.c.b16 %v6953, %v6949
      %v7314 = vpack.c.b16 %v6954, %v6950
      %v7315 = vpack.c.b16 %v6955, %v6951
      %v7316 = vpack.c.b16 %v6956, %v6952
      %v7317 = vpack.c.b16 %v6961, %v6957
      %v7318 = vpack.c.b16 %v6962, %v6958
      %v7319 = vpack.c.b16 %v6963, %v6959
      %v7320 = vpack.c.b16 %v6964, %v6960
      %v7321 = vpack.c.b16 %v6969, %v6965
      %v7322 = vpack.c.b16 %v6970, %v6966
      %v7323 = vpack.c.b16 %v6971, %v6967
      %v7324 = vpack.c.b16 %v6972, %v6968
      %v7325 = vpack.c.b16 %v6977, %v6973
      %v7326 = vpack.c.b16 %v6978, %v6974
      %v7327 = vpack.c.b16 %v6979, %v6975
      %v7328 = vpack.c.b16 %v6980, %v6976
      %v7329 = vpack.c.b16 %v6985, %v6981
      %v7330 = vpack.c.b16 %v6986, %v6982
      %v7331 = vpack.c.b16 %v6987, %v6983
      %v7332 = vpack.c.b16 %v6988, %v6984
      %v7333 = vpack.c.b16 %v6993, %v6989
      %v7334 = vpack.c.b16 %v6994, %v6990
      %v7335 = vpack.c.b16 %v6995, %v6991
      %v7336 = vpack.c.b16 %v6996, %v6992
      %v7337 = vpack.c.b16 %v7001, %v6997
      %v7338 = vpack.c.b16 %v7002, %v6998
      %v7339 = vpack.c.b16 %v7003, %v6999
      %v7340 = vpack.c.b16 %v7004, %v7000
      %v7341 = vpack.c.b16 %v7009, %v7005
      %v7342 = vpack.c.b16 %v7010, %v7006
      %v7343 = vpack.c.b16 %v7011, %v7007
      %v7344 = vpack.c.b16 %v7012, %v7008
      %v7345 = vpack.c.b16 %v7017, %v7013
      %v7346 = vpack.c.b16 %v7018, %v7014
      %v7347 = vpack.c.b16 %v7019, %v7015
      %v7348 = vpack.c.b16 %v7020, %v7016
      %v7349 = vpack.c.b16 %v7025, %v7021
      %v7350 = vpack.c.b16 %v7026, %v7022
      %v7351 = vpack.c.b16 %v7027, %v7023
      %v7352 = vpack.c.b16 %v7028, %v7024
      %v7353 = vpack.c.b16 %v7033, %v7029
      %v7354 = vpack.c.b16 %v7034, %v7030
      %v7355 = vpack.c.b16 %v7035, %v7031
      %v7356 = vpack.c.b16 %v7036, %v7032
      %v7357 = vpack.c.b16 %v7041, %v7037
      %v7358 = vpack.c.b16 %v7042, %v7038
      %v7359 = vpack.c.b16 %v7043, %v7039
      %v7360 = vpack.c.b16 %v7044, %v7040
      %v7361 = vpack.c.b16 %v7049, %v7045
      %v7362 = vpack.c.b16 %v7050, %v7046
      %v7363 = vpack.c.b16 %v7051, %v7047
      %v7364 = vpack.c.b16 %v7052, %v7048
      %v7365 = vpack.c.b16 %v7057, %v7053
      %v7366 = vpack.c.b16 %v7058, %v7054
      %v7367 = vpack.c.b16 %v7059, %v7055
      %v7368 = vpack.c.b16 %v7060, %v7056
      %v7369 = vpack.c.b16 %v7065, %v7061
      %v7370 = vpack.c.b16 %v7066, %v7062
      %v7371 = vpack.c.b16 %v7067, %v7063
      %v7372 = vpack.c.b16 %v7068, %v7064
      %v7373 = vpack.c.b16 %v7073, %v7069
      %v7374 = vpack.c.b16 %v7074, %v7070
      %v7375 = vpack.c.b16 %v7075, %v7071
      %v7376 = vpack.c.b16 %v7076, %v7072
      %v7377 = vpack.c.b16 %v7081, %v7077
      %v7378 = vpack.c.b16 %v7082, %v7078
      %v7379 = vpack.c.b16 %v7083, %v7079
      %v7380 = vpack.c.b16 %v7084, %v7080
      %v7381 = vpack.c.b16 %v7089, %v7085
      %v7382 = vpack.c.b16 %v7090, %v7086
      %v7383 = vpack.c.b16 %v7091, %v7087
      %v7384 = vpack.c.b16 %v7092, %v7088
      %v7385 = vpack.c.b16 %v7097, %v7093
      %v7386 = vpack.c.b16 %v7098, %v7094
      %v7387 = vpack.c.b16 %v7099, %v7095
      %v7388 = vpack.c.b16 %v7100, %v7096
      %v7389 = vpack.c.b16 %v7105, %v7101
      %v7390 = vpack.c.b16 %v7106, %v7102
      %v7391 = vpack.c.b16 %v7107, %v7103
      %v7392 = vpack.c.b16 %v7108, %v7104
      %v7393 = vpack.c.b16 %v7113, %v7109
      %v7394 = vpack.c.b16 %v7114, %v7110
      %v7395 = vpack.c.b16 %v7115, %v7111
      %v7396 = vpack.c.b16 %v7116, %v7112
      %v7397 = vpack.c.b16 %v7121, %v7117
      %v7398 = vpack.c.b16 %v7122, %v7118
      %v7399 = vpack.c.b16 %v7123, %v7119
      %v7400 = vpack.c.b16 %v7124, %v7120
      %v7401 = vpack.c.b16 %v7129, %v7125
      %v7402 = vpack.c.b16 %v7130, %v7126
      %v7403 = vpack.c.b16 %v7131, %v7127
      %v7404 = vpack.c.b16 %v7132, %v7128
      %v7405 = vpack.c.b16 %v7137, %v7133
      %v7406 = vpack.c.b16 %v7138, %v7134
      %v7407 = vpack.c.b16 %v7139, %v7135
      %v7408 = vpack.c.b16 %v7140, %v7136
      %v7409 = vpack.c.b16 %v7145, %v7141
      %v7410 = vpack.c.b16 %v7146, %v7142
      %v7411 = vpack.c.b16 %v7147, %v7143
      %v7412 = vpack.c.b16 %v7148, %v7144
      %v7413 = vpack.c.b16 %v7153, %v7149
      %v7414 = vpack.c.b16 %v7154, %v7150
      %v7415 = vpack.c.b16 %v7155, %v7151
      %v7416 = vpack.c.b16 %v7156, %v7152
      %v7417 = vpack.c.b16 %v7161, %v7157
      %v7418 = vpack.c.b16 %v7162, %v7158
      %v7419 = vpack.c.b16 %v7163, %v7159
      %v7420 = vpack.c.b16 %v7164, %v7160
      %7677 = vmatpush.bf16.msra.mxu0 %v7193
      %7678 = vmatpush.bf16.msra.mxu0 %v7189
      %7679 = vmatpush.bf16.msra.mxu0 %v7185
      %7680 = vmatpush.bf16.msra.mxu0 %v7181
      %7681 = vmatpush.bf16.msra.mxu0 %v7177
      %7682 = vmatpush.bf16.msra.mxu0 %v7173
      %7683 = vmatpush.bf16.msra.mxu0 %v7169
      %7684 = vmatpush.bf16.msra.mxu0 %v7165
      %7685 = vmatmul.bf16.gmra.mxu0 %v750
      %v7686 = vpop.f32.mrf.mxu0
      %v7687 = vadd.f32 0.0, %v7686
      %v7688 = vpop.f32.mrf.mxu0
      %7689 = vdwg.mxu0
      %7690 = vmatpush.bf16.msra.mxu0 %v7225
      %7691 = vmatpush.bf16.msra.mxu0 %v7221
      %7692 = vmatpush.bf16.msra.mxu0 %v7217
      %7693 = vmatpush.bf16.msra.mxu0 %v7213
      %7694 = vmatpush.bf16.msra.mxu0 %v7209
      %7695 = vmatpush.bf16.msra.mxu0 %v7205
      %7696 = vmatpush.bf16.msra.mxu0 %v7201
      %7697 = vmatpush.bf16.msra.mxu0 %v7197
      %7698 = vmatmul.bf16.gmra.mxu0 %v751
      %v7699 = vpop.f32.mrf.mxu0
      %v7700 = vadd.f32 %v7687, %v7699
      %v7701 = vpop.f32.mrf.mxu0
      %7702 = vdwg.mxu0
      %7703 = vmatpush.bf16.msra.mxu0 %v7257
      %7704 = vmatpush.bf16.msra.mxu0 %v7253
      %7705 = vmatpush.bf16.msra.mxu0 %v7249
      %7706 = vmatpush.bf16.msra.mxu0 %v7245
      %7707 = vmatpush.bf16.msra.mxu0 %v7241
      %7708 = vmatpush.bf16.msra.mxu0 %v7237
      %7709 = vmatpush.bf16.msra.mxu0 %v7233
      %7710 = vmatpush.bf16.msra.mxu0 %v7229
      %7711 = vmatmul.bf16.gmra.mxu0 %v752
      %v7712 = vpop.f32.mrf.mxu0
      %v7713 = vadd.f32 %v7700, %v7712
      %v7714 = vpop.f32.mrf.mxu0
      %7715 = vdwg.mxu0
      %7716 = vmatpush.bf16.msra.mxu0 %v7289
      %7717 = vmatpush.bf16.msra.mxu0 %v7285
      %7718 = vmatpush.bf16.msra.mxu0 %v7281
      %7719 = vmatpush.bf16.msra.mxu0 %v7277
      %7720 = vmatpush.bf16.msra.mxu0 %v7273
      %7721 = vmatpush.bf16.msra.mxu0 %v7269
      %7722 = vmatpush.bf16.msra.mxu0 %v7265
      %7723 = vmatpush.bf16.msra.mxu0 %v7261
      %7724 = vmatmul.bf16.gmra.mxu0 %v753
      %v7725 = vpop.f32.mrf.mxu0
      %v7726 = vadd.f32 %v7713, %v7725
      %v7727 = vpop.f32.mrf.mxu0
      %7728 = vdwg.mxu0
      %7729 = vmatpush.bf16.msra.mxu0 %v7321
      %7730 = vmatpush.bf16.msra.mxu0 %v7317
      %7731 = vmatpush.bf16.msra.mxu0 %v7313
      %7732 = vmatpush.bf16.msra.mxu0 %v7309
      %7733 = vmatpush.bf16.msra.mxu0 %v7305
      %7734 = vmatpush.bf16.msra.mxu0 %v7301
      %7735 = vmatpush.bf16.msra.mxu0 %v7297
      %7736 = vmatpush.bf16.msra.mxu0 %v7293
      %7737 = vmatmul.bf16.gmra.mxu0 %v754
      %v7738 = vpop.f32.mrf.mxu0
      %v7739 = vadd.f32 %v7726, %v7738
      %v7740 = vpop.f32.mrf.mxu0
      %7741 = vdwg.mxu0
      %7742 = vmatpush.bf16.msra.mxu0 %v7353
      %7743 = vmatpush.bf16.msra.mxu0 %v7349
      %7744 = vmatpush.bf16.msra.mxu0 %v7345
      %7745 = vmatpush.bf16.msra.mxu0 %v7341
      %7746 = vmatpush.bf16.msra.mxu0 %v7337
      %7747 = vmatpush.bf16.msra.mxu0 %v7333
      %7748 = vmatpush.bf16.msra.mxu0 %v7329
      %7749 = vmatpush.bf16.msra.mxu0 %v7325
      %7750 = vmatmul.bf16.gmra.mxu0 %v755
      %v7751 = vpop.f32.mrf.mxu0
      %v7752 = vadd.f32 %v7739, %v7751
      %v7753 = vpop.f32.mrf.mxu0
      %7754 = vdwg.mxu0
      %7755 = vmatpush.bf16.msra.mxu0 %v7385
      %7756 = vmatpush.bf16.msra.mxu0 %v7381
      %7757 = vmatpush.bf16.msra.mxu0 %v7377
      %7758 = vmatpush.bf16.msra.mxu0 %v7373
      %7759 = vmatpush.bf16.msra.mxu0 %v7369
      %7760 = vmatpush.bf16.msra.mxu0 %v7365
      %7761 = vmatpush.bf16.msra.mxu0 %v7361
      %7762 = vmatpush.bf16.msra.mxu0 %v7357
      %7763 = vmatmul.bf16.gmra.mxu0 %v756
      %v7764 = vpop.f32.mrf.mxu0
      %v7765 = vadd.f32 %v7752, %v7764
      %v7766 = vpop.f32.mrf.mxu0
      %7767 = vdwg.mxu0
      %7768 = vmatpush.bf16.msra.mxu0 %v7417
      %7769 = vmatpush.bf16.msra.mxu0 %v7413
      %7770 = vmatpush.bf16.msra.mxu0 %v7409
      %7771 = vmatpush.bf16.msra.mxu0 %v7405
      %7772 = vmatpush.bf16.msra.mxu0 %v7401
      %7773 = vmatpush.bf16.msra.mxu0 %v7397
      %7774 = vmatpush.bf16.msra.mxu0 %v7393
      %7775 = vmatpush.bf16.msra.mxu0 %v7389
      %7776 = vmatmul.bf16.gmra.mxu0 %v757
      %v7777 = vpop.f32.mrf.mxu0
      %v7778 = vadd.f32 %v7765, %v7777
      %v7779 = vpop.f32.mrf.mxu0
      %7780 = vdwg.mxu0
      %7781 = vmatpush.bf16.msra.mxu0 %v7194
      %7782 = vmatpush.bf16.msra.mxu0 %v7190
      %7783 = vmatpush.bf16.msra.mxu0 %v7186
      %7784 = vmatpush.bf16.msra.mxu0 %v7182
      %7785 = vmatpush.bf16.msra.mxu0 %v7178
      %7786 = vmatpush.bf16.msra.mxu0 %v7174
      %7787 = vmatpush.bf16.msra.mxu0 %v7170
      %7788 = vmatpush.bf16.msra.mxu0 %v7166
      %7789 = vmatmul.bf16.gmra.mxu0 %v750
      %v7790 = vpop.f32.mrf.mxu0
      %v7791 = vadd.f32 0.0, %v7790
      %v7792 = vpop.f32.mrf.mxu0
      %7793 = vdwg.mxu0
      %7794 = vmatpush.bf16.msra.mxu0 %v7226
      %7795 = vmatpush.bf16.msra.mxu0 %v7222
      %7796 = vmatpush.bf16.msra.mxu0 %v7218
      %7797 = vmatpush.bf16.msra.mxu0 %v7214
      %7798 = vmatpush.bf16.msra.mxu0 %v7210
      %7799 = vmatpush.bf16.msra.mxu0 %v7206
      %7800 = vmatpush.bf16.msra.mxu0 %v7202
      %7801 = vmatpush.bf16.msra.mxu0 %v7198
      %7802 = vmatmul.bf16.gmra.mxu0 %v751
      %v7803 = vpop.f32.mrf.mxu0
      %v7804 = vadd.f32 %v7791, %v7803
      %v7805 = vpop.f32.mrf.mxu0
      %7806 = vdwg.mxu0
      %7807 = vmatpush.bf16.msra.mxu0 %v7258
      %7808 = vmatpush.bf16.msra.mxu0 %v7254
      %7809 = vmatpush.bf16.msra.mxu0 %v7250
      %7810 = vmatpush.bf16.msra.mxu0 %v7246
      %7811 = vmatpush.bf16.msra.mxu0 %v7242
      %7812 = vmatpush.bf16.msra.mxu0 %v7238
      %7813 = vmatpush.bf16.msra.mxu0 %v7234
      %7814 = vmatpush.bf16.msra.mxu0 %v7230
      %7815 = vmatmul.bf16.gmra.mxu0 %v752
      %v7816 = vpop.f32.mrf.mxu0
      %v7817 = vadd.f32 %v7804, %v7816
      %v7818 = vpop.f32.mrf.mxu0
      %7819 = vdwg.mxu0
      %7820 = vmatpush.bf16.msra.mxu0 %v7290
      %7821 = vmatpush.bf16.msra.mxu0 %v7286
      %7822 = vmatpush.bf16.msra.mxu0 %v7282
      %7823 = vmatpush.bf16.msra.mxu0 %v7278
      %7824 = vmatpush.bf16.msra.mxu0 %v7274
      %7825 = vmatpush.bf16.msra.mxu0 %v7270
      %7826 = vmatpush.bf16.msra.mxu0 %v7266
      %7827 = vmatpush.bf16.msra.mxu0 %v7262
      %7828 = vmatmul.bf16.gmra.mxu0 %v753
      %v7829 = vpop.f32.mrf.mxu0
      %v7830 = vadd.f32 %v7817, %v7829
      %v7831 = vpop.f32.mrf.mxu0
      %7832 = vdwg.mxu0
      %7833 = vmatpush.bf16.msra.mxu0 %v7322
      %7834 = vmatpush.bf16.msra.mxu0 %v7318
      %7835 = vmatpush.bf16.msra.mxu0 %v7314
      %7836 = vmatpush.bf16.msra.mxu0 %v7310
      %7837 = vmatpush.bf16.msra.mxu0 %v7306
      %7838 = vmatpush.bf16.msra.mxu0 %v7302
      %7839 = vmatpush.bf16.msra.mxu0 %v7298
      %7840 = vmatpush.bf16.msra.mxu0 %v7294
      %7841 = vmatmul.bf16.gmra.mxu0 %v754
      %v7842 = vpop.f32.mrf.mxu0
      %v7843 = vadd.f32 %v7830, %v7842
      %v7844 = vpop.f32.mrf.mxu0
      %7845 = vdwg.mxu0
      %7846 = vmatpush.bf16.msra.mxu0 %v7354
      %7847 = vmatpush.bf16.msra.mxu0 %v7350
      %7848 = vmatpush.bf16.msra.mxu0 %v7346
      %7849 = vmatpush.bf16.msra.mxu0 %v7342
      %7850 = vmatpush.bf16.msra.mxu0 %v7338
      %7851 = vmatpush.bf16.msra.mxu0 %v7334
      %7852 = vmatpush.bf16.msra.mxu0 %v7330
      %7853 = vmatpush.bf16.msra.mxu0 %v7326
      %7854 = vmatmul.bf16.gmra.mxu0 %v755
      %v7855 = vpop.f32.mrf.mxu0
      %v7856 = vadd.f32 %v7843, %v7855
      %v7857 = vpop.f32.mrf.mxu0
      %7858 = vdwg.mxu0
      %7859 = vmatpush.bf16.msra.mxu0 %v7386
      %7860 = vmatpush.bf16.msra.mxu0 %v7382
      %7861 = vmatpush.bf16.msra.mxu0 %v7378
      %7862 = vmatpush.bf16.msra.mxu0 %v7374
      %7863 = vmatpush.bf16.msra.mxu0 %v7370
      %7864 = vmatpush.bf16.msra.mxu0 %v7366
      %7865 = vmatpush.bf16.msra.mxu0 %v7362
      %7866 = vmatpush.bf16.msra.mxu0 %v7358
      %7867 = vmatmul.bf16.gmra.mxu0 %v756
      %v7868 = vpop.f32.mrf.mxu0
      %v7869 = vadd.f32 %v7856, %v7868
      %v7870 = vpop.f32.mrf.mxu0
      %7871 = vdwg.mxu0
      %7872 = vmatpush.bf16.msra.mxu0 %v7418
      %7873 = vmatpush.bf16.msra.mxu0 %v7414
      %7874 = vmatpush.bf16.msra.mxu0 %v7410
      %7875 = vmatpush.bf16.msra.mxu0 %v7406
      %7876 = vmatpush.bf16.msra.mxu0 %v7402
      %7877 = vmatpush.bf16.msra.mxu0 %v7398
      %7878 = vmatpush.bf16.msra.mxu0 %v7394
      %7879 = vmatpush.bf16.msra.mxu0 %v7390
      %7880 = vmatmul.bf16.gmra.mxu0 %v757
      %v7881 = vpop.f32.mrf.mxu0
      %v7882 = vadd.f32 %v7869, %v7881
      %v7883 = vpop.f32.mrf.mxu0
      %7884 = vdwg.mxu0
      %7885 = vmatpush.bf16.msra.mxu0 %v7195
      %7886 = vmatpush.bf16.msra.mxu0 %v7191
      %7887 = vmatpush.bf16.msra.mxu0 %v7187
      %7888 = vmatpush.bf16.msra.mxu0 %v7183
      %7889 = vmatpush.bf16.msra.mxu0 %v7179
      %7890 = vmatpush.bf16.msra.mxu0 %v7175
      %7891 = vmatpush.bf16.msra.mxu0 %v7171
      %7892 = vmatpush.bf16.msra.mxu0 %v7167
      %7893 = vmatmul.bf16.gmra.mxu0 %v750
      %v7894 = vpop.f32.mrf.mxu0
      %v7895 = vadd.f32 0.0, %v7894
      %v7896 = vpop.f32.mrf.mxu0
      %7897 = vdwg.mxu0
      %7898 = vmatpush.bf16.msra.mxu0 %v7227
      %7899 = vmatpush.bf16.msra.mxu0 %v7223
      %7900 = vmatpush.bf16.msra.mxu0 %v7219
      %7901 = vmatpush.bf16.msra.mxu0 %v7215
      %7902 = vmatpush.bf16.msra.mxu0 %v7211
      %7903 = vmatpush.bf16.msra.mxu0 %v7207
      %7904 = vmatpush.bf16.msra.mxu0 %v7203
      %7905 = vmatpush.bf16.msra.mxu0 %v7199
      %7906 = vmatmul.bf16.gmra.mxu0 %v751
      %v7907 = vpop.f32.mrf.mxu0
      %v7908 = vadd.f32 %v7895, %v7907
      %v7909 = vpop.f32.mrf.mxu0
      %7910 = vdwg.mxu0
      %7911 = vmatpush.bf16.msra.mxu0 %v7259
      %7912 = vmatpush.bf16.msra.mxu0 %v7255
      %7913 = vmatpush.bf16.msra.mxu0 %v7251
      %7914 = vmatpush.bf16.msra.mxu0 %v7247
      %7915 = vmatpush.bf16.msra.mxu0 %v7243
      %7916 = vmatpush.bf16.msra.mxu0 %v7239
      %7917 = vmatpush.bf16.msra.mxu0 %v7235
      %7918 = vmatpush.bf16.msra.mxu0 %v7231
      %7919 = vmatmul.bf16.gmra.mxu0 %v752
      %v7920 = vpop.f32.mrf.mxu0
      %v7921 = vadd.f32 %v7908, %v7920
      %v7922 = vpop.f32.mrf.mxu0
      %7923 = vdwg.mxu0
      %7924 = vmatpush.bf16.msra.mxu0 %v7291
      %7925 = vmatpush.bf16.msra.mxu0 %v7287
      %7926 = vmatpush.bf16.msra.mxu0 %v7283
      %7927 = vmatpush.bf16.msra.mxu0 %v7279
      %7928 = vmatpush.bf16.msra.mxu0 %v7275
      %7929 = vmatpush.bf16.msra.mxu0 %v7271
      %7930 = vmatpush.bf16.msra.mxu0 %v7267
      %7931 = vmatpush.bf16.msra.mxu0 %v7263
      %7932 = vmatmul.bf16.gmra.mxu0 %v753
      %v7933 = vpop.f32.mrf.mxu0
      %v7934 = vadd.f32 %v7921, %v7933
      %v7935 = vpop.f32.mrf.mxu0
      %7936 = vdwg.mxu0
      %7937 = vmatpush.bf16.msra.mxu0 %v7323
      %7938 = vmatpush.bf16.msra.mxu0 %v7319
      %7939 = vmatpush.bf16.msra.mxu0 %v7315
      %7940 = vmatpush.bf16.msra.mxu0 %v7311
      %7941 = vmatpush.bf16.msra.mxu0 %v7307
      %7942 = vmatpush.bf16.msra.mxu0 %v7303
      %7943 = vmatpush.bf16.msra.mxu0 %v7299
      %7944 = vmatpush.bf16.msra.mxu0 %v7295
      %7945 = vmatmul.bf16.gmra.mxu0 %v754
      %v7946 = vpop.f32.mrf.mxu0
      %v7947 = vadd.f32 %v7934, %v7946
      %v7948 = vpop.f32.mrf.mxu0
      %7949 = vdwg.mxu0
      %7950 = vmatpush.bf16.msra.mxu0 %v7355
      %7951 = vmatpush.bf16.msra.mxu0 %v7351
      %7952 = vmatpush.bf16.msra.mxu0 %v7347
      %7953 = vmatpush.bf16.msra.mxu0 %v7343
      %7954 = vmatpush.bf16.msra.mxu0 %v7339
      %7955 = vmatpush.bf16.msra.mxu0 %v7335
      %7956 = vmatpush.bf16.msra.mxu0 %v7331
      %7957 = vmatpush.bf16.msra.mxu0 %v7327
      %7958 = vmatmul.bf16.gmra.mxu0 %v755
      %v7959 = vpop.f32.mrf.mxu0
      %v7960 = vadd.f32 %v7947, %v7959
      %v7961 = vpop.f32.mrf.mxu0
      %7962 = vdwg.mxu0
      %7963 = vmatpush.bf16.msra.mxu0 %v7387
      %7964 = vmatpush.bf16.msra.mxu0 %v7383
      %7965 = vmatpush.bf16.msra.mxu0 %v7379
      %7966 = vmatpush.bf16.msra.mxu0 %v7375
      %7967 = vmatpush.bf16.msra.mxu0 %v7371
      %7968 = vmatpush.bf16.msra.mxu0 %v7367
      %7969 = vmatpush.bf16.msra.mxu0 %v7363
      %7970 = vmatpush.bf16.msra.mxu0 %v7359
      %7971 = vmatmul.bf16.gmra.mxu0 %v756
      %v7972 = vpop.f32.mrf.mxu0
      %v7973 = vadd.f32 %v7960, %v7972
      %v7974 = vpop.f32.mrf.mxu0
      %7975 = vdwg.mxu0
      %7976 = vmatpush.bf16.msra.mxu0 %v7419
      %7977 = vmatpush.bf16.msra.mxu0 %v7415
      %7978 = vmatpush.bf16.msra.mxu0 %v7411
      %7979 = vmatpush.bf16.msra.mxu0 %v7407
      %7980 = vmatpush.bf16.msra.mxu0 %v7403
      %7981 = vmatpush.bf16.msra.mxu0 %v7399
      %7982 = vmatpush.bf16.msra.mxu0 %v7395
      %7983 = vmatpush.bf16.msra.mxu0 %v7391
      %7984 = vmatmul.bf16.gmra.mxu0 %v757
      %v7985 = vpop.f32.mrf.mxu0
      %v7986 = vadd.f32 %v7973, %v7985
      %v7987 = vpop.f32.mrf.mxu0
      %7988 = vdwg.mxu0
      %7989 = vmatpush.bf16.msra.mxu0 %v7196
      %7990 = vmatpush.bf16.msra.mxu0 %v7192
      %7991 = vmatpush.bf16.msra.mxu0 %v7188
      %7992 = vmatpush.bf16.msra.mxu0 %v7184
      %7993 = vmatpush.bf16.msra.mxu0 %v7180
      %7994 = vmatpush.bf16.msra.mxu0 %v7176
      %7995 = vmatpush.bf16.msra.mxu0 %v7172
      %7996 = vmatpush.bf16.msra.mxu0 %v7168
      %7997 = vmatmul.bf16.gmra.mxu0 %v750
      %v7998 = vpop.f32.mrf.mxu0
      %v7999 = vadd.f32 0.0, %v7998
      %v8000 = vpop.f32.mrf.mxu0
      %8001 = vdwg.mxu0
      %8002 = vmatpush.bf16.msra.mxu0 %v7228
      %8003 = vmatpush.bf16.msra.mxu0 %v7224
      %8004 = vmatpush.bf16.msra.mxu0 %v7220
      %8005 = vmatpush.bf16.msra.mxu0 %v7216
      %8006 = vmatpush.bf16.msra.mxu0 %v7212
      %8007 = vmatpush.bf16.msra.mxu0 %v7208
      %8008 = vmatpush.bf16.msra.mxu0 %v7204
      %8009 = vmatpush.bf16.msra.mxu0 %v7200
      %8010 = vmatmul.bf16.gmra.mxu0 %v751
      %v8011 = vpop.f32.mrf.mxu0
      %v8012 = vadd.f32 %v7999, %v8011
      %v8013 = vpop.f32.mrf.mxu0
      %8014 = vdwg.mxu0
      %8015 = vmatpush.bf16.msra.mxu0 %v7260
      %8016 = vmatpush.bf16.msra.mxu0 %v7256
      %8017 = vmatpush.bf16.msra.mxu0 %v7252
      %8018 = vmatpush.bf16.msra.mxu0 %v7248
      %8019 = vmatpush.bf16.msra.mxu0 %v7244
      %8020 = vmatpush.bf16.msra.mxu0 %v7240
      %8021 = vmatpush.bf16.msra.mxu0 %v7236
      %8022 = vmatpush.bf16.msra.mxu0 %v7232
      %8023 = vmatmul.bf16.gmra.mxu0 %v752
      %v8024 = vpop.f32.mrf.mxu0
      %v8025 = vadd.f32 %v8012, %v8024
      %v8026 = vpop.f32.mrf.mxu0
      %8027 = vdwg.mxu0
      %8028 = vmatpush.bf16.msra.mxu0 %v7292
      %8029 = vmatpush.bf16.msra.mxu0 %v7288
      %8030 = vmatpush.bf16.msra.mxu0 %v7284
      %8031 = vmatpush.bf16.msra.mxu0 %v7280
      %8032 = vmatpush.bf16.msra.mxu0 %v7276
      %8033 = vmatpush.bf16.msra.mxu0 %v7272
      %8034 = vmatpush.bf16.msra.mxu0 %v7268
      %8035 = vmatpush.bf16.msra.mxu0 %v7264
      %8036 = vmatmul.bf16.gmra.mxu0 %v753
      %v8037 = vpop.f32.mrf.mxu0
      %v8038 = vadd.f32 %v8025, %v8037
      %v8039 = vpop.f32.mrf.mxu0
      %8040 = vdwg.mxu0
      %8041 = vmatpush.bf16.msra.mxu0 %v7324
      %8042 = vmatpush.bf16.msra.mxu0 %v7320
      %8043 = vmatpush.bf16.msra.mxu0 %v7316
      %8044 = vmatpush.bf16.msra.mxu0 %v7312
      %8045 = vmatpush.bf16.msra.mxu0 %v7308
      %8046 = vmatpush.bf16.msra.mxu0 %v7304
      %8047 = vmatpush.bf16.msra.mxu0 %v7300
      %8048 = vmatpush.bf16.msra.mxu0 %v7296
      %8049 = vmatmul.bf16.gmra.mxu0 %v754
      %v8050 = vpop.f32.mrf.mxu0
      %v8051 = vadd.f32 %v8038, %v8050
      %v8052 = vpop.f32.mrf.mxu0
      %8053 = vdwg.mxu0
      %8054 = vmatpush.bf16.msra.mxu0 %v7356
      %8055 = vmatpush.bf16.msra.mxu0 %v7352
      %8056 = vmatpush.bf16.msra.mxu0 %v7348
      %8057 = vmatpush.bf16.msra.mxu0 %v7344
      %8058 = vmatpush.bf16.msra.mxu0 %v7340
      %8059 = vmatpush.bf16.msra.mxu0 %v7336
      %8060 = vmatpush.bf16.msra.mxu0 %v7332
      %8061 = vmatpush.bf16.msra.mxu0 %v7328
      %8062 = vmatmul.bf16.gmra.mxu0 %v755
      %v8063 = vpop.f32.mrf.mxu0
      %v8064 = vadd.f32 %v8051, %v8063
      %v8065 = vpop.f32.mrf.mxu0
      %8066 = vdwg.mxu0
      %8067 = vmatpush.bf16.msra.mxu0 %v7388
      %8068 = vmatpush.bf16.msra.mxu0 %v7384
      %8069 = vmatpush.bf16.msra.mxu0 %v7380
      %8070 = vmatpush.bf16.msra.mxu0 %v7376
      %8071 = vmatpush.bf16.msra.mxu0 %v7372
      %8072 = vmatpush.bf16.msra.mxu0 %v7368
      %8073 = vmatpush.bf16.msra.mxu0 %v7364
      %8074 = vmatpush.bf16.msra.mxu0 %v7360
      %8075 = vmatmul.bf16.gmra.mxu0 %v756
      %v8076 = vpop.f32.mrf.mxu0
      %v8077 = vadd.f32 %v8064, %v8076
      %v8078 = vpop.f32.mrf.mxu0
      %8079 = vdwg.mxu0
      %8080 = vmatpush.bf16.msra.mxu0 %v7420
      %8081 = vmatpush.bf16.msra.mxu0 %v7416
      %8082 = vmatpush.bf16.msra.mxu0 %v7412
      %8083 = vmatpush.bf16.msra.mxu0 %v7408
      %8084 = vmatpush.bf16.msra.mxu0 %v7404
      %8085 = vmatpush.bf16.msra.mxu0 %v7400
      %8086 = vmatpush.bf16.msra.mxu0 %v7396
      %8087 = vmatpush.bf16.msra.mxu0 %v7392
      %8088 = vmatmul.bf16.gmra.mxu0 %v757
      %v8089 = vpop.f32.mrf.mxu0
      %v8090 = vadd.f32 %v8077, %v8089
      %v8091 = vpop.f32.mrf.mxu0
      %8092 = vdwg.mxu0
      %v8093 = vrot.slane %v7778, 1
      %v8094 = vrot.slane %v7882, 1
      %v8095 = vrot.slane %v7986, 1
      %v8096 = vrot.slane %v8090, 1
      %vm8097 = vcmp.ge.s32.totalorder %v481, 0
      %vm8098 = vcmp.lt.s32.totalorder %v481, 7
      %vm8099 = vmand %vm8097, %vm8098
      %v8100 = vsel %vm8099, 1, 0
      %vm8101 = vcmp.eq.s32.totalorder %v8100, 1
      %v8102 = vsel %vm8101, %v8093, 0.0
      %v8103 = vsel %vm8101, %v8094, 0.0
      %v8104 = vsel %vm8101, %v8095, 0.0
      %v8105 = vsel %vm8101, %v8096, 0.0
      %v8106 = vadd.f32 %v6136, %v8102
      %v8107 = vadd.f32 %v6137, %v8103
      %v8108 = vadd.f32 %v6138, %v8104
      %v8109 = vadd.f32 %v6139, %v8105
      %s8110 = scalar_lea.vmem %s1, 8192
      %v8111 = vld [vmem:[%s8110] sm:$0xff]
      %v8112 = vld [vmem:[%s8110 + $0x8] sm:$0xff]
      %v8113 = vld [vmem:[%s8110 + $0x10] sm:$0xff]
      %v8114 = vld [vmem:[%s8110 + $0x18] sm:$0xff]
      %v8115 = vld [vmem:[%s8110 + $0x20] sm:$0xff]
      %v8116 = vld [vmem:[%s8110 + $0x28] sm:$0xff]
      %v8117 = vld [vmem:[%s8110 + $0x30] sm:$0xff]
      %v8118 = vld [vmem:[%s8110 + $0x38] sm:$0xff]
      %v8119 = vld [vmem:[%s8110 + $0x40] sm:$0xff]
      %v8120 = vld [vmem:[%s8110 + $0x48] sm:$0xff]
      %v8121 = vld [vmem:[%s8110 + $0x50] sm:$0xff]
      %v8122 = vld [vmem:[%s8110 + $0x58] sm:$0xff]
      %v8123 = vld [vmem:[%s8110 + $0x60] sm:$0xff]
      %v8124 = vld [vmem:[%s8110 + $0x68] sm:$0xff]
      %v8125 = vld [vmem:[%s8110 + $0x70] sm:$0xff]
      %v8126 = vld [vmem:[%s8110 + $0x78] sm:$0xff]
      %v8127 = vld [vmem:[%s8110 + $0x80] sm:$0xff]
      %v8128 = vld [vmem:[%s8110 + $0x88] sm:$0xff]
      %v8129 = vld [vmem:[%s8110 + $0x90] sm:$0xff]
      %v8130 = vld [vmem:[%s8110 + $0x98] sm:$0xff]
      %v8131 = vld [vmem:[%s8110 + $0xa0] sm:$0xff]
      %v8132 = vld [vmem:[%s8110 + $0xa8] sm:$0xff]
      %v8133 = vld [vmem:[%s8110 + $0xb0] sm:$0xff]
      %v8134 = vld [vmem:[%s8110 + $0xb8] sm:$0xff]
      %v8135 = vld [vmem:[%s8110 + $0xc0] sm:$0xff]
      %v8136 = vld [vmem:[%s8110 + $0xc8] sm:$0xff]
      %v8137 = vld [vmem:[%s8110 + $0xd0] sm:$0xff]
      %v8138 = vld [vmem:[%s8110 + $0xd8] sm:$0xff]
      %v8139 = vld [vmem:[%s8110 + $0xe0] sm:$0xff]
      %v8140 = vld [vmem:[%s8110 + $0xe8] sm:$0xff]
      %v8141 = vld [vmem:[%s8110 + $0xf0] sm:$0xff]
      %v8142 = vld [vmem:[%s8110 + $0xf8] sm:$0xff]
      %v8143 = vld [vmem:[%s8110 + $0x100] sm:$0xff]
      %v8144 = vld [vmem:[%s8110 + $0x108] sm:$0xff]
      %v8145 = vld [vmem:[%s8110 + $0x110] sm:$0xff]
      %v8146 = vld [vmem:[%s8110 + $0x118] sm:$0xff]
      %v8147 = vld [vmem:[%s8110 + $0x120] sm:$0xff]
      %v8148 = vld [vmem:[%s8110 + $0x128] sm:$0xff]
      %v8149 = vld [vmem:[%s8110 + $0x130] sm:$0xff]
      %v8150 = vld [vmem:[%s8110 + $0x138] sm:$0xff]
      %v8151 = vld [vmem:[%s8110 + $0x140] sm:$0xff]
      %v8152 = vld [vmem:[%s8110 + $0x148] sm:$0xff]
      %v8153 = vld [vmem:[%s8110 + $0x150] sm:$0xff]
      %v8154 = vld [vmem:[%s8110 + $0x158] sm:$0xff]
      %v8155 = vld [vmem:[%s8110 + $0x160] sm:$0xff]
      %v8156 = vld [vmem:[%s8110 + $0x168] sm:$0xff]
      %v8157 = vld [vmem:[%s8110 + $0x170] sm:$0xff]
      %v8158 = vld [vmem:[%s8110 + $0x178] sm:$0xff]
      %v8159 = vld [vmem:[%s8110 + $0x180] sm:$0xff]
      %v8160 = vld [vmem:[%s8110 + $0x188] sm:$0xff]
      %v8161 = vld [vmem:[%s8110 + $0x190] sm:$0xff]
      %v8162 = vld [vmem:[%s8110 + $0x198] sm:$0xff]
      %v8163 = vld [vmem:[%s8110 + $0x1a0] sm:$0xff]
      %v8164 = vld [vmem:[%s8110 + $0x1a8] sm:$0xff]
      %v8165 = vld [vmem:[%s8110 + $0x1b0] sm:$0xff]
      %v8166 = vld [vmem:[%s8110 + $0x1b8] sm:$0xff]
      %v8167 = vld [vmem:[%s8110 + $0x1c0] sm:$0xff]
      %v8168 = vld [vmem:[%s8110 + $0x1c8] sm:$0xff]
      %v8169 = vld [vmem:[%s8110 + $0x1d0] sm:$0xff]
      %v8170 = vld [vmem:[%s8110 + $0x1d8] sm:$0xff]
      %v8171 = vld [vmem:[%s8110 + $0x1e0] sm:$0xff]
      %v8172 = vld [vmem:[%s8110 + $0x1e8] sm:$0xff]
      %v8173 = vld [vmem:[%s8110 + $0x1f0] sm:$0xff]
      %v8174 = vld [vmem:[%s8110 + $0x1f8] sm:$0xff]
      %v8175 = vld [vmem:[%s8110 + $0x200] sm:$0xff]
      %v8176 = vld [vmem:[%s8110 + $0x208] sm:$0xff]
      %v8177 = vld [vmem:[%s8110 + $0x210] sm:$0xff]
      %v8178 = vld [vmem:[%s8110 + $0x218] sm:$0xff]
      %v8179 = vld [vmem:[%s8110 + $0x220] sm:$0xff]
      %v8180 = vld [vmem:[%s8110 + $0x228] sm:$0xff]
      %v8181 = vld [vmem:[%s8110 + $0x230] sm:$0xff]
      %v8182 = vld [vmem:[%s8110 + $0x238] sm:$0xff]
      %v8183 = vld [vmem:[%s8110 + $0x240] sm:$0xff]
      %v8184 = vld [vmem:[%s8110 + $0x248] sm:$0xff]
      %v8185 = vld [vmem:[%s8110 + $0x250] sm:$0xff]
      %v8186 = vld [vmem:[%s8110 + $0x258] sm:$0xff]
      %v8187 = vld [vmem:[%s8110 + $0x260] sm:$0xff]
      %v8188 = vld [vmem:[%s8110 + $0x268] sm:$0xff]
      %v8189 = vld [vmem:[%s8110 + $0x270] sm:$0xff]
      %v8190 = vld [vmem:[%s8110 + $0x278] sm:$0xff]
      %v8191 = vld [vmem:[%s8110 + $0x280] sm:$0xff]
      %v8192 = vld [vmem:[%s8110 + $0x288] sm:$0xff]
      %v8193 = vld [vmem:[%s8110 + $0x290] sm:$0xff]
      %v8194 = vld [vmem:[%s8110 + $0x298] sm:$0xff]
      %v8195 = vld [vmem:[%s8110 + $0x2a0] sm:$0xff]
      %v8196 = vld [vmem:[%s8110 + $0x2a8] sm:$0xff]
      %v8197 = vld [vmem:[%s8110 + $0x2b0] sm:$0xff]
      %v8198 = vld [vmem:[%s8110 + $0x2b8] sm:$0xff]
      %v8199 = vld [vmem:[%s8110 + $0x2c0] sm:$0xff]
      %v8200 = vld [vmem:[%s8110 + $0x2c8] sm:$0xff]
      %v8201 = vld [vmem:[%s8110 + $0x2d0] sm:$0xff]
      %v8202 = vld [vmem:[%s8110 + $0x2d8] sm:$0xff]
      %v8203 = vld [vmem:[%s8110 + $0x2e0] sm:$0xff]
      %v8204 = vld [vmem:[%s8110 + $0x2e8] sm:$0xff]
      %v8205 = vld [vmem:[%s8110 + $0x2f0] sm:$0xff]
      %v8206 = vld [vmem:[%s8110 + $0x2f8] sm:$0xff]
      %v8207 = vld [vmem:[%s8110 + $0x300] sm:$0xff]
      %v8208 = vld [vmem:[%s8110 + $0x308] sm:$0xff]
      %v8209 = vld [vmem:[%s8110 + $0x310] sm:$0xff]
      %v8210 = vld [vmem:[%s8110 + $0x318] sm:$0xff]
      %v8211 = vld [vmem:[%s8110 + $0x320] sm:$0xff]
      %v8212 = vld [vmem:[%s8110 + $0x328] sm:$0xff]
      %v8213 = vld [vmem:[%s8110 + $0x330] sm:$0xff]
      %v8214 = vld [vmem:[%s8110 + $0x338] sm:$0xff]
      %v8215 = vld [vmem:[%s8110 + $0x340] sm:$0xff]
      %v8216 = vld [vmem:[%s8110 + $0x348] sm:$0xff]
      %v8217 = vld [vmem:[%s8110 + $0x350] sm:$0xff]
      %v8218 = vld [vmem:[%s8110 + $0x358] sm:$0xff]
      %v8219 = vld [vmem:[%s8110 + $0x360] sm:$0xff]
      %v8220 = vld [vmem:[%s8110 + $0x368] sm:$0xff]
      %v8221 = vld [vmem:[%s8110 + $0x370] sm:$0xff]
      %v8222 = vld [vmem:[%s8110 + $0x378] sm:$0xff]
      %v8223 = vld [vmem:[%s8110 + $0x380] sm:$0xff]
      %v8224 = vld [vmem:[%s8110 + $0x388] sm:$0xff]
      %v8225 = vld [vmem:[%s8110 + $0x390] sm:$0xff]
      %v8226 = vld [vmem:[%s8110 + $0x398] sm:$0xff]
      %v8227 = vld [vmem:[%s8110 + $0x3a0] sm:$0xff]
      %v8228 = vld [vmem:[%s8110 + $0x3a8] sm:$0xff]
      %v8229 = vld [vmem:[%s8110 + $0x3b0] sm:$0xff]
      %v8230 = vld [vmem:[%s8110 + $0x3b8] sm:$0xff]
      %v8231 = vld [vmem:[%s8110 + $0x3c0] sm:$0xff]
      %v8232 = vld [vmem:[%s8110 + $0x3c8] sm:$0xff]
      %v8233 = vld [vmem:[%s8110 + $0x3d0] sm:$0xff]
      %v8234 = vld [vmem:[%s8110 + $0x3d8] sm:$0xff]
      %v8235 = vld [vmem:[%s8110 + $0x3e0] sm:$0xff]
      %v8236 = vld [vmem:[%s8110 + $0x3e8] sm:$0xff]
      %v8237 = vld [vmem:[%s8110 + $0x3f0] sm:$0xff]
      %v8238 = vld [vmem:[%s8110 + $0x3f8] sm:$0xff]
      %v8239 = vld [vmem:[%s8110 + $0x400] sm:$0xff]
      %v8240 = vld [vmem:[%s8110 + $0x408] sm:$0xff]
      %v8241 = vld [vmem:[%s8110 + $0x410] sm:$0xff]
      %v8242 = vld [vmem:[%s8110 + $0x418] sm:$0xff]
      %v8243 = vld [vmem:[%s8110 + $0x420] sm:$0xff]
      %v8244 = vld [vmem:[%s8110 + $0x428] sm:$0xff]
      %v8245 = vld [vmem:[%s8110 + $0x430] sm:$0xff]
      %v8246 = vld [vmem:[%s8110 + $0x438] sm:$0xff]
      %v8247 = vld [vmem:[%s8110 + $0x440] sm:$0xff]
      %v8248 = vld [vmem:[%s8110 + $0x448] sm:$0xff]
      %v8249 = vld [vmem:[%s8110 + $0x450] sm:$0xff]
      %v8250 = vld [vmem:[%s8110 + $0x458] sm:$0xff]
      %v8251 = vld [vmem:[%s8110 + $0x460] sm:$0xff]
      %v8252 = vld [vmem:[%s8110 + $0x468] sm:$0xff]
      %v8253 = vld [vmem:[%s8110 + $0x470] sm:$0xff]
      %v8254 = vld [vmem:[%s8110 + $0x478] sm:$0xff]
      %v8255 = vld [vmem:[%s8110 + $0x480] sm:$0xff]
      %v8256 = vld [vmem:[%s8110 + $0x488] sm:$0xff]
      %v8257 = vld [vmem:[%s8110 + $0x490] sm:$0xff]
      %v8258 = vld [vmem:[%s8110 + $0x498] sm:$0xff]
      %v8259 = vld [vmem:[%s8110 + $0x4a0] sm:$0xff]
      %v8260 = vld [vmem:[%s8110 + $0x4a8] sm:$0xff]
      %v8261 = vld [vmem:[%s8110 + $0x4b0] sm:$0xff]
      %v8262 = vld [vmem:[%s8110 + $0x4b8] sm:$0xff]
      %v8263 = vld [vmem:[%s8110 + $0x4c0] sm:$0xff]
      %v8264 = vld [vmem:[%s8110 + $0x4c8] sm:$0xff]
      %v8265 = vld [vmem:[%s8110 + $0x4d0] sm:$0xff]
      %v8266 = vld [vmem:[%s8110 + $0x4d8] sm:$0xff]
      %v8267 = vld [vmem:[%s8110 + $0x4e0] sm:$0xff]
      %v8268 = vld [vmem:[%s8110 + $0x4e8] sm:$0xff]
      %v8269 = vld [vmem:[%s8110 + $0x4f0] sm:$0xff]
      %v8270 = vld [vmem:[%s8110 + $0x4f8] sm:$0xff]
      %v8271 = vld [vmem:[%s8110 + $0x500] sm:$0xff]
      %v8272 = vld [vmem:[%s8110 + $0x508] sm:$0xff]
      %v8273 = vld [vmem:[%s8110 + $0x510] sm:$0xff]
      %v8274 = vld [vmem:[%s8110 + $0x518] sm:$0xff]
      %v8275 = vld [vmem:[%s8110 + $0x520] sm:$0xff]
      %v8276 = vld [vmem:[%s8110 + $0x528] sm:$0xff]
      %v8277 = vld [vmem:[%s8110 + $0x530] sm:$0xff]
      %v8278 = vld [vmem:[%s8110 + $0x538] sm:$0xff]
      %v8279 = vld [vmem:[%s8110 + $0x540] sm:$0xff]
      %v8280 = vld [vmem:[%s8110 + $0x548] sm:$0xff]
      %v8281 = vld [vmem:[%s8110 + $0x550] sm:$0xff]
      %v8282 = vld [vmem:[%s8110 + $0x558] sm:$0xff]
      %v8283 = vld [vmem:[%s8110 + $0x560] sm:$0xff]
      %v8284 = vld [vmem:[%s8110 + $0x568] sm:$0xff]
      %v8285 = vld [vmem:[%s8110 + $0x570] sm:$0xff]
      %v8286 = vld [vmem:[%s8110 + $0x578] sm:$0xff]
      %v8287 = vld [vmem:[%s8110 + $0x580] sm:$0xff]
      %v8288 = vld [vmem:[%s8110 + $0x588] sm:$0xff]
      %v8289 = vld [vmem:[%s8110 + $0x590] sm:$0xff]
      %v8290 = vld [vmem:[%s8110 + $0x598] sm:$0xff]
      %v8291 = vld [vmem:[%s8110 + $0x5a0] sm:$0xff]
      %v8292 = vld [vmem:[%s8110 + $0x5a8] sm:$0xff]
      %v8293 = vld [vmem:[%s8110 + $0x5b0] sm:$0xff]
      %v8294 = vld [vmem:[%s8110 + $0x5b8] sm:$0xff]
      %v8295 = vld [vmem:[%s8110 + $0x5c0] sm:$0xff]
      %v8296 = vld [vmem:[%s8110 + $0x5c8] sm:$0xff]
      %v8297 = vld [vmem:[%s8110 + $0x5d0] sm:$0xff]
      %v8298 = vld [vmem:[%s8110 + $0x5d8] sm:$0xff]
      %v8299 = vld [vmem:[%s8110 + $0x5e0] sm:$0xff]
      %v8300 = vld [vmem:[%s8110 + $0x5e8] sm:$0xff]
      %v8301 = vld [vmem:[%s8110 + $0x5f0] sm:$0xff]
      %v8302 = vld [vmem:[%s8110 + $0x5f8] sm:$0xff]
      %v8303 = vld [vmem:[%s8110 + $0x600] sm:$0xff]
      %v8304 = vld [vmem:[%s8110 + $0x608] sm:$0xff]
      %v8305 = vld [vmem:[%s8110 + $0x610] sm:$0xff]
      %v8306 = vld [vmem:[%s8110 + $0x618] sm:$0xff]
      %v8307 = vld [vmem:[%s8110 + $0x620] sm:$0xff]
      %v8308 = vld [vmem:[%s8110 + $0x628] sm:$0xff]
      %v8309 = vld [vmem:[%s8110 + $0x630] sm:$0xff]
      %v8310 = vld [vmem:[%s8110 + $0x638] sm:$0xff]
      %v8311 = vld [vmem:[%s8110 + $0x640] sm:$0xff]
      %v8312 = vld [vmem:[%s8110 + $0x648] sm:$0xff]
      %v8313 = vld [vmem:[%s8110 + $0x650] sm:$0xff]
      %v8314 = vld [vmem:[%s8110 + $0x658] sm:$0xff]
      %v8315 = vld [vmem:[%s8110 + $0x660] sm:$0xff]
      %v8316 = vld [vmem:[%s8110 + $0x668] sm:$0xff]
      %v8317 = vld [vmem:[%s8110 + $0x670] sm:$0xff]
      %v8318 = vld [vmem:[%s8110 + $0x678] sm:$0xff]
      %v8319 = vld [vmem:[%s8110 + $0x680] sm:$0xff]
      %v8320 = vld [vmem:[%s8110 + $0x688] sm:$0xff]
      %v8321 = vld [vmem:[%s8110 + $0x690] sm:$0xff]
      %v8322 = vld [vmem:[%s8110 + $0x698] sm:$0xff]
      %v8323 = vld [vmem:[%s8110 + $0x6a0] sm:$0xff]
      %v8324 = vld [vmem:[%s8110 + $0x6a8] sm:$0xff]
      %v8325 = vld [vmem:[%s8110 + $0x6b0] sm:$0xff]
      %v8326 = vld [vmem:[%s8110 + $0x6b8] sm:$0xff]
      %v8327 = vld [vmem:[%s8110 + $0x6c0] sm:$0xff]
      %v8328 = vld [vmem:[%s8110 + $0x6c8] sm:$0xff]
      %v8329 = vld [vmem:[%s8110 + $0x6d0] sm:$0xff]
      %v8330 = vld [vmem:[%s8110 + $0x6d8] sm:$0xff]
      %v8331 = vld [vmem:[%s8110 + $0x6e0] sm:$0xff]
      %v8332 = vld [vmem:[%s8110 + $0x6e8] sm:$0xff]
      %v8333 = vld [vmem:[%s8110 + $0x6f0] sm:$0xff]
      %v8334 = vld [vmem:[%s8110 + $0x6f8] sm:$0xff]
      %v8335 = vld [vmem:[%s8110 + $0x700] sm:$0xff]
      %v8336 = vld [vmem:[%s8110 + $0x708] sm:$0xff]
      %v8337 = vld [vmem:[%s8110 + $0x710] sm:$0xff]
      %v8338 = vld [vmem:[%s8110 + $0x718] sm:$0xff]
      %v8339 = vld [vmem:[%s8110 + $0x720] sm:$0xff]
      %v8340 = vld [vmem:[%s8110 + $0x728] sm:$0xff]
      %v8341 = vld [vmem:[%s8110 + $0x730] sm:$0xff]
      %v8342 = vld [vmem:[%s8110 + $0x738] sm:$0xff]
      %v8343 = vld [vmem:[%s8110 + $0x740] sm:$0xff]
      %v8344 = vld [vmem:[%s8110 + $0x748] sm:$0xff]
      %v8345 = vld [vmem:[%s8110 + $0x750] sm:$0xff]
      %v8346 = vld [vmem:[%s8110 + $0x758] sm:$0xff]
      %v8347 = vld [vmem:[%s8110 + $0x760] sm:$0xff]
      %v8348 = vld [vmem:[%s8110 + $0x768] sm:$0xff]
      %v8349 = vld [vmem:[%s8110 + $0x770] sm:$0xff]
      %v8350 = vld [vmem:[%s8110 + $0x778] sm:$0xff]
      %v8351 = vld [vmem:[%s8110 + $0x780] sm:$0xff]
      %v8352 = vld [vmem:[%s8110 + $0x788] sm:$0xff]
      %v8353 = vld [vmem:[%s8110 + $0x790] sm:$0xff]
      %v8354 = vld [vmem:[%s8110 + $0x798] sm:$0xff]
      %v8355 = vld [vmem:[%s8110 + $0x7a0] sm:$0xff]
      %v8356 = vld [vmem:[%s8110 + $0x7a8] sm:$0xff]
      %v8357 = vld [vmem:[%s8110 + $0x7b0] sm:$0xff]
      %v8358 = vld [vmem:[%s8110 + $0x7b8] sm:$0xff]
      %v8359 = vld [vmem:[%s8110 + $0x7c0] sm:$0xff]
      %v8360 = vld [vmem:[%s8110 + $0x7c8] sm:$0xff]
      %v8361 = vld [vmem:[%s8110 + $0x7d0] sm:$0xff]
      %v8362 = vld [vmem:[%s8110 + $0x7d8] sm:$0xff]
      %v8363 = vld [vmem:[%s8110 + $0x7e0] sm:$0xff]
      %v8364 = vld [vmem:[%s8110 + $0x7e8] sm:$0xff]
      %v8365 = vld [vmem:[%s8110 + $0x7f0] sm:$0xff]
      %v8366 = vld [vmem:[%s8110 + $0x7f8] sm:$0xff]
      %v8623 = vunpack.c.l.b16 %v8111
      %v8624 = vunpack.c.h.b16 %v8111
      %v8625 = vunpack.c.l.b16 %v8112
      %v8626 = vunpack.c.h.b16 %v8112
      %v8627 = vunpack.c.l.b16 %v8113
      %v8628 = vunpack.c.h.b16 %v8113
      %v8629 = vunpack.c.l.b16 %v8114
      %v8630 = vunpack.c.h.b16 %v8114
      %v8631 = vunpack.c.l.b16 %v8115
      %v8632 = vunpack.c.h.b16 %v8115
      %v8633 = vunpack.c.l.b16 %v8116
      %v8634 = vunpack.c.h.b16 %v8116
      %v8635 = vunpack.c.l.b16 %v8117
      %v8636 = vunpack.c.h.b16 %v8117
      %v8637 = vunpack.c.l.b16 %v8118
      %v8638 = vunpack.c.h.b16 %v8118
      %v8639 = vunpack.c.l.b16 %v8119
      %v8640 = vunpack.c.h.b16 %v8119
      %v8641 = vunpack.c.l.b16 %v8120
      %v8642 = vunpack.c.h.b16 %v8120
      %v8643 = vunpack.c.l.b16 %v8121
      %v8644 = vunpack.c.h.b16 %v8121
      %v8645 = vunpack.c.l.b16 %v8122
      %v8646 = vunpack.c.h.b16 %v8122
      %v8647 = vunpack.c.l.b16 %v8123
      %v8648 = vunpack.c.h.b16 %v8123
      %v8649 = vunpack.c.l.b16 %v8124
      %v8650 = vunpack.c.h.b16 %v8124
      %v8651 = vunpack.c.l.b16 %v8125
      %v8652 = vunpack.c.h.b16 %v8125
      %v8653 = vunpack.c.l.b16 %v8126
      %v8654 = vunpack.c.h.b16 %v8126
      %v8655 = vunpack.c.l.b16 %v8127
      %v8656 = vunpack.c.h.b16 %v8127
      %v8657 = vunpack.c.l.b16 %v8128
      %v8658 = vunpack.c.h.b16 %v8128
      %v8659 = vunpack.c.l.b16 %v8129
      %v8660 = vunpack.c.h.b16 %v8129
      %v8661 = vunpack.c.l.b16 %v8130
      %v8662 = vunpack.c.h.b16 %v8130
      %v8663 = vunpack.c.l.b16 %v8131
      %v8664 = vunpack.c.h.b16 %v8131
      %v8665 = vunpack.c.l.b16 %v8132
      %v8666 = vunpack.c.h.b16 %v8132
      %v8667 = vunpack.c.l.b16 %v8133
      %v8668 = vunpack.c.h.b16 %v8133
      %v8669 = vunpack.c.l.b16 %v8134
      %v8670 = vunpack.c.h.b16 %v8134
      %v8671 = vunpack.c.l.b16 %v8135
      %v8672 = vunpack.c.h.b16 %v8135
      %v8673 = vunpack.c.l.b16 %v8136
      %v8674 = vunpack.c.h.b16 %v8136
      %v8675 = vunpack.c.l.b16 %v8137
      %v8676 = vunpack.c.h.b16 %v8137
      %v8677 = vunpack.c.l.b16 %v8138
      %v8678 = vunpack.c.h.b16 %v8138
      %v8679 = vunpack.c.l.b16 %v8139
      %v8680 = vunpack.c.h.b16 %v8139
      %v8681 = vunpack.c.l.b16 %v8140
      %v8682 = vunpack.c.h.b16 %v8140
      %v8683 = vunpack.c.l.b16 %v8141
      %v8684 = vunpack.c.h.b16 %v8141
      %v8685 = vunpack.c.l.b16 %v8142
      %v8686 = vunpack.c.h.b16 %v8142
      %v8687 = vunpack.c.l.b16 %v8143
      %v8688 = vunpack.c.h.b16 %v8143
      %v8689 = vunpack.c.l.b16 %v8144
      %v8690 = vunpack.c.h.b16 %v8144
      %v8691 = vunpack.c.l.b16 %v8145
      %v8692 = vunpack.c.h.b16 %v8145
      %v8693 = vunpack.c.l.b16 %v8146
      %v8694 = vunpack.c.h.b16 %v8146
      %v8695 = vunpack.c.l.b16 %v8147
      %v8696 = vunpack.c.h.b16 %v8147
      %v8697 = vunpack.c.l.b16 %v8148
      %v8698 = vunpack.c.h.b16 %v8148
      %v8699 = vunpack.c.l.b16 %v8149
      %v8700 = vunpack.c.h.b16 %v8149
      %v8701 = vunpack.c.l.b16 %v8150
      %v8702 = vunpack.c.h.b16 %v8150
      %v8703 = vunpack.c.l.b16 %v8151
      %v8704 = vunpack.c.h.b16 %v8151
      %v8705 = vunpack.c.l.b16 %v8152
      %v8706 = vunpack.c.h.b16 %v8152
      %v8707 = vunpack.c.l.b16 %v8153
      %v8708 = vunpack.c.h.b16 %v8153
      %v8709 = vunpack.c.l.b16 %v8154
      %v8710 = vunpack.c.h.b16 %v8154
      %v8711 = vunpack.c.l.b16 %v8155
      %v8712 = vunpack.c.h.b16 %v8155
      %v8713 = vunpack.c.l.b16 %v8156
      %v8714 = vunpack.c.h.b16 %v8156
      %v8715 = vunpack.c.l.b16 %v8157
      %v8716 = vunpack.c.h.b16 %v8157
      %v8717 = vunpack.c.l.b16 %v8158
      %v8718 = vunpack.c.h.b16 %v8158
      %v8719 = vunpack.c.l.b16 %v8159
      %v8720 = vunpack.c.h.b16 %v8159
      %v8721 = vunpack.c.l.b16 %v8160
      %v8722 = vunpack.c.h.b16 %v8160
      %v8723 = vunpack.c.l.b16 %v8161
      %v8724 = vunpack.c.h.b16 %v8161
      %v8725 = vunpack.c.l.b16 %v8162
      %v8726 = vunpack.c.h.b16 %v8162
      %v8727 = vunpack.c.l.b16 %v8163
      %v8728 = vunpack.c.h.b16 %v8163
      %v8729 = vunpack.c.l.b16 %v8164
      %v8730 = vunpack.c.h.b16 %v8164
      %v8731 = vunpack.c.l.b16 %v8165
      %v8732 = vunpack.c.h.b16 %v8165
      %v8733 = vunpack.c.l.b16 %v8166
      %v8734 = vunpack.c.h.b16 %v8166
      %v8735 = vunpack.c.l.b16 %v8167
      %v8736 = vunpack.c.h.b16 %v8167
      %v8737 = vunpack.c.l.b16 %v8168
      %v8738 = vunpack.c.h.b16 %v8168
      %v8739 = vunpack.c.l.b16 %v8169
      %v8740 = vunpack.c.h.b16 %v8169
      %v8741 = vunpack.c.l.b16 %v8170
      %v8742 = vunpack.c.h.b16 %v8170
      %v8743 = vunpack.c.l.b16 %v8171
      %v8744 = vunpack.c.h.b16 %v8171
      %v8745 = vunpack.c.l.b16 %v8172
      %v8746 = vunpack.c.h.b16 %v8172
      %v8747 = vunpack.c.l.b16 %v8173
      %v8748 = vunpack.c.h.b16 %v8173
      %v8749 = vunpack.c.l.b16 %v8174
      %v8750 = vunpack.c.h.b16 %v8174
      %v8751 = vunpack.c.l.b16 %v8175
      %v8752 = vunpack.c.h.b16 %v8175
      %v8753 = vunpack.c.l.b16 %v8176
      %v8754 = vunpack.c.h.b16 %v8176
      %v8755 = vunpack.c.l.b16 %v8177
      %v8756 = vunpack.c.h.b16 %v8177
      %v8757 = vunpack.c.l.b16 %v8178
      %v8758 = vunpack.c.h.b16 %v8178
      %v8759 = vunpack.c.l.b16 %v8179
      %v8760 = vunpack.c.h.b16 %v8179
      %v8761 = vunpack.c.l.b16 %v8180
      %v8762 = vunpack.c.h.b16 %v8180
      %v8763 = vunpack.c.l.b16 %v8181
      %v8764 = vunpack.c.h.b16 %v8181
      %v8765 = vunpack.c.l.b16 %v8182
      %v8766 = vunpack.c.h.b16 %v8182
      %v8767 = vunpack.c.l.b16 %v8183
      %v8768 = vunpack.c.h.b16 %v8183
      %v8769 = vunpack.c.l.b16 %v8184
      %v8770 = vunpack.c.h.b16 %v8184
      %v8771 = vunpack.c.l.b16 %v8185
      %v8772 = vunpack.c.h.b16 %v8185
      %v8773 = vunpack.c.l.b16 %v8186
      %v8774 = vunpack.c.h.b16 %v8186
      %v8775 = vunpack.c.l.b16 %v8187
      %v8776 = vunpack.c.h.b16 %v8187
      %v8777 = vunpack.c.l.b16 %v8188
      %v8778 = vunpack.c.h.b16 %v8188
      %v8779 = vunpack.c.l.b16 %v8189
      %v8780 = vunpack.c.h.b16 %v8189
      %v8781 = vunpack.c.l.b16 %v8190
      %v8782 = vunpack.c.h.b16 %v8190
      %v8783 = vunpack.c.l.b16 %v8191
      %v8784 = vunpack.c.h.b16 %v8191
      %v8785 = vunpack.c.l.b16 %v8192
      %v8786 = vunpack.c.h.b16 %v8192
      %v8787 = vunpack.c.l.b16 %v8193
      %v8788 = vunpack.c.h.b16 %v8193
      %v8789 = vunpack.c.l.b16 %v8194
      %v8790 = vunpack.c.h.b16 %v8194
      %v8791 = vunpack.c.l.b16 %v8195
      %v8792 = vunpack.c.h.b16 %v8195
      %v8793 = vunpack.c.l.b16 %v8196
      %v8794 = vunpack.c.h.b16 %v8196
      %v8795 = vunpack.c.l.b16 %v8197
      %v8796 = vunpack.c.h.b16 %v8197
      %v8797 = vunpack.c.l.b16 %v8198
      %v8798 = vunpack.c.h.b16 %v8198
      %v8799 = vunpack.c.l.b16 %v8199
      %v8800 = vunpack.c.h.b16 %v8199
      %v8801 = vunpack.c.l.b16 %v8200
      %v8802 = vunpack.c.h.b16 %v8200
      %v8803 = vunpack.c.l.b16 %v8201
      %v8804 = vunpack.c.h.b16 %v8201
      %v8805 = vunpack.c.l.b16 %v8202
      %v8806 = vunpack.c.h.b16 %v8202
      %v8807 = vunpack.c.l.b16 %v8203
      %v8808 = vunpack.c.h.b16 %v8203
      %v8809 = vunpack.c.l.b16 %v8204
      %v8810 = vunpack.c.h.b16 %v8204
      %v8811 = vunpack.c.l.b16 %v8205
      %v8812 = vunpack.c.h.b16 %v8205
      %v8813 = vunpack.c.l.b16 %v8206
      %v8814 = vunpack.c.h.b16 %v8206
      %v8815 = vunpack.c.l.b16 %v8207
      %v8816 = vunpack.c.h.b16 %v8207
      %v8817 = vunpack.c.l.b16 %v8208
      %v8818 = vunpack.c.h.b16 %v8208
      %v8819 = vunpack.c.l.b16 %v8209
      %v8820 = vunpack.c.h.b16 %v8209
      %v8821 = vunpack.c.l.b16 %v8210
      %v8822 = vunpack.c.h.b16 %v8210
      %v8823 = vunpack.c.l.b16 %v8211
      %v8824 = vunpack.c.h.b16 %v8211
      %v8825 = vunpack.c.l.b16 %v8212
      %v8826 = vunpack.c.h.b16 %v8212
      %v8827 = vunpack.c.l.b16 %v8213
      %v8828 = vunpack.c.h.b16 %v8213
      %v8829 = vunpack.c.l.b16 %v8214
      %v8830 = vunpack.c.h.b16 %v8214
      %v8831 = vunpack.c.l.b16 %v8215
      %v8832 = vunpack.c.h.b16 %v8215
      %v8833 = vunpack.c.l.b16 %v8216
      %v8834 = vunpack.c.h.b16 %v8216
      %v8835 = vunpack.c.l.b16 %v8217
      %v8836 = vunpack.c.h.b16 %v8217
      %v8837 = vunpack.c.l.b16 %v8218
      %v8838 = vunpack.c.h.b16 %v8218
      %v8839 = vunpack.c.l.b16 %v8219
      %v8840 = vunpack.c.h.b16 %v8219
      %v8841 = vunpack.c.l.b16 %v8220
      %v8842 = vunpack.c.h.b16 %v8220
      %v8843 = vunpack.c.l.b16 %v8221
      %v8844 = vunpack.c.h.b16 %v8221
      %v8845 = vunpack.c.l.b16 %v8222
      %v8846 = vunpack.c.h.b16 %v8222
      %v8847 = vunpack.c.l.b16 %v8223
      %v8848 = vunpack.c.h.b16 %v8223
      %v8849 = vunpack.c.l.b16 %v8224
      %v8850 = vunpack.c.h.b16 %v8224
      %v8851 = vunpack.c.l.b16 %v8225
      %v8852 = vunpack.c.h.b16 %v8225
      %v8853 = vunpack.c.l.b16 %v8226
      %v8854 = vunpack.c.h.b16 %v8226
      %v8855 = vunpack.c.l.b16 %v8227
      %v8856 = vunpack.c.h.b16 %v8227
      %v8857 = vunpack.c.l.b16 %v8228
      %v8858 = vunpack.c.h.b16 %v8228
      %v8859 = vunpack.c.l.b16 %v8229
      %v8860 = vunpack.c.h.b16 %v8229
      %v8861 = vunpack.c.l.b16 %v8230
      %v8862 = vunpack.c.h.b16 %v8230
      %v8863 = vunpack.c.l.b16 %v8231
      %v8864 = vunpack.c.h.b16 %v8231
      %v8865 = vunpack.c.l.b16 %v8232
      %v8866 = vunpack.c.h.b16 %v8232
      %v8867 = vunpack.c.l.b16 %v8233
      %v8868 = vunpack.c.h.b16 %v8233
      %v8869 = vunpack.c.l.b16 %v8234
      %v8870 = vunpack.c.h.b16 %v8234
      %v8871 = vunpack.c.l.b16 %v8235
      %v8872 = vunpack.c.h.b16 %v8235
      %v8873 = vunpack.c.l.b16 %v8236
      %v8874 = vunpack.c.h.b16 %v8236
      %v8875 = vunpack.c.l.b16 %v8237
      %v8876 = vunpack.c.h.b16 %v8237
      %v8877 = vunpack.c.l.b16 %v8238
      %v8878 = vunpack.c.h.b16 %v8238
      %v8879 = vunpack.c.l.b16 %v8239
      %v8880 = vunpack.c.h.b16 %v8239
      %v8881 = vunpack.c.l.b16 %v8240
      %v8882 = vunpack.c.h.b16 %v8240
      %v8883 = vunpack.c.l.b16 %v8241
      %v8884 = vunpack.c.h.b16 %v8241
      %v8885 = vunpack.c.l.b16 %v8242
      %v8886 = vunpack.c.h.b16 %v8242
      %v8887 = vunpack.c.l.b16 %v8243
      %v8888 = vunpack.c.h.b16 %v8243
      %v8889 = vunpack.c.l.b16 %v8244
      %v8890 = vunpack.c.h.b16 %v8244
      %v8891 = vunpack.c.l.b16 %v8245
      %v8892 = vunpack.c.h.b16 %v8245
      %v8893 = vunpack.c.l.b16 %v8246
      %v8894 = vunpack.c.h.b16 %v8246
      %v8895 = vunpack.c.l.b16 %v8247
      %v8896 = vunpack.c.h.b16 %v8247
      %v8897 = vunpack.c.l.b16 %v8248
      %v8898 = vunpack.c.h.b16 %v8248
      %v8899 = vunpack.c.l.b16 %v8249
      %v8900 = vunpack.c.h.b16 %v8249
      %v8901 = vunpack.c.l.b16 %v8250
      %v8902 = vunpack.c.h.b16 %v8250
      %v8903 = vunpack.c.l.b16 %v8251
      %v8904 = vunpack.c.h.b16 %v8251
      %v8905 = vunpack.c.l.b16 %v8252
      %v8906 = vunpack.c.h.b16 %v8252
      %v8907 = vunpack.c.l.b16 %v8253
      %v8908 = vunpack.c.h.b16 %v8253
      %v8909 = vunpack.c.l.b16 %v8254
      %v8910 = vunpack.c.h.b16 %v8254
      %v8911 = vunpack.c.l.b16 %v8255
      %v8912 = vunpack.c.h.b16 %v8255
      %v8913 = vunpack.c.l.b16 %v8256
      %v8914 = vunpack.c.h.b16 %v8256
      %v8915 = vunpack.c.l.b16 %v8257
      %v8916 = vunpack.c.h.b16 %v8257
      %v8917 = vunpack.c.l.b16 %v8258
      %v8918 = vunpack.c.h.b16 %v8258
      %v8919 = vunpack.c.l.b16 %v8259
      %v8920 = vunpack.c.h.b16 %v8259
      %v8921 = vunpack.c.l.b16 %v8260
      %v8922 = vunpack.c.h.b16 %v8260
      %v8923 = vunpack.c.l.b16 %v8261
      %v8924 = vunpack.c.h.b16 %v8261
      %v8925 = vunpack.c.l.b16 %v8262
      %v8926 = vunpack.c.h.b16 %v8262
      %v8927 = vunpack.c.l.b16 %v8263
      %v8928 = vunpack.c.h.b16 %v8263
      %v8929 = vunpack.c.l.b16 %v8264
      %v8930 = vunpack.c.h.b16 %v8264
      %v8931 = vunpack.c.l.b16 %v8265
      %v8932 = vunpack.c.h.b16 %v8265
      %v8933 = vunpack.c.l.b16 %v8266
      %v8934 = vunpack.c.h.b16 %v8266
      %v8935 = vunpack.c.l.b16 %v8267
      %v8936 = vunpack.c.h.b16 %v8267
      %v8937 = vunpack.c.l.b16 %v8268
      %v8938 = vunpack.c.h.b16 %v8268
      %v8939 = vunpack.c.l.b16 %v8269
      %v8940 = vunpack.c.h.b16 %v8269
      %v8941 = vunpack.c.l.b16 %v8270
      %v8942 = vunpack.c.h.b16 %v8270
      %v8943 = vunpack.c.l.b16 %v8271
      %v8944 = vunpack.c.h.b16 %v8271
      %v8945 = vunpack.c.l.b16 %v8272
      %v8946 = vunpack.c.h.b16 %v8272
      %v8947 = vunpack.c.l.b16 %v8273
      %v8948 = vunpack.c.h.b16 %v8273
      %v8949 = vunpack.c.l.b16 %v8274
      %v8950 = vunpack.c.h.b16 %v8274
      %v8951 = vunpack.c.l.b16 %v8275
      %v8952 = vunpack.c.h.b16 %v8275
      %v8953 = vunpack.c.l.b16 %v8276
      %v8954 = vunpack.c.h.b16 %v8276
      %v8955 = vunpack.c.l.b16 %v8277
      %v8956 = vunpack.c.h.b16 %v8277
      %v8957 = vunpack.c.l.b16 %v8278
      %v8958 = vunpack.c.h.b16 %v8278
      %v8959 = vunpack.c.l.b16 %v8279
      %v8960 = vunpack.c.h.b16 %v8279
      %v8961 = vunpack.c.l.b16 %v8280
      %v8962 = vunpack.c.h.b16 %v8280
      %v8963 = vunpack.c.l.b16 %v8281
      %v8964 = vunpack.c.h.b16 %v8281
      %v8965 = vunpack.c.l.b16 %v8282
      %v8966 = vunpack.c.h.b16 %v8282
      %v8967 = vunpack.c.l.b16 %v8283
      %v8968 = vunpack.c.h.b16 %v8283
      %v8969 = vunpack.c.l.b16 %v8284
      %v8970 = vunpack.c.h.b16 %v8284
      %v8971 = vunpack.c.l.b16 %v8285
      %v8972 = vunpack.c.h.b16 %v8285
      %v8973 = vunpack.c.l.b16 %v8286
      %v8974 = vunpack.c.h.b16 %v8286
      %v8975 = vunpack.c.l.b16 %v8287
      %v8976 = vunpack.c.h.b16 %v8287
      %v8977 = vunpack.c.l.b16 %v8288
      %v8978 = vunpack.c.h.b16 %v8288
      %v8979 = vunpack.c.l.b16 %v8289
      %v8980 = vunpack.c.h.b16 %v8289
      %v8981 = vunpack.c.l.b16 %v8290
      %v8982 = vunpack.c.h.b16 %v8290
      %v8983 = vunpack.c.l.b16 %v8291
      %v8984 = vunpack.c.h.b16 %v8291
      %v8985 = vunpack.c.l.b16 %v8292
      %v8986 = vunpack.c.h.b16 %v8292
      %v8987 = vunpack.c.l.b16 %v8293
      %v8988 = vunpack.c.h.b16 %v8293
      %v8989 = vunpack.c.l.b16 %v8294
      %v8990 = vunpack.c.h.b16 %v8294
      %v8991 = vunpack.c.l.b16 %v8295
      %v8992 = vunpack.c.h.b16 %v8295
      %v8993 = vunpack.c.l.b16 %v8296
      %v8994 = vunpack.c.h.b16 %v8296
      %v8995 = vunpack.c.l.b16 %v8297
      %v8996 = vunpack.c.h.b16 %v8297
      %v8997 = vunpack.c.l.b16 %v8298
      %v8998 = vunpack.c.h.b16 %v8298
      %v8999 = vunpack.c.l.b16 %v8299
      %v9000 = vunpack.c.h.b16 %v8299
      %v9001 = vunpack.c.l.b16 %v8300
      %v9002 = vunpack.c.h.b16 %v8300
      %v9003 = vunpack.c.l.b16 %v8301
      %v9004 = vunpack.c.h.b16 %v8301
      %v9005 = vunpack.c.l.b16 %v8302
      %v9006 = vunpack.c.h.b16 %v8302
      %v9007 = vunpack.c.l.b16 %v8303
      %v9008 = vunpack.c.h.b16 %v8303
      %v9009 = vunpack.c.l.b16 %v8304
      %v9010 = vunpack.c.h.b16 %v8304
      %v9011 = vunpack.c.l.b16 %v8305
      %v9012 = vunpack.c.h.b16 %v8305
      %v9013 = vunpack.c.l.b16 %v8306
      %v9014 = vunpack.c.h.b16 %v8306
      %v9015 = vunpack.c.l.b16 %v8307
      %v9016 = vunpack.c.h.b16 %v8307
      %v9017 = vunpack.c.l.b16 %v8308
      %v9018 = vunpack.c.h.b16 %v8308
      %v9019 = vunpack.c.l.b16 %v8309
      %v9020 = vunpack.c.h.b16 %v8309
      %v9021 = vunpack.c.l.b16 %v8310
      %v9022 = vunpack.c.h.b16 %v8310
      %v9023 = vunpack.c.l.b16 %v8311
      %v9024 = vunpack.c.h.b16 %v8311
      %v9025 = vunpack.c.l.b16 %v8312
      %v9026 = vunpack.c.h.b16 %v8312
      %v9027 = vunpack.c.l.b16 %v8313
      %v9028 = vunpack.c.h.b16 %v8313
      %v9029 = vunpack.c.l.b16 %v8314
      %v9030 = vunpack.c.h.b16 %v8314
      %v9031 = vunpack.c.l.b16 %v8315
      %v9032 = vunpack.c.h.b16 %v8315
      %v9033 = vunpack.c.l.b16 %v8316
      %v9034 = vunpack.c.h.b16 %v8316
      %v9035 = vunpack.c.l.b16 %v8317
      %v9036 = vunpack.c.h.b16 %v8317
      %v9037 = vunpack.c.l.b16 %v8318
      %v9038 = vunpack.c.h.b16 %v8318
      %v9039 = vunpack.c.l.b16 %v8319
      %v9040 = vunpack.c.h.b16 %v8319
      %v9041 = vunpack.c.l.b16 %v8320
      %v9042 = vunpack.c.h.b16 %v8320
      %v9043 = vunpack.c.l.b16 %v8321
      %v9044 = vunpack.c.h.b16 %v8321
      %v9045 = vunpack.c.l.b16 %v8322
      %v9046 = vunpack.c.h.b16 %v8322
      %v9047 = vunpack.c.l.b16 %v8323
      %v9048 = vunpack.c.h.b16 %v8323
      %v9049 = vunpack.c.l.b16 %v8324
      %v9050 = vunpack.c.h.b16 %v8324
      %v9051 = vunpack.c.l.b16 %v8325
      %v9052 = vunpack.c.h.b16 %v8325
      %v9053 = vunpack.c.l.b16 %v8326
      %v9054 = vunpack.c.h.b16 %v8326
      %v9055 = vunpack.c.l.b16 %v8327
      %v9056 = vunpack.c.h.b16 %v8327
      %v9057 = vunpack.c.l.b16 %v8328
      %v9058 = vunpack.c.h.b16 %v8328
      %v9059 = vunpack.c.l.b16 %v8329
      %v9060 = vunpack.c.h.b16 %v8329
      %v9061 = vunpack.c.l.b16 %v8330
      %v9062 = vunpack.c.h.b16 %v8330
      %v9063 = vunpack.c.l.b16 %v8331
      %v9064 = vunpack.c.h.b16 %v8331
      %v9065 = vunpack.c.l.b16 %v8332
      %v9066 = vunpack.c.h.b16 %v8332
      %v9067 = vunpack.c.l.b16 %v8333
      %v9068 = vunpack.c.h.b16 %v8333
      %v9069 = vunpack.c.l.b16 %v8334
      %v9070 = vunpack.c.h.b16 %v8334
      %v9071 = vunpack.c.l.b16 %v8335
      %v9072 = vunpack.c.h.b16 %v8335
      %v9073 = vunpack.c.l.b16 %v8336
      %v9074 = vunpack.c.h.b16 %v8336
      %v9075 = vunpack.c.l.b16 %v8337
      %v9076 = vunpack.c.h.b16 %v8337
      %v9077 = vunpack.c.l.b16 %v8338
      %v9078 = vunpack.c.h.b16 %v8338
      %v9079 = vunpack.c.l.b16 %v8339
      %v9080 = vunpack.c.h.b16 %v8339
      %v9081 = vunpack.c.l.b16 %v8340
      %v9082 = vunpack.c.h.b16 %v8340
      %v9083 = vunpack.c.l.b16 %v8341
      %v9084 = vunpack.c.h.b16 %v8341
      %v9085 = vunpack.c.l.b16 %v8342
      %v9086 = vunpack.c.h.b16 %v8342
      %v9087 = vunpack.c.l.b16 %v8343
      %v9088 = vunpack.c.h.b16 %v8343
      %v9089 = vunpack.c.l.b16 %v8344
      %v9090 = vunpack.c.h.b16 %v8344
      %v9091 = vunpack.c.l.b16 %v8345
      %v9092 = vunpack.c.h.b16 %v8345
      %v9093 = vunpack.c.l.b16 %v8346
      %v9094 = vunpack.c.h.b16 %v8346
      %v9095 = vunpack.c.l.b16 %v8347
      %v9096 = vunpack.c.h.b16 %v8347
      %v9097 = vunpack.c.l.b16 %v8348
      %v9098 = vunpack.c.h.b16 %v8348
      %v9099 = vunpack.c.l.b16 %v8349
      %v9100 = vunpack.c.h.b16 %v8349
      %v9101 = vunpack.c.l.b16 %v8350
      %v9102 = vunpack.c.h.b16 %v8350
      %v9103 = vunpack.c.l.b16 %v8351
      %v9104 = vunpack.c.h.b16 %v8351
      %v9105 = vunpack.c.l.b16 %v8352
      %v9106 = vunpack.c.h.b16 %v8352
      %v9107 = vunpack.c.l.b16 %v8353
      %v9108 = vunpack.c.h.b16 %v8353
      %v9109 = vunpack.c.l.b16 %v8354
      %v9110 = vunpack.c.h.b16 %v8354
      %v9111 = vunpack.c.l.b16 %v8355
      %v9112 = vunpack.c.h.b16 %v8355
      %v9113 = vunpack.c.l.b16 %v8356
      %v9114 = vunpack.c.h.b16 %v8356
      %v9115 = vunpack.c.l.b16 %v8357
      %v9116 = vunpack.c.h.b16 %v8357
      %v9117 = vunpack.c.l.b16 %v8358
      %v9118 = vunpack.c.h.b16 %v8358
      %v9119 = vunpack.c.l.b16 %v8359
      %v9120 = vunpack.c.h.b16 %v8359
      %v9121 = vunpack.c.l.b16 %v8360
      %v9122 = vunpack.c.h.b16 %v8360
      %v9123 = vunpack.c.l.b16 %v8361
      %v9124 = vunpack.c.h.b16 %v8361
      %v9125 = vunpack.c.l.b16 %v8362
      %v9126 = vunpack.c.h.b16 %v8362
      %v9127 = vunpack.c.l.b16 %v8363
      %v9128 = vunpack.c.h.b16 %v8363
      %v9129 = vunpack.c.l.b16 %v8364
      %v9130 = vunpack.c.h.b16 %v8364
      %v9131 = vunpack.c.l.b16 %v8365
      %v9132 = vunpack.c.h.b16 %v8365
      %v9133 = vunpack.c.l.b16 %v8366
      %v9134 = vunpack.c.h.b16 %v8366
      %v9135 = vpack.c.b16 %v8627, %v8623
      %v9136 = vpack.c.b16 %v8628, %v8624
      %v9137 = vpack.c.b16 %v8629, %v8625
      %v9138 = vpack.c.b16 %v8630, %v8626
      %v9139 = vpack.c.b16 %v8635, %v8631
      %v9140 = vpack.c.b16 %v8636, %v8632
      %v9141 = vpack.c.b16 %v8637, %v8633
      %v9142 = vpack.c.b16 %v8638, %v8634
      %v9143 = vpack.c.b16 %v8643, %v8639
      %v9144 = vpack.c.b16 %v8644, %v8640
      %v9145 = vpack.c.b16 %v8645, %v8641
      %v9146 = vpack.c.b16 %v8646, %v8642
      %v9147 = vpack.c.b16 %v8651, %v8647
      %v9148 = vpack.c.b16 %v8652, %v8648
      %v9149 = vpack.c.b16 %v8653, %v8649
      %v9150 = vpack.c.b16 %v8654, %v8650
      %v9151 = vpack.c.b16 %v8659, %v8655
      %v9152 = vpack.c.b16 %v8660, %v8656
      %v9153 = vpack.c.b16 %v8661, %v8657
      %v9154 = vpack.c.b16 %v8662, %v8658
      %v9155 = vpack.c.b16 %v8667, %v8663
      %v9156 = vpack.c.b16 %v8668, %v8664
      %v9157 = vpack.c.b16 %v8669, %v8665
      %v9158 = vpack.c.b16 %v8670, %v8666
      %v9159 = vpack.c.b16 %v8675, %v8671
      %v9160 = vpack.c.b16 %v8676, %v8672
      %v9161 = vpack.c.b16 %v8677, %v8673
      %v9162 = vpack.c.b16 %v8678, %v8674
      %v9163 = vpack.c.b16 %v8683, %v8679
      %v9164 = vpack.c.b16 %v8684, %v8680
      %v9165 = vpack.c.b16 %v8685, %v8681
      %v9166 = vpack.c.b16 %v8686, %v8682
      %v9167 = vpack.c.b16 %v8691, %v8687
      %v9168 = vpack.c.b16 %v8692, %v8688
      %v9169 = vpack.c.b16 %v8693, %v8689
      %v9170 = vpack.c.b16 %v8694, %v8690
      %v9171 = vpack.c.b16 %v8699, %v8695
      %v9172 = vpack.c.b16 %v8700, %v8696
      %v9173 = vpack.c.b16 %v8701, %v8697
      %v9174 = vpack.c.b16 %v8702, %v8698
      %v9175 = vpack.c.b16 %v8707, %v8703
      %v9176 = vpack.c.b16 %v8708, %v8704
      %v9177 = vpack.c.b16 %v8709, %v8705
      %v9178 = vpack.c.b16 %v8710, %v8706
      %v9179 = vpack.c.b16 %v8715, %v8711
      %v9180 = vpack.c.b16 %v8716, %v8712
      %v9181 = vpack.c.b16 %v8717, %v8713
      %v9182 = vpack.c.b16 %v8718, %v8714
      %v9183 = vpack.c.b16 %v8723, %v8719
      %v9184 = vpack.c.b16 %v8724, %v8720
      %v9185 = vpack.c.b16 %v8725, %v8721
      %v9186 = vpack.c.b16 %v8726, %v8722
      %v9187 = vpack.c.b16 %v8731, %v8727
      %v9188 = vpack.c.b16 %v8732, %v8728
      %v9189 = vpack.c.b16 %v8733, %v8729
      %v9190 = vpack.c.b16 %v8734, %v8730
      %v9191 = vpack.c.b16 %v8739, %v8735
      %v9192 = vpack.c.b16 %v8740, %v8736
      %v9193 = vpack.c.b16 %v8741, %v8737
      %v9194 = vpack.c.b16 %v8742, %v8738
      %v9195 = vpack.c.b16 %v8747, %v8743
      %v9196 = vpack.c.b16 %v8748, %v8744
      %v9197 = vpack.c.b16 %v8749, %v8745
      %v9198 = vpack.c.b16 %v8750, %v8746
      %v9199 = vpack.c.b16 %v8755, %v8751
      %v9200 = vpack.c.b16 %v8756, %v8752
      %v9201 = vpack.c.b16 %v8757, %v8753
      %v9202 = vpack.c.b16 %v8758, %v8754
      %v9203 = vpack.c.b16 %v8763, %v8759
      %v9204 = vpack.c.b16 %v8764, %v8760
      %v9205 = vpack.c.b16 %v8765, %v8761
      %v9206 = vpack.c.b16 %v8766, %v8762
      %v9207 = vpack.c.b16 %v8771, %v8767
      %v9208 = vpack.c.b16 %v8772, %v8768
      %v9209 = vpack.c.b16 %v8773, %v8769
      %v9210 = vpack.c.b16 %v8774, %v8770
      %v9211 = vpack.c.b16 %v8779, %v8775
      %v9212 = vpack.c.b16 %v8780, %v8776
      %v9213 = vpack.c.b16 %v8781, %v8777
      %v9214 = vpack.c.b16 %v8782, %v8778
      %v9215 = vpack.c.b16 %v8787, %v8783
      %v9216 = vpack.c.b16 %v8788, %v8784
      %v9217 = vpack.c.b16 %v8789, %v8785
      %v9218 = vpack.c.b16 %v8790, %v8786
      %v9219 = vpack.c.b16 %v8795, %v8791
      %v9220 = vpack.c.b16 %v8796, %v8792
      %v9221 = vpack.c.b16 %v8797, %v8793
      %v9222 = vpack.c.b16 %v8798, %v8794
      %v9223 = vpack.c.b16 %v8803, %v8799
      %v9224 = vpack.c.b16 %v8804, %v8800
      %v9225 = vpack.c.b16 %v8805, %v8801
      %v9226 = vpack.c.b16 %v8806, %v8802
      %v9227 = vpack.c.b16 %v8811, %v8807
      %v9228 = vpack.c.b16 %v8812, %v8808
      %v9229 = vpack.c.b16 %v8813, %v8809
      %v9230 = vpack.c.b16 %v8814, %v8810
      %v9231 = vpack.c.b16 %v8819, %v8815
      %v9232 = vpack.c.b16 %v8820, %v8816
      %v9233 = vpack.c.b16 %v8821, %v8817
      %v9234 = vpack.c.b16 %v8822, %v8818
      %v9235 = vpack.c.b16 %v8827, %v8823
      %v9236 = vpack.c.b16 %v8828, %v8824
      %v9237 = vpack.c.b16 %v8829, %v8825
      %v9238 = vpack.c.b16 %v8830, %v8826
      %v9239 = vpack.c.b16 %v8835, %v8831
      %v9240 = vpack.c.b16 %v8836, %v8832
      %v9241 = vpack.c.b16 %v8837, %v8833
      %v9242 = vpack.c.b16 %v8838, %v8834
      %v9243 = vpack.c.b16 %v8843, %v8839
      %v9244 = vpack.c.b16 %v8844, %v8840
      %v9245 = vpack.c.b16 %v8845, %v8841
      %v9246 = vpack.c.b16 %v8846, %v8842
      %v9247 = vpack.c.b16 %v8851, %v8847
      %v9248 = vpack.c.b16 %v8852, %v8848
      %v9249 = vpack.c.b16 %v8853, %v8849
      %v9250 = vpack.c.b16 %v8854, %v8850
      %v9251 = vpack.c.b16 %v8859, %v8855
      %v9252 = vpack.c.b16 %v8860, %v8856
      %v9253 = vpack.c.b16 %v8861, %v8857
      %v9254 = vpack.c.b16 %v8862, %v8858
      %v9255 = vpack.c.b16 %v8867, %v8863
      %v9256 = vpack.c.b16 %v8868, %v8864
      %v9257 = vpack.c.b16 %v8869, %v8865
      %v9258 = vpack.c.b16 %v8870, %v8866
      %v9259 = vpack.c.b16 %v8875, %v8871
      %v9260 = vpack.c.b16 %v8876, %v8872
      %v9261 = vpack.c.b16 %v8877, %v8873
      %v9262 = vpack.c.b16 %v8878, %v8874
      %v9263 = vpack.c.b16 %v8883, %v8879
      %v9264 = vpack.c.b16 %v8884, %v8880
      %v9265 = vpack.c.b16 %v8885, %v8881
      %v9266 = vpack.c.b16 %v8886, %v8882
      %v9267 = vpack.c.b16 %v8891, %v8887
      %v9268 = vpack.c.b16 %v8892, %v8888
      %v9269 = vpack.c.b16 %v8893, %v8889
      %v9270 = vpack.c.b16 %v8894, %v8890
      %v9271 = vpack.c.b16 %v8899, %v8895
      %v9272 = vpack.c.b16 %v8900, %v8896
      %v9273 = vpack.c.b16 %v8901, %v8897
      %v9274 = vpack.c.b16 %v8902, %v8898
      %v9275 = vpack.c.b16 %v8907, %v8903
      %v9276 = vpack.c.b16 %v8908, %v8904
      %v9277 = vpack.c.b16 %v8909, %v8905
      %v9278 = vpack.c.b16 %v8910, %v8906
      %v9279 = vpack.c.b16 %v8915, %v8911
      %v9280 = vpack.c.b16 %v8916, %v8912
      %v9281 = vpack.c.b16 %v8917, %v8913
      %v9282 = vpack.c.b16 %v8918, %v8914
      %v9283 = vpack.c.b16 %v8923, %v8919
      %v9284 = vpack.c.b16 %v8924, %v8920
      %v9285 = vpack.c.b16 %v8925, %v8921
      %v9286 = vpack.c.b16 %v8926, %v8922
      %v9287 = vpack.c.b16 %v8931, %v8927
      %v9288 = vpack.c.b16 %v8932, %v8928
      %v9289 = vpack.c.b16 %v8933, %v8929
      %v9290 = vpack.c.b16 %v8934, %v8930
      %v9291 = vpack.c.b16 %v8939, %v8935
      %v9292 = vpack.c.b16 %v8940, %v8936
      %v9293 = vpack.c.b16 %v8941, %v8937
      %v9294 = vpack.c.b16 %v8942, %v8938
      %v9295 = vpack.c.b16 %v8947, %v8943
      %v9296 = vpack.c.b16 %v8948, %v8944
      %v9297 = vpack.c.b16 %v8949, %v8945
      %v9298 = vpack.c.b16 %v8950, %v8946
      %v9299 = vpack.c.b16 %v8955, %v8951
      %v9300 = vpack.c.b16 %v8956, %v8952
      %v9301 = vpack.c.b16 %v8957, %v8953
      %v9302 = vpack.c.b16 %v8958, %v8954
      %v9303 = vpack.c.b16 %v8963, %v8959
      %v9304 = vpack.c.b16 %v8964, %v8960
      %v9305 = vpack.c.b16 %v8965, %v8961
      %v9306 = vpack.c.b16 %v8966, %v8962
      %v9307 = vpack.c.b16 %v8971, %v8967
      %v9308 = vpack.c.b16 %v8972, %v8968
      %v9309 = vpack.c.b16 %v8973, %v8969
      %v9310 = vpack.c.b16 %v8974, %v8970
      %v9311 = vpack.c.b16 %v8979, %v8975
      %v9312 = vpack.c.b16 %v8980, %v8976
      %v9313 = vpack.c.b16 %v8981, %v8977
      %v9314 = vpack.c.b16 %v8982, %v8978
      %v9315 = vpack.c.b16 %v8987, %v8983
      %v9316 = vpack.c.b16 %v8988, %v8984
      %v9317 = vpack.c.b16 %v8989, %v8985
      %v9318 = vpack.c.b16 %v8990, %v8986
      %v9319 = vpack.c.b16 %v8995, %v8991
      %v9320 = vpack.c.b16 %v8996, %v8992
      %v9321 = vpack.c.b16 %v8997, %v8993
      %v9322 = vpack.c.b16 %v8998, %v8994
      %v9323 = vpack.c.b16 %v9003, %v8999
      %v9324 = vpack.c.b16 %v9004, %v9000
      %v9325 = vpack.c.b16 %v9005, %v9001
      %v9326 = vpack.c.b16 %v9006, %v9002
      %v9327 = vpack.c.b16 %v9011, %v9007
      %v9328 = vpack.c.b16 %v9012, %v9008
      %v9329 = vpack.c.b16 %v9013, %v9009
      %v9330 = vpack.c.b16 %v9014, %v9010
      %v9331 = vpack.c.b16 %v9019, %v9015
      %v9332 = vpack.c.b16 %v9020, %v9016
      %v9333 = vpack.c.b16 %v9021, %v9017
      %v9334 = vpack.c.b16 %v9022, %v9018
      %v9335 = vpack.c.b16 %v9027, %v9023
      %v9336 = vpack.c.b16 %v9028, %v9024
      %v9337 = vpack.c.b16 %v9029, %v9025
      %v9338 = vpack.c.b16 %v9030, %v9026
      %v9339 = vpack.c.b16 %v9035, %v9031
      %v9340 = vpack.c.b16 %v9036, %v9032
      %v9341 = vpack.c.b16 %v9037, %v9033
      %v9342 = vpack.c.b16 %v9038, %v9034
      %v9343 = vpack.c.b16 %v9043, %v9039
      %v9344 = vpack.c.b16 %v9044, %v9040
      %v9345 = vpack.c.b16 %v9045, %v9041
      %v9346 = vpack.c.b16 %v9046, %v9042
      %v9347 = vpack.c.b16 %v9051, %v9047
      %v9348 = vpack.c.b16 %v9052, %v9048
      %v9349 = vpack.c.b16 %v9053, %v9049
      %v9350 = vpack.c.b16 %v9054, %v9050
      %v9351 = vpack.c.b16 %v9059, %v9055
      %v9352 = vpack.c.b16 %v9060, %v9056
      %v9353 = vpack.c.b16 %v9061, %v9057
      %v9354 = vpack.c.b16 %v9062, %v9058
      %v9355 = vpack.c.b16 %v9067, %v9063
      %v9356 = vpack.c.b16 %v9068, %v9064
      %v9357 = vpack.c.b16 %v9069, %v9065
      %v9358 = vpack.c.b16 %v9070, %v9066
      %v9359 = vpack.c.b16 %v9075, %v9071
      %v9360 = vpack.c.b16 %v9076, %v9072
      %v9361 = vpack.c.b16 %v9077, %v9073
      %v9362 = vpack.c.b16 %v9078, %v9074
      %v9363 = vpack.c.b16 %v9083, %v9079
      %v9364 = vpack.c.b16 %v9084, %v9080
      %v9365 = vpack.c.b16 %v9085, %v9081
      %v9366 = vpack.c.b16 %v9086, %v9082
      %v9367 = vpack.c.b16 %v9091, %v9087
      %v9368 = vpack.c.b16 %v9092, %v9088
      %v9369 = vpack.c.b16 %v9093, %v9089
      %v9370 = vpack.c.b16 %v9094, %v9090
      %v9371 = vpack.c.b16 %v9099, %v9095
      %v9372 = vpack.c.b16 %v9100, %v9096
      %v9373 = vpack.c.b16 %v9101, %v9097
      %v9374 = vpack.c.b16 %v9102, %v9098
      %v9375 = vpack.c.b16 %v9107, %v9103
      %v9376 = vpack.c.b16 %v9108, %v9104
      %v9377 = vpack.c.b16 %v9109, %v9105
      %v9378 = vpack.c.b16 %v9110, %v9106
      %v9379 = vpack.c.b16 %v9115, %v9111
      %v9380 = vpack.c.b16 %v9116, %v9112
      %v9381 = vpack.c.b16 %v9117, %v9113
      %v9382 = vpack.c.b16 %v9118, %v9114
      %v9383 = vpack.c.b16 %v9123, %v9119
      %v9384 = vpack.c.b16 %v9124, %v9120
      %v9385 = vpack.c.b16 %v9125, %v9121
      %v9386 = vpack.c.b16 %v9126, %v9122
      %v9387 = vpack.c.b16 %v9131, %v9127
      %v9388 = vpack.c.b16 %v9132, %v9128
      %v9389 = vpack.c.b16 %v9133, %v9129
      %v9390 = vpack.c.b16 %v9134, %v9130
      %9647 = vmatpush.bf16.msra.mxu0 %v9163
      %9648 = vmatpush.bf16.msra.mxu0 %v9159
      %9649 = vmatpush.bf16.msra.mxu0 %v9155
      %9650 = vmatpush.bf16.msra.mxu0 %v9151
      %9651 = vmatpush.bf16.msra.mxu0 %v9147
      %9652 = vmatpush.bf16.msra.mxu0 %v9143
      %9653 = vmatpush.bf16.msra.mxu0 %v9139
      %9654 = vmatpush.bf16.msra.mxu0 %v9135
      %9655 = vmatmul.bf16.gmra.mxu0 %v750
      %v9656 = vpop.f32.mrf.mxu0
      %v9657 = vadd.f32 0.0, %v9656
      %v9658 = vpop.f32.mrf.mxu0
      %9659 = vdwg.mxu0
      %9660 = vmatpush.bf16.msra.mxu0 %v9195
      %9661 = vmatpush.bf16.msra.mxu0 %v9191
      %9662 = vmatpush.bf16.msra.mxu0 %v9187
      %9663 = vmatpush.bf16.msra.mxu0 %v9183
      %9664 = vmatpush.bf16.msra.mxu0 %v9179
      %9665 = vmatpush.bf16.msra.mxu0 %v9175
      %9666 = vmatpush.bf16.msra.mxu0 %v9171
      %9667 = vmatpush.bf16.msra.mxu0 %v9167
      %9668 = vmatmul.bf16.gmra.mxu0 %v751
      %v9669 = vpop.f32.mrf.mxu0
      %v9670 = vadd.f32 %v9657, %v9669
      %v9671 = vpop.f32.mrf.mxu0
      %9672 = vdwg.mxu0
      %9673 = vmatpush.bf16.msra.mxu0 %v9227
      %9674 = vmatpush.bf16.msra.mxu0 %v9223
      %9675 = vmatpush.bf16.msra.mxu0 %v9219
      %9676 = vmatpush.bf16.msra.mxu0 %v9215
      %9677 = vmatpush.bf16.msra.mxu0 %v9211
      %9678 = vmatpush.bf16.msra.mxu0 %v9207
      %9679 = vmatpush.bf16.msra.mxu0 %v9203
      %9680 = vmatpush.bf16.msra.mxu0 %v9199
      %9681 = vmatmul.bf16.gmra.mxu0 %v752
      %v9682 = vpop.f32.mrf.mxu0
      %v9683 = vadd.f32 %v9670, %v9682
      %v9684 = vpop.f32.mrf.mxu0
      %9685 = vdwg.mxu0
      %9686 = vmatpush.bf16.msra.mxu0 %v9259
      %9687 = vmatpush.bf16.msra.mxu0 %v9255
      %9688 = vmatpush.bf16.msra.mxu0 %v9251
      %9689 = vmatpush.bf16.msra.mxu0 %v9247
      %9690 = vmatpush.bf16.msra.mxu0 %v9243
      %9691 = vmatpush.bf16.msra.mxu0 %v9239
      %9692 = vmatpush.bf16.msra.mxu0 %v9235
      %9693 = vmatpush.bf16.msra.mxu0 %v9231
      %9694 = vmatmul.bf16.gmra.mxu0 %v753
      %v9695 = vpop.f32.mrf.mxu0
      %v9696 = vadd.f32 %v9683, %v9695
      %v9697 = vpop.f32.mrf.mxu0
      %9698 = vdwg.mxu0
      %9699 = vmatpush.bf16.msra.mxu0 %v9291
      %9700 = vmatpush.bf16.msra.mxu0 %v9287
      %9701 = vmatpush.bf16.msra.mxu0 %v9283
      %9702 = vmatpush.bf16.msra.mxu0 %v9279
      %9703 = vmatpush.bf16.msra.mxu0 %v9275
      %9704 = vmatpush.bf16.msra.mxu0 %v9271
      %9705 = vmatpush.bf16.msra.mxu0 %v9267
      %9706 = vmatpush.bf16.msra.mxu0 %v9263
      %9707 = vmatmul.bf16.gmra.mxu0 %v754
      %v9708 = vpop.f32.mrf.mxu0
      %v9709 = vadd.f32 %v9696, %v9708
      %v9710 = vpop.f32.mrf.mxu0
      %9711 = vdwg.mxu0
      %9712 = vmatpush.bf16.msra.mxu0 %v9323
      %9713 = vmatpush.bf16.msra.mxu0 %v9319
      %9714 = vmatpush.bf16.msra.mxu0 %v9315
      %9715 = vmatpush.bf16.msra.mxu0 %v9311
      %9716 = vmatpush.bf16.msra.mxu0 %v9307
      %9717 = vmatpush.bf16.msra.mxu0 %v9303
      %9718 = vmatpush.bf16.msra.mxu0 %v9299
      %9719 = vmatpush.bf16.msra.mxu0 %v9295
      %9720 = vmatmul.bf16.gmra.mxu0 %v755
      %v9721 = vpop.f32.mrf.mxu0
      %v9722 = vadd.f32 %v9709, %v9721
      %v9723 = vpop.f32.mrf.mxu0
      %9724 = vdwg.mxu0
      %9725 = vmatpush.bf16.msra.mxu0 %v9355
      %9726 = vmatpush.bf16.msra.mxu0 %v9351
      %9727 = vmatpush.bf16.msra.mxu0 %v9347
      %9728 = vmatpush.bf16.msra.mxu0 %v9343
      %9729 = vmatpush.bf16.msra.mxu0 %v9339
      %9730 = vmatpush.bf16.msra.mxu0 %v9335
      %9731 = vmatpush.bf16.msra.mxu0 %v9331
      %9732 = vmatpush.bf16.msra.mxu0 %v9327
      %9733 = vmatmul.bf16.gmra.mxu0 %v756
      %v9734 = vpop.f32.mrf.mxu0
      %v9735 = vadd.f32 %v9722, %v9734
      %v9736 = vpop.f32.mrf.mxu0
      %9737 = vdwg.mxu0
      %9738 = vmatpush.bf16.msra.mxu0 %v9387
      %9739 = vmatpush.bf16.msra.mxu0 %v9383
      %9740 = vmatpush.bf16.msra.mxu0 %v9379
      %9741 = vmatpush.bf16.msra.mxu0 %v9375
      %9742 = vmatpush.bf16.msra.mxu0 %v9371
      %9743 = vmatpush.bf16.msra.mxu0 %v9367
      %9744 = vmatpush.bf16.msra.mxu0 %v9363
      %9745 = vmatpush.bf16.msra.mxu0 %v9359
      %9746 = vmatmul.bf16.gmra.mxu0 %v757
      %v9747 = vpop.f32.mrf.mxu0
      %v9748 = vadd.f32 %v9735, %v9747
      %v9749 = vpop.f32.mrf.mxu0
      %9750 = vdwg.mxu0
      %9751 = vmatpush.bf16.msra.mxu0 %v9164
      %9752 = vmatpush.bf16.msra.mxu0 %v9160
      %9753 = vmatpush.bf16.msra.mxu0 %v9156
      %9754 = vmatpush.bf16.msra.mxu0 %v9152
      %9755 = vmatpush.bf16.msra.mxu0 %v9148
      %9756 = vmatpush.bf16.msra.mxu0 %v9144
      %9757 = vmatpush.bf16.msra.mxu0 %v9140
      %9758 = vmatpush.bf16.msra.mxu0 %v9136
      %9759 = vmatmul.bf16.gmra.mxu0 %v750
      %v9760 = vpop.f32.mrf.mxu0
      %v9761 = vadd.f32 0.0, %v9760
      %v9762 = vpop.f32.mrf.mxu0
      %9763 = vdwg.mxu0
      %9764 = vmatpush.bf16.msra.mxu0 %v9196
      %9765 = vmatpush.bf16.msra.mxu0 %v9192
      %9766 = vmatpush.bf16.msra.mxu0 %v9188
      %9767 = vmatpush.bf16.msra.mxu0 %v9184
      %9768 = vmatpush.bf16.msra.mxu0 %v9180
      %9769 = vmatpush.bf16.msra.mxu0 %v9176
      %9770 = vmatpush.bf16.msra.mxu0 %v9172
      %9771 = vmatpush.bf16.msra.mxu0 %v9168
      %9772 = vmatmul.bf16.gmra.mxu0 %v751
      %v9773 = vpop.f32.mrf.mxu0
      %v9774 = vadd.f32 %v9761, %v9773
      %v9775 = vpop.f32.mrf.mxu0
      %9776 = vdwg.mxu0
      %9777 = vmatpush.bf16.msra.mxu0 %v9228
      %9778 = vmatpush.bf16.msra.mxu0 %v9224
      %9779 = vmatpush.bf16.msra.mxu0 %v9220
      %9780 = vmatpush.bf16.msra.mxu0 %v9216
      %9781 = vmatpush.bf16.msra.mxu0 %v9212
      %9782 = vmatpush.bf16.msra.mxu0 %v9208
      %9783 = vmatpush.bf16.msra.mxu0 %v9204
      %9784 = vmatpush.bf16.msra.mxu0 %v9200
      %9785 = vmatmul.bf16.gmra.mxu0 %v752
      %v9786 = vpop.f32.mrf.mxu0
      %v9787 = vadd.f32 %v9774, %v9786
      %v9788 = vpop.f32.mrf.mxu0
      %9789 = vdwg.mxu0
      %9790 = vmatpush.bf16.msra.mxu0 %v9260
      %9791 = vmatpush.bf16.msra.mxu0 %v9256
      %9792 = vmatpush.bf16.msra.mxu0 %v9252
      %9793 = vmatpush.bf16.msra.mxu0 %v9248
      %9794 = vmatpush.bf16.msra.mxu0 %v9244
      %9795 = vmatpush.bf16.msra.mxu0 %v9240
      %9796 = vmatpush.bf16.msra.mxu0 %v9236
      %9797 = vmatpush.bf16.msra.mxu0 %v9232
      %9798 = vmatmul.bf16.gmra.mxu0 %v753
      %v9799 = vpop.f32.mrf.mxu0
      %v9800 = vadd.f32 %v9787, %v9799
      %v9801 = vpop.f32.mrf.mxu0
      %9802 = vdwg.mxu0
      %9803 = vmatpush.bf16.msra.mxu0 %v9292
      %9804 = vmatpush.bf16.msra.mxu0 %v9288
      %9805 = vmatpush.bf16.msra.mxu0 %v9284
      %9806 = vmatpush.bf16.msra.mxu0 %v9280
      %9807 = vmatpush.bf16.msra.mxu0 %v9276
      %9808 = vmatpush.bf16.msra.mxu0 %v9272
      %9809 = vmatpush.bf16.msra.mxu0 %v9268
      %9810 = vmatpush.bf16.msra.mxu0 %v9264
      %9811 = vmatmul.bf16.gmra.mxu0 %v754
      %v9812 = vpop.f32.mrf.mxu0
      %v9813 = vadd.f32 %v9800, %v9812
      %v9814 = vpop.f32.mrf.mxu0
      %9815 = vdwg.mxu0
      %9816 = vmatpush.bf16.msra.mxu0 %v9324
      %9817 = vmatpush.bf16.msra.mxu0 %v9320
      %9818 = vmatpush.bf16.msra.mxu0 %v9316
      %9819 = vmatpush.bf16.msra.mxu0 %v9312
      %9820 = vmatpush.bf16.msra.mxu0 %v9308
      %9821 = vmatpush.bf16.msra.mxu0 %v9304
      %9822 = vmatpush.bf16.msra.mxu0 %v9300
      %9823 = vmatpush.bf16.msra.mxu0 %v9296
      %9824 = vmatmul.bf16.gmra.mxu0 %v755
      %v9825 = vpop.f32.mrf.mxu0
      %v9826 = vadd.f32 %v9813, %v9825
      %v9827 = vpop.f32.mrf.mxu0
      %9828 = vdwg.mxu0
      %9829 = vmatpush.bf16.msra.mxu0 %v9356
      %9830 = vmatpush.bf16.msra.mxu0 %v9352
      %9831 = vmatpush.bf16.msra.mxu0 %v9348
      %9832 = vmatpush.bf16.msra.mxu0 %v9344
      %9833 = vmatpush.bf16.msra.mxu0 %v9340
      %9834 = vmatpush.bf16.msra.mxu0 %v9336
      %9835 = vmatpush.bf16.msra.mxu0 %v9332
      %9836 = vmatpush.bf16.msra.mxu0 %v9328
      %9837 = vmatmul.bf16.gmra.mxu0 %v756
      %v9838 = vpop.f32.mrf.mxu0
      %v9839 = vadd.f32 %v9826, %v9838
      %v9840 = vpop.f32.mrf.mxu0
      %9841 = vdwg.mxu0
      %9842 = vmatpush.bf16.msra.mxu0 %v9388
      %9843 = vmatpush.bf16.msra.mxu0 %v9384
      %9844 = vmatpush.bf16.msra.mxu0 %v9380
      %9845 = vmatpush.bf16.msra.mxu0 %v9376
      %9846 = vmatpush.bf16.msra.mxu0 %v9372
      %9847 = vmatpush.bf16.msra.mxu0 %v9368
      %9848 = vmatpush.bf16.msra.mxu0 %v9364
      %9849 = vmatpush.bf16.msra.mxu0 %v9360
      %9850 = vmatmul.bf16.gmra.mxu0 %v757
      %v9851 = vpop.f32.mrf.mxu0
      %v9852 = vadd.f32 %v9839, %v9851
      %v9853 = vpop.f32.mrf.mxu0
      %9854 = vdwg.mxu0
      %9855 = vmatpush.bf16.msra.mxu0 %v9165
      %9856 = vmatpush.bf16.msra.mxu0 %v9161
      %9857 = vmatpush.bf16.msra.mxu0 %v9157
      %9858 = vmatpush.bf16.msra.mxu0 %v9153
      %9859 = vmatpush.bf16.msra.mxu0 %v9149
      %9860 = vmatpush.bf16.msra.mxu0 %v9145
      %9861 = vmatpush.bf16.msra.mxu0 %v9141
      %9862 = vmatpush.bf16.msra.mxu0 %v9137
      %9863 = vmatmul.bf16.gmra.mxu0 %v750
      %v9864 = vpop.f32.mrf.mxu0
      %v9865 = vadd.f32 0.0, %v9864
      %v9866 = vpop.f32.mrf.mxu0
      %9867 = vdwg.mxu0
      %9868 = vmatpush.bf16.msra.mxu0 %v9197
      %9869 = vmatpush.bf16.msra.mxu0 %v9193
      %9870 = vmatpush.bf16.msra.mxu0 %v9189
      %9871 = vmatpush.bf16.msra.mxu0 %v9185
      %9872 = vmatpush.bf16.msra.mxu0 %v9181
      %9873 = vmatpush.bf16.msra.mxu0 %v9177
      %9874 = vmatpush.bf16.msra.mxu0 %v9173
      %9875 = vmatpush.bf16.msra.mxu0 %v9169
      %9876 = vmatmul.bf16.gmra.mxu0 %v751
      %v9877 = vpop.f32.mrf.mxu0
      %v9878 = vadd.f32 %v9865, %v9877
      %v9879 = vpop.f32.mrf.mxu0
      %9880 = vdwg.mxu0
      %9881 = vmatpush.bf16.msra.mxu0 %v9229
      %9882 = vmatpush.bf16.msra.mxu0 %v9225
      %9883 = vmatpush.bf16.msra.mxu0 %v9221
      %9884 = vmatpush.bf16.msra.mxu0 %v9217
      %9885 = vmatpush.bf16.msra.mxu0 %v9213
      %9886 = vmatpush.bf16.msra.mxu0 %v9209
      %9887 = vmatpush.bf16.msra.mxu0 %v9205
      %9888 = vmatpush.bf16.msra.mxu0 %v9201
      %9889 = vmatmul.bf16.gmra.mxu0 %v752
      %v9890 = vpop.f32.mrf.mxu0
      %v9891 = vadd.f32 %v9878, %v9890
      %v9892 = vpop.f32.mrf.mxu0
      %9893 = vdwg.mxu0
      %9894 = vmatpush.bf16.msra.mxu0 %v9261
      %9895 = vmatpush.bf16.msra.mxu0 %v9257
      %9896 = vmatpush.bf16.msra.mxu0 %v9253
      %9897 = vmatpush.bf16.msra.mxu0 %v9249
      %9898 = vmatpush.bf16.msra.mxu0 %v9245
      %9899 = vmatpush.bf16.msra.mxu0 %v9241
      %9900 = vmatpush.bf16.msra.mxu0 %v9237
      %9901 = vmatpush.bf16.msra.mxu0 %v9233
      %9902 = vmatmul.bf16.gmra.mxu0 %v753
      %v9903 = vpop.f32.mrf.mxu0
      %v9904 = vadd.f32 %v9891, %v9903
      %v9905 = vpop.f32.mrf.mxu0
      %9906 = vdwg.mxu0
      %9907 = vmatpush.bf16.msra.mxu0 %v9293
      %9908 = vmatpush.bf16.msra.mxu0 %v9289
      %9909 = vmatpush.bf16.msra.mxu0 %v9285
      %9910 = vmatpush.bf16.msra.mxu0 %v9281
      %9911 = vmatpush.bf16.msra.mxu0 %v9277
      %9912 = vmatpush.bf16.msra.mxu0 %v9273
      %9913 = vmatpush.bf16.msra.mxu0 %v9269
      %9914 = vmatpush.bf16.msra.mxu0 %v9265
      %9915 = vmatmul.bf16.gmra.mxu0 %v754
      %v9916 = vpop.f32.mrf.mxu0
      %v9917 = vadd.f32 %v9904, %v9916
      %v9918 = vpop.f32.mrf.mxu0
      %9919 = vdwg.mxu0
      %9920 = vmatpush.bf16.msra.mxu0 %v9325
      %9921 = vmatpush.bf16.msra.mxu0 %v9321
      %9922 = vmatpush.bf16.msra.mxu0 %v9317
      %9923 = vmatpush.bf16.msra.mxu0 %v9313
      %9924 = vmatpush.bf16.msra.mxu0 %v9309
      %9925 = vmatpush.bf16.msra.mxu0 %v9305
      %9926 = vmatpush.bf16.msra.mxu0 %v9301
      %9927 = vmatpush.bf16.msra.mxu0 %v9297
      %9928 = vmatmul.bf16.gmra.mxu0 %v755
      %v9929 = vpop.f32.mrf.mxu0
      %v9930 = vadd.f32 %v9917, %v9929
      %v9931 = vpop.f32.mrf.mxu0
      %9932 = vdwg.mxu0
      %9933 = vmatpush.bf16.msra.mxu0 %v9357
      %9934 = vmatpush.bf16.msra.mxu0 %v9353
      %9935 = vmatpush.bf16.msra.mxu0 %v9349
      %9936 = vmatpush.bf16.msra.mxu0 %v9345
      %9937 = vmatpush.bf16.msra.mxu0 %v9341
      %9938 = vmatpush.bf16.msra.mxu0 %v9337
      %9939 = vmatpush.bf16.msra.mxu0 %v9333
      %9940 = vmatpush.bf16.msra.mxu0 %v9329
      %9941 = vmatmul.bf16.gmra.mxu0 %v756
      %v9942 = vpop.f32.mrf.mxu0
      %v9943 = vadd.f32 %v9930, %v9942
      %v9944 = vpop.f32.mrf.mxu0
      %9945 = vdwg.mxu0
      %9946 = vmatpush.bf16.msra.mxu0 %v9389
      %9947 = vmatpush.bf16.msra.mxu0 %v9385
      %9948 = vmatpush.bf16.msra.mxu0 %v9381
      %9949 = vmatpush.bf16.msra.mxu0 %v9377
      %9950 = vmatpush.bf16.msra.mxu0 %v9373
      %9951 = vmatpush.bf16.msra.mxu0 %v9369
      %9952 = vmatpush.bf16.msra.mxu0 %v9365
      %9953 = vmatpush.bf16.msra.mxu0 %v9361
      %9954 = vmatmul.bf16.gmra.mxu0 %v757
      %v9955 = vpop.f32.mrf.mxu0
      %v9956 = vadd.f32 %v9943, %v9955
      %v9957 = vpop.f32.mrf.mxu0
      %9958 = vdwg.mxu0
      %9959 = vmatpush.bf16.msra.mxu0 %v9166
      %9960 = vmatpush.bf16.msra.mxu0 %v9162
      %9961 = vmatpush.bf16.msra.mxu0 %v9158
      %9962 = vmatpush.bf16.msra.mxu0 %v9154
      %9963 = vmatpush.bf16.msra.mxu0 %v9150
      %9964 = vmatpush.bf16.msra.mxu0 %v9146
      %9965 = vmatpush.bf16.msra.mxu0 %v9142
      %9966 = vmatpush.bf16.msra.mxu0 %v9138
      %9967 = vmatmul.bf16.gmra.mxu0 %v750
      %v9968 = vpop.f32.mrf.mxu0
      %v9969 = vadd.f32 0.0, %v9968
      %v9970 = vpop.f32.mrf.mxu0
      %9971 = vdwg.mxu0
      %9972 = vmatpush.bf16.msra.mxu0 %v9198
      %9973 = vmatpush.bf16.msra.mxu0 %v9194
      %9974 = vmatpush.bf16.msra.mxu0 %v9190
      %9975 = vmatpush.bf16.msra.mxu0 %v9186
      %9976 = vmatpush.bf16.msra.mxu0 %v9182
      %9977 = vmatpush.bf16.msra.mxu0 %v9178
      %9978 = vmatpush.bf16.msra.mxu0 %v9174
      %9979 = vmatpush.bf16.msra.mxu0 %v9170
      %9980 = vmatmul.bf16.gmra.mxu0 %v751
      %v9981 = vpop.f32.mrf.mxu0
      %v9982 = vadd.f32 %v9969, %v9981
      %v9983 = vpop.f32.mrf.mxu0
      %9984 = vdwg.mxu0
      %9985 = vmatpush.bf16.msra.mxu0 %v9230
      %9986 = vmatpush.bf16.msra.mxu0 %v9226
      %9987 = vmatpush.bf16.msra.mxu0 %v9222
      %9988 = vmatpush.bf16.msra.mxu0 %v9218
      %9989 = vmatpush.bf16.msra.mxu0 %v9214
      %9990 = vmatpush.bf16.msra.mxu0 %v9210
      %9991 = vmatpush.bf16.msra.mxu0 %v9206
      %9992 = vmatpush.bf16.msra.mxu0 %v9202
      %9993 = vmatmul.bf16.gmra.mxu0 %v752
      %v9994 = vpop.f32.mrf.mxu0
      %v9995 = vadd.f32 %v9982, %v9994
      %v9996 = vpop.f32.mrf.mxu0
      %9997 = vdwg.mxu0
      %9998 = vmatpush.bf16.msra.mxu0 %v9262
      %9999 = vmatpush.bf16.msra.mxu0 %v9258
      %10000 = vmatpush.bf16.msra.mxu0 %v9254
      %10001 = vmatpush.bf16.msra.mxu0 %v9250
      %10002 = vmatpush.bf16.msra.mxu0 %v9246
      %10003 = vmatpush.bf16.msra.mxu0 %v9242
      %10004 = vmatpush.bf16.msra.mxu0 %v9238
      %10005 = vmatpush.bf16.msra.mxu0 %v9234
      %10006 = vmatmul.bf16.gmra.mxu0 %v753
      %v10007 = vpop.f32.mrf.mxu0
      %v10008 = vadd.f32 %v9995, %v10007
      %v10009 = vpop.f32.mrf.mxu0
      %10010 = vdwg.mxu0
      %10011 = vmatpush.bf16.msra.mxu0 %v9294
      %10012 = vmatpush.bf16.msra.mxu0 %v9290
      %10013 = vmatpush.bf16.msra.mxu0 %v9286
      %10014 = vmatpush.bf16.msra.mxu0 %v9282
      %10015 = vmatpush.bf16.msra.mxu0 %v9278
      %10016 = vmatpush.bf16.msra.mxu0 %v9274
      %10017 = vmatpush.bf16.msra.mxu0 %v9270
      %10018 = vmatpush.bf16.msra.mxu0 %v9266
      %10019 = vmatmul.bf16.gmra.mxu0 %v754
      %v10020 = vpop.f32.mrf.mxu0
      %v10021 = vadd.f32 %v10008, %v10020
      %v10022 = vpop.f32.mrf.mxu0
      %10023 = vdwg.mxu0
      %10024 = vmatpush.bf16.msra.mxu0 %v9326
      %10025 = vmatpush.bf16.msra.mxu0 %v9322
      %10026 = vmatpush.bf16.msra.mxu0 %v9318
      %10027 = vmatpush.bf16.msra.mxu0 %v9314
      %10028 = vmatpush.bf16.msra.mxu0 %v9310
      %10029 = vmatpush.bf16.msra.mxu0 %v9306
      %10030 = vmatpush.bf16.msra.mxu0 %v9302
      %10031 = vmatpush.bf16.msra.mxu0 %v9298
      %10032 = vmatmul.bf16.gmra.mxu0 %v755
      %v10033 = vpop.f32.mrf.mxu0
      %v10034 = vadd.f32 %v10021, %v10033
      %v10035 = vpop.f32.mrf.mxu0
      %10036 = vdwg.mxu0
      %10037 = vmatpush.bf16.msra.mxu0 %v9358
      %10038 = vmatpush.bf16.msra.mxu0 %v9354
      %10039 = vmatpush.bf16.msra.mxu0 %v9350
      %10040 = vmatpush.bf16.msra.mxu0 %v9346
      %10041 = vmatpush.bf16.msra.mxu0 %v9342
      %10042 = vmatpush.bf16.msra.mxu0 %v9338
      %10043 = vmatpush.bf16.msra.mxu0 %v9334
      %10044 = vmatpush.bf16.msra.mxu0 %v9330
      %10045 = vmatmul.bf16.gmra.mxu0 %v756
      %v10046 = vpop.f32.mrf.mxu0
      %v10047 = vadd.f32 %v10034, %v10046
      %v10048 = vpop.f32.mrf.mxu0
      %10049 = vdwg.mxu0
      %10050 = vmatpush.bf16.msra.mxu0 %v9390
      %10051 = vmatpush.bf16.msra.mxu0 %v9386
      %10052 = vmatpush.bf16.msra.mxu0 %v9382
      %10053 = vmatpush.bf16.msra.mxu0 %v9378
      %10054 = vmatpush.bf16.msra.mxu0 %v9374
      %10055 = vmatpush.bf16.msra.mxu0 %v9370
      %10056 = vmatpush.bf16.msra.mxu0 %v9366
      %10057 = vmatpush.bf16.msra.mxu0 %v9362
      %10058 = vmatmul.bf16.gmra.mxu0 %v757
      %v10059 = vpop.f32.mrf.mxu0
      %v10060 = vadd.f32 %v10047, %v10059
      %v10061 = vpop.f32.mrf.mxu0
      %10062 = vdwg.mxu0
      %v10063 = vrot.slane %v9748, 2
      %v10064 = vrot.slane %v9852, 2
      %v10065 = vrot.slane %v9956, 2
      %v10066 = vrot.slane %v10060, 2
      %vm10067 = vcmp.lt.s32.totalorder %v481, 6
      %vm10068 = vmand %vm8097, %vm10067
      %v10069 = vsel %vm10068, 1, 0
      %vm10070 = vcmp.eq.s32.totalorder %v10069, 1
      %v10071 = vsel %vm10070, %v10063, 0.0
      %v10072 = vsel %vm10070, %v10064, 0.0
      %v10073 = vsel %vm10070, %v10065, 0.0
      %v10074 = vsel %vm10070, %v10066, 0.0
      %v10075 = vadd.f32 %v8106, %v10071
      %v10076 = vadd.f32 %v8107, %v10072
      %v10077 = vadd.f32 %v8108, %v10073
      %v10078 = vadd.f32 %v8109, %v10074
      %10079 = vst [vmem:[%s210] sm:$0xff] %v10075
      %10080 = vst [vmem:[%s210 + $0x8] sm:$0xff] %v10076
      %10081 = vst [vmem:[%s210 + $0x10] sm:$0xff] %v10077
      %10082 = vst [vmem:[%s210 + $0x18] sm:$0xff] %v10078
      %v10083 = vrot.slane %v10075, 4
      %v10084 = vadd.f32 %v10075, %v10083
      %v10085 = vrot.slane %v10084, 2
      %v10086 = vadd.f32 %v10084, %v10085
      %v10087 = vrot.slane %v10086, 1
      %v10088 = vadd.f32 %v10086, %v10087
      %v10089 = vrot.slane %v10076, 4
      %v10090 = vadd.f32 %v10076, %v10089
      %v10091 = vrot.slane %v10090, 2
      %v10092 = vadd.f32 %v10090, %v10091
      %v10093 = vrot.slane %v10092, 1
      %v10094 = vadd.f32 %v10092, %v10093
      %v10095 = vrot.slane %v10077, 4
      %v10096 = vadd.f32 %v10077, %v10095
      %v10097 = vrot.slane %v10096, 2
      %v10098 = vadd.f32 %v10096, %v10097
      %v10099 = vrot.slane %v10098, 1
      %v10100 = vadd.f32 %v10098, %v10099
      %v10101 = vrot.slane %v10078, 4
      %v10102 = vadd.f32 %v10078, %v10101
      %v10103 = vrot.slane %v10102, 2
      %v10104 = vadd.f32 %v10102, %v10103
      %v10105 = vrot.slane %v10104, 1
      %v10106 = vadd.f32 %v10104, %v10105
      %v10111 = vrot.slane %v10094, 7
      %v10112 = vrot.slane %v10100, 6
      %v10113 = vrot.slane %v10106, 5
      %vm10114 = vcmask 1040384
      %v10115 = vsel %vm10114, %v10088, %v10111
      %vm10116 = vcmask 1042434
      %v10117 = vsel %vm10116, %v10112, %v10113
      %vm10118 = vcmask 1041408
      %v10119 = vsel %vm10118, %v10115, %v10117
      %v10121 = vlaneseq
      %vm10122 = vcmp.ge.s32.totalorder %v10121, 0
      %vm10123 = vcmp.lt.s32.totalorder %v10121, 512
      %vm10124 = vmand %vm10122, %vm10123
      %10125 = vst.msk [vmem:[%s214] sm:$0xf] %vm10124, %v10119
      %v10126 = vmul.f32 %v10075, %v10075
      %v10127 = vmul.f32 %v10076, %v10076
      %v10128 = vmul.f32 %v10077, %v10077
      %v10129 = vmul.f32 %v10078, %v10078
      %v10130 = vrot.slane %v10126, 4
      %v10131 = vadd.f32 %v10126, %v10130
      %v10132 = vrot.slane %v10131, 2
      %v10133 = vadd.f32 %v10131, %v10132
      %v10134 = vrot.slane %v10133, 1
      %v10135 = vadd.f32 %v10133, %v10134
      %v10136 = vrot.slane %v10127, 4
      %v10137 = vadd.f32 %v10127, %v10136
      %v10138 = vrot.slane %v10137, 2
      %v10139 = vadd.f32 %v10137, %v10138
      %v10140 = vrot.slane %v10139, 1
      %v10141 = vadd.f32 %v10139, %v10140
      %v10142 = vrot.slane %v10128, 4
      %v10143 = vadd.f32 %v10128, %v10142
      %v10144 = vrot.slane %v10143, 2
      %v10145 = vadd.f32 %v10143, %v10144
      %v10146 = vrot.slane %v10145, 1
      %v10147 = vadd.f32 %v10145, %v10146
      %v10148 = vrot.slane %v10129, 4
      %v10149 = vadd.f32 %v10129, %v10148
      %v10150 = vrot.slane %v10149, 2
      %v10151 = vadd.f32 %v10149, %v10150
      %v10152 = vrot.slane %v10151, 1
      %v10153 = vadd.f32 %v10151, %v10152
      %v10158 = vrot.slane %v10141, 7
      %v10159 = vrot.slane %v10147, 6
      %v10160 = vrot.slane %v10153, 5
      %v10161 = vsel %vm10114, %v10135, %v10158
      %v10162 = vsel %vm10116, %v10159, %v10160
      %v10163 = vsel %vm10118, %v10161, %v10162
      %10165 = vst.msk [vmem:[%s218] sm:$0xf] %vm10124, %v10163
      %p10166 = scmp.lt.s32.totalorder %s16, 1
      %s10167 = scalar_select %p10166, %s16, 1
      %s10168 = smul.addr %s10167, 4
      %s10169 = smul.addr %s10168, 8
      %s10170 = scalar_lea.vmem %s2, %s10169
      %p10171 = scmp.lt.s32.totalorder %s16, 1
      %s10172 = scalar_select %p10171, %s16, 1
      %s10173 = smul.addr %s10172, 4
      %s10174 = scalar_lea.vmem %s3, %s10173
      %p10175 = scmp.lt.s32.totalorder %s16, 1
      %s10176 = scalar_select %p10175, %s16, 1
      %s10177 = smul.addr %s10176, 4
      %s10178 = scalar_lea.vmem %s4, %s10177
      // Predicated region
      $region29: #{cnn_batchnorm_forward.3} parent=27 // pred_check
        %p10179 = pneg %p81
      $region30: #{cnn_batchnorm_forward.3} parent=27 // pred_check_branch
        %10181 = sbr.rel (%p10179) target = $region32
      $region31: #{cnn_batchnorm_forward.3} parent=27 // pred_region
        _
      $region32: #{cnn_batchnorm_forward.3} parent=27 // pred_fallthru
        _
      // Predicated region
      $region33: #{cnn_batchnorm_forward.3} parent=27 // pred_check
        %p10182 = pneg %p107
      $region34: #{cnn_batchnorm_forward.3} parent=27 // pred_check_branch
        %10184 = sbr.rel (%p10182) target = $region36
      $region35: #{cnn_batchnorm_forward.3} parent=27 // pred_region
        _
      $region36: #{cnn_batchnorm_forward.3} parent=27 // pred_fallthru
        _
      // Predicated region
      $region37: #{cnn_batchnorm_forward.3} parent=27 // pred_check
        %p10185 = pneg %p133
      $region38: #{cnn_batchnorm_forward.3} parent=27 // pred_check_branch
        %10187 = sbr.rel (%p10185) target = $region40
      $region39: #{cnn_batchnorm_forward.3} parent=27 // pred_region
        _
      $region40: #{cnn_batchnorm_forward.3} parent=27 // pred_fallthru
        _
    $region28: #{cnn_batchnorm_forward.3} parent=5 // pred_fallthru
      _
    %p10188 = scmp.le.s32.totalorder 2, %s11
    // Predicated region
    $region41: #{cnn_batchnorm_forward.3} parent=5 // pred_check
      %p10189 = pneg %p10188
    $region42: #{cnn_batchnorm_forward.3} parent=5 // pred_check_branch
      %10191 = sbr.rel (%p10189) target = $region44
    $region43: #{cnn_batchnorm_forward.3} parent=5 // pred_region
      %s10192 = ssub.s32 %s11, 2
      // Predicated region
      $region45: #{cnn_batchnorm_forward.3} parent=43 // pred_check
        %p10193 = pneg %p87
      $region46: #{cnn_batchnorm_forward.3} parent=43 // pred_check_branch
        %10195 = sbr.rel (%p10193) target = $region48
      $region47: #{cnn_batchnorm_forward.3} parent=43 // pred_region
        %p10196 = scmp.lt.s32.totalorder %s17, 1
        %s10197 = scalar_select %p10196, %s17, 1
        %s10198 = smul.addr %s10197, 4
        %s10199 = smul.addr %s10198, 8
        %s10200 = scalar_lea.vmem %s2, %s10199
      $region48: #{cnn_batchnorm_forward.3} parent=43 // pred_fallthru
        _
      // Predicated region
      $region49: #{cnn_batchnorm_forward.3} parent=43 // pred_check
        %p10201 = pneg %p113
      $region50: #{cnn_batchnorm_forward.3} parent=43 // pred_check_branch
        %10203 = sbr.rel (%p10201) target = $region52
      $region51: #{cnn_batchnorm_forward.3} parent=43 // pred_region
        %p10204 = scmp.lt.s32.totalorder %s17, 1
        %s10205 = scalar_select %p10204, %s17, 1
        %s10206 = smul.addr %s10205, 4
        %s10207 = scalar_lea.vmem %s3, %s10206
      $region52: #{cnn_batchnorm_forward.3} parent=43 // pred_fallthru
        _
      // Predicated region
      $region53: #{cnn_batchnorm_forward.3} parent=43 // pred_check
        %p10208 = pneg %p139
      $region54: #{cnn_batchnorm_forward.3} parent=43 // pred_check_branch
        %10210 = sbr.rel (%p10208) target = $region56
      $region55: #{cnn_batchnorm_forward.3} parent=43 // pred_region
        %p10211 = scmp.lt.s32.totalorder %s17, 1
        %s10212 = scalar_select %p10211, %s17, 1
        %s10213 = smul.addr %s10212, 4
        %s10214 = scalar_lea.vmem %s4, %s10213
      $region56: #{cnn_batchnorm_forward.3} parent=43 // pred_fallthru
        _
    $region44: #{cnn_batchnorm_forward.3} parent=5 // pred_fallthru
      _
  $region6: #{cnn_batchnorm_forward.3} parent=0 // loop_footer
    %s15 = sadd.s32 1, %s11
  $region7: #{cnn_batchnorm_forward.3} parent=0 // loop_footer_branch
    %10 = sbr.rel target = $region3
  $region8: #{cnn_batchnorm_forward.3} parent=0 // loop_exit
    _

</llo_original>
